<compile_context>
chip_gen: v5e
topology: v5e:2x2
jax: 0.10.0
libtpu: 0.0.40
codegen_flags: <defaults>
</compile_context>

<pallas_src>
import jax
import jax.numpy as jnp
from jax.experimental import pallas as pl
from jax.experimental.pallas import tpu as pltpu


# ----------------------------------------------------------------------------
# Kernels
# ----------------------------------------------------------------------------
def mlp_fused_kernel(x_ref, w1_ref, b1_ref, w2_ref, b2_ref, o_ref):
    # x arrives f32; cast to bf16 on the VPU (hides under MXU cycles).
    x = x_ref[...].astype(jnp.bfloat16)
    h = jnp.dot(x, w1_ref[...], preferred_element_type=jnp.float32)
    h = jnp.maximum(h + b1_ref[...], 0.0)              # bias + ReLU in f32
    h = h.astype(jnp.bfloat16)                          # bf16 for 2nd MXU pass
    y = jnp.dot(h, w2_ref[...], preferred_element_type=jnp.float32)
    o_ref[...] = (y + b2_ref[...]).astype(o_ref.dtype)


def mlp_ktiled_kernel(x_ref, w1_ref, b1_ref, w2_ref, b2_ref, o_ref, acc_ref):
    # Hidden-dim tiled variant (large in_c): w1 columns / w2 rows are tiled on
    # the last ("arbitrary") grid axis; partial 2nd-matmul results accumulate
    # into an f32 VMEM scratch, finalized with b2 on the last step.
    hk = pl.program_id(1)

    @pl.when(hk == 0)
    def _():
        acc_ref[...] = jnp.zeros_like(acc_ref)

    x = x_ref[...].astype(jnp.bfloat16)
    h = jnp.dot(x, w1_ref[...], preferred_element_type=jnp.float32)
    h = jnp.maximum(h + b1_ref[...], 0.0).astype(jnp.bfloat16)
    acc_ref[...] += jnp.dot(h, w2_ref[...], preferred_element_type=jnp.float32)

    @pl.when(hk == pl.num_programs(1) - 1)
    def _():
        o_ref[...] = (acc_ref[...] + b2_ref[...]).astype(o_ref.dtype)


# ----------------------------------------------------------------------------
# Wrapper
# ----------------------------------------------------------------------------
def _pick_tm(B):
    for cand in (512, 256, 128):
        if B >= cand:
            return cand
    return B   # tiny batch: single full-extent block (exempt from (8,128) rule)


def _pick_th(in_c, out_c):
    # Keep w1/w2 fully VMEM-resident while their bf16 footprint is modest;
    # beyond that, tile the hidden dim so VMEM stays bounded (v7x: 64 MiB/TC).
    w_bytes = (in_c * in_c + in_c * out_c) * 2
    if w_bytes <= (16 << 20):
        return in_c
    for cand in (2048, 1024, 512, 256, 128):
        if in_c % cand == 0:
            return cand
    # TODO(synk): for huge in_c that is not a multiple of 128, pad the hidden
    # dim once at init time instead of falling back to the resident path.
    return in_c


def _vmem_limit_bytes(tm, in_c, out_c, th):
    x_tiles = 2 * tm * in_c * 4                 # f32 x tile, double-buffered
    out_tiles = 2 * tm * out_c * 4
    biases = 2 * (in_c + out_c) * 4
    if th >= in_c:
        weights = 2 * (in_c * in_c + in_c * out_c) * 2   # room for 2 bufs (fallback)
        hidden = tm * in_c * (4 + 2)                     # f32 + bf16 h temporaries
        acc = 0
    else:
        weights = 2 * (in_c * th + th * out_c) * 2
        hidden = tm * th * (4 + 2)
        acc = tm * out_c * 4
    total = x_tiles + out_tiles + weights + biases + hidden + acc
    return min(int(total * 1.5) + (2 << 20), 64 << 20)


def mlp_forward(x_flat, w1_bf, b1, w2_bf, b2, *, tm=None, th=None):
    """x_flat: (B, in_c) f32; w1_bf: (in_c, in_c) bf16; b1: (1, in_c) f32;
    w2_bf: (in_c, out_c) bf16; b2: (1, out_c) f32 -> (B, out_c) f32."""
    B, in_c = x_flat.shape
    out_c = w2_bf.shape[1]

    x_flat = x_flat.astype(jnp.float32)          # kernel casts to bf16 itself
    w1_bf = w1_bf.astype(jnp.bfloat16)           # no-op when caller caches bf16
    w2_bf = w2_bf.astype(jnp.bfloat16)
    b1 = b1.reshape(1, in_c).astype(jnp.float32)
    b2 = b2.reshape(1, out_c).astype(jnp.float32)

    if tm is None:
        tm = _pick_tm(B)
    grid_m = pl.cdiv(B, tm)                      # no jnp.pad: edge blocks clipped

    if th is None:
        th = _pick_th(in_c, out_c)
    if in_c % th != 0:
        # Hidden tiles must divide in_c exactly: OOB hidden columns would
        # pollute real outputs (unlike batch OOB rows, which are discarded).
        th = in_c

    vmem_limit = _vmem_limit_bytes(tm, in_c, out_c, th)
    cost = pl.CostEstimate(
        flops=2 * grid_m * tm * in_c * (in_c + out_c),
        transcendentals=0,
        bytes_accessed=(B * in_c * 4 + (in_c * in_c + in_c * out_c) * 2
                        + (in_c + out_c) * 4 + B * out_c * 4))
    out_shape = jax.ShapeDtypeStruct((B, out_c), jnp.float32)

    def run(single_buffer):
        res = dict(pipeline_mode=pl.Buffered(1)) if single_buffer else {}
        if th >= in_c:
            # Fused path: weights/biases VMEM-resident (constant index_map),
            # single-buffered so they are not double-allocated.
            in_specs = [
                pl.BlockSpec((tm, in_c), lambda i: (i, 0)),
                pl.BlockSpec((in_c, in_c), lambda i: (0, 0), **res),
                pl.BlockSpec((1, in_c), lambda i: (0, 0), **res),
                pl.BlockSpec((in_c, out_c), lambda i: (0, 0), **res),
                pl.BlockSpec((1, out_c), lambda i: (0, 0), **res),
            ]
            return pl.pallas_call(
                mlp_fused_kernel,
                out_shape=out_shape,
                grid=(grid_m,),
                in_specs=in_specs,
                out_specs=pl.BlockSpec((tm, out_c), lambda i: (i, 0)),
                compiler_params=pltpu.CompilerParams(
                    dimension_semantics=("parallel",),
                    vmem_limit_bytes=vmem_limit),
                cost_estimate=cost,
            )(x_flat, w1_bf, b1, w2_bf, b2)
        else:
            grid_h = in_c // th
            in_specs = [
                pl.BlockSpec((tm, in_c), lambda i, k: (i, 0)),
                pl.BlockSpec((in_c, th), lambda i, k: (0, k)),
                pl.BlockSpec((1, th), lambda i, k: (0, k)),
                pl.BlockSpec((th, out_c), lambda i, k: (k, 0)),
                pl.BlockSpec((1, out_c), lambda i, k: (0, 0), **res),
            ]
            return pl.pallas_call(
                mlp_ktiled_kernel,
                out_shape=out_shape,
                grid=(grid_m, grid_h),
                in_specs=in_specs,
                out_specs=pl.BlockSpec((tm, out_c), lambda i, k: (i, 0)),
                scratch_shapes=[pltpu.VMEM((tm, out_c), jnp.float32)],
                compiler_params=pltpu.CompilerParams(
                    dimension_semantics=("parallel", "arbitrary"),
                    vmem_limit_bytes=vmem_limit),
                cost_estimate=cost,
            )(x_flat, w1_bf, b1, w2_bf, b2)

    try:
        return run(single_buffer=True)
    except Exception:
        # Fallback for jax versions without BlockSpec(pipeline_mode=...):
        # default double-buffered specs, identical semantics.
        return run(single_buffer=False)


class MLPPallas:
    """JAX/Pallas equivalent of the PyTorch MLP module (forward only)."""

    def __init__(self, in_c, key, out_c=128):
        k1, k2, k3, k4 = jax.random.split(key, 4)
        s = 1.0 / jnp.sqrt(in_c)
        self.w1 = jax.random.uniform(k1, (in_c, in_c), jnp.float32, -s, s)
        self.b1 = jax.random.uniform(k2, (1, in_c), jnp.float32, -s, s)
        self.w2 = jax.random.uniform(k3, (in_c, out_c), jnp.float32, -s, s)
        self.b2 = jax.random.uniform(k4, (1, out_c), jnp.float32, -s, s)
        # Cache the bf16 matmul operands once (not per forward call).
        self.w1_bf = self.w1.astype(jnp.bfloat16)
        self.w2_bf = self.w2.astype(jnp.bfloat16)

    def __call__(self, x):
        x_flat = x.reshape(x.shape[0], -1)      # x.view(x.size(0), -1)
        return mlp_forward(x_flat, self.w1_bf, self.b1, self.w2_bf, self.b2)


if __name__ == "__main__":
    key = jax.random.PRNGKey(0)
    k_in, k_in2, k_param = jax.random.split(key, 3)

    # Small NCHW input: in_c = 4*16*16 = 1024.
    B, C, H, W = 2, 4, 16, 16
    in_c = C * H * W
    x = jax.random.normal(k_in, (B, C, H, W), jnp.float32)

    model = MLPPallas(in_c, k_param)
    out = jax.block_until_ready(model(x))
    assert out.shape == (B, 128)

    # Reference 1: same bf16-operand / f32-accumulate recipe in plain JAX.
    x_flat = x.reshape(B, -1)
    h_ref = jnp.maximum(
        jnp.dot(x_flat.astype(jnp.bfloat16), model.w1_bf,
                preferred_element_type=jnp.float32) + model.b1, 0.0
    ).astype(jnp.bfloat16)
    ref_bf = jnp.dot(h_ref, model.w2_bf,
                     preferred_element_type=jnp.float32) + model.b2
    assert jnp.allclose(out, ref_bf, atol=1e-2, rtol=1e-2)

    # Reference 2: full-f32 math (looser tolerance: bf16 matmul operands).
    ref_f32 = (jnp.maximum(x_flat @ model.w1 + model.b1, 0.0)
               @ model.w2 + model.b2)
    assert jnp.allclose(out, ref_f32, atol=5e-2, rtol=5e-2)

    # Non-divisible batch: B=130 with tm=128 exercises the clipped edge block
    # (no jnp.pad pass over x).
    B2 = 130
    x2 = jax.random.normal(k_in2, (B2, C, H, W), jnp.float32)
    out2 = jax.block_until_ready(model(x2))
    assert out2.shape == (B2, 128)
    x2_flat = x2.reshape(B2, -1)
    ref2 = (jnp.maximum(x2_flat @ model.w1 + model.b1, 0.0)
            @ model.w2 + model.b2)
    assert jnp.allclose(out2, ref2, atol=5e-2, rtol=5e-2)

    # Hidden-dim-tiled path (auto-selected for large in_c) forced at small
    # shape to verify it compiles and matches the fused path.
    out3 = jax.block_until_ready(
        mlp_forward(x2_flat, model.w1_bf, model.b1, model.w2_bf, model.b2,
                    th=256))
    assert out3.shape == (B2, 128)
    assert jnp.allclose(out3, out2, atol=1e-2, rtol=1e-2)

    print("KERNEL_OK")
</pallas_src>

<mosaic_0001>
module attributes {stable_mosaic.version = 11 : i64} {
  func.func @mlp_fused_kernel(%arg0: i32, %arg1: memref<2x1024xf32, #tpu.memory_space<vmem>>, %arg2: memref<1024x1024xbf16, #tpu.memory_space<vmem>>, %arg3: memref<1x1024xf32, #tpu.memory_space<vmem>>, %arg4: memref<1024x128xbf16, #tpu.memory_space<vmem>>, %arg5: memref<1x128xf32, #tpu.memory_space<vmem>>, %arg6: memref<2x128xf32, #tpu.memory_space<vmem>>) attributes {dimension_semantics = [#tpu.dimension_semantics<parallel>], iteration_bounds = array<i64: 1>, scalar_prefetch = 0 : i64, scratch_operands = 0 : i64, tpu.core_type = #tpu.core_type<tc>, window_params = [{transform_indices = @transform_0, window_bounds = array<i64: 2, 1024>}, {pipeline_mode = #tpu.pipeline_mode<synchronous>, transform_indices = @transform_1, window_bounds = array<i64: 1024, 1024>}, {pipeline_mode = #tpu.pipeline_mode<synchronous>, transform_indices = @transform_2, window_bounds = array<i64: 1, 1024>}, {pipeline_mode = #tpu.pipeline_mode<synchronous>, transform_indices = @transform_3, window_bounds = array<i64: 1024, 128>}, {pipeline_mode = #tpu.pipeline_mode<synchronous>, transform_indices = @transform_4, window_bounds = array<i64: 1, 128>}, {transform_indices = @transform_5, window_bounds = array<i64: 2, 128>}]} {
    %c0 = arith.constant 0 : index
    %c0_0 = arith.constant 0 : index
    %0 = vector.load %arg1[%c0, %c0_0] : memref<2x1024xf32, #tpu.memory_space<vmem>>, vector<2x1024xf32>
    %1 = arith.truncf %0 : vector<2x1024xf32> to vector<2x1024xbf16>
    %c0_1 = arith.constant 0 : index
    %c0_2 = arith.constant 0 : index
    %2 = vector.load %arg2[%c0_1, %c0_2] : memref<1024x1024xbf16, #tpu.memory_space<vmem>>, vector<1024x1024xbf16>
    %cst = arith.constant dense<0.000000e+00> : vector<2x1024xf32>
    %3 = tpu.matmul %1, %2, %cst {dimension_numbers = #tpu.dot_dimension_numbers<[1], [0], [0], [1], [0, 0, 1, 1], [], []>} : vector<2x1024xbf16>, vector<1024x1024xbf16>, vector<2x1024xf32> -> vector<2x1024xf32>
    %c0_3 = arith.constant 0 : index
    %c0_4 = arith.constant 0 : index
    %4 = vector.load %arg3[%c0_3, %c0_4] : memref<1x1024xf32, #tpu.memory_space<vmem>>, vector<1x1024xf32>
    %5 = vector.broadcast %4 : vector<1x1024xf32> to vector<2x1024xf32>
    %6 = arith.addf %3, %5 : vector<2x1024xf32>
    %cst_5 = arith.constant 0.000000e+00 : f32
    %7 = vector.broadcast %cst_5 : f32 to vector<2x1024xf32>
    %8 = arith.maximumf %6, %7 : vector<2x1024xf32>
    %9 = arith.truncf %8 : vector<2x1024xf32> to vector<2x1024xbf16>
    %c0_6 = arith.constant 0 : index
    %c0_7 = arith.constant 0 : index
    %10 = vector.load %arg4[%c0_6, %c0_7] : memref<1024x128xbf16, #tpu.memory_space<vmem>>, vector<1024x128xbf16>
    %cst_8 = arith.constant dense<0.000000e+00> : vector<2x128xf32>
    %11 = tpu.matmul %9, %10, %cst_8 {dimension_numbers = #tpu.dot_dimension_numbers<[1], [0], [0], [1], [0, 0, 1, 1], [], []>} : vector<2x1024xbf16>, vector<1024x128xbf16>, vector<2x128xf32> -> vector<2x128xf32>
    %c0_9 = arith.constant 0 : index
    %c0_10 = arith.constant 0 : index
    %12 = vector.load %arg5[%c0_9, %c0_10] : memref<1x128xf32, #tpu.memory_space<vmem>>, vector<1x128xf32>
    %13 = vector.broadcast %12 : vector<1x128xf32> to vector<2x128xf32>
    %14 = arith.addf %11, %13 : vector<2x128xf32>
    %c0_11 = arith.constant 0 : index
    %c0_12 = arith.constant 0 : index
    %15 = vector.load %arg6[%c0_11, %c0_12] : memref<2x128xf32, #tpu.memory_space<vmem>>, vector<2x128xf32>
    tpu.vector_store %arg6[%c0_11, %c0_12], %14 {strides = array<i32>} : memref<2x128xf32, #tpu.memory_space<vmem>>, vector<2x128xf32>,
    return
  }
  func.func @transform_0(%arg0: i32) -> (i32, i32) {
    %c0_i32 = arith.constant 0 : i32
    %c0_i32_0 = arith.constant 0 : i32
    return %arg0, %c0_i32 : i32, i32
  }
  func.func @transform_1(%arg0: i32) -> (i32, i32) {
    %c0_i32 = arith.constant 0 : i32
    %c0_i32_0 = arith.constant 0 : i32
    %c0_i32_1 = arith.constant 0 : i32
    return %c0_i32, %c0_i32_0 : i32, i32
  }
  func.func @transform_2(%arg0: i32) -> (i32, i32) {
    %c0_i32 = arith.constant 0 : i32
    %c0_i32_0 = arith.constant 0 : i32
    %c0_i32_1 = arith.constant 0 : i32
    return %c0_i32, %c0_i32_0 : i32, i32
  }
  func.func @transform_3(%arg0: i32) -> (i32, i32) {
    %c0_i32 = arith.constant 0 : i32
    %c0_i32_0 = arith.constant 0 : i32
    %c0_i32_1 = arith.constant 0 : i32
    return %c0_i32, %c0_i32_0 : i32, i32
  }
  func.func @transform_4(%arg0: i32) -> (i32, i32) {
    %c0_i32 = arith.constant 0 : i32
    %c0_i32_0 = arith.constant 0 : i32
    %c0_i32_1 = arith.constant 0 : i32
    return %c0_i32, %c0_i32_0 : i32, i32
  }
  func.func @transform_5(%arg0: i32) -> (i32, i32) {
    %c0_i32 = arith.constant 0 : i32
    %c0_i32_0 = arith.constant 0 : i32
    return %arg0, %c0_i32 : i32, i32
  }
}

module attributes {stable_mosaic.version = 11 : i64} {
  func.func @mlp_fused_kernel(%arg0: i32, %arg1: memref<2x1024xf32, #tpu.memory_space<vmem>>, %arg2: memref<1024x1024xbf16, #tpu.memory_space<vmem>>, %arg3: memref<1x1024xf32, #tpu.memory_space<vmem>>, %arg4: memref<1024x128xbf16, #tpu.memory_space<vmem>>, %arg5: memref<1x128xf32, #tpu.memory_space<vmem>>, %arg6: memref<2x128xf32, #tpu.memory_space<vmem>>) attributes {dimension_semantics = [#tpu.dimension_semantics<parallel>], iteration_bounds = array<i64: 1>, scalar_prefetch = 0 : i64, scratch_operands = 0 : i64, tpu.core_type = #tpu.core_type<tc>, window_params = [{transform_indices = @transform_0, window_bounds = array<i64: 2, 1024>}, {pipeline_mode = #tpu.pipeline_mode<synchronous>, transform_indices = @transform_1, window_bounds = array<i64: 1024, 1024>}, {pipeline_mode = #tpu.pipeline_mode<synchronous>, transform_indices = @transform_2, window_bounds = array<i64: 1, 1024>}, {pipeline_mode = #tpu.pipeline_mode<synchronous>, transform_indices = @transform_3, window_bounds = array<i64: 1024, 128>}, {pipeline_mode = #tpu.pipeline_mode<synchronous>, transform_indices = @transform_4, window_bounds = array<i64: 1, 128>}, {transform_indices = @transform_5, window_bounds = array<i64: 2, 128>}]} {
    %c0 = arith.constant 0 : index
    %c0_0 = arith.constant 0 : index
    %0 = vector.load %arg1[%c0, %c0_0] : memref<2x1024xf32, #tpu.memory_space<vmem>>, vector<2x1024xf32>
    %1 = arith.truncf %0 : vector<2x1024xf32> to vector<2x1024xbf16>
    %c0_1 = arith.constant 0 : index
    %c0_2 = arith.constant 0 : index
    %2 = vector.load %arg2[%c0_1, %c0_2] : memref<1024x1024xbf16, #tpu.memory_space<vmem>>, vector<1024x1024xbf16>
    %cst = arith.constant dense<0.000000e+00> : vector<2x1024xf32>
    %3 = tpu.matmul %1, %2, %cst {dimension_numbers = #tpu.dot_dimension_numbers<[1], [0], [0], [1], [0, 0, 1, 1], [], []>} : vector<2x1024xbf16>, vector<1024x1024xbf16>, vector<2x1024xf32> -> vector<2x1024xf32>
    %c0_3 = arith.constant 0 : index
    %c0_4 = arith.constant 0 : index
    %4 = vector.load %arg3[%c0_3, %c0_4] : memref<1x1024xf32, #tpu.memory_space<vmem>>, vector<1x1024xf32>
    %5 = vector.broadcast %4 : vector<1x1024xf32> to vector<2x1024xf32>
    %6 = arith.addf %3, %5 : vector<2x1024xf32>
    %cst_5 = arith.constant 0.000000e+00 : f32
    %7 = vector.broadcast %cst_5 : f32 to vector<2x1024xf32>
    %8 = arith.maximumf %6, %7 : vector<2x1024xf32>
    %9 = arith.truncf %8 : vector<2x1024xf32> to vector<2x1024xbf16>
    %c0_6 = arith.constant 0 : index
    %c0_7 = arith.constant 0 : index
    %10 = vector.load %arg4[%c0_6, %c0_7] : memref<1024x128xbf16, #tpu.memory_space<vmem>>, vector<1024x128xbf16>
    %cst_8 = arith.constant dense<0.000000e+00> : vector<2x128xf32>
    %11 = tpu.matmul %9, %10, %cst_8 {dimension_numbers = #tpu.dot_dimension_numbers<[1], [0], [0], [1], [0, 0, 1, 1], [], []>} : vector<2x1024xbf16>, vector<1024x128xbf16>, vector<2x128xf32> -> vector<2x128xf32>
    %c0_9 = arith.constant 0 : index
    %c0_10 = arith.constant 0 : index
    %12 = vector.load %arg5[%c0_9, %c0_10] : memref<1x128xf32, #tpu.memory_space<vmem>>, vector<1x128xf32>
    %13 = vector.broadcast %12 : vector<1x128xf32> to vector<2x128xf32>
    %14 = arith.addf %11, %13 : vector<2x128xf32>
    %c0_11 = arith.constant 0 : index
    %c0_12 = arith.constant 0 : index
    %15 = vector.load %arg6[%c0_11, %c0_12] : memref<2x128xf32, #tpu.memory_space<vmem>>, vector<2x128xf32>
    tpu.vector_store %arg6[%c0_11, %c0_12], %14 {strides = array<i32>} : memref<2x128xf32, #tpu.memory_space<vmem>>, vector<2x128xf32>,
    return
  }
  func.func @transform_0(%arg0: i32) -> (i32, i32) {
    %c0_i32 = arith.constant 0 : i32
    %c0_i32_0 = arith.constant 0 : i32
    return %arg0, %c0_i32 : i32, i32
  }
  func.func @transform_1(%arg0: i32) -> (i32, i32) {
    %c0_i32 = arith.constant 0 : i32
    %c0_i32_0 = arith.constant 0 : i32
    %c0_i32_1 = arith.constant 0 : i32
    return %c0_i32, %c0_i32_0 : i32, i32
  }
  func.func @transform_2(%arg0: i32) -> (i32, i32) {
    %c0_i32 = arith.constant 0 : i32
    %c0_i32_0 = arith.constant 0 : i32
    %c0_i32_1 = arith.constant 0 : i32
    return %c0_i32, %c0_i32_0 : i32, i32
  }
  func.func @transform_3(%arg0: i32) -> (i32, i32) {
    %c0_i32 = arith.constant 0 : i32
    %c0_i32_0 = arith.constant 0 : i32
    %c0_i32_1 = arith.constant 0 : i32
    return %c0_i32, %c0_i32_0 : i32, i32
  }
  func.func @transform_4(%arg0: i32) -> (i32, i32) {
    %c0_i32 = arith.constant 0 : i32
    %c0_i32_0 = arith.constant 0 : i32
    %c0_i32_1 = arith.constant 0 : i32
    return %c0_i32, %c0_i32_0 : i32, i32
  }
  func.func @transform_5(%arg0: i32) -> (i32, i32) {
    %c0_i32 = arith.constant 0 : i32
    %c0_i32_0 = arith.constant 0 : i32
    return %arg0, %c0_i32 : i32, i32
  }
}

</mosaic_0001>

<llo_original>
// kernel: tpu_custom_call.1
$region0: #{tpu_custom_call.1}
  #allocation0 [shape = 'u32[]', space=smem, size = 0x4, offset = 0x4, fixed_abs, tag = 'smem constant byte address 0x4 - core index']
  #allocation1 [shape = 'u32[72,128]{1,0:T(1,128)}', space=vmem, size = 0x9000, scoped, tag = 'internal scratch']
  %s0 = inlined_call_operand.hbm [shape: f32[2,1024], index: 0, kind: input, shape index: {}]
  %s1 = inlined_call_operand.hbm [shape: bf16[1024,1024], index: 1, kind: input, shape index: {}]
  %s2 = inlined_call_operand.hbm [shape: f32[1,1024], index: 2, kind: input, shape index: {}]
  %s3 = inlined_call_operand.hbm [shape: bf16[1024,128], index: 3, kind: input, shape index: {}]
  %s4 = inlined_call_operand.hbm [shape: f32[1,128], index: 4, kind: input, shape index: {}]
  %s5 = inlined_call_operand.hbm [shape: f32[2,128], index: 5, kind: output, shape index: {}]
  %s6 = sld [smem:[#allocation0]]
  $region50: #{tpu_custom_call.1} parent=0
    _
  %s8 = ssub.s32 1, %s6
  %s9 = scalar_select 0, %s8, %s6
  $region1: #{tpu_custom_call.1} parent=0
    #allocation2 [shape = 'u8[8192]{0}', space=vmem, size = 0x2000, scoped, tag = 'input window, operand 0, single buffered']
    #allocation3 [shape = 's32[1]{0}', space=sflag, size = 0x4, scoped, tag = 'scoped memory for tpu_custom_call.1']
    #allocation4 [shape = 's32[1]{0}', space=sflag, size = 0x4, scoped, tag = 'scoped memory for tpu_custom_call.1']
    #allocation5 [shape = 'u8[2097152]{0}', space=vmem, size = 0x200000, scoped, tag = 'input window, operand 1, single buffered']
    #allocation6 [shape = 's32[1]{0}', space=sflag, size = 0x4, scoped, tag = 'scoped memory for tpu_custom_call.1']
    #allocation7 [shape = 'u8[4096]{0}', space=vmem, size = 0x1000, scoped, tag = 'input window, operand 2, single buffered']
    #allocation8 [shape = 'u8[262144]{0}', space=vmem, size = 0x40000, scoped, tag = 'input window, operand 3, single buffered']
    #allocation9 [shape = 's32[1]{0}', space=sflag, size = 0x4, scoped, tag = 'scoped memory for tpu_custom_call.1']
    #allocation10 [shape = 'u8[512]{0}', space=vmem, size = 0x400, scoped, tag = 'input window, operand 4, single buffered']
    #allocation11 [shape = 'u8[1024]{0}', space=vmem, size = 0x400, scoped, tag = 'output window, operand 0, single buffered']
    %10 = vsyncpa [#allocation3], 0
    %11 = vsyncpa [#allocation6], 0
    %12 = vsyncpa [#allocation9], 0
    %13 = vsyncpa [#allocation4], 0
    // Predicated region
    $region2: #{tpu_custom_call.1} parent=1 // pred_check
      _
    $region3: #{tpu_custom_call.1} parent=1 // pred_check_branch
      %15 = sbr.rel (0) target = $region5
    $region4: #{tpu_custom_call.1} parent=1 // pred_region
      %17 = vsyncadd [#allocation3], 0
      %s19 = sshll.u32 %s0, 4
      %s20 = int_to_ptr.hbm [resolvable:$true] %s19
      %s21 = sshll.u32 [#allocation2], 4
      %s22 = int_to_ptr.vmem [resolvable:$true] %s21
      %24 = dma.hbm_to_vmem [thread:$0]  %s20, 256, %s22, [#allocation3]
    $region5: #{tpu_custom_call.1} parent=1 // pred_fallthru
      _
    // Predicated region
    $region6: #{tpu_custom_call.1} parent=1 // pred_check
      _
    $region7: #{tpu_custom_call.1} parent=1 // pred_check_branch
      %26 = sbr.rel (0) target = $region9
    $region8: #{tpu_custom_call.1} parent=1 // pred_region
      %28 = vsyncadd [#allocation6], 0
      %s29 = sshll.u32 %s1, 4
      %s30 = int_to_ptr.hbm [resolvable:$true] %s29
      %s31 = sshll.u32 [#allocation5], 4
      %s32 = int_to_ptr.vmem [resolvable:$true] %s31
      %37 = dma.hbm_to_vmem [thread:$0]  %s30, 65536, %s32, [#allocation6], 512, 512, 32
    $region9: #{tpu_custom_call.1} parent=1 // pred_fallthru
      _
    // Predicated region
    $region10: #{tpu_custom_call.1} parent=1 // pred_check
      _
    $region11: #{tpu_custom_call.1} parent=1 // pred_check_branch
      %39 = sbr.rel (0) target = $region13
    $region12: #{tpu_custom_call.1} parent=1 // pred_region
      %41 = vsyncadd [#allocation6], 0
      %s43 = sshll.u32 %s2, 4
      %s44 = int_to_ptr.hbm [resolvable:$true] %s43
      %s45 = sshll.u32 [#allocation7], 4
      %s46 = int_to_ptr.vmem [resolvable:$true] %s45
      %48 = dma.hbm_to_vmem [thread:$0]  %s44, 128, %s46, [#allocation6]
    $region13: #{tpu_custom_call.1} parent=1 // pred_fallthru
      _
    // Predicated region
    $region14: #{tpu_custom_call.1} parent=1 // pred_check
      _
    $region15: #{tpu_custom_call.1} parent=1 // pred_check_branch
      %50 = sbr.rel (0) target = $region17
    $region16: #{tpu_custom_call.1} parent=1 // pred_region
      %52 = vsyncadd [#allocation9], 0
      %s53 = sshll.u32 %s3, 4
      %s54 = int_to_ptr.hbm [resolvable:$true] %s53
      %s55 = sshll.u32 [#allocation8], 4
      %s56 = int_to_ptr.vmem [resolvable:$true] %s55
      %61 = dma.hbm_to_vmem [thread:$0]  %s54, 8192, %s56, [#allocation9], 64, 64, 4
    $region17: #{tpu_custom_call.1} parent=1 // pred_fallthru
      _
    // Predicated region
    $region18: #{tpu_custom_call.1} parent=1 // pred_check
      _
    $region19: #{tpu_custom_call.1} parent=1 // pred_check_branch
      %63 = sbr.rel (0) target = $region21
    $region20: #{tpu_custom_call.1} parent=1 // pred_region
      %65 = vsyncadd [#allocation9], 0
      %s67 = sshll.u32 %s4, 4
      %s68 = int_to_ptr.hbm [resolvable:$true] %s67
      %s69 = sshll.u32 [#allocation10], 4
      %s70 = int_to_ptr.vmem [resolvable:$true] %s69
      %72 = dma.hbm_to_vmem [thread:$0]  %s68, 16, %s70, [#allocation9]
    $region21: #{tpu_custom_call.1} parent=1 // pred_fallthru
      _
    // Predicated region
    $region22: #{tpu_custom_call.1} parent=1 // pred_check
      _
    $region23: #{tpu_custom_call.1} parent=1 // pred_check_branch
      %74 = sbr.rel (0) target = $region25
    $region24: #{tpu_custom_call.1} parent=1 // pred_region
      %76 = dma.done [#allocation3], 256
    $region25: #{tpu_custom_call.1} parent=1 // pred_fallthru
      _
    // Predicated region
    $region26: #{tpu_custom_call.1} parent=1 // pred_check
      _
    $region27: #{tpu_custom_call.1} parent=1 // pred_check_branch
      %78 = sbr.rel (0) target = $region29
    $region28: #{tpu_custom_call.1} parent=1 // pred_region
      %80 = dma.done [#allocation6], 65536
    $region29: #{tpu_custom_call.1} parent=1 // pred_fallthru
      _
    // Predicated region
    $region30: #{tpu_custom_call.1} parent=1 // pred_check
      _
    $region31: #{tpu_custom_call.1} parent=1 // pred_check_branch
      %82 = sbr.rel (0) target = $region33
    $region32: #{tpu_custom_call.1} parent=1 // pred_region
      %84 = dma.done [#allocation6], 128
    $region33: #{tpu_custom_call.1} parent=1 // pred_fallthru
      _
    // Predicated region
    $region34: #{tpu_custom_call.1} parent=1 // pred_check
      _
    $region35: #{tpu_custom_call.1} parent=1 // pred_check_branch
      %86 = sbr.rel (0) target = $region37
    $region36: #{tpu_custom_call.1} parent=1 // pred_region
      %88 = dma.done [#allocation9], 8192
    $region37: #{tpu_custom_call.1} parent=1 // pred_fallthru
      _
    // Predicated region
    $region38: #{tpu_custom_call.1} parent=1 // pred_check
      _
    $region39: #{tpu_custom_call.1} parent=1 // pred_check_branch
      %90 = sbr.rel (0) target = $region41
    $region40: #{tpu_custom_call.1} parent=1 // pred_region
      %92 = dma.done [#allocation9], 16
    $region41: #{tpu_custom_call.1} parent=1 // pred_fallthru
      _
    %v93 = vld [vmem:[#allocation2] sm:$0xff]
    %v94 = vld [vmem:[#allocation2 + $0x8] sm:$0xff]
    %97 = vst [vmem:[#allocation1] ss:$4 sm:$0xff] %v93
    %s98 = scalar_lea.vmem [#allocation1], 32
    %99 = vst [vmem:[%s98] ss:$4 sm:$0xff] %v94
    %v100 = vld.sshfl [vmem:[#allocation1] sm:$0xff pattern:$0x73625140]
    %v101 = vld.sshfl [vmem:[#allocation1 + $0x8] sm:$0xff pattern:$0x73625140]
    %v102 = vld.sshfl [vmem:[#allocation1 + $0x10] sm:$0xff pattern:$0x73625140]
    %v103 = vld.sshfl [vmem:[#allocation1 + $0x18] sm:$0xff pattern:$0x73625140]
    %v104 = vld.sshfl [vmem:[#allocation1 + $0x20] sm:$0xff pattern:$0x73625140]
    %v105 = vld.sshfl [vmem:[#allocation1 + $0x28] sm:$0xff pattern:$0x73625140]
    %v106 = vld.sshfl [vmem:[#allocation1 + $0x30] sm:$0xff pattern:$0x73625140]
    %v107 = vld.sshfl [vmem:[#allocation1 + $0x38] sm:$0xff pattern:$0x73625140]
    %v116 = vpack.c.bf16 %v100, %v100
    %v117 = vpack.c.bf16 %v101, %v101
    %v118 = vpack.c.bf16 %v102, %v102
    %v119 = vpack.c.bf16 %v103, %v103
    %v120 = vpack.c.bf16 %v104, %v104
    %v121 = vpack.c.bf16 %v105, %v105
    %v122 = vpack.c.bf16 %v106, %v106
    %v123 = vpack.c.bf16 %v107, %v107
    %v124 = vld [vmem:[#allocation5] sm:$0xff]
    %v125 = vld [vmem:[#allocation5 + $0x8] sm:$0xff]
    %v126 = vld [vmem:[#allocation5 + $0x10] sm:$0xff]
    %v127 = vld [vmem:[#allocation5 + $0x18] sm:$0xff]
    %v128 = vld [vmem:[#allocation5 + $0x20] sm:$0xff]
    %v129 = vld [vmem:[#allocation5 + $0x28] sm:$0xff]
    %v130 = vld [vmem:[#allocation5 + $0x30] sm:$0xff]
    %v131 = vld [vmem:[#allocation5 + $0x38] sm:$0xff]
    %v132 = vld [vmem:[#allocation5 + $0x40] sm:$0xff]
    %v133 = vld [vmem:[#allocation5 + $0x48] sm:$0xff]
    %v134 = vld [vmem:[#allocation5 + $0x50] sm:$0xff]
    %v135 = vld [vmem:[#allocation5 + $0x58] sm:$0xff]
    %v136 = vld [vmem:[#allocation5 + $0x60] sm:$0xff]
    %v137 = vld [vmem:[#allocation5 + $0x68] sm:$0xff]
    %v138 = vld [vmem:[#allocation5 + $0x70] sm:$0xff]
    %v139 = vld [vmem:[#allocation5 + $0x78] sm:$0xff]
    %v140 = vld [vmem:[#allocation5 + $0x80] sm:$0xff]
    %v141 = vld [vmem:[#allocation5 + $0x88] sm:$0xff]
    %v142 = vld [vmem:[#allocation5 + $0x90] sm:$0xff]
    %v143 = vld [vmem:[#allocation5 + $0x98] sm:$0xff]
    %v144 = vld [vmem:[#allocation5 + $0xa0] sm:$0xff]
    %v145 = vld [vmem:[#allocation5 + $0xa8] sm:$0xff]
    %v146 = vld [vmem:[#allocation5 + $0xb0] sm:$0xff]
    %v147 = vld [vmem:[#allocation5 + $0xb8] sm:$0xff]
    %v148 = vld [vmem:[#allocation5 + $0xc0] sm:$0xff]
    %v149 = vld [vmem:[#allocation5 + $0xc8] sm:$0xff]
    %v150 = vld [vmem:[#allocation5 + $0xd0] sm:$0xff]
    %v151 = vld [vmem:[#allocation5 + $0xd8] sm:$0xff]
    %v152 = vld [vmem:[#allocation5 + $0xe0] sm:$0xff]
    %v153 = vld [vmem:[#allocation5 + $0xe8] sm:$0xff]
    %v154 = vld [vmem:[#allocation5 + $0xf0] sm:$0xff]
    %v155 = vld [vmem:[#allocation5 + $0xf8] sm:$0xff]
    %v156 = vld [vmem:[#allocation5 + $0x100] sm:$0xff]
    %v157 = vld [vmem:[#allocation5 + $0x108] sm:$0xff]
    %v158 = vld [vmem:[#allocation5 + $0x110] sm:$0xff]
    %v159 = vld [vmem:[#allocation5 + $0x118] sm:$0xff]
    %v160 = vld [vmem:[#allocation5 + $0x120] sm:$0xff]
    %v161 = vld [vmem:[#allocation5 + $0x128] sm:$0xff]
    %v162 = vld [vmem:[#allocation5 + $0x130] sm:$0xff]
    %v163 = vld [vmem:[#allocation5 + $0x138] sm:$0xff]
    %v164 = vld [vmem:[#allocation5 + $0x140] sm:$0xff]
    %v165 = vld [vmem:[#allocation5 + $0x148] sm:$0xff]
    %v166 = vld [vmem:[#allocation5 + $0x150] sm:$0xff]
    %v167 = vld [vmem:[#allocation5 + $0x158] sm:$0xff]
    %v168 = vld [vmem:[#allocation5 + $0x160] sm:$0xff]
    %v169 = vld [vmem:[#allocation5 + $0x168] sm:$0xff]
    %v170 = vld [vmem:[#allocation5 + $0x170] sm:$0xff]
    %v171 = vld [vmem:[#allocation5 + $0x178] sm:$0xff]
    %v172 = vld [vmem:[#allocation5 + $0x180] sm:$0xff]
    %v173 = vld [vmem:[#allocation5 + $0x188] sm:$0xff]
    %v174 = vld [vmem:[#allocation5 + $0x190] sm:$0xff]
    %v175 = vld [vmem:[#allocation5 + $0x198] sm:$0xff]
    %v176 = vld [vmem:[#allocation5 + $0x1a0] sm:$0xff]
    %v177 = vld [vmem:[#allocation5 + $0x1a8] sm:$0xff]
    %v178 = vld [vmem:[#allocation5 + $0x1b0] sm:$0xff]
    %v179 = vld [vmem:[#allocation5 + $0x1b8] sm:$0xff]
    %v180 = vld [vmem:[#allocation5 + $0x1c0] sm:$0xff]
    %v181 = vld [vmem:[#allocation5 + $0x1c8] sm:$0xff]
    %v182 = vld [vmem:[#allocation5 + $0x1d0] sm:$0xff]
    %v183 = vld [vmem:[#allocation5 + $0x1d8] sm:$0xff]
    %v184 = vld [vmem:[#allocation5 + $0x1e0] sm:$0xff]
    %v185 = vld [vmem:[#allocation5 + $0x1e8] sm:$0xff]
    %v186 = vld [vmem:[#allocation5 + $0x1f0] sm:$0xff]
    %v187 = vld [vmem:[#allocation5 + $0x1f8] sm:$0xff]
    %v188 = vld [vmem:[#allocation5 + $0x200] sm:$0xff]
    %v189 = vld [vmem:[#allocation5 + $0x208] sm:$0xff]
    %v190 = vld [vmem:[#allocation5 + $0x210] sm:$0xff]
    %v191 = vld [vmem:[#allocation5 + $0x218] sm:$0xff]
    %v192 = vld [vmem:[#allocation5 + $0x220] sm:$0xff]
    %v193 = vld [vmem:[#allocation5 + $0x228] sm:$0xff]
    %v194 = vld [vmem:[#allocation5 + $0x230] sm:$0xff]
    %v195 = vld [vmem:[#allocation5 + $0x238] sm:$0xff]
    %v196 = vld [vmem:[#allocation5 + $0x240] sm:$0xff]
    %v197 = vld [vmem:[#allocation5 + $0x248] sm:$0xff]
    %v198 = vld [vmem:[#allocation5 + $0x250] sm:$0xff]
    %v199 = vld [vmem:[#allocation5 + $0x258] sm:$0xff]
    %v200 = vld [vmem:[#allocation5 + $0x260] sm:$0xff]
    %v201 = vld [vmem:[#allocation5 + $0x268] sm:$0xff]
    %v202 = vld [vmem:[#allocation5 + $0x270] sm:$0xff]
    %v203 = vld [vmem:[#allocation5 + $0x278] sm:$0xff]
    %v204 = vld [vmem:[#allocation5 + $0x280] sm:$0xff]
    %v205 = vld [vmem:[#allocation5 + $0x288] sm:$0xff]
    %v206 = vld [vmem:[#allocation5 + $0x290] sm:$0xff]
    %v207 = vld [vmem:[#allocation5 + $0x298] sm:$0xff]
    %v208 = vld [vmem:[#allocation5 + $0x2a0] sm:$0xff]
    %v209 = vld [vmem:[#allocation5 + $0x2a8] sm:$0xff]
    %v210 = vld [vmem:[#allocation5 + $0x2b0] sm:$0xff]
    %v211 = vld [vmem:[#allocation5 + $0x2b8] sm:$0xff]
    %v212 = vld [vmem:[#allocation5 + $0x2c0] sm:$0xff]
    %v213 = vld [vmem:[#allocation5 + $0x2c8] sm:$0xff]
    %v214 = vld [vmem:[#allocation5 + $0x2d0] sm:$0xff]
    %v215 = vld [vmem:[#allocation5 + $0x2d8] sm:$0xff]
    %v216 = vld [vmem:[#allocation5 + $0x2e0] sm:$0xff]
    %v217 = vld [vmem:[#allocation5 + $0x2e8] sm:$0xff]
    %v218 = vld [vmem:[#allocation5 + $0x2f0] sm:$0xff]
    %v219 = vld [vmem:[#allocation5 + $0x2f8] sm:$0xff]
    %v220 = vld [vmem:[#allocation5 + $0x300] sm:$0xff]
    %v221 = vld [vmem:[#allocation5 + $0x308] sm:$0xff]
    %v222 = vld [vmem:[#allocation5 + $0x310] sm:$0xff]
    %v223 = vld [vmem:[#allocation5 + $0x318] sm:$0xff]
    %v224 = vld [vmem:[#allocation5 + $0x320] sm:$0xff]
    %v225 = vld [vmem:[#allocation5 + $0x328] sm:$0xff]
    %v226 = vld [vmem:[#allocation5 + $0x330] sm:$0xff]
    %v227 = vld [vmem:[#allocation5 + $0x338] sm:$0xff]
    %v228 = vld [vmem:[#allocation5 + $0x340] sm:$0xff]
    %v229 = vld [vmem:[#allocation5 + $0x348] sm:$0xff]
    %v230 = vld [vmem:[#allocation5 + $0x350] sm:$0xff]
    %v231 = vld [vmem:[#allocation5 + $0x358] sm:$0xff]
    %v232 = vld [vmem:[#allocation5 + $0x360] sm:$0xff]
    %v233 = vld [vmem:[#allocation5 + $0x368] sm:$0xff]
    %v234 = vld [vmem:[#allocation5 + $0x370] sm:$0xff]
    %v235 = vld [vmem:[#allocation5 + $0x378] sm:$0xff]
    %v236 = vld [vmem:[#allocation5 + $0x380] sm:$0xff]
    %v237 = vld [vmem:[#allocation5 + $0x388] sm:$0xff]
    %v238 = vld [vmem:[#allocation5 + $0x390] sm:$0xff]
    %v239 = vld [vmem:[#allocation5 + $0x398] sm:$0xff]
    %v240 = vld [vmem:[#allocation5 + $0x3a0] sm:$0xff]
    %v241 = vld [vmem:[#allocation5 + $0x3a8] sm:$0xff]
    %v242 = vld [vmem:[#allocation5 + $0x3b0] sm:$0xff]
    %v243 = vld [vmem:[#allocation5 + $0x3b8] sm:$0xff]
    %v244 = vld [vmem:[#allocation5 + $0x3c0] sm:$0xff]
    %v245 = vld [vmem:[#allocation5 + $0x3c8] sm:$0xff]
    %v246 = vld [vmem:[#allocation5 + $0x3d0] sm:$0xff]
    %v247 = vld [vmem:[#allocation5 + $0x3d8] sm:$0xff]
    %v248 = vld [vmem:[#allocation5 + $0x3e0] sm:$0xff]
    %v249 = vld [vmem:[#allocation5 + $0x3e8] sm:$0xff]
    %v250 = vld [vmem:[#allocation5 + $0x3f0] sm:$0xff]
    %v251 = vld [vmem:[#allocation5 + $0x3f8] sm:$0xff]
    %v252 = vld [vmem:[#allocation5 + $0x400] sm:$0xff]
    %v253 = vld [vmem:[#allocation5 + $0x408] sm:$0xff]
    %v254 = vld [vmem:[#allocation5 + $0x410] sm:$0xff]
    %v255 = vld [vmem:[#allocation5 + $0x418] sm:$0xff]
    %v256 = vld [vmem:[#allocation5 + $0x420] sm:$0xff]
    %v257 = vld [vmem:[#allocation5 + $0x428] sm:$0xff]
    %v258 = vld [vmem:[#allocation5 + $0x430] sm:$0xff]
    %v259 = vld [vmem:[#allocation5 + $0x438] sm:$0xff]
    %v260 = vld [vmem:[#allocation5 + $0x440] sm:$0xff]
    %v261 = vld [vmem:[#allocation5 + $0x448] sm:$0xff]
    %v262 = vld [vmem:[#allocation5 + $0x450] sm:$0xff]
    %v263 = vld [vmem:[#allocation5 + $0x458] sm:$0xff]
    %v264 = vld [vmem:[#allocation5 + $0x460] sm:$0xff]
    %v265 = vld [vmem:[#allocation5 + $0x468] sm:$0xff]
    %v266 = vld [vmem:[#allocation5 + $0x470] sm:$0xff]
    %v267 = vld [vmem:[#allocation5 + $0x478] sm:$0xff]
    %v268 = vld [vmem:[#allocation5 + $0x480] sm:$0xff]
    %v269 = vld [vmem:[#allocation5 + $0x488] sm:$0xff]
    %v270 = vld [vmem:[#allocation5 + $0x490] sm:$0xff]
    %v271 = vld [vmem:[#allocation5 + $0x498] sm:$0xff]
    %v272 = vld [vmem:[#allocation5 + $0x4a0] sm:$0xff]
    %v273 = vld [vmem:[#allocation5 + $0x4a8] sm:$0xff]
    %v274 = vld [vmem:[#allocation5 + $0x4b0] sm:$0xff]
    %v275 = vld [vmem:[#allocation5 + $0x4b8] sm:$0xff]
    %v276 = vld [vmem:[#allocation5 + $0x4c0] sm:$0xff]
    %v277 = vld [vmem:[#allocation5 + $0x4c8] sm:$0xff]
    %v278 = vld [vmem:[#allocation5 + $0x4d0] sm:$0xff]
    %v279 = vld [vmem:[#allocation5 + $0x4d8] sm:$0xff]
    %v280 = vld [vmem:[#allocation5 + $0x4e0] sm:$0xff]
    %v281 = vld [vmem:[#allocation5 + $0x4e8] sm:$0xff]
    %v282 = vld [vmem:[#allocation5 + $0x4f0] sm:$0xff]
    %v283 = vld [vmem:[#allocation5 + $0x4f8] sm:$0xff]
    %v284 = vld [vmem:[#allocation5 + $0x500] sm:$0xff]
    %v285 = vld [vmem:[#allocation5 + $0x508] sm:$0xff]
    %v286 = vld [vmem:[#allocation5 + $0x510] sm:$0xff]
    %v287 = vld [vmem:[#allocation5 + $0x518] sm:$0xff]
    %v288 = vld [vmem:[#allocation5 + $0x520] sm:$0xff]
    %v289 = vld [vmem:[#allocation5 + $0x528] sm:$0xff]
    %v290 = vld [vmem:[#allocation5 + $0x530] sm:$0xff]
    %v291 = vld [vmem:[#allocation5 + $0x538] sm:$0xff]
    %v292 = vld [vmem:[#allocation5 + $0x540] sm:$0xff]
    %v293 = vld [vmem:[#allocation5 + $0x548] sm:$0xff]
    %v294 = vld [vmem:[#allocation5 + $0x550] sm:$0xff]
    %v295 = vld [vmem:[#allocation5 + $0x558] sm:$0xff]
    %v296 = vld [vmem:[#allocation5 + $0x560] sm:$0xff]
    %v297 = vld [vmem:[#allocation5 + $0x568] sm:$0xff]
    %v298 = vld [vmem:[#allocation5 + $0x570] sm:$0xff]
    %v299 = vld [vmem:[#allocation5 + $0x578] sm:$0xff]
    %v300 = vld [vmem:[#allocation5 + $0x580] sm:$0xff]
    %v301 = vld [vmem:[#allocation5 + $0x588] sm:$0xff]
    %v302 = vld [vmem:[#allocation5 + $0x590] sm:$0xff]
    %v303 = vld [vmem:[#allocation5 + $0x598] sm:$0xff]
    %v304 = vld [vmem:[#allocation5 + $0x5a0] sm:$0xff]
    %v305 = vld [vmem:[#allocation5 + $0x5a8] sm:$0xff]
    %v306 = vld [vmem:[#allocation5 + $0x5b0] sm:$0xff]
    %v307 = vld [vmem:[#allocation5 + $0x5b8] sm:$0xff]
    %v308 = vld [vmem:[#allocation5 + $0x5c0] sm:$0xff]
    %v309 = vld [vmem:[#allocation5 + $0x5c8] sm:$0xff]
    %v310 = vld [vmem:[#allocation5 + $0x5d0] sm:$0xff]
    %v311 = vld [vmem:[#allocation5 + $0x5d8] sm:$0xff]
    %v312 = vld [vmem:[#allocation5 + $0x5e0] sm:$0xff]
    %v313 = vld [vmem:[#allocation5 + $0x5e8] sm:$0xff]
    %v314 = vld [vmem:[#allocation5 + $0x5f0] sm:$0xff]
    %v315 = vld [vmem:[#allocation5 + $0x5f8] sm:$0xff]
    %v316 = vld [vmem:[#allocation5 + $0x600] sm:$0xff]
    %v317 = vld [vmem:[#allocation5 + $0x608] sm:$0xff]
    %v318 = vld [vmem:[#allocation5 + $0x610] sm:$0xff]
    %v319 = vld [vmem:[#allocation5 + $0x618] sm:$0xff]
    %v320 = vld [vmem:[#allocation5 + $0x620] sm:$0xff]
    %v321 = vld [vmem:[#allocation5 + $0x628] sm:$0xff]
    %v322 = vld [vmem:[#allocation5 + $0x630] sm:$0xff]
    %v323 = vld [vmem:[#allocation5 + $0x638] sm:$0xff]
    %v324 = vld [vmem:[#allocation5 + $0x640] sm:$0xff]
    %v325 = vld [vmem:[#allocation5 + $0x648] sm:$0xff]
    %v326 = vld [vmem:[#allocation5 + $0x650] sm:$0xff]
    %v327 = vld [vmem:[#allocation5 + $0x658] sm:$0xff]
    %v328 = vld [vmem:[#allocation5 + $0x660] sm:$0xff]
    %v329 = vld [vmem:[#allocation5 + $0x668] sm:$0xff]
    %v330 = vld [vmem:[#allocation5 + $0x670] sm:$0xff]
    %v331 = vld [vmem:[#allocation5 + $0x678] sm:$0xff]
    %v332 = vld [vmem:[#allocation5 + $0x680] sm:$0xff]
    %v333 = vld [vmem:[#allocation5 + $0x688] sm:$0xff]
    %v334 = vld [vmem:[#allocation5 + $0x690] sm:$0xff]
    %v335 = vld [vmem:[#allocation5 + $0x698] sm:$0xff]
    %v336 = vld [vmem:[#allocation5 + $0x6a0] sm:$0xff]
    %v337 = vld [vmem:[#allocation5 + $0x6a8] sm:$0xff]
    %v338 = vld [vmem:[#allocation5 + $0x6b0] sm:$0xff]
    %v339 = vld [vmem:[#allocation5 + $0x6b8] sm:$0xff]
    %v340 = vld [vmem:[#allocation5 + $0x6c0] sm:$0xff]
    %v341 = vld [vmem:[#allocation5 + $0x6c8] sm:$0xff]
    %v342 = vld [vmem:[#allocation5 + $0x6d0] sm:$0xff]
    %v343 = vld [vmem:[#allocation5 + $0x6d8] sm:$0xff]
    %v344 = vld [vmem:[#allocation5 + $0x6e0] sm:$0xff]
    %v345 = vld [vmem:[#allocation5 + $0x6e8] sm:$0xff]
    %v346 = vld [vmem:[#allocation5 + $0x6f0] sm:$0xff]
    %v347 = vld [vmem:[#allocation5 + $0x6f8] sm:$0xff]
    %v348 = vld [vmem:[#allocation5 + $0x700] sm:$0xff]
    %v349 = vld [vmem:[#allocation5 + $0x708] sm:$0xff]
    %v350 = vld [vmem:[#allocation5 + $0x710] sm:$0xff]
    %v351 = vld [vmem:[#allocation5 + $0x718] sm:$0xff]
    %v352 = vld [vmem:[#allocation5 + $0x720] sm:$0xff]
    %v353 = vld [vmem:[#allocation5 + $0x728] sm:$0xff]
    %v354 = vld [vmem:[#allocation5 + $0x730] sm:$0xff]
    %v355 = vld [vmem:[#allocation5 + $0x738] sm:$0xff]
    %v356 = vld [vmem:[#allocation5 + $0x740] sm:$0xff]
    %v357 = vld [vmem:[#allocation5 + $0x748] sm:$0xff]
    %v358 = vld [vmem:[#allocation5 + $0x750] sm:$0xff]
    %v359 = vld [vmem:[#allocation5 + $0x758] sm:$0xff]
    %v360 = vld [vmem:[#allocation5 + $0x760] sm:$0xff]
    %v361 = vld [vmem:[#allocation5 + $0x768] sm:$0xff]
    %v362 = vld [vmem:[#allocation5 + $0x770] sm:$0xff]
    %v363 = vld [vmem:[#allocation5 + $0x778] sm:$0xff]
    %v364 = vld [vmem:[#allocation5 + $0x780] sm:$0xff]
    %v365 = vld [vmem:[#allocation5 + $0x788] sm:$0xff]
    %v366 = vld [vmem:[#allocation5 + $0x790] sm:$0xff]
    %v367 = vld [vmem:[#allocation5 + $0x798] sm:$0xff]
    %v368 = vld [vmem:[#allocation5 + $0x7a0] sm:$0xff]
    %v369 = vld [vmem:[#allocation5 + $0x7a8] sm:$0xff]
    %v370 = vld [vmem:[#allocation5 + $0x7b0] sm:$0xff]
    %v371 = vld [vmem:[#allocation5 + $0x7b8] sm:$0xff]
    %v372 = vld [vmem:[#allocation5 + $0x7c0] sm:$0xff]
    %v373 = vld [vmem:[#allocation5 + $0x7c8] sm:$0xff]
    %v374 = vld [vmem:[#allocation5 + $0x7d0] sm:$0xff]
    %v375 = vld [vmem:[#allocation5 + $0x7d8] sm:$0xff]
    %v376 = vld [vmem:[#allocation5 + $0x7e0] sm:$0xff]
    %v377 = vld [vmem:[#allocation5 + $0x7e8] sm:$0xff]
    %v378 = vld [vmem:[#allocation5 + $0x7f0] sm:$0xff]
    %v379 = vld [vmem:[#allocation5 + $0x7f8] sm:$0xff]
    %v380 = vld [vmem:[#allocation5 + $0x800] sm:$0xff]
    %v381 = vld [vmem:[#allocation5 + $0x808] sm:$0xff]
    %v382 = vld [vmem:[#allocation5 + $0x810] sm:$0xff]
    %v383 = vld [vmem:[#allocation5 + $0x818] sm:$0xff]
    %v384 = vld [vmem:[#allocation5 + $0x820] sm:$0xff]
    %v385 = vld [vmem:[#allocation5 + $0x828] sm:$0xff]
    %v386 = vld [vmem:[#allocation5 + $0x830] sm:$0xff]
    %v387 = vld [vmem:[#allocation5 + $0x838] sm:$0xff]
    %v388 = vld [vmem:[#allocation5 + $0x840] sm:$0xff]
    %v389 = vld [vmem:[#allocation5 + $0x848] sm:$0xff]
    %v390 = vld [vmem:[#allocation5 + $0x850] sm:$0xff]
    %v391 = vld [vmem:[#allocation5 + $0x858] sm:$0xff]
    %v392 = vld [vmem:[#allocation5 + $0x860] sm:$0xff]
    %v393 = vld [vmem:[#allocation5 + $0x868] sm:$0xff]
    %v394 = vld [vmem:[#allocation5 + $0x870] sm:$0xff]
    %v395 = vld [vmem:[#allocation5 + $0x878] sm:$0xff]
    %v396 = vld [vmem:[#allocation5 + $0x880] sm:$0xff]
    %v397 = vld [vmem:[#allocation5 + $0x888] sm:$0xff]
    %v398 = vld [vmem:[#allocation5 + $0x890] sm:$0xff]
    %v399 = vld [vmem:[#allocation5 + $0x898] sm:$0xff]
    %v400 = vld [vmem:[#allocation5 + $0x8a0] sm:$0xff]
    %v401 = vld [vmem:[#allocation5 + $0x8a8] sm:$0xff]
    %v402 = vld [vmem:[#allocation5 + $0x8b0] sm:$0xff]
    %v403 = vld [vmem:[#allocation5 + $0x8b8] sm:$0xff]
    %v404 = vld [vmem:[#allocation5 + $0x8c0] sm:$0xff]
    %v405 = vld [vmem:[#allocation5 + $0x8c8] sm:$0xff]
    %v406 = vld [vmem:[#allocation5 + $0x8d0] sm:$0xff]
    %v407 = vld [vmem:[#allocation5 + $0x8d8] sm:$0xff]
    %v408 = vld [vmem:[#allocation5 + $0x8e0] sm:$0xff]
    %v409 = vld [vmem:[#allocation5 + $0x8e8] sm:$0xff]
    %v410 = vld [vmem:[#allocation5 + $0x8f0] sm:$0xff]
    %v411 = vld [vmem:[#allocation5 + $0x8f8] sm:$0xff]
    %v412 = vld [vmem:[#allocation5 + $0x900] sm:$0xff]
    %v413 = vld [vmem:[#allocation5 + $0x908] sm:$0xff]
    %v414 = vld [vmem:[#allocation5 + $0x910] sm:$0xff]
    %v415 = vld [vmem:[#allocation5 + $0x918] sm:$0xff]
    %v416 = vld [vmem:[#allocation5 + $0x920] sm:$0xff]
    %v417 = vld [vmem:[#allocation5 + $0x928] sm:$0xff]
    %v418 = vld [vmem:[#allocation5 + $0x930] sm:$0xff]
    %v419 = vld [vmem:[#allocation5 + $0x938] sm:$0xff]
    %v420 = vld [vmem:[#allocation5 + $0x940] sm:$0xff]
    %v421 = vld [vmem:[#allocation5 + $0x948] sm:$0xff]
    %v422 = vld [vmem:[#allocation5 + $0x950] sm:$0xff]
    %v423 = vld [vmem:[#allocation5 + $0x958] sm:$0xff]
    %v424 = vld [vmem:[#allocation5 + $0x960] sm:$0xff]
    %v425 = vld [vmem:[#allocation5 + $0x968] sm:$0xff]
    %v426 = vld [vmem:[#allocation5 + $0x970] sm:$0xff]
    %v427 = vld [vmem:[#allocation5 + $0x978] sm:$0xff]
    %v428 = vld [vmem:[#allocation5 + $0x980] sm:$0xff]
    %v429 = vld [vmem:[#allocation5 + $0x988] sm:$0xff]
    %v430 = vld [vmem:[#allocation5 + $0x990] sm:$0xff]
    %v431 = vld [vmem:[#allocation5 + $0x998] sm:$0xff]
    %v432 = vld [vmem:[#allocation5 + $0x9a0] sm:$0xff]
    %v433 = vld [vmem:[#allocation5 + $0x9a8] sm:$0xff]
    %v434 = vld [vmem:[#allocation5 + $0x9b0] sm:$0xff]
    %v435 = vld [vmem:[#allocation5 + $0x9b8] sm:$0xff]
    %v436 = vld [vmem:[#allocation5 + $0x9c0] sm:$0xff]
    %v437 = vld [vmem:[#allocation5 + $0x9c8] sm:$0xff]
    %v438 = vld [vmem:[#allocation5 + $0x9d0] sm:$0xff]
    %v439 = vld [vmem:[#allocation5 + $0x9d8] sm:$0xff]
    %v440 = vld [vmem:[#allocation5 + $0x9e0] sm:$0xff]
    %v441 = vld [vmem:[#allocation5 + $0x9e8] sm:$0xff]
    %v442 = vld [vmem:[#allocation5 + $0x9f0] sm:$0xff]
    %v443 = vld [vmem:[#allocation5 + $0x9f8] sm:$0xff]
    %v444 = vld [vmem:[#allocation5 + $0xa00] sm:$0xff]
    %v445 = vld [vmem:[#allocation5 + $0xa08] sm:$0xff]
    %v446 = vld [vmem:[#allocation5 + $0xa10] sm:$0xff]
    %v447 = vld [vmem:[#allocation5 + $0xa18] sm:$0xff]
    %v448 = vld [vmem:[#allocation5 + $0xa20] sm:$0xff]
    %v449 = vld [vmem:[#allocation5 + $0xa28] sm:$0xff]
    %v450 = vld [vmem:[#allocation5 + $0xa30] sm:$0xff]
    %v451 = vld [vmem:[#allocation5 + $0xa38] sm:$0xff]
    %v452 = vld [vmem:[#allocation5 + $0xa40] sm:$0xff]
    %v453 = vld [vmem:[#allocation5 + $0xa48] sm:$0xff]
    %v454 = vld [vmem:[#allocation5 + $0xa50] sm:$0xff]
    %v455 = vld [vmem:[#allocation5 + $0xa58] sm:$0xff]
    %v456 = vld [vmem:[#allocation5 + $0xa60] sm:$0xff]
    %v457 = vld [vmem:[#allocation5 + $0xa68] sm:$0xff]
    %v458 = vld [vmem:[#allocation5 + $0xa70] sm:$0xff]
    %v459 = vld [vmem:[#allocation5 + $0xa78] sm:$0xff]
    %v460 = vld [vmem:[#allocation5 + $0xa80] sm:$0xff]
    %v461 = vld [vmem:[#allocation5 + $0xa88] sm:$0xff]
    %v462 = vld [vmem:[#allocation5 + $0xa90] sm:$0xff]
    %v463 = vld [vmem:[#allocation5 + $0xa98] sm:$0xff]
    %v464 = vld [vmem:[#allocation5 + $0xaa0] sm:$0xff]
    %v465 = vld [vmem:[#allocation5 + $0xaa8] sm:$0xff]
    %v466 = vld [vmem:[#allocation5 + $0xab0] sm:$0xff]
    %v467 = vld [vmem:[#allocation5 + $0xab8] sm:$0xff]
    %v468 = vld [vmem:[#allocation5 + $0xac0] sm:$0xff]
    %v469 = vld [vmem:[#allocation5 + $0xac8] sm:$0xff]
    %v470 = vld [vmem:[#allocation5 + $0xad0] sm:$0xff]
    %v471 = vld [vmem:[#allocation5 + $0xad8] sm:$0xff]
    %v472 = vld [vmem:[#allocation5 + $0xae0] sm:$0xff]
    %v473 = vld [vmem:[#allocation5 + $0xae8] sm:$0xff]
    %v474 = vld [vmem:[#allocation5 + $0xaf0] sm:$0xff]
    %v475 = vld [vmem:[#allocation5 + $0xaf8] sm:$0xff]
    %v476 = vld [vmem:[#allocation5 + $0xb00] sm:$0xff]
    %v477 = vld [vmem:[#allocation5 + $0xb08] sm:$0xff]
    %v478 = vld [vmem:[#allocation5 + $0xb10] sm:$0xff]
    %v479 = vld [vmem:[#allocation5 + $0xb18] sm:$0xff]
    %v480 = vld [vmem:[#allocation5 + $0xb20] sm:$0xff]
    %v481 = vld [vmem:[#allocation5 + $0xb28] sm:$0xff]
    %v482 = vld [vmem:[#allocation5 + $0xb30] sm:$0xff]
    %v483 = vld [vmem:[#allocation5 + $0xb38] sm:$0xff]
    %v484 = vld [vmem:[#allocation5 + $0xb40] sm:$0xff]
    %v485 = vld [vmem:[#allocation5 + $0xb48] sm:$0xff]
    %v486 = vld [vmem:[#allocation5 + $0xb50] sm:$0xff]
    %v487 = vld [vmem:[#allocation5 + $0xb58] sm:$0xff]
    %v488 = vld [vmem:[#allocation5 + $0xb60] sm:$0xff]
    %v489 = vld [vmem:[#allocation5 + $0xb68] sm:$0xff]
    %v490 = vld [vmem:[#allocation5 + $0xb70] sm:$0xff]
    %v491 = vld [vmem:[#allocation5 + $0xb78] sm:$0xff]
    %v492 = vld [vmem:[#allocation5 + $0xb80] sm:$0xff]
    %v493 = vld [vmem:[#allocation5 + $0xb88] sm:$0xff]
    %v494 = vld [vmem:[#allocation5 + $0xb90] sm:$0xff]
    %v495 = vld [vmem:[#allocation5 + $0xb98] sm:$0xff]
    %v496 = vld [vmem:[#allocation5 + $0xba0] sm:$0xff]
    %v497 = vld [vmem:[#allocation5 + $0xba8] sm:$0xff]
    %v498 = vld [vmem:[#allocation5 + $0xbb0] sm:$0xff]
    %v499 = vld [vmem:[#allocation5 + $0xbb8] sm:$0xff]
    %v500 = vld [vmem:[#allocation5 + $0xbc0] sm:$0xff]
    %v501 = vld [vmem:[#allocation5 + $0xbc8] sm:$0xff]
    %v502 = vld [vmem:[#allocation5 + $0xbd0] sm:$0xff]
    %v503 = vld [vmem:[#allocation5 + $0xbd8] sm:$0xff]
    %v504 = vld [vmem:[#allocation5 + $0xbe0] sm:$0xff]
    %v505 = vld [vmem:[#allocation5 + $0xbe8] sm:$0xff]
    %v506 = vld [vmem:[#allocation5 + $0xbf0] sm:$0xff]
    %v507 = vld [vmem:[#allocation5 + $0xbf8] sm:$0xff]
    %v508 = vld [vmem:[#allocation5 + $0xc00] sm:$0xff]
    %v509 = vld [vmem:[#allocation5 + $0xc08] sm:$0xff]
    %v510 = vld [vmem:[#allocation5 + $0xc10] sm:$0xff]
    %v511 = vld [vmem:[#allocation5 + $0xc18] sm:$0xff]
    %v512 = vld [vmem:[#allocation5 + $0xc20] sm:$0xff]
    %v513 = vld [vmem:[#allocation5 + $0xc28] sm:$0xff]
    %v514 = vld [vmem:[#allocation5 + $0xc30] sm:$0xff]
    %v515 = vld [vmem:[#allocation5 + $0xc38] sm:$0xff]
    %v516 = vld [vmem:[#allocation5 + $0xc40] sm:$0xff]
    %v517 = vld [vmem:[#allocation5 + $0xc48] sm:$0xff]
    %v518 = vld [vmem:[#allocation5 + $0xc50] sm:$0xff]
    %v519 = vld [vmem:[#allocation5 + $0xc58] sm:$0xff]
    %v520 = vld [vmem:[#allocation5 + $0xc60] sm:$0xff]
    %v521 = vld [vmem:[#allocation5 + $0xc68] sm:$0xff]
    %v522 = vld [vmem:[#allocation5 + $0xc70] sm:$0xff]
    %v523 = vld [vmem:[#allocation5 + $0xc78] sm:$0xff]
    %v524 = vld [vmem:[#allocation5 + $0xc80] sm:$0xff]
    %v525 = vld [vmem:[#allocation5 + $0xc88] sm:$0xff]
    %v526 = vld [vmem:[#allocation5 + $0xc90] sm:$0xff]
    %v527 = vld [vmem:[#allocation5 + $0xc98] sm:$0xff]
    %v528 = vld [vmem:[#allocation5 + $0xca0] sm:$0xff]
    %v529 = vld [vmem:[#allocation5 + $0xca8] sm:$0xff]
    %v530 = vld [vmem:[#allocation5 + $0xcb0] sm:$0xff]
    %v531 = vld [vmem:[#allocation5 + $0xcb8] sm:$0xff]
    %v532 = vld [vmem:[#allocation5 + $0xcc0] sm:$0xff]
    %v533 = vld [vmem:[#allocation5 + $0xcc8] sm:$0xff]
    %v534 = vld [vmem:[#allocation5 + $0xcd0] sm:$0xff]
    %v535 = vld [vmem:[#allocation5 + $0xcd8] sm:$0xff]
    %v536 = vld [vmem:[#allocation5 + $0xce0] sm:$0xff]
    %v537 = vld [vmem:[#allocation5 + $0xce8] sm:$0xff]
    %v538 = vld [vmem:[#allocation5 + $0xcf0] sm:$0xff]
    %v539 = vld [vmem:[#allocation5 + $0xcf8] sm:$0xff]
    %v540 = vld [vmem:[#allocation5 + $0xd00] sm:$0xff]
    %v541 = vld [vmem:[#allocation5 + $0xd08] sm:$0xff]
    %v542 = vld [vmem:[#allocation5 + $0xd10] sm:$0xff]
    %v543 = vld [vmem:[#allocation5 + $0xd18] sm:$0xff]
    %v544 = vld [vmem:[#allocation5 + $0xd20] sm:$0xff]
    %v545 = vld [vmem:[#allocation5 + $0xd28] sm:$0xff]
    %v546 = vld [vmem:[#allocation5 + $0xd30] sm:$0xff]
    %v547 = vld [vmem:[#allocation5 + $0xd38] sm:$0xff]
    %v548 = vld [vmem:[#allocation5 + $0xd40] sm:$0xff]
    %v549 = vld [vmem:[#allocation5 + $0xd48] sm:$0xff]
    %v550 = vld [vmem:[#allocation5 + $0xd50] sm:$0xff]
    %v551 = vld [vmem:[#allocation5 + $0xd58] sm:$0xff]
    %v552 = vld [vmem:[#allocation5 + $0xd60] sm:$0xff]
    %v553 = vld [vmem:[#allocation5 + $0xd68] sm:$0xff]
    %v554 = vld [vmem:[#allocation5 + $0xd70] sm:$0xff]
    %v555 = vld [vmem:[#allocation5 + $0xd78] sm:$0xff]
    %v556 = vld [vmem:[#allocation5 + $0xd80] sm:$0xff]
    %v557 = vld [vmem:[#allocation5 + $0xd88] sm:$0xff]
    %v558 = vld [vmem:[#allocation5 + $0xd90] sm:$0xff]
    %v559 = vld [vmem:[#allocation5 + $0xd98] sm:$0xff]
    %v560 = vld [vmem:[#allocation5 + $0xda0] sm:$0xff]
    %v561 = vld [vmem:[#allocation5 + $0xda8] sm:$0xff]
    %v562 = vld [vmem:[#allocation5 + $0xdb0] sm:$0xff]
    %v563 = vld [vmem:[#allocation5 + $0xdb8] sm:$0xff]
    %v564 = vld [vmem:[#allocation5 + $0xdc0] sm:$0xff]
    %v565 = vld [vmem:[#allocation5 + $0xdc8] sm:$0xff]
    %v566 = vld [vmem:[#allocation5 + $0xdd0] sm:$0xff]
    %v567 = vld [vmem:[#allocation5 + $0xdd8] sm:$0xff]
    %v568 = vld [vmem:[#allocation5 + $0xde0] sm:$0xff]
    %v569 = vld [vmem:[#allocation5 + $0xde8] sm:$0xff]
    %v570 = vld [vmem:[#allocation5 + $0xdf0] sm:$0xff]
    %v571 = vld [vmem:[#allocation5 + $0xdf8] sm:$0xff]
    %v572 = vld [vmem:[#allocation5 + $0xe00] sm:$0xff]
    %v573 = vld [vmem:[#allocation5 + $0xe08] sm:$0xff]
    %v574 = vld [vmem:[#allocation5 + $0xe10] sm:$0xff]
    %v575 = vld [vmem:[#allocation5 + $0xe18] sm:$0xff]
    %v576 = vld [vmem:[#allocation5 + $0xe20] sm:$0xff]
    %v577 = vld [vmem:[#allocation5 + $0xe28] sm:$0xff]
    %v578 = vld [vmem:[#allocation5 + $0xe30] sm:$0xff]
    %v579 = vld [vmem:[#allocation5 + $0xe38] sm:$0xff]
    %v580 = vld [vmem:[#allocation5 + $0xe40] sm:$0xff]
    %v581 = vld [vmem:[#allocation5 + $0xe48] sm:$0xff]
    %v582 = vld [vmem:[#allocation5 + $0xe50] sm:$0xff]
    %v583 = vld [vmem:[#allocation5 + $0xe58] sm:$0xff]
    %v584 = vld [vmem:[#allocation5 + $0xe60] sm:$0xff]
    %v585 = vld [vmem:[#allocation5 + $0xe68] sm:$0xff]
    %v586 = vld [vmem:[#allocation5 + $0xe70] sm:$0xff]
    %v587 = vld [vmem:[#allocation5 + $0xe78] sm:$0xff]
    %v588 = vld [vmem:[#allocation5 + $0xe80] sm:$0xff]
    %v589 = vld [vmem:[#allocation5 + $0xe88] sm:$0xff]
    %v590 = vld [vmem:[#allocation5 + $0xe90] sm:$0xff]
    %v591 = vld [vmem:[#allocation5 + $0xe98] sm:$0xff]
    %v592 = vld [vmem:[#allocation5 + $0xea0] sm:$0xff]
    %v593 = vld [vmem:[#allocation5 + $0xea8] sm:$0xff]
    %v594 = vld [vmem:[#allocation5 + $0xeb0] sm:$0xff]
    %v595 = vld [vmem:[#allocation5 + $0xeb8] sm:$0xff]
    %v596 = vld [vmem:[#allocation5 + $0xec0] sm:$0xff]
    %v597 = vld [vmem:[#allocation5 + $0xec8] sm:$0xff]
    %v598 = vld [vmem:[#allocation5 + $0xed0] sm:$0xff]
    %v599 = vld [vmem:[#allocation5 + $0xed8] sm:$0xff]
    %v600 = vld [vmem:[#allocation5 + $0xee0] sm:$0xff]
    %v601 = vld [vmem:[#allocation5 + $0xee8] sm:$0xff]
    %v602 = vld [vmem:[#allocation5 + $0xef0] sm:$0xff]
    %v603 = vld [vmem:[#allocation5 + $0xef8] sm:$0xff]
    %v604 = vld [vmem:[#allocation5 + $0xf00] sm:$0xff]
    %v605 = vld [vmem:[#allocation5 + $0xf08] sm:$0xff]
    %v606 = vld [vmem:[#allocation5 + $0xf10] sm:$0xff]
    %v607 = vld [vmem:[#allocation5 + $0xf18] sm:$0xff]
    %v608 = vld [vmem:[#allocation5 + $0xf20] sm:$0xff]
    %v609 = vld [vmem:[#allocation5 + $0xf28] sm:$0xff]
    %v610 = vld [vmem:[#allocation5 + $0xf30] sm:$0xff]
    %v611 = vld [vmem:[#allocation5 + $0xf38] sm:$0xff]
    %v612 = vld [vmem:[#allocation5 + $0xf40] sm:$0xff]
    %v613 = vld [vmem:[#allocation5 + $0xf48] sm:$0xff]
    %v614 = vld [vmem:[#allocation5 + $0xf50] sm:$0xff]
    %v615 = vld [vmem:[#allocation5 + $0xf58] sm:$0xff]
    %v616 = vld [vmem:[#allocation5 + $0xf60] sm:$0xff]
    %v617 = vld [vmem:[#allocation5 + $0xf68] sm:$0xff]
    %v618 = vld [vmem:[#allocation5 + $0xf70] sm:$0xff]
    %v619 = vld [vmem:[#allocation5 + $0xf78] sm:$0xff]
    %v620 = vld [vmem:[#allocation5 + $0xf80] sm:$0xff]
    %v621 = vld [vmem:[#allocation5 + $0xf88] sm:$0xff]
    %v622 = vld [vmem:[#allocation5 + $0xf90] sm:$0xff]
    %v623 = vld [vmem:[#allocation5 + $0xf98] sm:$0xff]
    %v624 = vld [vmem:[#allocation5 + $0xfa0] sm:$0xff]
    %v625 = vld [vmem:[#allocation5 + $0xfa8] sm:$0xff]
    %v626 = vld [vmem:[#allocation5 + $0xfb0] sm:$0xff]
    %v627 = vld [vmem:[#allocation5 + $0xfb8] sm:$0xff]
    %v628 = vld [vmem:[#allocation5 + $0xfc0] sm:$0xff]
    %v629 = vld [vmem:[#allocation5 + $0xfc8] sm:$0xff]
    %v630 = vld [vmem:[#allocation5 + $0xfd0] sm:$0xff]
    %v631 = vld [vmem:[#allocation5 + $0xfd8] sm:$0xff]
    %v632 = vld [vmem:[#allocation5 + $0xfe0] sm:$0xff]
    %v633 = vld [vmem:[#allocation5 + $0xfe8] sm:$0xff]
    %v634 = vld [vmem:[#allocation5 + $0xff0] sm:$0xff]
    %v635 = vld [vmem:[#allocation5 + $0xff8] sm:$0xff]
    %v636 = vld [vmem:[#allocation7] sm:$0xff]
    %v638 = vperm.slane %v636, 0
    %v639 = vperm.slane %v636, 1
    %v640 = vperm.slane %v636, 2
    %v641 = vperm.slane %v636, 3
    %v642 = vperm.slane %v636, 4
    %v643 = vperm.slane %v636, 5
    %v644 = vperm.slane %v636, 6
    %v645 = vperm.slane %v636, 7
    %v1166 = vunpack.c.l.b16 %v124
    %v1167 = vunpack.c.h.b16 %v124
    %v1168 = vunpack.c.l.b16 %v125
    %v1169 = vunpack.c.h.b16 %v125
    %v1170 = vunpack.c.l.b16 %v126
    %v1171 = vunpack.c.h.b16 %v126
    %v1172 = vunpack.c.l.b16 %v127
    %v1173 = vunpack.c.h.b16 %v127
    %v1174 = vunpack.c.l.b16 %v128
    %v1175 = vunpack.c.h.b16 %v128
    %v1176 = vunpack.c.l.b16 %v129
    %v1177 = vunpack.c.h.b16 %v129
    %v1178 = vunpack.c.l.b16 %v130
    %v1179 = vunpack.c.h.b16 %v130
    %v1180 = vunpack.c.l.b16 %v131
    %v1181 = vunpack.c.h.b16 %v131
    %v1182 = vunpack.c.l.b16 %v132
    %v1183 = vunpack.c.h.b16 %v132
    %v1184 = vunpack.c.l.b16 %v133
    %v1185 = vunpack.c.h.b16 %v133
    %v1186 = vunpack.c.l.b16 %v134
    %v1187 = vunpack.c.h.b16 %v134
    %v1188 = vunpack.c.l.b16 %v135
    %v1189 = vunpack.c.h.b16 %v135
    %v1190 = vunpack.c.l.b16 %v136
    %v1191 = vunpack.c.h.b16 %v136
    %v1192 = vunpack.c.l.b16 %v137
    %v1193 = vunpack.c.h.b16 %v137
    %v1194 = vunpack.c.l.b16 %v138
    %v1195 = vunpack.c.h.b16 %v138
    %v1196 = vunpack.c.l.b16 %v139
    %v1197 = vunpack.c.h.b16 %v139
    %v1198 = vunpack.c.l.b16 %v140
    %v1199 = vunpack.c.h.b16 %v140
    %v1200 = vunpack.c.l.b16 %v141
    %v1201 = vunpack.c.h.b16 %v141
    %v1202 = vunpack.c.l.b16 %v142
    %v1203 = vunpack.c.h.b16 %v142
    %v1204 = vunpack.c.l.b16 %v143
    %v1205 = vunpack.c.h.b16 %v143
    %v1206 = vunpack.c.l.b16 %v144
    %v1207 = vunpack.c.h.b16 %v144
    %v1208 = vunpack.c.l.b16 %v145
    %v1209 = vunpack.c.h.b16 %v145
    %v1210 = vunpack.c.l.b16 %v146
    %v1211 = vunpack.c.h.b16 %v146
    %v1212 = vunpack.c.l.b16 %v147
    %v1213 = vunpack.c.h.b16 %v147
    %v1214 = vunpack.c.l.b16 %v148
    %v1215 = vunpack.c.h.b16 %v148
    %v1216 = vunpack.c.l.b16 %v149
    %v1217 = vunpack.c.h.b16 %v149
    %v1218 = vunpack.c.l.b16 %v150
    %v1219 = vunpack.c.h.b16 %v150
    %v1220 = vunpack.c.l.b16 %v151
    %v1221 = vunpack.c.h.b16 %v151
    %v1222 = vunpack.c.l.b16 %v152
    %v1223 = vunpack.c.h.b16 %v152
    %v1224 = vunpack.c.l.b16 %v153
    %v1225 = vunpack.c.h.b16 %v153
    %v1226 = vunpack.c.l.b16 %v154
    %v1227 = vunpack.c.h.b16 %v154
    %v1228 = vunpack.c.l.b16 %v155
    %v1229 = vunpack.c.h.b16 %v155
    %v1230 = vunpack.c.l.b16 %v156
    %v1231 = vunpack.c.h.b16 %v156
    %v1232 = vunpack.c.l.b16 %v157
    %v1233 = vunpack.c.h.b16 %v157
    %v1234 = vunpack.c.l.b16 %v158
    %v1235 = vunpack.c.h.b16 %v158
    %v1236 = vunpack.c.l.b16 %v159
    %v1237 = vunpack.c.h.b16 %v159
    %v1238 = vunpack.c.l.b16 %v160
    %v1239 = vunpack.c.h.b16 %v160
    %v1240 = vunpack.c.l.b16 %v161
    %v1241 = vunpack.c.h.b16 %v161
    %v1242 = vunpack.c.l.b16 %v162
    %v1243 = vunpack.c.h.b16 %v162
    %v1244 = vunpack.c.l.b16 %v163
    %v1245 = vunpack.c.h.b16 %v163
    %v1246 = vunpack.c.l.b16 %v164
    %v1247 = vunpack.c.h.b16 %v164
    %v1248 = vunpack.c.l.b16 %v165
    %v1249 = vunpack.c.h.b16 %v165
    %v1250 = vunpack.c.l.b16 %v166
    %v1251 = vunpack.c.h.b16 %v166
    %v1252 = vunpack.c.l.b16 %v167
    %v1253 = vunpack.c.h.b16 %v167
    %v1254 = vunpack.c.l.b16 %v168
    %v1255 = vunpack.c.h.b16 %v168
    %v1256 = vunpack.c.l.b16 %v169
    %v1257 = vunpack.c.h.b16 %v169
    %v1258 = vunpack.c.l.b16 %v170
    %v1259 = vunpack.c.h.b16 %v170
    %v1260 = vunpack.c.l.b16 %v171
    %v1261 = vunpack.c.h.b16 %v171
    %v1262 = vunpack.c.l.b16 %v172
    %v1263 = vunpack.c.h.b16 %v172
    %v1264 = vunpack.c.l.b16 %v173
    %v1265 = vunpack.c.h.b16 %v173
    %v1266 = vunpack.c.l.b16 %v174
    %v1267 = vunpack.c.h.b16 %v174
    %v1268 = vunpack.c.l.b16 %v175
    %v1269 = vunpack.c.h.b16 %v175
    %v1270 = vunpack.c.l.b16 %v176
    %v1271 = vunpack.c.h.b16 %v176
    %v1272 = vunpack.c.l.b16 %v177
    %v1273 = vunpack.c.h.b16 %v177
    %v1274 = vunpack.c.l.b16 %v178
    %v1275 = vunpack.c.h.b16 %v178
    %v1276 = vunpack.c.l.b16 %v179
    %v1277 = vunpack.c.h.b16 %v179
    %v1278 = vunpack.c.l.b16 %v180
    %v1279 = vunpack.c.h.b16 %v180
    %v1280 = vunpack.c.l.b16 %v181
    %v1281 = vunpack.c.h.b16 %v181
    %v1282 = vunpack.c.l.b16 %v182
    %v1283 = vunpack.c.h.b16 %v182
    %v1284 = vunpack.c.l.b16 %v183
    %v1285 = vunpack.c.h.b16 %v183
    %v1286 = vunpack.c.l.b16 %v184
    %v1287 = vunpack.c.h.b16 %v184
    %v1288 = vunpack.c.l.b16 %v185
    %v1289 = vunpack.c.h.b16 %v185
    %v1290 = vunpack.c.l.b16 %v186
    %v1291 = vunpack.c.h.b16 %v186
    %v1292 = vunpack.c.l.b16 %v187
    %v1293 = vunpack.c.h.b16 %v187
    %v1294 = vunpack.c.l.b16 %v188
    %v1295 = vunpack.c.h.b16 %v188
    %v1296 = vunpack.c.l.b16 %v189
    %v1297 = vunpack.c.h.b16 %v189
    %v1298 = vunpack.c.l.b16 %v190
    %v1299 = vunpack.c.h.b16 %v190
    %v1300 = vunpack.c.l.b16 %v191
    %v1301 = vunpack.c.h.b16 %v191
    %v1302 = vunpack.c.l.b16 %v192
    %v1303 = vunpack.c.h.b16 %v192
    %v1304 = vunpack.c.l.b16 %v193
    %v1305 = vunpack.c.h.b16 %v193
    %v1306 = vunpack.c.l.b16 %v194
    %v1307 = vunpack.c.h.b16 %v194
    %v1308 = vunpack.c.l.b16 %v195
    %v1309 = vunpack.c.h.b16 %v195
    %v1310 = vunpack.c.l.b16 %v196
    %v1311 = vunpack.c.h.b16 %v196
    %v1312 = vunpack.c.l.b16 %v197
    %v1313 = vunpack.c.h.b16 %v197
    %v1314 = vunpack.c.l.b16 %v198
    %v1315 = vunpack.c.h.b16 %v198
    %v1316 = vunpack.c.l.b16 %v199
    %v1317 = vunpack.c.h.b16 %v199
    %v1318 = vunpack.c.l.b16 %v200
    %v1319 = vunpack.c.h.b16 %v200
    %v1320 = vunpack.c.l.b16 %v201
    %v1321 = vunpack.c.h.b16 %v201
    %v1322 = vunpack.c.l.b16 %v202
    %v1323 = vunpack.c.h.b16 %v202
    %v1324 = vunpack.c.l.b16 %v203
    %v1325 = vunpack.c.h.b16 %v203
    %v1326 = vunpack.c.l.b16 %v204
    %v1327 = vunpack.c.h.b16 %v204
    %v1328 = vunpack.c.l.b16 %v205
    %v1329 = vunpack.c.h.b16 %v205
    %v1330 = vunpack.c.l.b16 %v206
    %v1331 = vunpack.c.h.b16 %v206
    %v1332 = vunpack.c.l.b16 %v207
    %v1333 = vunpack.c.h.b16 %v207
    %v1334 = vunpack.c.l.b16 %v208
    %v1335 = vunpack.c.h.b16 %v208
    %v1336 = vunpack.c.l.b16 %v209
    %v1337 = vunpack.c.h.b16 %v209
    %v1338 = vunpack.c.l.b16 %v210
    %v1339 = vunpack.c.h.b16 %v210
    %v1340 = vunpack.c.l.b16 %v211
    %v1341 = vunpack.c.h.b16 %v211
    %v1342 = vunpack.c.l.b16 %v212
    %v1343 = vunpack.c.h.b16 %v212
    %v1344 = vunpack.c.l.b16 %v213
    %v1345 = vunpack.c.h.b16 %v213
    %v1346 = vunpack.c.l.b16 %v214
    %v1347 = vunpack.c.h.b16 %v214
    %v1348 = vunpack.c.l.b16 %v215
    %v1349 = vunpack.c.h.b16 %v215
    %v1350 = vunpack.c.l.b16 %v216
    %v1351 = vunpack.c.h.b16 %v216
    %v1352 = vunpack.c.l.b16 %v217
    %v1353 = vunpack.c.h.b16 %v217
    %v1354 = vunpack.c.l.b16 %v218
    %v1355 = vunpack.c.h.b16 %v218
    %v1356 = vunpack.c.l.b16 %v219
    %v1357 = vunpack.c.h.b16 %v219
    %v1358 = vunpack.c.l.b16 %v220
    %v1359 = vunpack.c.h.b16 %v220
    %v1360 = vunpack.c.l.b16 %v221
    %v1361 = vunpack.c.h.b16 %v221
    %v1362 = vunpack.c.l.b16 %v222
    %v1363 = vunpack.c.h.b16 %v222
    %v1364 = vunpack.c.l.b16 %v223
    %v1365 = vunpack.c.h.b16 %v223
    %v1366 = vunpack.c.l.b16 %v224
    %v1367 = vunpack.c.h.b16 %v224
    %v1368 = vunpack.c.l.b16 %v225
    %v1369 = vunpack.c.h.b16 %v225
    %v1370 = vunpack.c.l.b16 %v226
    %v1371 = vunpack.c.h.b16 %v226
    %v1372 = vunpack.c.l.b16 %v227
    %v1373 = vunpack.c.h.b16 %v227
    %v1374 = vunpack.c.l.b16 %v228
    %v1375 = vunpack.c.h.b16 %v228
    %v1376 = vunpack.c.l.b16 %v229
    %v1377 = vunpack.c.h.b16 %v229
    %v1378 = vunpack.c.l.b16 %v230
    %v1379 = vunpack.c.h.b16 %v230
    %v1380 = vunpack.c.l.b16 %v231
    %v1381 = vunpack.c.h.b16 %v231
    %v1382 = vunpack.c.l.b16 %v232
    %v1383 = vunpack.c.h.b16 %v232
    %v1384 = vunpack.c.l.b16 %v233
    %v1385 = vunpack.c.h.b16 %v233
    %v1386 = vunpack.c.l.b16 %v234
    %v1387 = vunpack.c.h.b16 %v234
    %v1388 = vunpack.c.l.b16 %v235
    %v1389 = vunpack.c.h.b16 %v235
    %v1390 = vunpack.c.l.b16 %v236
    %v1391 = vunpack.c.h.b16 %v236
    %v1392 = vunpack.c.l.b16 %v237
    %v1393 = vunpack.c.h.b16 %v237
    %v1394 = vunpack.c.l.b16 %v238
    %v1395 = vunpack.c.h.b16 %v238
    %v1396 = vunpack.c.l.b16 %v239
    %v1397 = vunpack.c.h.b16 %v239
    %v1398 = vunpack.c.l.b16 %v240
    %v1399 = vunpack.c.h.b16 %v240
    %v1400 = vunpack.c.l.b16 %v241
    %v1401 = vunpack.c.h.b16 %v241
    %v1402 = vunpack.c.l.b16 %v242
    %v1403 = vunpack.c.h.b16 %v242
    %v1404 = vunpack.c.l.b16 %v243
    %v1405 = vunpack.c.h.b16 %v243
    %v1406 = vunpack.c.l.b16 %v244
    %v1407 = vunpack.c.h.b16 %v244
    %v1408 = vunpack.c.l.b16 %v245
    %v1409 = vunpack.c.h.b16 %v245
    %v1410 = vunpack.c.l.b16 %v246
    %v1411 = vunpack.c.h.b16 %v246
    %v1412 = vunpack.c.l.b16 %v247
    %v1413 = vunpack.c.h.b16 %v247
    %v1414 = vunpack.c.l.b16 %v248
    %v1415 = vunpack.c.h.b16 %v248
    %v1416 = vunpack.c.l.b16 %v249
    %v1417 = vunpack.c.h.b16 %v249
    %v1418 = vunpack.c.l.b16 %v250
    %v1419 = vunpack.c.h.b16 %v250
    %v1420 = vunpack.c.l.b16 %v251
    %v1421 = vunpack.c.h.b16 %v251
    %v1422 = vunpack.c.l.b16 %v252
    %v1423 = vunpack.c.h.b16 %v252
    %v1424 = vunpack.c.l.b16 %v253
    %v1425 = vunpack.c.h.b16 %v253
    %v1426 = vunpack.c.l.b16 %v254
    %v1427 = vunpack.c.h.b16 %v254
    %v1428 = vunpack.c.l.b16 %v255
    %v1429 = vunpack.c.h.b16 %v255
    %v1430 = vunpack.c.l.b16 %v256
    %v1431 = vunpack.c.h.b16 %v256
    %v1432 = vunpack.c.l.b16 %v257
    %v1433 = vunpack.c.h.b16 %v257
    %v1434 = vunpack.c.l.b16 %v258
    %v1435 = vunpack.c.h.b16 %v258
    %v1436 = vunpack.c.l.b16 %v259
    %v1437 = vunpack.c.h.b16 %v259
    %v1438 = vunpack.c.l.b16 %v260
    %v1439 = vunpack.c.h.b16 %v260
    %v1440 = vunpack.c.l.b16 %v261
    %v1441 = vunpack.c.h.b16 %v261
    %v1442 = vunpack.c.l.b16 %v262
    %v1443 = vunpack.c.h.b16 %v262
    %v1444 = vunpack.c.l.b16 %v263
    %v1445 = vunpack.c.h.b16 %v263
    %v1446 = vunpack.c.l.b16 %v264
    %v1447 = vunpack.c.h.b16 %v264
    %v1448 = vunpack.c.l.b16 %v265
    %v1449 = vunpack.c.h.b16 %v265
    %v1450 = vunpack.c.l.b16 %v266
    %v1451 = vunpack.c.h.b16 %v266
    %v1452 = vunpack.c.l.b16 %v267
    %v1453 = vunpack.c.h.b16 %v267
    %v1454 = vunpack.c.l.b16 %v268
    %v1455 = vunpack.c.h.b16 %v268
    %v1456 = vunpack.c.l.b16 %v269
    %v1457 = vunpack.c.h.b16 %v269
    %v1458 = vunpack.c.l.b16 %v270
    %v1459 = vunpack.c.h.b16 %v270
    %v1460 = vunpack.c.l.b16 %v271
    %v1461 = vunpack.c.h.b16 %v271
    %v1462 = vunpack.c.l.b16 %v272
    %v1463 = vunpack.c.h.b16 %v272
    %v1464 = vunpack.c.l.b16 %v273
    %v1465 = vunpack.c.h.b16 %v273
    %v1466 = vunpack.c.l.b16 %v274
    %v1467 = vunpack.c.h.b16 %v274
    %v1468 = vunpack.c.l.b16 %v275
    %v1469 = vunpack.c.h.b16 %v275
    %v1470 = vunpack.c.l.b16 %v276
    %v1471 = vunpack.c.h.b16 %v276
    %v1472 = vunpack.c.l.b16 %v277
    %v1473 = vunpack.c.h.b16 %v277
    %v1474 = vunpack.c.l.b16 %v278
    %v1475 = vunpack.c.h.b16 %v278
    %v1476 = vunpack.c.l.b16 %v279
    %v1477 = vunpack.c.h.b16 %v279
    %v1478 = vunpack.c.l.b16 %v280
    %v1479 = vunpack.c.h.b16 %v280
    %v1480 = vunpack.c.l.b16 %v281
    %v1481 = vunpack.c.h.b16 %v281
    %v1482 = vunpack.c.l.b16 %v282
    %v1483 = vunpack.c.h.b16 %v282
    %v1484 = vunpack.c.l.b16 %v283
    %v1485 = vunpack.c.h.b16 %v283
    %v1486 = vunpack.c.l.b16 %v284
    %v1487 = vunpack.c.h.b16 %v284
    %v1488 = vunpack.c.l.b16 %v285
    %v1489 = vunpack.c.h.b16 %v285
    %v1490 = vunpack.c.l.b16 %v286
    %v1491 = vunpack.c.h.b16 %v286
    %v1492 = vunpack.c.l.b16 %v287
    %v1493 = vunpack.c.h.b16 %v287
    %v1494 = vunpack.c.l.b16 %v288
    %v1495 = vunpack.c.h.b16 %v288
    %v1496 = vunpack.c.l.b16 %v289
    %v1497 = vunpack.c.h.b16 %v289
    %v1498 = vunpack.c.l.b16 %v290
    %v1499 = vunpack.c.h.b16 %v290
    %v1500 = vunpack.c.l.b16 %v291
    %v1501 = vunpack.c.h.b16 %v291
    %v1502 = vunpack.c.l.b16 %v292
    %v1503 = vunpack.c.h.b16 %v292
    %v1504 = vunpack.c.l.b16 %v293
    %v1505 = vunpack.c.h.b16 %v293
    %v1506 = vunpack.c.l.b16 %v294
    %v1507 = vunpack.c.h.b16 %v294
    %v1508 = vunpack.c.l.b16 %v295
    %v1509 = vunpack.c.h.b16 %v295
    %v1510 = vunpack.c.l.b16 %v296
    %v1511 = vunpack.c.h.b16 %v296
    %v1512 = vunpack.c.l.b16 %v297
    %v1513 = vunpack.c.h.b16 %v297
    %v1514 = vunpack.c.l.b16 %v298
    %v1515 = vunpack.c.h.b16 %v298
    %v1516 = vunpack.c.l.b16 %v299
    %v1517 = vunpack.c.h.b16 %v299
    %v1518 = vunpack.c.l.b16 %v300
    %v1519 = vunpack.c.h.b16 %v300
    %v1520 = vunpack.c.l.b16 %v301
    %v1521 = vunpack.c.h.b16 %v301
    %v1522 = vunpack.c.l.b16 %v302
    %v1523 = vunpack.c.h.b16 %v302
    %v1524 = vunpack.c.l.b16 %v303
    %v1525 = vunpack.c.h.b16 %v303
    %v1526 = vunpack.c.l.b16 %v304
    %v1527 = vunpack.c.h.b16 %v304
    %v1528 = vunpack.c.l.b16 %v305
    %v1529 = vunpack.c.h.b16 %v305
    %v1530 = vunpack.c.l.b16 %v306
    %v1531 = vunpack.c.h.b16 %v306
    %v1532 = vunpack.c.l.b16 %v307
    %v1533 = vunpack.c.h.b16 %v307
    %v1534 = vunpack.c.l.b16 %v308
    %v1535 = vunpack.c.h.b16 %v308
    %v1536 = vunpack.c.l.b16 %v309
    %v1537 = vunpack.c.h.b16 %v309
    %v1538 = vunpack.c.l.b16 %v310
    %v1539 = vunpack.c.h.b16 %v310
    %v1540 = vunpack.c.l.b16 %v311
    %v1541 = vunpack.c.h.b16 %v311
    %v1542 = vunpack.c.l.b16 %v312
    %v1543 = vunpack.c.h.b16 %v312
    %v1544 = vunpack.c.l.b16 %v313
    %v1545 = vunpack.c.h.b16 %v313
    %v1546 = vunpack.c.l.b16 %v314
    %v1547 = vunpack.c.h.b16 %v314
    %v1548 = vunpack.c.l.b16 %v315
    %v1549 = vunpack.c.h.b16 %v315
    %v1550 = vunpack.c.l.b16 %v316
    %v1551 = vunpack.c.h.b16 %v316
    %v1552 = vunpack.c.l.b16 %v317
    %v1553 = vunpack.c.h.b16 %v317
    %v1554 = vunpack.c.l.b16 %v318
    %v1555 = vunpack.c.h.b16 %v318
    %v1556 = vunpack.c.l.b16 %v319
    %v1557 = vunpack.c.h.b16 %v319
    %v1558 = vunpack.c.l.b16 %v320
    %v1559 = vunpack.c.h.b16 %v320
    %v1560 = vunpack.c.l.b16 %v321
    %v1561 = vunpack.c.h.b16 %v321
    %v1562 = vunpack.c.l.b16 %v322
    %v1563 = vunpack.c.h.b16 %v322
    %v1564 = vunpack.c.l.b16 %v323
    %v1565 = vunpack.c.h.b16 %v323
    %v1566 = vunpack.c.l.b16 %v324
    %v1567 = vunpack.c.h.b16 %v324
    %v1568 = vunpack.c.l.b16 %v325
    %v1569 = vunpack.c.h.b16 %v325
    %v1570 = vunpack.c.l.b16 %v326
    %v1571 = vunpack.c.h.b16 %v326
    %v1572 = vunpack.c.l.b16 %v327
    %v1573 = vunpack.c.h.b16 %v327
    %v1574 = vunpack.c.l.b16 %v328
    %v1575 = vunpack.c.h.b16 %v328
    %v1576 = vunpack.c.l.b16 %v329
    %v1577 = vunpack.c.h.b16 %v329
    %v1578 = vunpack.c.l.b16 %v330
    %v1579 = vunpack.c.h.b16 %v330
    %v1580 = vunpack.c.l.b16 %v331
    %v1581 = vunpack.c.h.b16 %v331
    %v1582 = vunpack.c.l.b16 %v332
    %v1583 = vunpack.c.h.b16 %v332
    %v1584 = vunpack.c.l.b16 %v333
    %v1585 = vunpack.c.h.b16 %v333
    %v1586 = vunpack.c.l.b16 %v334
    %v1587 = vunpack.c.h.b16 %v334
    %v1588 = vunpack.c.l.b16 %v335
    %v1589 = vunpack.c.h.b16 %v335
    %v1590 = vunpack.c.l.b16 %v336
    %v1591 = vunpack.c.h.b16 %v336
    %v1592 = vunpack.c.l.b16 %v337
    %v1593 = vunpack.c.h.b16 %v337
    %v1594 = vunpack.c.l.b16 %v338
    %v1595 = vunpack.c.h.b16 %v338
    %v1596 = vunpack.c.l.b16 %v339
    %v1597 = vunpack.c.h.b16 %v339
    %v1598 = vunpack.c.l.b16 %v340
    %v1599 = vunpack.c.h.b16 %v340
    %v1600 = vunpack.c.l.b16 %v341
    %v1601 = vunpack.c.h.b16 %v341
    %v1602 = vunpack.c.l.b16 %v342
    %v1603 = vunpack.c.h.b16 %v342
    %v1604 = vunpack.c.l.b16 %v343
    %v1605 = vunpack.c.h.b16 %v343
    %v1606 = vunpack.c.l.b16 %v344
    %v1607 = vunpack.c.h.b16 %v344
    %v1608 = vunpack.c.l.b16 %v345
    %v1609 = vunpack.c.h.b16 %v345
    %v1610 = vunpack.c.l.b16 %v346
    %v1611 = vunpack.c.h.b16 %v346
    %v1612 = vunpack.c.l.b16 %v347
    %v1613 = vunpack.c.h.b16 %v347
    %v1614 = vunpack.c.l.b16 %v348
    %v1615 = vunpack.c.h.b16 %v348
    %v1616 = vunpack.c.l.b16 %v349
    %v1617 = vunpack.c.h.b16 %v349
    %v1618 = vunpack.c.l.b16 %v350
    %v1619 = vunpack.c.h.b16 %v350
    %v1620 = vunpack.c.l.b16 %v351
    %v1621 = vunpack.c.h.b16 %v351
    %v1622 = vunpack.c.l.b16 %v352
    %v1623 = vunpack.c.h.b16 %v352
    %v1624 = vunpack.c.l.b16 %v353
    %v1625 = vunpack.c.h.b16 %v353
    %v1626 = vunpack.c.l.b16 %v354
    %v1627 = vunpack.c.h.b16 %v354
    %v1628 = vunpack.c.l.b16 %v355
    %v1629 = vunpack.c.h.b16 %v355
    %v1630 = vunpack.c.l.b16 %v356
    %v1631 = vunpack.c.h.b16 %v356
    %v1632 = vunpack.c.l.b16 %v357
    %v1633 = vunpack.c.h.b16 %v357
    %v1634 = vunpack.c.l.b16 %v358
    %v1635 = vunpack.c.h.b16 %v358
    %v1636 = vunpack.c.l.b16 %v359
    %v1637 = vunpack.c.h.b16 %v359
    %v1638 = vunpack.c.l.b16 %v360
    %v1639 = vunpack.c.h.b16 %v360
    %v1640 = vunpack.c.l.b16 %v361
    %v1641 = vunpack.c.h.b16 %v361
    %v1642 = vunpack.c.l.b16 %v362
    %v1643 = vunpack.c.h.b16 %v362
    %v1644 = vunpack.c.l.b16 %v363
    %v1645 = vunpack.c.h.b16 %v363
    %v1646 = vunpack.c.l.b16 %v364
    %v1647 = vunpack.c.h.b16 %v364
    %v1648 = vunpack.c.l.b16 %v365
    %v1649 = vunpack.c.h.b16 %v365
    %v1650 = vunpack.c.l.b16 %v366
    %v1651 = vunpack.c.h.b16 %v366
    %v1652 = vunpack.c.l.b16 %v367
    %v1653 = vunpack.c.h.b16 %v367
    %v1654 = vunpack.c.l.b16 %v368
    %v1655 = vunpack.c.h.b16 %v368
    %v1656 = vunpack.c.l.b16 %v369
    %v1657 = vunpack.c.h.b16 %v369
    %v1658 = vunpack.c.l.b16 %v370
    %v1659 = vunpack.c.h.b16 %v370
    %v1660 = vunpack.c.l.b16 %v371
    %v1661 = vunpack.c.h.b16 %v371
    %v1662 = vunpack.c.l.b16 %v372
    %v1663 = vunpack.c.h.b16 %v372
    %v1664 = vunpack.c.l.b16 %v373
    %v1665 = vunpack.c.h.b16 %v373
    %v1666 = vunpack.c.l.b16 %v374
    %v1667 = vunpack.c.h.b16 %v374
    %v1668 = vunpack.c.l.b16 %v375
    %v1669 = vunpack.c.h.b16 %v375
    %v1670 = vunpack.c.l.b16 %v376
    %v1671 = vunpack.c.h.b16 %v376
    %v1672 = vunpack.c.l.b16 %v377
    %v1673 = vunpack.c.h.b16 %v377
    %v1674 = vunpack.c.l.b16 %v378
    %v1675 = vunpack.c.h.b16 %v378
    %v1676 = vunpack.c.l.b16 %v379
    %v1677 = vunpack.c.h.b16 %v379
    %v1678 = vunpack.c.l.b16 %v380
    %v1679 = vunpack.c.h.b16 %v380
    %v1680 = vunpack.c.l.b16 %v381
    %v1681 = vunpack.c.h.b16 %v381
    %v1682 = vunpack.c.l.b16 %v382
    %v1683 = vunpack.c.h.b16 %v382
    %v1684 = vunpack.c.l.b16 %v383
    %v1685 = vunpack.c.h.b16 %v383
    %v1686 = vunpack.c.l.b16 %v384
    %v1687 = vunpack.c.h.b16 %v384
    %v1688 = vunpack.c.l.b16 %v385
    %v1689 = vunpack.c.h.b16 %v385
    %v1690 = vunpack.c.l.b16 %v386
    %v1691 = vunpack.c.h.b16 %v386
    %v1692 = vunpack.c.l.b16 %v387
    %v1693 = vunpack.c.h.b16 %v387
    %v1694 = vunpack.c.l.b16 %v388
    %v1695 = vunpack.c.h.b16 %v388
    %v1696 = vunpack.c.l.b16 %v389
    %v1697 = vunpack.c.h.b16 %v389
    %v1698 = vunpack.c.l.b16 %v390
    %v1699 = vunpack.c.h.b16 %v390
    %v1700 = vunpack.c.l.b16 %v391
    %v1701 = vunpack.c.h.b16 %v391
    %v1702 = vunpack.c.l.b16 %v392
    %v1703 = vunpack.c.h.b16 %v392
    %v1704 = vunpack.c.l.b16 %v393
    %v1705 = vunpack.c.h.b16 %v393
    %v1706 = vunpack.c.l.b16 %v394
    %v1707 = vunpack.c.h.b16 %v394
    %v1708 = vunpack.c.l.b16 %v395
    %v1709 = vunpack.c.h.b16 %v395
    %v1710 = vunpack.c.l.b16 %v396
    %v1711 = vunpack.c.h.b16 %v396
    %v1712 = vunpack.c.l.b16 %v397
    %v1713 = vunpack.c.h.b16 %v397
    %v1714 = vunpack.c.l.b16 %v398
    %v1715 = vunpack.c.h.b16 %v398
    %v1716 = vunpack.c.l.b16 %v399
    %v1717 = vunpack.c.h.b16 %v399
    %v1718 = vunpack.c.l.b16 %v400
    %v1719 = vunpack.c.h.b16 %v400
    %v1720 = vunpack.c.l.b16 %v401
    %v1721 = vunpack.c.h.b16 %v401
    %v1722 = vunpack.c.l.b16 %v402
    %v1723 = vunpack.c.h.b16 %v402
    %v1724 = vunpack.c.l.b16 %v403
    %v1725 = vunpack.c.h.b16 %v403
    %v1726 = vunpack.c.l.b16 %v404
    %v1727 = vunpack.c.h.b16 %v404
    %v1728 = vunpack.c.l.b16 %v405
    %v1729 = vunpack.c.h.b16 %v405
    %v1730 = vunpack.c.l.b16 %v406
    %v1731 = vunpack.c.h.b16 %v406
    %v1732 = vunpack.c.l.b16 %v407
    %v1733 = vunpack.c.h.b16 %v407
    %v1734 = vunpack.c.l.b16 %v408
    %v1735 = vunpack.c.h.b16 %v408
    %v1736 = vunpack.c.l.b16 %v409
    %v1737 = vunpack.c.h.b16 %v409
    %v1738 = vunpack.c.l.b16 %v410
    %v1739 = vunpack.c.h.b16 %v410
    %v1740 = vunpack.c.l.b16 %v411
    %v1741 = vunpack.c.h.b16 %v411
    %v1742 = vunpack.c.l.b16 %v412
    %v1743 = vunpack.c.h.b16 %v412
    %v1744 = vunpack.c.l.b16 %v413
    %v1745 = vunpack.c.h.b16 %v413
    %v1746 = vunpack.c.l.b16 %v414
    %v1747 = vunpack.c.h.b16 %v414
    %v1748 = vunpack.c.l.b16 %v415
    %v1749 = vunpack.c.h.b16 %v415
    %v1750 = vunpack.c.l.b16 %v416
    %v1751 = vunpack.c.h.b16 %v416
    %v1752 = vunpack.c.l.b16 %v417
    %v1753 = vunpack.c.h.b16 %v417
    %v1754 = vunpack.c.l.b16 %v418
    %v1755 = vunpack.c.h.b16 %v418
    %v1756 = vunpack.c.l.b16 %v419
    %v1757 = vunpack.c.h.b16 %v419
    %v1758 = vunpack.c.l.b16 %v420
    %v1759 = vunpack.c.h.b16 %v420
    %v1760 = vunpack.c.l.b16 %v421
    %v1761 = vunpack.c.h.b16 %v421
    %v1762 = vunpack.c.l.b16 %v422
    %v1763 = vunpack.c.h.b16 %v422
    %v1764 = vunpack.c.l.b16 %v423
    %v1765 = vunpack.c.h.b16 %v423
    %v1766 = vunpack.c.l.b16 %v424
    %v1767 = vunpack.c.h.b16 %v424
    %v1768 = vunpack.c.l.b16 %v425
    %v1769 = vunpack.c.h.b16 %v425
    %v1770 = vunpack.c.l.b16 %v426
    %v1771 = vunpack.c.h.b16 %v426
    %v1772 = vunpack.c.l.b16 %v427
    %v1773 = vunpack.c.h.b16 %v427
    %v1774 = vunpack.c.l.b16 %v428
    %v1775 = vunpack.c.h.b16 %v428
    %v1776 = vunpack.c.l.b16 %v429
    %v1777 = vunpack.c.h.b16 %v429
    %v1778 = vunpack.c.l.b16 %v430
    %v1779 = vunpack.c.h.b16 %v430
    %v1780 = vunpack.c.l.b16 %v431
    %v1781 = vunpack.c.h.b16 %v431
    %v1782 = vunpack.c.l.b16 %v432
    %v1783 = vunpack.c.h.b16 %v432
    %v1784 = vunpack.c.l.b16 %v433
    %v1785 = vunpack.c.h.b16 %v433
    %v1786 = vunpack.c.l.b16 %v434
    %v1787 = vunpack.c.h.b16 %v434
    %v1788 = vunpack.c.l.b16 %v435
    %v1789 = vunpack.c.h.b16 %v435
    %v1790 = vunpack.c.l.b16 %v436
    %v1791 = vunpack.c.h.b16 %v436
    %v1792 = vunpack.c.l.b16 %v437
    %v1793 = vunpack.c.h.b16 %v437
    %v1794 = vunpack.c.l.b16 %v438
    %v1795 = vunpack.c.h.b16 %v438
    %v1796 = vunpack.c.l.b16 %v439
    %v1797 = vunpack.c.h.b16 %v439
    %v1798 = vunpack.c.l.b16 %v440
    %v1799 = vunpack.c.h.b16 %v440
    %v1800 = vunpack.c.l.b16 %v441
    %v1801 = vunpack.c.h.b16 %v441
    %v1802 = vunpack.c.l.b16 %v442
    %v1803 = vunpack.c.h.b16 %v442
    %v1804 = vunpack.c.l.b16 %v443
    %v1805 = vunpack.c.h.b16 %v443
    %v1806 = vunpack.c.l.b16 %v444
    %v1807 = vunpack.c.h.b16 %v444
    %v1808 = vunpack.c.l.b16 %v445
    %v1809 = vunpack.c.h.b16 %v445
    %v1810 = vunpack.c.l.b16 %v446
    %v1811 = vunpack.c.h.b16 %v446
    %v1812 = vunpack.c.l.b16 %v447
    %v1813 = vunpack.c.h.b16 %v447
    %v1814 = vunpack.c.l.b16 %v448
    %v1815 = vunpack.c.h.b16 %v448
    %v1816 = vunpack.c.l.b16 %v449
    %v1817 = vunpack.c.h.b16 %v449
    %v1818 = vunpack.c.l.b16 %v450
    %v1819 = vunpack.c.h.b16 %v450
    %v1820 = vunpack.c.l.b16 %v451
    %v1821 = vunpack.c.h.b16 %v451
    %v1822 = vunpack.c.l.b16 %v452
    %v1823 = vunpack.c.h.b16 %v452
    %v1824 = vunpack.c.l.b16 %v453
    %v1825 = vunpack.c.h.b16 %v453
    %v1826 = vunpack.c.l.b16 %v454
    %v1827 = vunpack.c.h.b16 %v454
    %v1828 = vunpack.c.l.b16 %v455
    %v1829 = vunpack.c.h.b16 %v455
    %v1830 = vunpack.c.l.b16 %v456
    %v1831 = vunpack.c.h.b16 %v456
    %v1832 = vunpack.c.l.b16 %v457
    %v1833 = vunpack.c.h.b16 %v457
    %v1834 = vunpack.c.l.b16 %v458
    %v1835 = vunpack.c.h.b16 %v458
    %v1836 = vunpack.c.l.b16 %v459
    %v1837 = vunpack.c.h.b16 %v459
    %v1838 = vunpack.c.l.b16 %v460
    %v1839 = vunpack.c.h.b16 %v460
    %v1840 = vunpack.c.l.b16 %v461
    %v1841 = vunpack.c.h.b16 %v461
    %v1842 = vunpack.c.l.b16 %v462
    %v1843 = vunpack.c.h.b16 %v462
    %v1844 = vunpack.c.l.b16 %v463
    %v1845 = vunpack.c.h.b16 %v463
    %v1846 = vunpack.c.l.b16 %v464
    %v1847 = vunpack.c.h.b16 %v464
    %v1848 = vunpack.c.l.b16 %v465
    %v1849 = vunpack.c.h.b16 %v465
    %v1850 = vunpack.c.l.b16 %v466
    %v1851 = vunpack.c.h.b16 %v466
    %v1852 = vunpack.c.l.b16 %v467
    %v1853 = vunpack.c.h.b16 %v467
    %v1854 = vunpack.c.l.b16 %v468
    %v1855 = vunpack.c.h.b16 %v468
    %v1856 = vunpack.c.l.b16 %v469
    %v1857 = vunpack.c.h.b16 %v469
    %v1858 = vunpack.c.l.b16 %v470
    %v1859 = vunpack.c.h.b16 %v470
    %v1860 = vunpack.c.l.b16 %v471
    %v1861 = vunpack.c.h.b16 %v471
    %v1862 = vunpack.c.l.b16 %v472
    %v1863 = vunpack.c.h.b16 %v472
    %v1864 = vunpack.c.l.b16 %v473
    %v1865 = vunpack.c.h.b16 %v473
    %v1866 = vunpack.c.l.b16 %v474
    %v1867 = vunpack.c.h.b16 %v474
    %v1868 = vunpack.c.l.b16 %v475
    %v1869 = vunpack.c.h.b16 %v475
    %v1870 = vunpack.c.l.b16 %v476
    %v1871 = vunpack.c.h.b16 %v476
    %v1872 = vunpack.c.l.b16 %v477
    %v1873 = vunpack.c.h.b16 %v477
    %v1874 = vunpack.c.l.b16 %v478
    %v1875 = vunpack.c.h.b16 %v478
    %v1876 = vunpack.c.l.b16 %v479
    %v1877 = vunpack.c.h.b16 %v479
    %v1878 = vunpack.c.l.b16 %v480
    %v1879 = vunpack.c.h.b16 %v480
    %v1880 = vunpack.c.l.b16 %v481
    %v1881 = vunpack.c.h.b16 %v481
    %v1882 = vunpack.c.l.b16 %v482
    %v1883 = vunpack.c.h.b16 %v482
    %v1884 = vunpack.c.l.b16 %v483
    %v1885 = vunpack.c.h.b16 %v483
    %v1886 = vunpack.c.l.b16 %v484
    %v1887 = vunpack.c.h.b16 %v484
    %v1888 = vunpack.c.l.b16 %v485
    %v1889 = vunpack.c.h.b16 %v485
    %v1890 = vunpack.c.l.b16 %v486
    %v1891 = vunpack.c.h.b16 %v486
    %v1892 = vunpack.c.l.b16 %v487
    %v1893 = vunpack.c.h.b16 %v487
    %v1894 = vunpack.c.l.b16 %v488
    %v1895 = vunpack.c.h.b16 %v488
    %v1896 = vunpack.c.l.b16 %v489
    %v1897 = vunpack.c.h.b16 %v489
    %v1898 = vunpack.c.l.b16 %v490
    %v1899 = vunpack.c.h.b16 %v490
    %v1900 = vunpack.c.l.b16 %v491
    %v1901 = vunpack.c.h.b16 %v491
    %v1902 = vunpack.c.l.b16 %v492
    %v1903 = vunpack.c.h.b16 %v492
    %v1904 = vunpack.c.l.b16 %v493
    %v1905 = vunpack.c.h.b16 %v493
    %v1906 = vunpack.c.l.b16 %v494
    %v1907 = vunpack.c.h.b16 %v494
    %v1908 = vunpack.c.l.b16 %v495
    %v1909 = vunpack.c.h.b16 %v495
    %v1910 = vunpack.c.l.b16 %v496
    %v1911 = vunpack.c.h.b16 %v496
    %v1912 = vunpack.c.l.b16 %v497
    %v1913 = vunpack.c.h.b16 %v497
    %v1914 = vunpack.c.l.b16 %v498
    %v1915 = vunpack.c.h.b16 %v498
    %v1916 = vunpack.c.l.b16 %v499
    %v1917 = vunpack.c.h.b16 %v499
    %v1918 = vunpack.c.l.b16 %v500
    %v1919 = vunpack.c.h.b16 %v500
    %v1920 = vunpack.c.l.b16 %v501
    %v1921 = vunpack.c.h.b16 %v501
    %v1922 = vunpack.c.l.b16 %v502
    %v1923 = vunpack.c.h.b16 %v502
    %v1924 = vunpack.c.l.b16 %v503
    %v1925 = vunpack.c.h.b16 %v503
    %v1926 = vunpack.c.l.b16 %v504
    %v1927 = vunpack.c.h.b16 %v504
    %v1928 = vunpack.c.l.b16 %v505
    %v1929 = vunpack.c.h.b16 %v505
    %v1930 = vunpack.c.l.b16 %v506
    %v1931 = vunpack.c.h.b16 %v506
    %v1932 = vunpack.c.l.b16 %v507
    %v1933 = vunpack.c.h.b16 %v507
    %v1934 = vunpack.c.l.b16 %v508
    %v1935 = vunpack.c.h.b16 %v508
    %v1936 = vunpack.c.l.b16 %v509
    %v1937 = vunpack.c.h.b16 %v509
    %v1938 = vunpack.c.l.b16 %v510
    %v1939 = vunpack.c.h.b16 %v510
    %v1940 = vunpack.c.l.b16 %v511
    %v1941 = vunpack.c.h.b16 %v511
    %v1942 = vunpack.c.l.b16 %v512
    %v1943 = vunpack.c.h.b16 %v512
    %v1944 = vunpack.c.l.b16 %v513
    %v1945 = vunpack.c.h.b16 %v513
    %v1946 = vunpack.c.l.b16 %v514
    %v1947 = vunpack.c.h.b16 %v514
    %v1948 = vunpack.c.l.b16 %v515
    %v1949 = vunpack.c.h.b16 %v515
    %v1950 = vunpack.c.l.b16 %v516
    %v1951 = vunpack.c.h.b16 %v516
    %v1952 = vunpack.c.l.b16 %v517
    %v1953 = vunpack.c.h.b16 %v517
    %v1954 = vunpack.c.l.b16 %v518
    %v1955 = vunpack.c.h.b16 %v518
    %v1956 = vunpack.c.l.b16 %v519
    %v1957 = vunpack.c.h.b16 %v519
    %v1958 = vunpack.c.l.b16 %v520
    %v1959 = vunpack.c.h.b16 %v520
    %v1960 = vunpack.c.l.b16 %v521
    %v1961 = vunpack.c.h.b16 %v521
    %v1962 = vunpack.c.l.b16 %v522
    %v1963 = vunpack.c.h.b16 %v522
    %v1964 = vunpack.c.l.b16 %v523
    %v1965 = vunpack.c.h.b16 %v523
    %v1966 = vunpack.c.l.b16 %v524
    %v1967 = vunpack.c.h.b16 %v524
    %v1968 = vunpack.c.l.b16 %v525
    %v1969 = vunpack.c.h.b16 %v525
    %v1970 = vunpack.c.l.b16 %v526
    %v1971 = vunpack.c.h.b16 %v526
    %v1972 = vunpack.c.l.b16 %v527
    %v1973 = vunpack.c.h.b16 %v527
    %v1974 = vunpack.c.l.b16 %v528
    %v1975 = vunpack.c.h.b16 %v528
    %v1976 = vunpack.c.l.b16 %v529
    %v1977 = vunpack.c.h.b16 %v529
    %v1978 = vunpack.c.l.b16 %v530
    %v1979 = vunpack.c.h.b16 %v530
    %v1980 = vunpack.c.l.b16 %v531
    %v1981 = vunpack.c.h.b16 %v531
    %v1982 = vunpack.c.l.b16 %v532
    %v1983 = vunpack.c.h.b16 %v532
    %v1984 = vunpack.c.l.b16 %v533
    %v1985 = vunpack.c.h.b16 %v533
    %v1986 = vunpack.c.l.b16 %v534
    %v1987 = vunpack.c.h.b16 %v534
    %v1988 = vunpack.c.l.b16 %v535
    %v1989 = vunpack.c.h.b16 %v535
    %v1990 = vunpack.c.l.b16 %v536
    %v1991 = vunpack.c.h.b16 %v536
    %v1992 = vunpack.c.l.b16 %v537
    %v1993 = vunpack.c.h.b16 %v537
    %v1994 = vunpack.c.l.b16 %v538
    %v1995 = vunpack.c.h.b16 %v538
    %v1996 = vunpack.c.l.b16 %v539
    %v1997 = vunpack.c.h.b16 %v539
    %v1998 = vunpack.c.l.b16 %v540
    %v1999 = vunpack.c.h.b16 %v540
    %v2000 = vunpack.c.l.b16 %v541
    %v2001 = vunpack.c.h.b16 %v541
    %v2002 = vunpack.c.l.b16 %v542
    %v2003 = vunpack.c.h.b16 %v542
    %v2004 = vunpack.c.l.b16 %v543
    %v2005 = vunpack.c.h.b16 %v543
    %v2006 = vunpack.c.l.b16 %v544
    %v2007 = vunpack.c.h.b16 %v544
    %v2008 = vunpack.c.l.b16 %v545
    %v2009 = vunpack.c.h.b16 %v545
    %v2010 = vunpack.c.l.b16 %v546
    %v2011 = vunpack.c.h.b16 %v546
    %v2012 = vunpack.c.l.b16 %v547
    %v2013 = vunpack.c.h.b16 %v547
    %v2014 = vunpack.c.l.b16 %v548
    %v2015 = vunpack.c.h.b16 %v548
    %v2016 = vunpack.c.l.b16 %v549
    %v2017 = vunpack.c.h.b16 %v549
    %v2018 = vunpack.c.l.b16 %v550
    %v2019 = vunpack.c.h.b16 %v550
    %v2020 = vunpack.c.l.b16 %v551
    %v2021 = vunpack.c.h.b16 %v551
    %v2022 = vunpack.c.l.b16 %v552
    %v2023 = vunpack.c.h.b16 %v552
    %v2024 = vunpack.c.l.b16 %v553
    %v2025 = vunpack.c.h.b16 %v553
    %v2026 = vunpack.c.l.b16 %v554
    %v2027 = vunpack.c.h.b16 %v554
    %v2028 = vunpack.c.l.b16 %v555
    %v2029 = vunpack.c.h.b16 %v555
    %v2030 = vunpack.c.l.b16 %v556
    %v2031 = vunpack.c.h.b16 %v556
    %v2032 = vunpack.c.l.b16 %v557
    %v2033 = vunpack.c.h.b16 %v557
    %v2034 = vunpack.c.l.b16 %v558
    %v2035 = vunpack.c.h.b16 %v558
    %v2036 = vunpack.c.l.b16 %v559
    %v2037 = vunpack.c.h.b16 %v559
    %v2038 = vunpack.c.l.b16 %v560
    %v2039 = vunpack.c.h.b16 %v560
    %v2040 = vunpack.c.l.b16 %v561
    %v2041 = vunpack.c.h.b16 %v561
    %v2042 = vunpack.c.l.b16 %v562
    %v2043 = vunpack.c.h.b16 %v562
    %v2044 = vunpack.c.l.b16 %v563
    %v2045 = vunpack.c.h.b16 %v563
    %v2046 = vunpack.c.l.b16 %v564
    %v2047 = vunpack.c.h.b16 %v564
    %v2048 = vunpack.c.l.b16 %v565
    %v2049 = vunpack.c.h.b16 %v565
    %v2050 = vunpack.c.l.b16 %v566
    %v2051 = vunpack.c.h.b16 %v566
    %v2052 = vunpack.c.l.b16 %v567
    %v2053 = vunpack.c.h.b16 %v567
    %v2054 = vunpack.c.l.b16 %v568
    %v2055 = vunpack.c.h.b16 %v568
    %v2056 = vunpack.c.l.b16 %v569
    %v2057 = vunpack.c.h.b16 %v569
    %v2058 = vunpack.c.l.b16 %v570
    %v2059 = vunpack.c.h.b16 %v570
    %v2060 = vunpack.c.l.b16 %v571
    %v2061 = vunpack.c.h.b16 %v571
    %v2062 = vunpack.c.l.b16 %v572
    %v2063 = vunpack.c.h.b16 %v572
    %v2064 = vunpack.c.l.b16 %v573
    %v2065 = vunpack.c.h.b16 %v573
    %v2066 = vunpack.c.l.b16 %v574
    %v2067 = vunpack.c.h.b16 %v574
    %v2068 = vunpack.c.l.b16 %v575
    %v2069 = vunpack.c.h.b16 %v575
    %v2070 = vunpack.c.l.b16 %v576
    %v2071 = vunpack.c.h.b16 %v576
    %v2072 = vunpack.c.l.b16 %v577
    %v2073 = vunpack.c.h.b16 %v577
    %v2074 = vunpack.c.l.b16 %v578
    %v2075 = vunpack.c.h.b16 %v578
    %v2076 = vunpack.c.l.b16 %v579
    %v2077 = vunpack.c.h.b16 %v579
    %v2078 = vunpack.c.l.b16 %v580
    %v2079 = vunpack.c.h.b16 %v580
    %v2080 = vunpack.c.l.b16 %v581
    %v2081 = vunpack.c.h.b16 %v581
    %v2082 = vunpack.c.l.b16 %v582
    %v2083 = vunpack.c.h.b16 %v582
    %v2084 = vunpack.c.l.b16 %v583
    %v2085 = vunpack.c.h.b16 %v583
    %v2086 = vunpack.c.l.b16 %v584
    %v2087 = vunpack.c.h.b16 %v584
    %v2088 = vunpack.c.l.b16 %v585
    %v2089 = vunpack.c.h.b16 %v585
    %v2090 = vunpack.c.l.b16 %v586
    %v2091 = vunpack.c.h.b16 %v586
    %v2092 = vunpack.c.l.b16 %v587
    %v2093 = vunpack.c.h.b16 %v587
    %v2094 = vunpack.c.l.b16 %v588
    %v2095 = vunpack.c.h.b16 %v588
    %v2096 = vunpack.c.l.b16 %v589
    %v2097 = vunpack.c.h.b16 %v589
    %v2098 = vunpack.c.l.b16 %v590
    %v2099 = vunpack.c.h.b16 %v590
    %v2100 = vunpack.c.l.b16 %v591
    %v2101 = vunpack.c.h.b16 %v591
    %v2102 = vunpack.c.l.b16 %v592
    %v2103 = vunpack.c.h.b16 %v592
    %v2104 = vunpack.c.l.b16 %v593
    %v2105 = vunpack.c.h.b16 %v593
    %v2106 = vunpack.c.l.b16 %v594
    %v2107 = vunpack.c.h.b16 %v594
    %v2108 = vunpack.c.l.b16 %v595
    %v2109 = vunpack.c.h.b16 %v595
    %v2110 = vunpack.c.l.b16 %v596
    %v2111 = vunpack.c.h.b16 %v596
    %v2112 = vunpack.c.l.b16 %v597
    %v2113 = vunpack.c.h.b16 %v597
    %v2114 = vunpack.c.l.b16 %v598
    %v2115 = vunpack.c.h.b16 %v598
    %v2116 = vunpack.c.l.b16 %v599
    %v2117 = vunpack.c.h.b16 %v599
    %v2118 = vunpack.c.l.b16 %v600
    %v2119 = vunpack.c.h.b16 %v600
    %v2120 = vunpack.c.l.b16 %v601
    %v2121 = vunpack.c.h.b16 %v601
    %v2122 = vunpack.c.l.b16 %v602
    %v2123 = vunpack.c.h.b16 %v602
    %v2124 = vunpack.c.l.b16 %v603
    %v2125 = vunpack.c.h.b16 %v603
    %v2126 = vunpack.c.l.b16 %v604
    %v2127 = vunpack.c.h.b16 %v604
    %v2128 = vunpack.c.l.b16 %v605
    %v2129 = vunpack.c.h.b16 %v605
    %v2130 = vunpack.c.l.b16 %v606
    %v2131 = vunpack.c.h.b16 %v606
    %v2132 = vunpack.c.l.b16 %v607
    %v2133 = vunpack.c.h.b16 %v607
    %v2134 = vunpack.c.l.b16 %v608
    %v2135 = vunpack.c.h.b16 %v608
    %v2136 = vunpack.c.l.b16 %v609
    %v2137 = vunpack.c.h.b16 %v609
    %v2138 = vunpack.c.l.b16 %v610
    %v2139 = vunpack.c.h.b16 %v610
    %v2140 = vunpack.c.l.b16 %v611
    %v2141 = vunpack.c.h.b16 %v611
    %v2142 = vunpack.c.l.b16 %v612
    %v2143 = vunpack.c.h.b16 %v612
    %v2144 = vunpack.c.l.b16 %v613
    %v2145 = vunpack.c.h.b16 %v613
    %v2146 = vunpack.c.l.b16 %v614
    %v2147 = vunpack.c.h.b16 %v614
    %v2148 = vunpack.c.l.b16 %v615
    %v2149 = vunpack.c.h.b16 %v615
    %v2150 = vunpack.c.l.b16 %v616
    %v2151 = vunpack.c.h.b16 %v616
    %v2152 = vunpack.c.l.b16 %v617
    %v2153 = vunpack.c.h.b16 %v617
    %v2154 = vunpack.c.l.b16 %v618
    %v2155 = vunpack.c.h.b16 %v618
    %v2156 = vunpack.c.l.b16 %v619
    %v2157 = vunpack.c.h.b16 %v619
    %v2158 = vunpack.c.l.b16 %v620
    %v2159 = vunpack.c.h.b16 %v620
    %v2160 = vunpack.c.l.b16 %v621
    %v2161 = vunpack.c.h.b16 %v621
    %v2162 = vunpack.c.l.b16 %v622
    %v2163 = vunpack.c.h.b16 %v622
    %v2164 = vunpack.c.l.b16 %v623
    %v2165 = vunpack.c.h.b16 %v623
    %v2166 = vunpack.c.l.b16 %v624
    %v2167 = vunpack.c.h.b16 %v624
    %v2168 = vunpack.c.l.b16 %v625
    %v2169 = vunpack.c.h.b16 %v625
    %v2170 = vunpack.c.l.b16 %v626
    %v2171 = vunpack.c.h.b16 %v626
    %v2172 = vunpack.c.l.b16 %v627
    %v2173 = vunpack.c.h.b16 %v627
    %v2174 = vunpack.c.l.b16 %v628
    %v2175 = vunpack.c.h.b16 %v628
    %v2176 = vunpack.c.l.b16 %v629
    %v2177 = vunpack.c.h.b16 %v629
    %v2178 = vunpack.c.l.b16 %v630
    %v2179 = vunpack.c.h.b16 %v630
    %v2180 = vunpack.c.l.b16 %v631
    %v2181 = vunpack.c.h.b16 %v631
    %v2182 = vunpack.c.l.b16 %v632
    %v2183 = vunpack.c.h.b16 %v632
    %v2184 = vunpack.c.l.b16 %v633
    %v2185 = vunpack.c.h.b16 %v633
    %v2186 = vunpack.c.l.b16 %v634
    %v2187 = vunpack.c.h.b16 %v634
    %v2188 = vunpack.c.l.b16 %v635
    %v2189 = vunpack.c.h.b16 %v635
    %v2190 = vpack.c.b16 %v1174, %v1166
    %v2191 = vpack.c.b16 %v1175, %v1167
    %v2192 = vpack.c.b16 %v1176, %v1168
    %v2193 = vpack.c.b16 %v1177, %v1169
    %v2194 = vpack.c.b16 %v1178, %v1170
    %v2195 = vpack.c.b16 %v1179, %v1171
    %v2196 = vpack.c.b16 %v1180, %v1172
    %v2197 = vpack.c.b16 %v1181, %v1173
    %v2198 = vpack.c.b16 %v1190, %v1182
    %v2199 = vpack.c.b16 %v1191, %v1183
    %v2200 = vpack.c.b16 %v1192, %v1184
    %v2201 = vpack.c.b16 %v1193, %v1185
    %v2202 = vpack.c.b16 %v1194, %v1186
    %v2203 = vpack.c.b16 %v1195, %v1187
    %v2204 = vpack.c.b16 %v1196, %v1188
    %v2205 = vpack.c.b16 %v1197, %v1189
    %v2206 = vpack.c.b16 %v1206, %v1198
    %v2207 = vpack.c.b16 %v1207, %v1199
    %v2208 = vpack.c.b16 %v1208, %v1200
    %v2209 = vpack.c.b16 %v1209, %v1201
    %v2210 = vpack.c.b16 %v1210, %v1202
    %v2211 = vpack.c.b16 %v1211, %v1203
    %v2212 = vpack.c.b16 %v1212, %v1204
    %v2213 = vpack.c.b16 %v1213, %v1205
    %v2214 = vpack.c.b16 %v1222, %v1214
    %v2215 = vpack.c.b16 %v1223, %v1215
    %v2216 = vpack.c.b16 %v1224, %v1216
    %v2217 = vpack.c.b16 %v1225, %v1217
    %v2218 = vpack.c.b16 %v1226, %v1218
    %v2219 = vpack.c.b16 %v1227, %v1219
    %v2220 = vpack.c.b16 %v1228, %v1220
    %v2221 = vpack.c.b16 %v1229, %v1221
    %v2222 = vpack.c.b16 %v1238, %v1230
    %v2223 = vpack.c.b16 %v1239, %v1231
    %v2224 = vpack.c.b16 %v1240, %v1232
    %v2225 = vpack.c.b16 %v1241, %v1233
    %v2226 = vpack.c.b16 %v1242, %v1234
    %v2227 = vpack.c.b16 %v1243, %v1235
    %v2228 = vpack.c.b16 %v1244, %v1236
    %v2229 = vpack.c.b16 %v1245, %v1237
    %v2230 = vpack.c.b16 %v1254, %v1246
    %v2231 = vpack.c.b16 %v1255, %v1247
    %v2232 = vpack.c.b16 %v1256, %v1248
    %v2233 = vpack.c.b16 %v1257, %v1249
    %v2234 = vpack.c.b16 %v1258, %v1250
    %v2235 = vpack.c.b16 %v1259, %v1251
    %v2236 = vpack.c.b16 %v1260, %v1252
    %v2237 = vpack.c.b16 %v1261, %v1253
    %v2238 = vpack.c.b16 %v1270, %v1262
    %v2239 = vpack.c.b16 %v1271, %v1263
    %v2240 = vpack.c.b16 %v1272, %v1264
    %v2241 = vpack.c.b16 %v1273, %v1265
    %v2242 = vpack.c.b16 %v1274, %v1266
    %v2243 = vpack.c.b16 %v1275, %v1267
    %v2244 = vpack.c.b16 %v1276, %v1268
    %v2245 = vpack.c.b16 %v1277, %v1269
    %v2246 = vpack.c.b16 %v1286, %v1278
    %v2247 = vpack.c.b16 %v1287, %v1279
    %v2248 = vpack.c.b16 %v1288, %v1280
    %v2249 = vpack.c.b16 %v1289, %v1281
    %v2250 = vpack.c.b16 %v1290, %v1282
    %v2251 = vpack.c.b16 %v1291, %v1283
    %v2252 = vpack.c.b16 %v1292, %v1284
    %v2253 = vpack.c.b16 %v1293, %v1285
    %v2254 = vpack.c.b16 %v1302, %v1294
    %v2255 = vpack.c.b16 %v1303, %v1295
    %v2256 = vpack.c.b16 %v1304, %v1296
    %v2257 = vpack.c.b16 %v1305, %v1297
    %v2258 = vpack.c.b16 %v1306, %v1298
    %v2259 = vpack.c.b16 %v1307, %v1299
    %v2260 = vpack.c.b16 %v1308, %v1300
    %v2261 = vpack.c.b16 %v1309, %v1301
    %v2262 = vpack.c.b16 %v1318, %v1310
    %v2263 = vpack.c.b16 %v1319, %v1311
    %v2264 = vpack.c.b16 %v1320, %v1312
    %v2265 = vpack.c.b16 %v1321, %v1313
    %v2266 = vpack.c.b16 %v1322, %v1314
    %v2267 = vpack.c.b16 %v1323, %v1315
    %v2268 = vpack.c.b16 %v1324, %v1316
    %v2269 = vpack.c.b16 %v1325, %v1317
    %v2270 = vpack.c.b16 %v1334, %v1326
    %v2271 = vpack.c.b16 %v1335, %v1327
    %v2272 = vpack.c.b16 %v1336, %v1328
    %v2273 = vpack.c.b16 %v1337, %v1329
    %v2274 = vpack.c.b16 %v1338, %v1330
    %v2275 = vpack.c.b16 %v1339, %v1331
    %v2276 = vpack.c.b16 %v1340, %v1332
    %v2277 = vpack.c.b16 %v1341, %v1333
    %v2278 = vpack.c.b16 %v1350, %v1342
    %v2279 = vpack.c.b16 %v1351, %v1343
    %v2280 = vpack.c.b16 %v1352, %v1344
    %v2281 = vpack.c.b16 %v1353, %v1345
    %v2282 = vpack.c.b16 %v1354, %v1346
    %v2283 = vpack.c.b16 %v1355, %v1347
    %v2284 = vpack.c.b16 %v1356, %v1348
    %v2285 = vpack.c.b16 %v1357, %v1349
    %v2286 = vpack.c.b16 %v1366, %v1358
    %v2287 = vpack.c.b16 %v1367, %v1359
    %v2288 = vpack.c.b16 %v1368, %v1360
    %v2289 = vpack.c.b16 %v1369, %v1361
    %v2290 = vpack.c.b16 %v1370, %v1362
    %v2291 = vpack.c.b16 %v1371, %v1363
    %v2292 = vpack.c.b16 %v1372, %v1364
    %v2293 = vpack.c.b16 %v1373, %v1365
    %v2294 = vpack.c.b16 %v1382, %v1374
    %v2295 = vpack.c.b16 %v1383, %v1375
    %v2296 = vpack.c.b16 %v1384, %v1376
    %v2297 = vpack.c.b16 %v1385, %v1377
    %v2298 = vpack.c.b16 %v1386, %v1378
    %v2299 = vpack.c.b16 %v1387, %v1379
    %v2300 = vpack.c.b16 %v1388, %v1380
    %v2301 = vpack.c.b16 %v1389, %v1381
    %v2302 = vpack.c.b16 %v1398, %v1390
    %v2303 = vpack.c.b16 %v1399, %v1391
    %v2304 = vpack.c.b16 %v1400, %v1392
    %v2305 = vpack.c.b16 %v1401, %v1393
    %v2306 = vpack.c.b16 %v1402, %v1394
    %v2307 = vpack.c.b16 %v1403, %v1395
    %v2308 = vpack.c.b16 %v1404, %v1396
    %v2309 = vpack.c.b16 %v1405, %v1397
    %v2310 = vpack.c.b16 %v1414, %v1406
    %v2311 = vpack.c.b16 %v1415, %v1407
    %v2312 = vpack.c.b16 %v1416, %v1408
    %v2313 = vpack.c.b16 %v1417, %v1409
    %v2314 = vpack.c.b16 %v1418, %v1410
    %v2315 = vpack.c.b16 %v1419, %v1411
    %v2316 = vpack.c.b16 %v1420, %v1412
    %v2317 = vpack.c.b16 %v1421, %v1413
    %v2318 = vpack.c.b16 %v1430, %v1422
    %v2319 = vpack.c.b16 %v1431, %v1423
    %v2320 = vpack.c.b16 %v1432, %v1424
    %v2321 = vpack.c.b16 %v1433, %v1425
    %v2322 = vpack.c.b16 %v1434, %v1426
    %v2323 = vpack.c.b16 %v1435, %v1427
    %v2324 = vpack.c.b16 %v1436, %v1428
    %v2325 = vpack.c.b16 %v1437, %v1429
    %v2326 = vpack.c.b16 %v1446, %v1438
    %v2327 = vpack.c.b16 %v1447, %v1439
    %v2328 = vpack.c.b16 %v1448, %v1440
    %v2329 = vpack.c.b16 %v1449, %v1441
    %v2330 = vpack.c.b16 %v1450, %v1442
    %v2331 = vpack.c.b16 %v1451, %v1443
    %v2332 = vpack.c.b16 %v1452, %v1444
    %v2333 = vpack.c.b16 %v1453, %v1445
    %v2334 = vpack.c.b16 %v1462, %v1454
    %v2335 = vpack.c.b16 %v1463, %v1455
    %v2336 = vpack.c.b16 %v1464, %v1456
    %v2337 = vpack.c.b16 %v1465, %v1457
    %v2338 = vpack.c.b16 %v1466, %v1458
    %v2339 = vpack.c.b16 %v1467, %v1459
    %v2340 = vpack.c.b16 %v1468, %v1460
    %v2341 = vpack.c.b16 %v1469, %v1461
    %v2342 = vpack.c.b16 %v1478, %v1470
    %v2343 = vpack.c.b16 %v1479, %v1471
    %v2344 = vpack.c.b16 %v1480, %v1472
    %v2345 = vpack.c.b16 %v1481, %v1473
    %v2346 = vpack.c.b16 %v1482, %v1474
    %v2347 = vpack.c.b16 %v1483, %v1475
    %v2348 = vpack.c.b16 %v1484, %v1476
    %v2349 = vpack.c.b16 %v1485, %v1477
    %v2350 = vpack.c.b16 %v1494, %v1486
    %v2351 = vpack.c.b16 %v1495, %v1487
    %v2352 = vpack.c.b16 %v1496, %v1488
    %v2353 = vpack.c.b16 %v1497, %v1489
    %v2354 = vpack.c.b16 %v1498, %v1490
    %v2355 = vpack.c.b16 %v1499, %v1491
    %v2356 = vpack.c.b16 %v1500, %v1492
    %v2357 = vpack.c.b16 %v1501, %v1493
    %v2358 = vpack.c.b16 %v1510, %v1502
    %v2359 = vpack.c.b16 %v1511, %v1503
    %v2360 = vpack.c.b16 %v1512, %v1504
    %v2361 = vpack.c.b16 %v1513, %v1505
    %v2362 = vpack.c.b16 %v1514, %v1506
    %v2363 = vpack.c.b16 %v1515, %v1507
    %v2364 = vpack.c.b16 %v1516, %v1508
    %v2365 = vpack.c.b16 %v1517, %v1509
    %v2366 = vpack.c.b16 %v1526, %v1518
    %v2367 = vpack.c.b16 %v1527, %v1519
    %v2368 = vpack.c.b16 %v1528, %v1520
    %v2369 = vpack.c.b16 %v1529, %v1521
    %v2370 = vpack.c.b16 %v1530, %v1522
    %v2371 = vpack.c.b16 %v1531, %v1523
    %v2372 = vpack.c.b16 %v1532, %v1524
    %v2373 = vpack.c.b16 %v1533, %v1525
    %v2374 = vpack.c.b16 %v1542, %v1534
    %v2375 = vpack.c.b16 %v1543, %v1535
    %v2376 = vpack.c.b16 %v1544, %v1536
    %v2377 = vpack.c.b16 %v1545, %v1537
    %v2378 = vpack.c.b16 %v1546, %v1538
    %v2379 = vpack.c.b16 %v1547, %v1539
    %v2380 = vpack.c.b16 %v1548, %v1540
    %v2381 = vpack.c.b16 %v1549, %v1541
    %v2382 = vpack.c.b16 %v1558, %v1550
    %v2383 = vpack.c.b16 %v1559, %v1551
    %v2384 = vpack.c.b16 %v1560, %v1552
    %v2385 = vpack.c.b16 %v1561, %v1553
    %v2386 = vpack.c.b16 %v1562, %v1554
    %v2387 = vpack.c.b16 %v1563, %v1555
    %v2388 = vpack.c.b16 %v1564, %v1556
    %v2389 = vpack.c.b16 %v1565, %v1557
    %v2390 = vpack.c.b16 %v1574, %v1566
    %v2391 = vpack.c.b16 %v1575, %v1567
    %v2392 = vpack.c.b16 %v1576, %v1568
    %v2393 = vpack.c.b16 %v1577, %v1569
    %v2394 = vpack.c.b16 %v1578, %v1570
    %v2395 = vpack.c.b16 %v1579, %v1571
    %v2396 = vpack.c.b16 %v1580, %v1572
    %v2397 = vpack.c.b16 %v1581, %v1573
    %v2398 = vpack.c.b16 %v1590, %v1582
    %v2399 = vpack.c.b16 %v1591, %v1583
    %v2400 = vpack.c.b16 %v1592, %v1584
    %v2401 = vpack.c.b16 %v1593, %v1585
    %v2402 = vpack.c.b16 %v1594, %v1586
    %v2403 = vpack.c.b16 %v1595, %v1587
    %v2404 = vpack.c.b16 %v1596, %v1588
    %v2405 = vpack.c.b16 %v1597, %v1589
    %v2406 = vpack.c.b16 %v1606, %v1598
    %v2407 = vpack.c.b16 %v1607, %v1599
    %v2408 = vpack.c.b16 %v1608, %v1600
    %v2409 = vpack.c.b16 %v1609, %v1601
    %v2410 = vpack.c.b16 %v1610, %v1602
    %v2411 = vpack.c.b16 %v1611, %v1603
    %v2412 = vpack.c.b16 %v1612, %v1604
    %v2413 = vpack.c.b16 %v1613, %v1605
    %v2414 = vpack.c.b16 %v1622, %v1614
    %v2415 = vpack.c.b16 %v1623, %v1615
    %v2416 = vpack.c.b16 %v1624, %v1616
    %v2417 = vpack.c.b16 %v1625, %v1617
    %v2418 = vpack.c.b16 %v1626, %v1618
    %v2419 = vpack.c.b16 %v1627, %v1619
    %v2420 = vpack.c.b16 %v1628, %v1620
    %v2421 = vpack.c.b16 %v1629, %v1621
    %v2422 = vpack.c.b16 %v1638, %v1630
    %v2423 = vpack.c.b16 %v1639, %v1631
    %v2424 = vpack.c.b16 %v1640, %v1632
    %v2425 = vpack.c.b16 %v1641, %v1633
    %v2426 = vpack.c.b16 %v1642, %v1634
    %v2427 = vpack.c.b16 %v1643, %v1635
    %v2428 = vpack.c.b16 %v1644, %v1636
    %v2429 = vpack.c.b16 %v1645, %v1637
    %v2430 = vpack.c.b16 %v1654, %v1646
    %v2431 = vpack.c.b16 %v1655, %v1647
    %v2432 = vpack.c.b16 %v1656, %v1648
    %v2433 = vpack.c.b16 %v1657, %v1649
    %v2434 = vpack.c.b16 %v1658, %v1650
    %v2435 = vpack.c.b16 %v1659, %v1651
    %v2436 = vpack.c.b16 %v1660, %v1652
    %v2437 = vpack.c.b16 %v1661, %v1653
    %v2438 = vpack.c.b16 %v1670, %v1662
    %v2439 = vpack.c.b16 %v1671, %v1663
    %v2440 = vpack.c.b16 %v1672, %v1664
    %v2441 = vpack.c.b16 %v1673, %v1665
    %v2442 = vpack.c.b16 %v1674, %v1666
    %v2443 = vpack.c.b16 %v1675, %v1667
    %v2444 = vpack.c.b16 %v1676, %v1668
    %v2445 = vpack.c.b16 %v1677, %v1669
    %v2446 = vpack.c.b16 %v1686, %v1678
    %v2447 = vpack.c.b16 %v1687, %v1679
    %v2448 = vpack.c.b16 %v1688, %v1680
    %v2449 = vpack.c.b16 %v1689, %v1681
    %v2450 = vpack.c.b16 %v1690, %v1682
    %v2451 = vpack.c.b16 %v1691, %v1683
    %v2452 = vpack.c.b16 %v1692, %v1684
    %v2453 = vpack.c.b16 %v1693, %v1685
    %v2454 = vpack.c.b16 %v1702, %v1694
    %v2455 = vpack.c.b16 %v1703, %v1695
    %v2456 = vpack.c.b16 %v1704, %v1696
    %v2457 = vpack.c.b16 %v1705, %v1697
    %v2458 = vpack.c.b16 %v1706, %v1698
    %v2459 = vpack.c.b16 %v1707, %v1699
    %v2460 = vpack.c.b16 %v1708, %v1700
    %v2461 = vpack.c.b16 %v1709, %v1701
    %v2462 = vpack.c.b16 %v1718, %v1710
    %v2463 = vpack.c.b16 %v1719, %v1711
    %v2464 = vpack.c.b16 %v1720, %v1712
    %v2465 = vpack.c.b16 %v1721, %v1713
    %v2466 = vpack.c.b16 %v1722, %v1714
    %v2467 = vpack.c.b16 %v1723, %v1715
    %v2468 = vpack.c.b16 %v1724, %v1716
    %v2469 = vpack.c.b16 %v1725, %v1717
    %v2470 = vpack.c.b16 %v1734, %v1726
    %v2471 = vpack.c.b16 %v1735, %v1727
    %v2472 = vpack.c.b16 %v1736, %v1728
    %v2473 = vpack.c.b16 %v1737, %v1729
    %v2474 = vpack.c.b16 %v1738, %v1730
    %v2475 = vpack.c.b16 %v1739, %v1731
    %v2476 = vpack.c.b16 %v1740, %v1732
    %v2477 = vpack.c.b16 %v1741, %v1733
    %v2478 = vpack.c.b16 %v1750, %v1742
    %v2479 = vpack.c.b16 %v1751, %v1743
    %v2480 = vpack.c.b16 %v1752, %v1744
    %v2481 = vpack.c.b16 %v1753, %v1745
    %v2482 = vpack.c.b16 %v1754, %v1746
    %v2483 = vpack.c.b16 %v1755, %v1747
    %v2484 = vpack.c.b16 %v1756, %v1748
    %v2485 = vpack.c.b16 %v1757, %v1749
    %v2486 = vpack.c.b16 %v1766, %v1758
    %v2487 = vpack.c.b16 %v1767, %v1759
    %v2488 = vpack.c.b16 %v1768, %v1760
    %v2489 = vpack.c.b16 %v1769, %v1761
    %v2490 = vpack.c.b16 %v1770, %v1762
    %v2491 = vpack.c.b16 %v1771, %v1763
    %v2492 = vpack.c.b16 %v1772, %v1764
    %v2493 = vpack.c.b16 %v1773, %v1765
    %v2494 = vpack.c.b16 %v1782, %v1774
    %v2495 = vpack.c.b16 %v1783, %v1775
    %v2496 = vpack.c.b16 %v1784, %v1776
    %v2497 = vpack.c.b16 %v1785, %v1777
    %v2498 = vpack.c.b16 %v1786, %v1778
    %v2499 = vpack.c.b16 %v1787, %v1779
    %v2500 = vpack.c.b16 %v1788, %v1780
    %v2501 = vpack.c.b16 %v1789, %v1781
    %v2502 = vpack.c.b16 %v1798, %v1790
    %v2503 = vpack.c.b16 %v1799, %v1791
    %v2504 = vpack.c.b16 %v1800, %v1792
    %v2505 = vpack.c.b16 %v1801, %v1793
    %v2506 = vpack.c.b16 %v1802, %v1794
    %v2507 = vpack.c.b16 %v1803, %v1795
    %v2508 = vpack.c.b16 %v1804, %v1796
    %v2509 = vpack.c.b16 %v1805, %v1797
    %v2510 = vpack.c.b16 %v1814, %v1806
    %v2511 = vpack.c.b16 %v1815, %v1807
    %v2512 = vpack.c.b16 %v1816, %v1808
    %v2513 = vpack.c.b16 %v1817, %v1809
    %v2514 = vpack.c.b16 %v1818, %v1810
    %v2515 = vpack.c.b16 %v1819, %v1811
    %v2516 = vpack.c.b16 %v1820, %v1812
    %v2517 = vpack.c.b16 %v1821, %v1813
    %v2518 = vpack.c.b16 %v1830, %v1822
    %v2519 = vpack.c.b16 %v1831, %v1823
    %v2520 = vpack.c.b16 %v1832, %v1824
    %v2521 = vpack.c.b16 %v1833, %v1825
    %v2522 = vpack.c.b16 %v1834, %v1826
    %v2523 = vpack.c.b16 %v1835, %v1827
    %v2524 = vpack.c.b16 %v1836, %v1828
    %v2525 = vpack.c.b16 %v1837, %v1829
    %v2526 = vpack.c.b16 %v1846, %v1838
    %v2527 = vpack.c.b16 %v1847, %v1839
    %v2528 = vpack.c.b16 %v1848, %v1840
    %v2529 = vpack.c.b16 %v1849, %v1841
    %v2530 = vpack.c.b16 %v1850, %v1842
    %v2531 = vpack.c.b16 %v1851, %v1843
    %v2532 = vpack.c.b16 %v1852, %v1844
    %v2533 = vpack.c.b16 %v1853, %v1845
    %v2534 = vpack.c.b16 %v1862, %v1854
    %v2535 = vpack.c.b16 %v1863, %v1855
    %v2536 = vpack.c.b16 %v1864, %v1856
    %v2537 = vpack.c.b16 %v1865, %v1857
    %v2538 = vpack.c.b16 %v1866, %v1858
    %v2539 = vpack.c.b16 %v1867, %v1859
    %v2540 = vpack.c.b16 %v1868, %v1860
    %v2541 = vpack.c.b16 %v1869, %v1861
    %v2542 = vpack.c.b16 %v1878, %v1870
    %v2543 = vpack.c.b16 %v1879, %v1871
    %v2544 = vpack.c.b16 %v1880, %v1872
    %v2545 = vpack.c.b16 %v1881, %v1873
    %v2546 = vpack.c.b16 %v1882, %v1874
    %v2547 = vpack.c.b16 %v1883, %v1875
    %v2548 = vpack.c.b16 %v1884, %v1876
    %v2549 = vpack.c.b16 %v1885, %v1877
    %v2550 = vpack.c.b16 %v1894, %v1886
    %v2551 = vpack.c.b16 %v1895, %v1887
    %v2552 = vpack.c.b16 %v1896, %v1888
    %v2553 = vpack.c.b16 %v1897, %v1889
    %v2554 = vpack.c.b16 %v1898, %v1890
    %v2555 = vpack.c.b16 %v1899, %v1891
    %v2556 = vpack.c.b16 %v1900, %v1892
    %v2557 = vpack.c.b16 %v1901, %v1893
    %v2558 = vpack.c.b16 %v1910, %v1902
    %v2559 = vpack.c.b16 %v1911, %v1903
    %v2560 = vpack.c.b16 %v1912, %v1904
    %v2561 = vpack.c.b16 %v1913, %v1905
    %v2562 = vpack.c.b16 %v1914, %v1906
    %v2563 = vpack.c.b16 %v1915, %v1907
    %v2564 = vpack.c.b16 %v1916, %v1908
    %v2565 = vpack.c.b16 %v1917, %v1909
    %v2566 = vpack.c.b16 %v1926, %v1918
    %v2567 = vpack.c.b16 %v1927, %v1919
    %v2568 = vpack.c.b16 %v1928, %v1920
    %v2569 = vpack.c.b16 %v1929, %v1921
    %v2570 = vpack.c.b16 %v1930, %v1922
    %v2571 = vpack.c.b16 %v1931, %v1923
    %v2572 = vpack.c.b16 %v1932, %v1924
    %v2573 = vpack.c.b16 %v1933, %v1925
    %v2574 = vpack.c.b16 %v1942, %v1934
    %v2575 = vpack.c.b16 %v1943, %v1935
    %v2576 = vpack.c.b16 %v1944, %v1936
    %v2577 = vpack.c.b16 %v1945, %v1937
    %v2578 = vpack.c.b16 %v1946, %v1938
    %v2579 = vpack.c.b16 %v1947, %v1939
    %v2580 = vpack.c.b16 %v1948, %v1940
    %v2581 = vpack.c.b16 %v1949, %v1941
    %v2582 = vpack.c.b16 %v1958, %v1950
    %v2583 = vpack.c.b16 %v1959, %v1951
    %v2584 = vpack.c.b16 %v1960, %v1952
    %v2585 = vpack.c.b16 %v1961, %v1953
    %v2586 = vpack.c.b16 %v1962, %v1954
    %v2587 = vpack.c.b16 %v1963, %v1955
    %v2588 = vpack.c.b16 %v1964, %v1956
    %v2589 = vpack.c.b16 %v1965, %v1957
    %v2590 = vpack.c.b16 %v1974, %v1966
    %v2591 = vpack.c.b16 %v1975, %v1967
    %v2592 = vpack.c.b16 %v1976, %v1968
    %v2593 = vpack.c.b16 %v1977, %v1969
    %v2594 = vpack.c.b16 %v1978, %v1970
    %v2595 = vpack.c.b16 %v1979, %v1971
    %v2596 = vpack.c.b16 %v1980, %v1972
    %v2597 = vpack.c.b16 %v1981, %v1973
    %v2598 = vpack.c.b16 %v1990, %v1982
    %v2599 = vpack.c.b16 %v1991, %v1983
    %v2600 = vpack.c.b16 %v1992, %v1984
    %v2601 = vpack.c.b16 %v1993, %v1985
    %v2602 = vpack.c.b16 %v1994, %v1986
    %v2603 = vpack.c.b16 %v1995, %v1987
    %v2604 = vpack.c.b16 %v1996, %v1988
    %v2605 = vpack.c.b16 %v1997, %v1989
    %v2606 = vpack.c.b16 %v2006, %v1998
    %v2607 = vpack.c.b16 %v2007, %v1999
    %v2608 = vpack.c.b16 %v2008, %v2000
    %v2609 = vpack.c.b16 %v2009, %v2001
    %v2610 = vpack.c.b16 %v2010, %v2002
    %v2611 = vpack.c.b16 %v2011, %v2003
    %v2612 = vpack.c.b16 %v2012, %v2004
    %v2613 = vpack.c.b16 %v2013, %v2005
    %v2614 = vpack.c.b16 %v2022, %v2014
    %v2615 = vpack.c.b16 %v2023, %v2015
    %v2616 = vpack.c.b16 %v2024, %v2016
    %v2617 = vpack.c.b16 %v2025, %v2017
    %v2618 = vpack.c.b16 %v2026, %v2018
    %v2619 = vpack.c.b16 %v2027, %v2019
    %v2620 = vpack.c.b16 %v2028, %v2020
    %v2621 = vpack.c.b16 %v2029, %v2021
    %v2622 = vpack.c.b16 %v2038, %v2030
    %v2623 = vpack.c.b16 %v2039, %v2031
    %v2624 = vpack.c.b16 %v2040, %v2032
    %v2625 = vpack.c.b16 %v2041, %v2033
    %v2626 = vpack.c.b16 %v2042, %v2034
    %v2627 = vpack.c.b16 %v2043, %v2035
    %v2628 = vpack.c.b16 %v2044, %v2036
    %v2629 = vpack.c.b16 %v2045, %v2037
    %v2630 = vpack.c.b16 %v2054, %v2046
    %v2631 = vpack.c.b16 %v2055, %v2047
    %v2632 = vpack.c.b16 %v2056, %v2048
    %v2633 = vpack.c.b16 %v2057, %v2049
    %v2634 = vpack.c.b16 %v2058, %v2050
    %v2635 = vpack.c.b16 %v2059, %v2051
    %v2636 = vpack.c.b16 %v2060, %v2052
    %v2637 = vpack.c.b16 %v2061, %v2053
    %v2638 = vpack.c.b16 %v2070, %v2062
    %v2639 = vpack.c.b16 %v2071, %v2063
    %v2640 = vpack.c.b16 %v2072, %v2064
    %v2641 = vpack.c.b16 %v2073, %v2065
    %v2642 = vpack.c.b16 %v2074, %v2066
    %v2643 = vpack.c.b16 %v2075, %v2067
    %v2644 = vpack.c.b16 %v2076, %v2068
    %v2645 = vpack.c.b16 %v2077, %v2069
    %v2646 = vpack.c.b16 %v2086, %v2078
    %v2647 = vpack.c.b16 %v2087, %v2079
    %v2648 = vpack.c.b16 %v2088, %v2080
    %v2649 = vpack.c.b16 %v2089, %v2081
    %v2650 = vpack.c.b16 %v2090, %v2082
    %v2651 = vpack.c.b16 %v2091, %v2083
    %v2652 = vpack.c.b16 %v2092, %v2084
    %v2653 = vpack.c.b16 %v2093, %v2085
    %v2654 = vpack.c.b16 %v2102, %v2094
    %v2655 = vpack.c.b16 %v2103, %v2095
    %v2656 = vpack.c.b16 %v2104, %v2096
    %v2657 = vpack.c.b16 %v2105, %v2097
    %v2658 = vpack.c.b16 %v2106, %v2098
    %v2659 = vpack.c.b16 %v2107, %v2099
    %v2660 = vpack.c.b16 %v2108, %v2100
    %v2661 = vpack.c.b16 %v2109, %v2101
    %v2662 = vpack.c.b16 %v2118, %v2110
    %v2663 = vpack.c.b16 %v2119, %v2111
    %v2664 = vpack.c.b16 %v2120, %v2112
    %v2665 = vpack.c.b16 %v2121, %v2113
    %v2666 = vpack.c.b16 %v2122, %v2114
    %v2667 = vpack.c.b16 %v2123, %v2115
    %v2668 = vpack.c.b16 %v2124, %v2116
    %v2669 = vpack.c.b16 %v2125, %v2117
    %v2670 = vpack.c.b16 %v2134, %v2126
    %v2671 = vpack.c.b16 %v2135, %v2127
    %v2672 = vpack.c.b16 %v2136, %v2128
    %v2673 = vpack.c.b16 %v2137, %v2129
    %v2674 = vpack.c.b16 %v2138, %v2130
    %v2675 = vpack.c.b16 %v2139, %v2131
    %v2676 = vpack.c.b16 %v2140, %v2132
    %v2677 = vpack.c.b16 %v2141, %v2133
    %v2678 = vpack.c.b16 %v2150, %v2142
    %v2679 = vpack.c.b16 %v2151, %v2143
    %v2680 = vpack.c.b16 %v2152, %v2144
    %v2681 = vpack.c.b16 %v2153, %v2145
    %v2682 = vpack.c.b16 %v2154, %v2146
    %v2683 = vpack.c.b16 %v2155, %v2147
    %v2684 = vpack.c.b16 %v2156, %v2148
    %v2685 = vpack.c.b16 %v2157, %v2149
    %v2686 = vpack.c.b16 %v2166, %v2158
    %v2687 = vpack.c.b16 %v2167, %v2159
    %v2688 = vpack.c.b16 %v2168, %v2160
    %v2689 = vpack.c.b16 %v2169, %v2161
    %v2690 = vpack.c.b16 %v2170, %v2162
    %v2691 = vpack.c.b16 %v2171, %v2163
    %v2692 = vpack.c.b16 %v2172, %v2164
    %v2693 = vpack.c.b16 %v2173, %v2165
    %v2694 = vpack.c.b16 %v2182, %v2174
    %v2695 = vpack.c.b16 %v2183, %v2175
    %v2696 = vpack.c.b16 %v2184, %v2176
    %v2697 = vpack.c.b16 %v2185, %v2177
    %v2698 = vpack.c.b16 %v2186, %v2178
    %v2699 = vpack.c.b16 %v2187, %v2179
    %v2700 = vpack.c.b16 %v2188, %v2180
    %v2701 = vpack.c.b16 %v2189, %v2181
    %3214 = vmatpush.bf16.msra.mxu0 %v2246
    %3215 = vmatpush.bf16.msra.mxu0 %v2238
    %3216 = vmatpush.bf16.msra.mxu0 %v2230
    %3217 = vmatpush.bf16.msra.mxu0 %v2222
    %3218 = vmatpush.bf16.msra.mxu0 %v2214
    %3219 = vmatpush.bf16.msra.mxu0 %v2206
    %3220 = vmatpush.bf16.msra.mxu0 %v2198
    %3221 = vmatpush.bf16.msra.mxu0 %v2190
    %3222 = vmatmul.bf16.gmra.mxu0 %v116
    %v3223 = vpop.f32.mrf.mxu0
    %v3224 = vadd.f32 %v638, %v3223
    %v3225 = vpop.f32.mrf.mxu0
    %3226 = vdwg.mxu0
    %3227 = vmatpush.bf16.msra.mxu0 %v2310
    %3228 = vmatpush.bf16.msra.mxu0 %v2302
    %3229 = vmatpush.bf16.msra.mxu0 %v2294
    %3230 = vmatpush.bf16.msra.mxu0 %v2286
    %3231 = vmatpush.bf16.msra.mxu0 %v2278
    %3232 = vmatpush.bf16.msra.mxu0 %v2270
    %3233 = vmatpush.bf16.msra.mxu0 %v2262
    %3234 = vmatpush.bf16.msra.mxu0 %v2254
    %3235 = vmatmul.bf16.gmra.mxu0 %v117
    %v3236 = vpop.f32.mrf.mxu0
    %v3237 = vadd.f32 %v3224, %v3236
    %v3238 = vpop.f32.mrf.mxu0
    %3239 = vdwg.mxu0
    %3240 = vmatpush.bf16.msra.mxu0 %v2374
    %3241 = vmatpush.bf16.msra.mxu0 %v2366
    %3242 = vmatpush.bf16.msra.mxu0 %v2358
    %3243 = vmatpush.bf16.msra.mxu0 %v2350
    %3244 = vmatpush.bf16.msra.mxu0 %v2342
    %3245 = vmatpush.bf16.msra.mxu0 %v2334
    %3246 = vmatpush.bf16.msra.mxu0 %v2326
    %3247 = vmatpush.bf16.msra.mxu0 %v2318
    %3248 = vmatmul.bf16.gmra.mxu0 %v118
    %v3249 = vpop.f32.mrf.mxu0
    %v3250 = vadd.f32 %v3237, %v3249
    %v3251 = vpop.f32.mrf.mxu0
    %3252 = vdwg.mxu0
    %3253 = vmatpush.bf16.msra.mxu0 %v2438
    %3254 = vmatpush.bf16.msra.mxu0 %v2430
    %3255 = vmatpush.bf16.msra.mxu0 %v2422
    %3256 = vmatpush.bf16.msra.mxu0 %v2414
    %3257 = vmatpush.bf16.msra.mxu0 %v2406
    %3258 = vmatpush.bf16.msra.mxu0 %v2398
    %3259 = vmatpush.bf16.msra.mxu0 %v2390
    %3260 = vmatpush.bf16.msra.mxu0 %v2382
    %3261 = vmatmul.bf16.gmra.mxu0 %v119
    %v3262 = vpop.f32.mrf.mxu0
    %v3263 = vadd.f32 %v3250, %v3262
    %v3264 = vpop.f32.mrf.mxu0
    %3265 = vdwg.mxu0
    %3266 = vmatpush.bf16.msra.mxu0 %v2502
    %3267 = vmatpush.bf16.msra.mxu0 %v2494
    %3268 = vmatpush.bf16.msra.mxu0 %v2486
    %3269 = vmatpush.bf16.msra.mxu0 %v2478
    %3270 = vmatpush.bf16.msra.mxu0 %v2470
    %3271 = vmatpush.bf16.msra.mxu0 %v2462
    %3272 = vmatpush.bf16.msra.mxu0 %v2454
    %3273 = vmatpush.bf16.msra.mxu0 %v2446
    %3274 = vmatmul.bf16.gmra.mxu0 %v120
    %v3275 = vpop.f32.mrf.mxu0
    %v3276 = vadd.f32 %v3263, %v3275
    %v3277 = vpop.f32.mrf.mxu0
    %3278 = vdwg.mxu0
    %3279 = vmatpush.bf16.msra.mxu0 %v2566
    %3280 = vmatpush.bf16.msra.mxu0 %v2558
    %3281 = vmatpush.bf16.msra.mxu0 %v2550
    %3282 = vmatpush.bf16.msra.mxu0 %v2542
    %3283 = vmatpush.bf16.msra.mxu0 %v2534
    %3284 = vmatpush.bf16.msra.mxu0 %v2526
    %3285 = vmatpush.bf16.msra.mxu0 %v2518
    %3286 = vmatpush.bf16.msra.mxu0 %v2510
    %3287 = vmatmul.bf16.gmra.mxu0 %v121
    %v3288 = vpop.f32.mrf.mxu0
    %v3289 = vadd.f32 %v3276, %v3288
    %v3290 = vpop.f32.mrf.mxu0
    %3291 = vdwg.mxu0
    %3292 = vmatpush.bf16.msra.mxu0 %v2630
    %3293 = vmatpush.bf16.msra.mxu0 %v2622
    %3294 = vmatpush.bf16.msra.mxu0 %v2614
    %3295 = vmatpush.bf16.msra.mxu0 %v2606
    %3296 = vmatpush.bf16.msra.mxu0 %v2598
    %3297 = vmatpush.bf16.msra.mxu0 %v2590
    %3298 = vmatpush.bf16.msra.mxu0 %v2582
    %3299 = vmatpush.bf16.msra.mxu0 %v2574
    %3300 = vmatmul.bf16.gmra.mxu0 %v122
    %v3301 = vpop.f32.mrf.mxu0
    %v3302 = vadd.f32 %v3289, %v3301
    %v3303 = vpop.f32.mrf.mxu0
    %3304 = vdwg.mxu0
    %3305 = vmatpush.bf16.msra.mxu0 %v2694
    %3306 = vmatpush.bf16.msra.mxu0 %v2686
    %3307 = vmatpush.bf16.msra.mxu0 %v2678
    %3308 = vmatpush.bf16.msra.mxu0 %v2670
    %3309 = vmatpush.bf16.msra.mxu0 %v2662
    %3310 = vmatpush.bf16.msra.mxu0 %v2654
    %3311 = vmatpush.bf16.msra.mxu0 %v2646
    %3312 = vmatpush.bf16.msra.mxu0 %v2638
    %3313 = vmatmul.bf16.gmra.mxu0 %v123
    %v3314 = vpop.f32.mrf.mxu0
    %v3315 = vadd.f32 %v3302, %v3314
    %v3316 = vpop.f32.mrf.mxu0
    %3317 = vdwg.mxu0
    %3318 = vmatpush.bf16.msra.mxu0 %v2247
    %3319 = vmatpush.bf16.msra.mxu0 %v2239
    %3320 = vmatpush.bf16.msra.mxu0 %v2231
    %3321 = vmatpush.bf16.msra.mxu0 %v2223
    %3322 = vmatpush.bf16.msra.mxu0 %v2215
    %3323 = vmatpush.bf16.msra.mxu0 %v2207
    %3324 = vmatpush.bf16.msra.mxu0 %v2199
    %3325 = vmatpush.bf16.msra.mxu0 %v2191
    %3326 = vmatmul.bf16.gmra.mxu0 %v116
    %v3327 = vpop.f32.mrf.mxu0
    %v3328 = vadd.f32 %v639, %v3327
    %v3329 = vpop.f32.mrf.mxu0
    %3330 = vdwg.mxu0
    %3331 = vmatpush.bf16.msra.mxu0 %v2311
    %3332 = vmatpush.bf16.msra.mxu0 %v2303
    %3333 = vmatpush.bf16.msra.mxu0 %v2295
    %3334 = vmatpush.bf16.msra.mxu0 %v2287
    %3335 = vmatpush.bf16.msra.mxu0 %v2279
    %3336 = vmatpush.bf16.msra.mxu0 %v2271
    %3337 = vmatpush.bf16.msra.mxu0 %v2263
    %3338 = vmatpush.bf16.msra.mxu0 %v2255
    %3339 = vmatmul.bf16.gmra.mxu0 %v117
    %v3340 = vpop.f32.mrf.mxu0
    %v3341 = vadd.f32 %v3328, %v3340
    %v3342 = vpop.f32.mrf.mxu0
    %3343 = vdwg.mxu0
    %3344 = vmatpush.bf16.msra.mxu0 %v2375
    %3345 = vmatpush.bf16.msra.mxu0 %v2367
    %3346 = vmatpush.bf16.msra.mxu0 %v2359
    %3347 = vmatpush.bf16.msra.mxu0 %v2351
    %3348 = vmatpush.bf16.msra.mxu0 %v2343
    %3349 = vmatpush.bf16.msra.mxu0 %v2335
    %3350 = vmatpush.bf16.msra.mxu0 %v2327
    %3351 = vmatpush.bf16.msra.mxu0 %v2319
    %3352 = vmatmul.bf16.gmra.mxu0 %v118
    %v3353 = vpop.f32.mrf.mxu0
    %v3354 = vadd.f32 %v3341, %v3353
    %v3355 = vpop.f32.mrf.mxu0
    %3356 = vdwg.mxu0
    %3357 = vmatpush.bf16.msra.mxu0 %v2439
    %3358 = vmatpush.bf16.msra.mxu0 %v2431
    %3359 = vmatpush.bf16.msra.mxu0 %v2423
    %3360 = vmatpush.bf16.msra.mxu0 %v2415
    %3361 = vmatpush.bf16.msra.mxu0 %v2407
    %3362 = vmatpush.bf16.msra.mxu0 %v2399
    %3363 = vmatpush.bf16.msra.mxu0 %v2391
    %3364 = vmatpush.bf16.msra.mxu0 %v2383
    %3365 = vmatmul.bf16.gmra.mxu0 %v119
    %v3366 = vpop.f32.mrf.mxu0
    %v3367 = vadd.f32 %v3354, %v3366
    %v3368 = vpop.f32.mrf.mxu0
    %3369 = vdwg.mxu0
    %3370 = vmatpush.bf16.msra.mxu0 %v2503
    %3371 = vmatpush.bf16.msra.mxu0 %v2495
    %3372 = vmatpush.bf16.msra.mxu0 %v2487
    %3373 = vmatpush.bf16.msra.mxu0 %v2479
    %3374 = vmatpush.bf16.msra.mxu0 %v2471
    %3375 = vmatpush.bf16.msra.mxu0 %v2463
    %3376 = vmatpush.bf16.msra.mxu0 %v2455
    %3377 = vmatpush.bf16.msra.mxu0 %v2447
    %3378 = vmatmul.bf16.gmra.mxu0 %v120
    %v3379 = vpop.f32.mrf.mxu0
    %v3380 = vadd.f32 %v3367, %v3379
    %v3381 = vpop.f32.mrf.mxu0
    %3382 = vdwg.mxu0
    %3383 = vmatpush.bf16.msra.mxu0 %v2567
    %3384 = vmatpush.bf16.msra.mxu0 %v2559
    %3385 = vmatpush.bf16.msra.mxu0 %v2551
    %3386 = vmatpush.bf16.msra.mxu0 %v2543
    %3387 = vmatpush.bf16.msra.mxu0 %v2535
    %3388 = vmatpush.bf16.msra.mxu0 %v2527
    %3389 = vmatpush.bf16.msra.mxu0 %v2519
    %3390 = vmatpush.bf16.msra.mxu0 %v2511
    %3391 = vmatmul.bf16.gmra.mxu0 %v121
    %v3392 = vpop.f32.mrf.mxu0
    %v3393 = vadd.f32 %v3380, %v3392
    %v3394 = vpop.f32.mrf.mxu0
    %3395 = vdwg.mxu0
    %3396 = vmatpush.bf16.msra.mxu0 %v2631
    %3397 = vmatpush.bf16.msra.mxu0 %v2623
    %3398 = vmatpush.bf16.msra.mxu0 %v2615
    %3399 = vmatpush.bf16.msra.mxu0 %v2607
    %3400 = vmatpush.bf16.msra.mxu0 %v2599
    %3401 = vmatpush.bf16.msra.mxu0 %v2591
    %3402 = vmatpush.bf16.msra.mxu0 %v2583
    %3403 = vmatpush.bf16.msra.mxu0 %v2575
    %3404 = vmatmul.bf16.gmra.mxu0 %v122
    %v3405 = vpop.f32.mrf.mxu0
    %v3406 = vadd.f32 %v3393, %v3405
    %v3407 = vpop.f32.mrf.mxu0
    %3408 = vdwg.mxu0
    %3409 = vmatpush.bf16.msra.mxu0 %v2695
    %3410 = vmatpush.bf16.msra.mxu0 %v2687
    %3411 = vmatpush.bf16.msra.mxu0 %v2679
    %3412 = vmatpush.bf16.msra.mxu0 %v2671
    %3413 = vmatpush.bf16.msra.mxu0 %v2663
    %3414 = vmatpush.bf16.msra.mxu0 %v2655
    %3415 = vmatpush.bf16.msra.mxu0 %v2647
    %3416 = vmatpush.bf16.msra.mxu0 %v2639
    %3417 = vmatmul.bf16.gmra.mxu0 %v123
    %v3418 = vpop.f32.mrf.mxu0
    %v3419 = vadd.f32 %v3406, %v3418
    %v3420 = vpop.f32.mrf.mxu0
    %3421 = vdwg.mxu0
    %3422 = vmatpush.bf16.msra.mxu0 %v2248
    %3423 = vmatpush.bf16.msra.mxu0 %v2240
    %3424 = vmatpush.bf16.msra.mxu0 %v2232
    %3425 = vmatpush.bf16.msra.mxu0 %v2224
    %3426 = vmatpush.bf16.msra.mxu0 %v2216
    %3427 = vmatpush.bf16.msra.mxu0 %v2208
    %3428 = vmatpush.bf16.msra.mxu0 %v2200
    %3429 = vmatpush.bf16.msra.mxu0 %v2192
    %3430 = vmatmul.bf16.gmra.mxu0 %v116
    %v3431 = vpop.f32.mrf.mxu0
    %v3432 = vadd.f32 %v640, %v3431
    %v3433 = vpop.f32.mrf.mxu0
    %3434 = vdwg.mxu0
    %3435 = vmatpush.bf16.msra.mxu0 %v2312
    %3436 = vmatpush.bf16.msra.mxu0 %v2304
    %3437 = vmatpush.bf16.msra.mxu0 %v2296
    %3438 = vmatpush.bf16.msra.mxu0 %v2288
    %3439 = vmatpush.bf16.msra.mxu0 %v2280
    %3440 = vmatpush.bf16.msra.mxu0 %v2272
    %3441 = vmatpush.bf16.msra.mxu0 %v2264
    %3442 = vmatpush.bf16.msra.mxu0 %v2256
    %3443 = vmatmul.bf16.gmra.mxu0 %v117
    %v3444 = vpop.f32.mrf.mxu0
    %v3445 = vadd.f32 %v3432, %v3444
    %v3446 = vpop.f32.mrf.mxu0
    %3447 = vdwg.mxu0
    %3448 = vmatpush.bf16.msra.mxu0 %v2376
    %3449 = vmatpush.bf16.msra.mxu0 %v2368
    %3450 = vmatpush.bf16.msra.mxu0 %v2360
    %3451 = vmatpush.bf16.msra.mxu0 %v2352
    %3452 = vmatpush.bf16.msra.mxu0 %v2344
    %3453 = vmatpush.bf16.msra.mxu0 %v2336
    %3454 = vmatpush.bf16.msra.mxu0 %v2328
    %3455 = vmatpush.bf16.msra.mxu0 %v2320
    %3456 = vmatmul.bf16.gmra.mxu0 %v118
    %v3457 = vpop.f32.mrf.mxu0
    %v3458 = vadd.f32 %v3445, %v3457
    %v3459 = vpop.f32.mrf.mxu0
    %3460 = vdwg.mxu0
    %3461 = vmatpush.bf16.msra.mxu0 %v2440
    %3462 = vmatpush.bf16.msra.mxu0 %v2432
    %3463 = vmatpush.bf16.msra.mxu0 %v2424
    %3464 = vmatpush.bf16.msra.mxu0 %v2416
    %3465 = vmatpush.bf16.msra.mxu0 %v2408
    %3466 = vmatpush.bf16.msra.mxu0 %v2400
    %3467 = vmatpush.bf16.msra.mxu0 %v2392
    %3468 = vmatpush.bf16.msra.mxu0 %v2384
    %3469 = vmatmul.bf16.gmra.mxu0 %v119
    %v3470 = vpop.f32.mrf.mxu0
    %v3471 = vadd.f32 %v3458, %v3470
    %v3472 = vpop.f32.mrf.mxu0
    %3473 = vdwg.mxu0
    %3474 = vmatpush.bf16.msra.mxu0 %v2504
    %3475 = vmatpush.bf16.msra.mxu0 %v2496
    %3476 = vmatpush.bf16.msra.mxu0 %v2488
    %3477 = vmatpush.bf16.msra.mxu0 %v2480
    %3478 = vmatpush.bf16.msra.mxu0 %v2472
    %3479 = vmatpush.bf16.msra.mxu0 %v2464
    %3480 = vmatpush.bf16.msra.mxu0 %v2456
    %3481 = vmatpush.bf16.msra.mxu0 %v2448
    %3482 = vmatmul.bf16.gmra.mxu0 %v120
    %v3483 = vpop.f32.mrf.mxu0
    %v3484 = vadd.f32 %v3471, %v3483
    %v3485 = vpop.f32.mrf.mxu0
    %3486 = vdwg.mxu0
    %3487 = vmatpush.bf16.msra.mxu0 %v2568
    %3488 = vmatpush.bf16.msra.mxu0 %v2560
    %3489 = vmatpush.bf16.msra.mxu0 %v2552
    %3490 = vmatpush.bf16.msra.mxu0 %v2544
    %3491 = vmatpush.bf16.msra.mxu0 %v2536
    %3492 = vmatpush.bf16.msra.mxu0 %v2528
    %3493 = vmatpush.bf16.msra.mxu0 %v2520
    %3494 = vmatpush.bf16.msra.mxu0 %v2512
    %3495 = vmatmul.bf16.gmra.mxu0 %v121
    %v3496 = vpop.f32.mrf.mxu0
    %v3497 = vadd.f32 %v3484, %v3496
    %v3498 = vpop.f32.mrf.mxu0
    %3499 = vdwg.mxu0
    %3500 = vmatpush.bf16.msra.mxu0 %v2632
    %3501 = vmatpush.bf16.msra.mxu0 %v2624
    %3502 = vmatpush.bf16.msra.mxu0 %v2616
    %3503 = vmatpush.bf16.msra.mxu0 %v2608
    %3504 = vmatpush.bf16.msra.mxu0 %v2600
    %3505 = vmatpush.bf16.msra.mxu0 %v2592
    %3506 = vmatpush.bf16.msra.mxu0 %v2584
    %3507 = vmatpush.bf16.msra.mxu0 %v2576
    %3508 = vmatmul.bf16.gmra.mxu0 %v122
    %v3509 = vpop.f32.mrf.mxu0
    %v3510 = vadd.f32 %v3497, %v3509
    %v3511 = vpop.f32.mrf.mxu0
    %3512 = vdwg.mxu0
    %3513 = vmatpush.bf16.msra.mxu0 %v2696
    %3514 = vmatpush.bf16.msra.mxu0 %v2688
    %3515 = vmatpush.bf16.msra.mxu0 %v2680
    %3516 = vmatpush.bf16.msra.mxu0 %v2672
    %3517 = vmatpush.bf16.msra.mxu0 %v2664
    %3518 = vmatpush.bf16.msra.mxu0 %v2656
    %3519 = vmatpush.bf16.msra.mxu0 %v2648
    %3520 = vmatpush.bf16.msra.mxu0 %v2640
    %3521 = vmatmul.bf16.gmra.mxu0 %v123
    %v3522 = vpop.f32.mrf.mxu0
    %v3523 = vadd.f32 %v3510, %v3522
    %v3524 = vpop.f32.mrf.mxu0
    %3525 = vdwg.mxu0
    %3526 = vmatpush.bf16.msra.mxu0 %v2249
    %3527 = vmatpush.bf16.msra.mxu0 %v2241
    %3528 = vmatpush.bf16.msra.mxu0 %v2233
    %3529 = vmatpush.bf16.msra.mxu0 %v2225
    %3530 = vmatpush.bf16.msra.mxu0 %v2217
    %3531 = vmatpush.bf16.msra.mxu0 %v2209
    %3532 = vmatpush.bf16.msra.mxu0 %v2201
    %3533 = vmatpush.bf16.msra.mxu0 %v2193
    %3534 = vmatmul.bf16.gmra.mxu0 %v116
    %v3535 = vpop.f32.mrf.mxu0
    %v3536 = vadd.f32 %v641, %v3535
    %v3537 = vpop.f32.mrf.mxu0
    %3538 = vdwg.mxu0
    %3539 = vmatpush.bf16.msra.mxu0 %v2313
    %3540 = vmatpush.bf16.msra.mxu0 %v2305
    %3541 = vmatpush.bf16.msra.mxu0 %v2297
    %3542 = vmatpush.bf16.msra.mxu0 %v2289
    %3543 = vmatpush.bf16.msra.mxu0 %v2281
    %3544 = vmatpush.bf16.msra.mxu0 %v2273
    %3545 = vmatpush.bf16.msra.mxu0 %v2265
    %3546 = vmatpush.bf16.msra.mxu0 %v2257
    %3547 = vmatmul.bf16.gmra.mxu0 %v117
    %v3548 = vpop.f32.mrf.mxu0
    %v3549 = vadd.f32 %v3536, %v3548
    %v3550 = vpop.f32.mrf.mxu0
    %3551 = vdwg.mxu0
    %3552 = vmatpush.bf16.msra.mxu0 %v2377
    %3553 = vmatpush.bf16.msra.mxu0 %v2369
    %3554 = vmatpush.bf16.msra.mxu0 %v2361
    %3555 = vmatpush.bf16.msra.mxu0 %v2353
    %3556 = vmatpush.bf16.msra.mxu0 %v2345
    %3557 = vmatpush.bf16.msra.mxu0 %v2337
    %3558 = vmatpush.bf16.msra.mxu0 %v2329
    %3559 = vmatpush.bf16.msra.mxu0 %v2321
    %3560 = vmatmul.bf16.gmra.mxu0 %v118
    %v3561 = vpop.f32.mrf.mxu0
    %v3562 = vadd.f32 %v3549, %v3561
    %v3563 = vpop.f32.mrf.mxu0
    %3564 = vdwg.mxu0
    %3565 = vmatpush.bf16.msra.mxu0 %v2441
    %3566 = vmatpush.bf16.msra.mxu0 %v2433
    %3567 = vmatpush.bf16.msra.mxu0 %v2425
    %3568 = vmatpush.bf16.msra.mxu0 %v2417
    %3569 = vmatpush.bf16.msra.mxu0 %v2409
    %3570 = vmatpush.bf16.msra.mxu0 %v2401
    %3571 = vmatpush.bf16.msra.mxu0 %v2393
    %3572 = vmatpush.bf16.msra.mxu0 %v2385
    %3573 = vmatmul.bf16.gmra.mxu0 %v119
    %v3574 = vpop.f32.mrf.mxu0
    %v3575 = vadd.f32 %v3562, %v3574
    %v3576 = vpop.f32.mrf.mxu0
    %3577 = vdwg.mxu0
    %3578 = vmatpush.bf16.msra.mxu0 %v2505
    %3579 = vmatpush.bf16.msra.mxu0 %v2497
    %3580 = vmatpush.bf16.msra.mxu0 %v2489
    %3581 = vmatpush.bf16.msra.mxu0 %v2481
    %3582 = vmatpush.bf16.msra.mxu0 %v2473
    %3583 = vmatpush.bf16.msra.mxu0 %v2465
    %3584 = vmatpush.bf16.msra.mxu0 %v2457
    %3585 = vmatpush.bf16.msra.mxu0 %v2449
    %3586 = vmatmul.bf16.gmra.mxu0 %v120
    %v3587 = vpop.f32.mrf.mxu0
    %v3588 = vadd.f32 %v3575, %v3587
    %v3589 = vpop.f32.mrf.mxu0
    %3590 = vdwg.mxu0
    %3591 = vmatpush.bf16.msra.mxu0 %v2569
    %3592 = vmatpush.bf16.msra.mxu0 %v2561
    %3593 = vmatpush.bf16.msra.mxu0 %v2553
    %3594 = vmatpush.bf16.msra.mxu0 %v2545
    %3595 = vmatpush.bf16.msra.mxu0 %v2537
    %3596 = vmatpush.bf16.msra.mxu0 %v2529
    %3597 = vmatpush.bf16.msra.mxu0 %v2521
    %3598 = vmatpush.bf16.msra.mxu0 %v2513
    %3599 = vmatmul.bf16.gmra.mxu0 %v121
    %v3600 = vpop.f32.mrf.mxu0
    %v3601 = vadd.f32 %v3588, %v3600
    %v3602 = vpop.f32.mrf.mxu0
    %3603 = vdwg.mxu0
    %3604 = vmatpush.bf16.msra.mxu0 %v2633
    %3605 = vmatpush.bf16.msra.mxu0 %v2625
    %3606 = vmatpush.bf16.msra.mxu0 %v2617
    %3607 = vmatpush.bf16.msra.mxu0 %v2609
    %3608 = vmatpush.bf16.msra.mxu0 %v2601
    %3609 = vmatpush.bf16.msra.mxu0 %v2593
    %3610 = vmatpush.bf16.msra.mxu0 %v2585
    %3611 = vmatpush.bf16.msra.mxu0 %v2577
    %3612 = vmatmul.bf16.gmra.mxu0 %v122
    %v3613 = vpop.f32.mrf.mxu0
    %v3614 = vadd.f32 %v3601, %v3613
    %v3615 = vpop.f32.mrf.mxu0
    %3616 = vdwg.mxu0
    %3617 = vmatpush.bf16.msra.mxu0 %v2697
    %3618 = vmatpush.bf16.msra.mxu0 %v2689
    %3619 = vmatpush.bf16.msra.mxu0 %v2681
    %3620 = vmatpush.bf16.msra.mxu0 %v2673
    %3621 = vmatpush.bf16.msra.mxu0 %v2665
    %3622 = vmatpush.bf16.msra.mxu0 %v2657
    %3623 = vmatpush.bf16.msra.mxu0 %v2649
    %3624 = vmatpush.bf16.msra.mxu0 %v2641
    %3625 = vmatmul.bf16.gmra.mxu0 %v123
    %v3626 = vpop.f32.mrf.mxu0
    %v3627 = vadd.f32 %v3614, %v3626
    %v3628 = vpop.f32.mrf.mxu0
    %3629 = vdwg.mxu0
    %3630 = vmatpush.bf16.msra.mxu0 %v2250
    %3631 = vmatpush.bf16.msra.mxu0 %v2242
    %3632 = vmatpush.bf16.msra.mxu0 %v2234
    %3633 = vmatpush.bf16.msra.mxu0 %v2226
    %3634 = vmatpush.bf16.msra.mxu0 %v2218
    %3635 = vmatpush.bf16.msra.mxu0 %v2210
    %3636 = vmatpush.bf16.msra.mxu0 %v2202
    %3637 = vmatpush.bf16.msra.mxu0 %v2194
    %3638 = vmatmul.bf16.gmra.mxu0 %v116
    %v3639 = vpop.f32.mrf.mxu0
    %v3640 = vadd.f32 %v642, %v3639
    %v3641 = vpop.f32.mrf.mxu0
    %3642 = vdwg.mxu0
    %3643 = vmatpush.bf16.msra.mxu0 %v2314
    %3644 = vmatpush.bf16.msra.mxu0 %v2306
    %3645 = vmatpush.bf16.msra.mxu0 %v2298
    %3646 = vmatpush.bf16.msra.mxu0 %v2290
    %3647 = vmatpush.bf16.msra.mxu0 %v2282
    %3648 = vmatpush.bf16.msra.mxu0 %v2274
    %3649 = vmatpush.bf16.msra.mxu0 %v2266
    %3650 = vmatpush.bf16.msra.mxu0 %v2258
    %3651 = vmatmul.bf16.gmra.mxu0 %v117
    %v3652 = vpop.f32.mrf.mxu0
    %v3653 = vadd.f32 %v3640, %v3652
    %v3654 = vpop.f32.mrf.mxu0
    %3655 = vdwg.mxu0
    %3656 = vmatpush.bf16.msra.mxu0 %v2378
    %3657 = vmatpush.bf16.msra.mxu0 %v2370
    %3658 = vmatpush.bf16.msra.mxu0 %v2362
    %3659 = vmatpush.bf16.msra.mxu0 %v2354
    %3660 = vmatpush.bf16.msra.mxu0 %v2346
    %3661 = vmatpush.bf16.msra.mxu0 %v2338
    %3662 = vmatpush.bf16.msra.mxu0 %v2330
    %3663 = vmatpush.bf16.msra.mxu0 %v2322
    %3664 = vmatmul.bf16.gmra.mxu0 %v118
    %v3665 = vpop.f32.mrf.mxu0
    %v3666 = vadd.f32 %v3653, %v3665
    %v3667 = vpop.f32.mrf.mxu0
    %3668 = vdwg.mxu0
    %3669 = vmatpush.bf16.msra.mxu0 %v2442
    %3670 = vmatpush.bf16.msra.mxu0 %v2434
    %3671 = vmatpush.bf16.msra.mxu0 %v2426
    %3672 = vmatpush.bf16.msra.mxu0 %v2418
    %3673 = vmatpush.bf16.msra.mxu0 %v2410
    %3674 = vmatpush.bf16.msra.mxu0 %v2402
    %3675 = vmatpush.bf16.msra.mxu0 %v2394
    %3676 = vmatpush.bf16.msra.mxu0 %v2386
    %3677 = vmatmul.bf16.gmra.mxu0 %v119
    %v3678 = vpop.f32.mrf.mxu0
    %v3679 = vadd.f32 %v3666, %v3678
    %v3680 = vpop.f32.mrf.mxu0
    %3681 = vdwg.mxu0
    %3682 = vmatpush.bf16.msra.mxu0 %v2506
    %3683 = vmatpush.bf16.msra.mxu0 %v2498
    %3684 = vmatpush.bf16.msra.mxu0 %v2490
    %3685 = vmatpush.bf16.msra.mxu0 %v2482
    %3686 = vmatpush.bf16.msra.mxu0 %v2474
    %3687 = vmatpush.bf16.msra.mxu0 %v2466
    %3688 = vmatpush.bf16.msra.mxu0 %v2458
    %3689 = vmatpush.bf16.msra.mxu0 %v2450
    %3690 = vmatmul.bf16.gmra.mxu0 %v120
    %v3691 = vpop.f32.mrf.mxu0
    %v3692 = vadd.f32 %v3679, %v3691
    %v3693 = vpop.f32.mrf.mxu0
    %3694 = vdwg.mxu0
    %3695 = vmatpush.bf16.msra.mxu0 %v2570
    %3696 = vmatpush.bf16.msra.mxu0 %v2562
    %3697 = vmatpush.bf16.msra.mxu0 %v2554
    %3698 = vmatpush.bf16.msra.mxu0 %v2546
    %3699 = vmatpush.bf16.msra.mxu0 %v2538
    %3700 = vmatpush.bf16.msra.mxu0 %v2530
    %3701 = vmatpush.bf16.msra.mxu0 %v2522
    %3702 = vmatpush.bf16.msra.mxu0 %v2514
    %3703 = vmatmul.bf16.gmra.mxu0 %v121
    %v3704 = vpop.f32.mrf.mxu0
    %v3705 = vadd.f32 %v3692, %v3704
    %v3706 = vpop.f32.mrf.mxu0
    %3707 = vdwg.mxu0
    %3708 = vmatpush.bf16.msra.mxu0 %v2634
    %3709 = vmatpush.bf16.msra.mxu0 %v2626
    %3710 = vmatpush.bf16.msra.mxu0 %v2618
    %3711 = vmatpush.bf16.msra.mxu0 %v2610
    %3712 = vmatpush.bf16.msra.mxu0 %v2602
    %3713 = vmatpush.bf16.msra.mxu0 %v2594
    %3714 = vmatpush.bf16.msra.mxu0 %v2586
    %3715 = vmatpush.bf16.msra.mxu0 %v2578
    %3716 = vmatmul.bf16.gmra.mxu0 %v122
    %v3717 = vpop.f32.mrf.mxu0
    %v3718 = vadd.f32 %v3705, %v3717
    %v3719 = vpop.f32.mrf.mxu0
    %3720 = vdwg.mxu0
    %3721 = vmatpush.bf16.msra.mxu0 %v2698
    %3722 = vmatpush.bf16.msra.mxu0 %v2690
    %3723 = vmatpush.bf16.msra.mxu0 %v2682
    %3724 = vmatpush.bf16.msra.mxu0 %v2674
    %3725 = vmatpush.bf16.msra.mxu0 %v2666
    %3726 = vmatpush.bf16.msra.mxu0 %v2658
    %3727 = vmatpush.bf16.msra.mxu0 %v2650
    %3728 = vmatpush.bf16.msra.mxu0 %v2642
    %3729 = vmatmul.bf16.gmra.mxu0 %v123
    %v3730 = vpop.f32.mrf.mxu0
    %v3731 = vadd.f32 %v3718, %v3730
    %v3732 = vpop.f32.mrf.mxu0
    %3733 = vdwg.mxu0
    %3734 = vmatpush.bf16.msra.mxu0 %v2251
    %3735 = vmatpush.bf16.msra.mxu0 %v2243
    %3736 = vmatpush.bf16.msra.mxu0 %v2235
    %3737 = vmatpush.bf16.msra.mxu0 %v2227
    %3738 = vmatpush.bf16.msra.mxu0 %v2219
    %3739 = vmatpush.bf16.msra.mxu0 %v2211
    %3740 = vmatpush.bf16.msra.mxu0 %v2203
    %3741 = vmatpush.bf16.msra.mxu0 %v2195
    %3742 = vmatmul.bf16.gmra.mxu0 %v116
    %v3743 = vpop.f32.mrf.mxu0
    %v3744 = vadd.f32 %v643, %v3743
    %v3745 = vpop.f32.mrf.mxu0
    %3746 = vdwg.mxu0
    %3747 = vmatpush.bf16.msra.mxu0 %v2315
    %3748 = vmatpush.bf16.msra.mxu0 %v2307
    %3749 = vmatpush.bf16.msra.mxu0 %v2299
    %3750 = vmatpush.bf16.msra.mxu0 %v2291
    %3751 = vmatpush.bf16.msra.mxu0 %v2283
    %3752 = vmatpush.bf16.msra.mxu0 %v2275
    %3753 = vmatpush.bf16.msra.mxu0 %v2267
    %3754 = vmatpush.bf16.msra.mxu0 %v2259
    %3755 = vmatmul.bf16.gmra.mxu0 %v117
    %v3756 = vpop.f32.mrf.mxu0
    %v3757 = vadd.f32 %v3744, %v3756
    %v3758 = vpop.f32.mrf.mxu0
    %3759 = vdwg.mxu0
    %3760 = vmatpush.bf16.msra.mxu0 %v2379
    %3761 = vmatpush.bf16.msra.mxu0 %v2371
    %3762 = vmatpush.bf16.msra.mxu0 %v2363
    %3763 = vmatpush.bf16.msra.mxu0 %v2355
    %3764 = vmatpush.bf16.msra.mxu0 %v2347
    %3765 = vmatpush.bf16.msra.mxu0 %v2339
    %3766 = vmatpush.bf16.msra.mxu0 %v2331
    %3767 = vmatpush.bf16.msra.mxu0 %v2323
    %3768 = vmatmul.bf16.gmra.mxu0 %v118
    %v3769 = vpop.f32.mrf.mxu0
    %v3770 = vadd.f32 %v3757, %v3769
    %v3771 = vpop.f32.mrf.mxu0
    %3772 = vdwg.mxu0
    %3773 = vmatpush.bf16.msra.mxu0 %v2443
    %3774 = vmatpush.bf16.msra.mxu0 %v2435
    %3775 = vmatpush.bf16.msra.mxu0 %v2427
    %3776 = vmatpush.bf16.msra.mxu0 %v2419
    %3777 = vmatpush.bf16.msra.mxu0 %v2411
    %3778 = vmatpush.bf16.msra.mxu0 %v2403
    %3779 = vmatpush.bf16.msra.mxu0 %v2395
    %3780 = vmatpush.bf16.msra.mxu0 %v2387
    %3781 = vmatmul.bf16.gmra.mxu0 %v119
    %v3782 = vpop.f32.mrf.mxu0
    %v3783 = vadd.f32 %v3770, %v3782
    %v3784 = vpop.f32.mrf.mxu0
    %3785 = vdwg.mxu0
    %3786 = vmatpush.bf16.msra.mxu0 %v2507
    %3787 = vmatpush.bf16.msra.mxu0 %v2499
    %3788 = vmatpush.bf16.msra.mxu0 %v2491
    %3789 = vmatpush.bf16.msra.mxu0 %v2483
    %3790 = vmatpush.bf16.msra.mxu0 %v2475
    %3791 = vmatpush.bf16.msra.mxu0 %v2467
    %3792 = vmatpush.bf16.msra.mxu0 %v2459
    %3793 = vmatpush.bf16.msra.mxu0 %v2451
    %3794 = vmatmul.bf16.gmra.mxu0 %v120
    %v3795 = vpop.f32.mrf.mxu0
    %v3796 = vadd.f32 %v3783, %v3795
    %v3797 = vpop.f32.mrf.mxu0
    %3798 = vdwg.mxu0
    %3799 = vmatpush.bf16.msra.mxu0 %v2571
    %3800 = vmatpush.bf16.msra.mxu0 %v2563
    %3801 = vmatpush.bf16.msra.mxu0 %v2555
    %3802 = vmatpush.bf16.msra.mxu0 %v2547
    %3803 = vmatpush.bf16.msra.mxu0 %v2539
    %3804 = vmatpush.bf16.msra.mxu0 %v2531
    %3805 = vmatpush.bf16.msra.mxu0 %v2523
    %3806 = vmatpush.bf16.msra.mxu0 %v2515
    %3807 = vmatmul.bf16.gmra.mxu0 %v121
    %v3808 = vpop.f32.mrf.mxu0
    %v3809 = vadd.f32 %v3796, %v3808
    %v3810 = vpop.f32.mrf.mxu0
    %3811 = vdwg.mxu0
    %3812 = vmatpush.bf16.msra.mxu0 %v2635
    %3813 = vmatpush.bf16.msra.mxu0 %v2627
    %3814 = vmatpush.bf16.msra.mxu0 %v2619
    %3815 = vmatpush.bf16.msra.mxu0 %v2611
    %3816 = vmatpush.bf16.msra.mxu0 %v2603
    %3817 = vmatpush.bf16.msra.mxu0 %v2595
    %3818 = vmatpush.bf16.msra.mxu0 %v2587
    %3819 = vmatpush.bf16.msra.mxu0 %v2579
    %3820 = vmatmul.bf16.gmra.mxu0 %v122
    %v3821 = vpop.f32.mrf.mxu0
    %v3822 = vadd.f32 %v3809, %v3821
    %v3823 = vpop.f32.mrf.mxu0
    %3824 = vdwg.mxu0
    %3825 = vmatpush.bf16.msra.mxu0 %v2699
    %3826 = vmatpush.bf16.msra.mxu0 %v2691
    %3827 = vmatpush.bf16.msra.mxu0 %v2683
    %3828 = vmatpush.bf16.msra.mxu0 %v2675
    %3829 = vmatpush.bf16.msra.mxu0 %v2667
    %3830 = vmatpush.bf16.msra.mxu0 %v2659
    %3831 = vmatpush.bf16.msra.mxu0 %v2651
    %3832 = vmatpush.bf16.msra.mxu0 %v2643
    %3833 = vmatmul.bf16.gmra.mxu0 %v123
    %v3834 = vpop.f32.mrf.mxu0
    %v3835 = vadd.f32 %v3822, %v3834
    %v3836 = vpop.f32.mrf.mxu0
    %3837 = vdwg.mxu0
    %3838 = vmatpush.bf16.msra.mxu0 %v2252
    %3839 = vmatpush.bf16.msra.mxu0 %v2244
    %3840 = vmatpush.bf16.msra.mxu0 %v2236
    %3841 = vmatpush.bf16.msra.mxu0 %v2228
    %3842 = vmatpush.bf16.msra.mxu0 %v2220
    %3843 = vmatpush.bf16.msra.mxu0 %v2212
    %3844 = vmatpush.bf16.msra.mxu0 %v2204
    %3845 = vmatpush.bf16.msra.mxu0 %v2196
    %3846 = vmatmul.bf16.gmra.mxu0 %v116
    %v3847 = vpop.f32.mrf.mxu0
    %v3848 = vadd.f32 %v644, %v3847
    %v3849 = vpop.f32.mrf.mxu0
    %3850 = vdwg.mxu0
    %3851 = vmatpush.bf16.msra.mxu0 %v2316
    %3852 = vmatpush.bf16.msra.mxu0 %v2308
    %3853 = vmatpush.bf16.msra.mxu0 %v2300
    %3854 = vmatpush.bf16.msra.mxu0 %v2292
    %3855 = vmatpush.bf16.msra.mxu0 %v2284
    %3856 = vmatpush.bf16.msra.mxu0 %v2276
    %3857 = vmatpush.bf16.msra.mxu0 %v2268
    %3858 = vmatpush.bf16.msra.mxu0 %v2260
    %3859 = vmatmul.bf16.gmra.mxu0 %v117
    %v3860 = vpop.f32.mrf.mxu0
    %v3861 = vadd.f32 %v3848, %v3860
    %v3862 = vpop.f32.mrf.mxu0
    %3863 = vdwg.mxu0
    %3864 = vmatpush.bf16.msra.mxu0 %v2380
    %3865 = vmatpush.bf16.msra.mxu0 %v2372
    %3866 = vmatpush.bf16.msra.mxu0 %v2364
    %3867 = vmatpush.bf16.msra.mxu0 %v2356
    %3868 = vmatpush.bf16.msra.mxu0 %v2348
    %3869 = vmatpush.bf16.msra.mxu0 %v2340
    %3870 = vmatpush.bf16.msra.mxu0 %v2332
    %3871 = vmatpush.bf16.msra.mxu0 %v2324
    %3872 = vmatmul.bf16.gmra.mxu0 %v118
    %v3873 = vpop.f32.mrf.mxu0
    %v3874 = vadd.f32 %v3861, %v3873
    %v3875 = vpop.f32.mrf.mxu0
    %3876 = vdwg.mxu0
    %3877 = vmatpush.bf16.msra.mxu0 %v2444
    %3878 = vmatpush.bf16.msra.mxu0 %v2436
    %3879 = vmatpush.bf16.msra.mxu0 %v2428
    %3880 = vmatpush.bf16.msra.mxu0 %v2420
    %3881 = vmatpush.bf16.msra.mxu0 %v2412
    %3882 = vmatpush.bf16.msra.mxu0 %v2404
    %3883 = vmatpush.bf16.msra.mxu0 %v2396
    %3884 = vmatpush.bf16.msra.mxu0 %v2388
    %3885 = vmatmul.bf16.gmra.mxu0 %v119
    %v3886 = vpop.f32.mrf.mxu0
    %v3887 = vadd.f32 %v3874, %v3886
    %v3888 = vpop.f32.mrf.mxu0
    %3889 = vdwg.mxu0
    %3890 = vmatpush.bf16.msra.mxu0 %v2508
    %3891 = vmatpush.bf16.msra.mxu0 %v2500
    %3892 = vmatpush.bf16.msra.mxu0 %v2492
    %3893 = vmatpush.bf16.msra.mxu0 %v2484
    %3894 = vmatpush.bf16.msra.mxu0 %v2476
    %3895 = vmatpush.bf16.msra.mxu0 %v2468
    %3896 = vmatpush.bf16.msra.mxu0 %v2460
    %3897 = vmatpush.bf16.msra.mxu0 %v2452
    %3898 = vmatmul.bf16.gmra.mxu0 %v120
    %v3899 = vpop.f32.mrf.mxu0
    %v3900 = vadd.f32 %v3887, %v3899
    %v3901 = vpop.f32.mrf.mxu0
    %3902 = vdwg.mxu0
    %3903 = vmatpush.bf16.msra.mxu0 %v2572
    %3904 = vmatpush.bf16.msra.mxu0 %v2564
    %3905 = vmatpush.bf16.msra.mxu0 %v2556
    %3906 = vmatpush.bf16.msra.mxu0 %v2548
    %3907 = vmatpush.bf16.msra.mxu0 %v2540
    %3908 = vmatpush.bf16.msra.mxu0 %v2532
    %3909 = vmatpush.bf16.msra.mxu0 %v2524
    %3910 = vmatpush.bf16.msra.mxu0 %v2516
    %3911 = vmatmul.bf16.gmra.mxu0 %v121
    %v3912 = vpop.f32.mrf.mxu0
    %v3913 = vadd.f32 %v3900, %v3912
    %v3914 = vpop.f32.mrf.mxu0
    %3915 = vdwg.mxu0
    %3916 = vmatpush.bf16.msra.mxu0 %v2636
    %3917 = vmatpush.bf16.msra.mxu0 %v2628
    %3918 = vmatpush.bf16.msra.mxu0 %v2620
    %3919 = vmatpush.bf16.msra.mxu0 %v2612
    %3920 = vmatpush.bf16.msra.mxu0 %v2604
    %3921 = vmatpush.bf16.msra.mxu0 %v2596
    %3922 = vmatpush.bf16.msra.mxu0 %v2588
    %3923 = vmatpush.bf16.msra.mxu0 %v2580
    %3924 = vmatmul.bf16.gmra.mxu0 %v122
    %v3925 = vpop.f32.mrf.mxu0
    %v3926 = vadd.f32 %v3913, %v3925
    %v3927 = vpop.f32.mrf.mxu0
    %3928 = vdwg.mxu0
    %3929 = vmatpush.bf16.msra.mxu0 %v2700
    %3930 = vmatpush.bf16.msra.mxu0 %v2692
    %3931 = vmatpush.bf16.msra.mxu0 %v2684
    %3932 = vmatpush.bf16.msra.mxu0 %v2676
    %3933 = vmatpush.bf16.msra.mxu0 %v2668
    %3934 = vmatpush.bf16.msra.mxu0 %v2660
    %3935 = vmatpush.bf16.msra.mxu0 %v2652
    %3936 = vmatpush.bf16.msra.mxu0 %v2644
    %3937 = vmatmul.bf16.gmra.mxu0 %v123
    %v3938 = vpop.f32.mrf.mxu0
    %v3939 = vadd.f32 %v3926, %v3938
    %v3940 = vpop.f32.mrf.mxu0
    %3941 = vdwg.mxu0
    %3942 = vmatpush.bf16.msra.mxu0 %v2253
    %3943 = vmatpush.bf16.msra.mxu0 %v2245
    %3944 = vmatpush.bf16.msra.mxu0 %v2237
    %3945 = vmatpush.bf16.msra.mxu0 %v2229
    %3946 = vmatpush.bf16.msra.mxu0 %v2221
    %3947 = vmatpush.bf16.msra.mxu0 %v2213
    %3948 = vmatpush.bf16.msra.mxu0 %v2205
    %3949 = vmatpush.bf16.msra.mxu0 %v2197
    %3950 = vmatmul.bf16.gmra.mxu0 %v116
    %v3951 = vpop.f32.mrf.mxu0
    %v3952 = vadd.f32 %v645, %v3951
    %v3953 = vpop.f32.mrf.mxu0
    %3954 = vdwg.mxu0
    %3955 = vmatpush.bf16.msra.mxu0 %v2317
    %3956 = vmatpush.bf16.msra.mxu0 %v2309
    %3957 = vmatpush.bf16.msra.mxu0 %v2301
    %3958 = vmatpush.bf16.msra.mxu0 %v2293
    %3959 = vmatpush.bf16.msra.mxu0 %v2285
    %3960 = vmatpush.bf16.msra.mxu0 %v2277
    %3961 = vmatpush.bf16.msra.mxu0 %v2269
    %3962 = vmatpush.bf16.msra.mxu0 %v2261
    %3963 = vmatmul.bf16.gmra.mxu0 %v117
    %v3964 = vpop.f32.mrf.mxu0
    %v3965 = vadd.f32 %v3952, %v3964
    %v3966 = vpop.f32.mrf.mxu0
    %3967 = vdwg.mxu0
    %3968 = vmatpush.bf16.msra.mxu0 %v2381
    %3969 = vmatpush.bf16.msra.mxu0 %v2373
    %3970 = vmatpush.bf16.msra.mxu0 %v2365
    %3971 = vmatpush.bf16.msra.mxu0 %v2357
    %3972 = vmatpush.bf16.msra.mxu0 %v2349
    %3973 = vmatpush.bf16.msra.mxu0 %v2341
    %3974 = vmatpush.bf16.msra.mxu0 %v2333
    %3975 = vmatpush.bf16.msra.mxu0 %v2325
    %3976 = vmatmul.bf16.gmra.mxu0 %v118
    %v3977 = vpop.f32.mrf.mxu0
    %v3978 = vadd.f32 %v3965, %v3977
    %v3979 = vpop.f32.mrf.mxu0
    %3980 = vdwg.mxu0
    %3981 = vmatpush.bf16.msra.mxu0 %v2445
    %3982 = vmatpush.bf16.msra.mxu0 %v2437
    %3983 = vmatpush.bf16.msra.mxu0 %v2429
    %3984 = vmatpush.bf16.msra.mxu0 %v2421
    %3985 = vmatpush.bf16.msra.mxu0 %v2413
    %3986 = vmatpush.bf16.msra.mxu0 %v2405
    %3987 = vmatpush.bf16.msra.mxu0 %v2397
    %3988 = vmatpush.bf16.msra.mxu0 %v2389
    %3989 = vmatmul.bf16.gmra.mxu0 %v119
    %v3990 = vpop.f32.mrf.mxu0
    %v3991 = vadd.f32 %v3978, %v3990
    %v3992 = vpop.f32.mrf.mxu0
    %3993 = vdwg.mxu0
    %3994 = vmatpush.bf16.msra.mxu0 %v2509
    %3995 = vmatpush.bf16.msra.mxu0 %v2501
    %3996 = vmatpush.bf16.msra.mxu0 %v2493
    %3997 = vmatpush.bf16.msra.mxu0 %v2485
    %3998 = vmatpush.bf16.msra.mxu0 %v2477
    %3999 = vmatpush.bf16.msra.mxu0 %v2469
    %4000 = vmatpush.bf16.msra.mxu0 %v2461
    %4001 = vmatpush.bf16.msra.mxu0 %v2453
    %4002 = vmatmul.bf16.gmra.mxu0 %v120
    %v4003 = vpop.f32.mrf.mxu0
    %v4004 = vadd.f32 %v3991, %v4003
    %v4005 = vpop.f32.mrf.mxu0
    %4006 = vdwg.mxu0
    %4007 = vmatpush.bf16.msra.mxu0 %v2573
    %4008 = vmatpush.bf16.msra.mxu0 %v2565
    %4009 = vmatpush.bf16.msra.mxu0 %v2557
    %4010 = vmatpush.bf16.msra.mxu0 %v2549
    %4011 = vmatpush.bf16.msra.mxu0 %v2541
    %4012 = vmatpush.bf16.msra.mxu0 %v2533
    %4013 = vmatpush.bf16.msra.mxu0 %v2525
    %4014 = vmatpush.bf16.msra.mxu0 %v2517
    %4015 = vmatmul.bf16.gmra.mxu0 %v121
    %v4016 = vpop.f32.mrf.mxu0
    %v4017 = vadd.f32 %v4004, %v4016
    %v4018 = vpop.f32.mrf.mxu0
    %4019 = vdwg.mxu0
    %4020 = vmatpush.bf16.msra.mxu0 %v2637
    %4021 = vmatpush.bf16.msra.mxu0 %v2629
    %4022 = vmatpush.bf16.msra.mxu0 %v2621
    %4023 = vmatpush.bf16.msra.mxu0 %v2613
    %4024 = vmatpush.bf16.msra.mxu0 %v2605
    %4025 = vmatpush.bf16.msra.mxu0 %v2597
    %4026 = vmatpush.bf16.msra.mxu0 %v2589
    %4027 = vmatpush.bf16.msra.mxu0 %v2581
    %4028 = vmatmul.bf16.gmra.mxu0 %v122
    %v4029 = vpop.f32.mrf.mxu0
    %v4030 = vadd.f32 %v4017, %v4029
    %v4031 = vpop.f32.mrf.mxu0
    %4032 = vdwg.mxu0
    %4033 = vmatpush.bf16.msra.mxu0 %v2701
    %4034 = vmatpush.bf16.msra.mxu0 %v2693
    %4035 = vmatpush.bf16.msra.mxu0 %v2685
    %4036 = vmatpush.bf16.msra.mxu0 %v2677
    %4037 = vmatpush.bf16.msra.mxu0 %v2669
    %4038 = vmatpush.bf16.msra.mxu0 %v2661
    %4039 = vmatpush.bf16.msra.mxu0 %v2653
    %4040 = vmatpush.bf16.msra.mxu0 %v2645
    %4041 = vmatmul.bf16.gmra.mxu0 %v123
    %v4042 = vpop.f32.mrf.mxu0
    %v4043 = vadd.f32 %v4030, %v4042
    %v4044 = vpop.f32.mrf.mxu0
    %4045 = vdwg.mxu0
    %v4046 = vmax.f32 %v3315, 0.0
    %v4047 = vmax.f32 %v3419, 0.0
    %v4048 = vmax.f32 %v3523, 0.0
    %v4049 = vmax.f32 %v3627, 0.0
    %v4050 = vmax.f32 %v3731, 0.0
    %v4051 = vmax.f32 %v3835, 0.0
    %v4052 = vmax.f32 %v3939, 0.0
    %v4053 = vmax.f32 %v4043, 0.0
    %v4054 = vpack.c.bf16 %v4046, %v4046
    %v4055 = vpack.c.bf16 %v4047, %v4047
    %v4056 = vpack.c.bf16 %v4048, %v4048
    %v4057 = vpack.c.bf16 %v4049, %v4049
    %v4058 = vpack.c.bf16 %v4050, %v4050
    %v4059 = vpack.c.bf16 %v4051, %v4051
    %v4060 = vpack.c.bf16 %v4052, %v4052
    %v4061 = vpack.c.bf16 %v4053, %v4053
    %v4062 = vld [vmem:[#allocation8] sm:$0xf]
    %v4063 = vld [vmem:[#allocation8 + $0x4] sm:$0xf]
    %v4064 = vld [vmem:[#allocation8 + $0x8] sm:$0xf]
    %v4065 = vld [vmem:[#allocation8 + $0xc] sm:$0xf]
    %v4066 = vld [vmem:[#allocation8 + $0x10] sm:$0xf]
    %v4067 = vld [vmem:[#allocation8 + $0x14] sm:$0xf]
    %v4068 = vld [vmem:[#allocation8 + $0x18] sm:$0xf]
    %v4069 = vld [vmem:[#allocation8 + $0x1c] sm:$0xf]
    %v4070 = vld [vmem:[#allocation8 + $0x20] sm:$0xf]
    %v4071 = vld [vmem:[#allocation8 + $0x24] sm:$0xf]
    %v4072 = vld [vmem:[#allocation8 + $0x28] sm:$0xf]
    %v4073 = vld [vmem:[#allocation8 + $0x2c] sm:$0xf]
    %v4074 = vld [vmem:[#allocation8 + $0x30] sm:$0xf]
    %v4075 = vld [vmem:[#allocation8 + $0x34] sm:$0xf]
    %v4076 = vld [vmem:[#allocation8 + $0x38] sm:$0xf]
    %v4077 = vld [vmem:[#allocation8 + $0x3c] sm:$0xf]
    %v4078 = vld [vmem:[#allocation8 + $0x40] sm:$0xf]
    %v4079 = vld [vmem:[#allocation8 + $0x44] sm:$0xf]
    %v4080 = vld [vmem:[#allocation8 + $0x48] sm:$0xf]
    %v4081 = vld [vmem:[#allocation8 + $0x4c] sm:$0xf]
    %v4082 = vld [vmem:[#allocation8 + $0x50] sm:$0xf]
    %v4083 = vld [vmem:[#allocation8 + $0x54] sm:$0xf]
    %v4084 = vld [vmem:[#allocation8 + $0x58] sm:$0xf]
    %v4085 = vld [vmem:[#allocation8 + $0x5c] sm:$0xf]
    %v4086 = vld [vmem:[#allocation8 + $0x60] sm:$0xf]
    %v4087 = vld [vmem:[#allocation8 + $0x64] sm:$0xf]
    %v4088 = vld [vmem:[#allocation8 + $0x68] sm:$0xf]
    %v4089 = vld [vmem:[#allocation8 + $0x6c] sm:$0xf]
    %v4090 = vld [vmem:[#allocation8 + $0x70] sm:$0xf]
    %v4091 = vld [vmem:[#allocation8 + $0x74] sm:$0xf]
    %v4092 = vld [vmem:[#allocation8 + $0x78] sm:$0xf]
    %v4093 = vld [vmem:[#allocation8 + $0x7c] sm:$0xf]
    %v4094 = vld [vmem:[#allocation8 + $0x80] sm:$0xf]
    %v4095 = vld [vmem:[#allocation8 + $0x84] sm:$0xf]
    %v4096 = vld [vmem:[#allocation8 + $0x88] sm:$0xf]
    %v4097 = vld [vmem:[#allocation8 + $0x8c] sm:$0xf]
    %v4098 = vld [vmem:[#allocation8 + $0x90] sm:$0xf]
    %v4099 = vld [vmem:[#allocation8 + $0x94] sm:$0xf]
    %v4100 = vld [vmem:[#allocation8 + $0x98] sm:$0xf]
    %v4101 = vld [vmem:[#allocation8 + $0x9c] sm:$0xf]
    %v4102 = vld [vmem:[#allocation8 + $0xa0] sm:$0xf]
    %v4103 = vld [vmem:[#allocation8 + $0xa4] sm:$0xf]
    %v4104 = vld [vmem:[#allocation8 + $0xa8] sm:$0xf]
    %v4105 = vld [vmem:[#allocation8 + $0xac] sm:$0xf]
    %v4106 = vld [vmem:[#allocation8 + $0xb0] sm:$0xf]
    %v4107 = vld [vmem:[#allocation8 + $0xb4] sm:$0xf]
    %v4108 = vld [vmem:[#allocation8 + $0xb8] sm:$0xf]
    %v4109 = vld [vmem:[#allocation8 + $0xbc] sm:$0xf]
    %v4110 = vld [vmem:[#allocation8 + $0xc0] sm:$0xf]
    %v4111 = vld [vmem:[#allocation8 + $0xc4] sm:$0xf]
    %v4112 = vld [vmem:[#allocation8 + $0xc8] sm:$0xf]
    %v4113 = vld [vmem:[#allocation8 + $0xcc] sm:$0xf]
    %v4114 = vld [vmem:[#allocation8 + $0xd0] sm:$0xf]
    %v4115 = vld [vmem:[#allocation8 + $0xd4] sm:$0xf]
    %v4116 = vld [vmem:[#allocation8 + $0xd8] sm:$0xf]
    %v4117 = vld [vmem:[#allocation8 + $0xdc] sm:$0xf]
    %v4118 = vld [vmem:[#allocation8 + $0xe0] sm:$0xf]
    %v4119 = vld [vmem:[#allocation8 + $0xe4] sm:$0xf]
    %v4120 = vld [vmem:[#allocation8 + $0xe8] sm:$0xf]
    %v4121 = vld [vmem:[#allocation8 + $0xec] sm:$0xf]
    %v4122 = vld [vmem:[#allocation8 + $0xf0] sm:$0xf]
    %v4123 = vld [vmem:[#allocation8 + $0xf4] sm:$0xf]
    %v4124 = vld [vmem:[#allocation8 + $0xf8] sm:$0xf]
    %v4125 = vld [vmem:[#allocation8 + $0xfc] sm:$0xf]
    %v4126 = vld [vmem:[#allocation8 + $0x100] sm:$0xf]
    %v4127 = vld [vmem:[#allocation8 + $0x104] sm:$0xf]
    %v4128 = vld [vmem:[#allocation8 + $0x108] sm:$0xf]
    %v4129 = vld [vmem:[#allocation8 + $0x10c] sm:$0xf]
    %v4130 = vld [vmem:[#allocation8 + $0x110] sm:$0xf]
    %v4131 = vld [vmem:[#allocation8 + $0x114] sm:$0xf]
    %v4132 = vld [vmem:[#allocation8 + $0x118] sm:$0xf]
    %v4133 = vld [vmem:[#allocation8 + $0x11c] sm:$0xf]
    %v4134 = vld [vmem:[#allocation8 + $0x120] sm:$0xf]
    %v4135 = vld [vmem:[#allocation8 + $0x124] sm:$0xf]
    %v4136 = vld [vmem:[#allocation8 + $0x128] sm:$0xf]
    %v4137 = vld [vmem:[#allocation8 + $0x12c] sm:$0xf]
    %v4138 = vld [vmem:[#allocation8 + $0x130] sm:$0xf]
    %v4139 = vld [vmem:[#allocation8 + $0x134] sm:$0xf]
    %v4140 = vld [vmem:[#allocation8 + $0x138] sm:$0xf]
    %v4141 = vld [vmem:[#allocation8 + $0x13c] sm:$0xf]
    %v4142 = vld [vmem:[#allocation8 + $0x140] sm:$0xf]
    %v4143 = vld [vmem:[#allocation8 + $0x144] sm:$0xf]
    %v4144 = vld [vmem:[#allocation8 + $0x148] sm:$0xf]
    %v4145 = vld [vmem:[#allocation8 + $0x14c] sm:$0xf]
    %v4146 = vld [vmem:[#allocation8 + $0x150] sm:$0xf]
    %v4147 = vld [vmem:[#allocation8 + $0x154] sm:$0xf]
    %v4148 = vld [vmem:[#allocation8 + $0x158] sm:$0xf]
    %v4149 = vld [vmem:[#allocation8 + $0x15c] sm:$0xf]
    %v4150 = vld [vmem:[#allocation8 + $0x160] sm:$0xf]
    %v4151 = vld [vmem:[#allocation8 + $0x164] sm:$0xf]
    %v4152 = vld [vmem:[#allocation8 + $0x168] sm:$0xf]
    %v4153 = vld [vmem:[#allocation8 + $0x16c] sm:$0xf]
    %v4154 = vld [vmem:[#allocation8 + $0x170] sm:$0xf]
    %v4155 = vld [vmem:[#allocation8 + $0x174] sm:$0xf]
    %v4156 = vld [vmem:[#allocation8 + $0x178] sm:$0xf]
    %v4157 = vld [vmem:[#allocation8 + $0x17c] sm:$0xf]
    %v4158 = vld [vmem:[#allocation8 + $0x180] sm:$0xf]
    %v4159 = vld [vmem:[#allocation8 + $0x184] sm:$0xf]
    %v4160 = vld [vmem:[#allocation8 + $0x188] sm:$0xf]
    %v4161 = vld [vmem:[#allocation8 + $0x18c] sm:$0xf]
    %v4162 = vld [vmem:[#allocation8 + $0x190] sm:$0xf]
    %v4163 = vld [vmem:[#allocation8 + $0x194] sm:$0xf]
    %v4164 = vld [vmem:[#allocation8 + $0x198] sm:$0xf]
    %v4165 = vld [vmem:[#allocation8 + $0x19c] sm:$0xf]
    %v4166 = vld [vmem:[#allocation8 + $0x1a0] sm:$0xf]
    %v4167 = vld [vmem:[#allocation8 + $0x1a4] sm:$0xf]
    %v4168 = vld [vmem:[#allocation8 + $0x1a8] sm:$0xf]
    %v4169 = vld [vmem:[#allocation8 + $0x1ac] sm:$0xf]
    %v4170 = vld [vmem:[#allocation8 + $0x1b0] sm:$0xf]
    %v4171 = vld [vmem:[#allocation8 + $0x1b4] sm:$0xf]
    %v4172 = vld [vmem:[#allocation8 + $0x1b8] sm:$0xf]
    %v4173 = vld [vmem:[#allocation8 + $0x1bc] sm:$0xf]
    %v4174 = vld [vmem:[#allocation8 + $0x1c0] sm:$0xf]
    %v4175 = vld [vmem:[#allocation8 + $0x1c4] sm:$0xf]
    %v4176 = vld [vmem:[#allocation8 + $0x1c8] sm:$0xf]
    %v4177 = vld [vmem:[#allocation8 + $0x1cc] sm:$0xf]
    %v4178 = vld [vmem:[#allocation8 + $0x1d0] sm:$0xf]
    %v4179 = vld [vmem:[#allocation8 + $0x1d4] sm:$0xf]
    %v4180 = vld [vmem:[#allocation8 + $0x1d8] sm:$0xf]
    %v4181 = vld [vmem:[#allocation8 + $0x1dc] sm:$0xf]
    %v4182 = vld [vmem:[#allocation8 + $0x1e0] sm:$0xf]
    %v4183 = vld [vmem:[#allocation8 + $0x1e4] sm:$0xf]
    %v4184 = vld [vmem:[#allocation8 + $0x1e8] sm:$0xf]
    %v4185 = vld [vmem:[#allocation8 + $0x1ec] sm:$0xf]
    %v4186 = vld [vmem:[#allocation8 + $0x1f0] sm:$0xf]
    %v4187 = vld [vmem:[#allocation8 + $0x1f4] sm:$0xf]
    %v4188 = vld [vmem:[#allocation8 + $0x1f8] sm:$0xf]
    %v4189 = vld [vmem:[#allocation8 + $0x1fc] sm:$0xf]
    %v4190 = vld [vmem:[#allocation10] sm:$0x1]
    %v4192 = vperm.slane %v4190, 0
    %v4322 = vunpack.c.l.b16 %v4062
    %v4323 = vunpack.c.l.b16 %v4063
    %v4324 = vunpack.c.l.b16 %v4064
    %v4325 = vunpack.c.l.b16 %v4065
    %v4326 = vunpack.c.l.b16 %v4066
    %v4327 = vunpack.c.l.b16 %v4067
    %v4328 = vunpack.c.l.b16 %v4068
    %v4329 = vunpack.c.l.b16 %v4069
    %v4330 = vunpack.c.l.b16 %v4070
    %v4331 = vunpack.c.l.b16 %v4071
    %v4332 = vunpack.c.l.b16 %v4072
    %v4333 = vunpack.c.l.b16 %v4073
    %v4334 = vunpack.c.l.b16 %v4074
    %v4335 = vunpack.c.l.b16 %v4075
    %v4336 = vunpack.c.l.b16 %v4076
    %v4337 = vunpack.c.l.b16 %v4077
    %v4338 = vunpack.c.l.b16 %v4078
    %v4339 = vunpack.c.l.b16 %v4079
    %v4340 = vunpack.c.l.b16 %v4080
    %v4341 = vunpack.c.l.b16 %v4081
    %v4342 = vunpack.c.l.b16 %v4082
    %v4343 = vunpack.c.l.b16 %v4083
    %v4344 = vunpack.c.l.b16 %v4084
    %v4345 = vunpack.c.l.b16 %v4085
    %v4346 = vunpack.c.l.b16 %v4086
    %v4347 = vunpack.c.l.b16 %v4087
    %v4348 = vunpack.c.l.b16 %v4088
    %v4349 = vunpack.c.l.b16 %v4089
    %v4350 = vunpack.c.l.b16 %v4090
    %v4351 = vunpack.c.l.b16 %v4091
    %v4352 = vunpack.c.l.b16 %v4092
    %v4353 = vunpack.c.l.b16 %v4093
    %v4354 = vunpack.c.l.b16 %v4094
    %v4355 = vunpack.c.l.b16 %v4095
    %v4356 = vunpack.c.l.b16 %v4096
    %v4357 = vunpack.c.l.b16 %v4097
    %v4358 = vunpack.c.l.b16 %v4098
    %v4359 = vunpack.c.l.b16 %v4099
    %v4360 = vunpack.c.l.b16 %v4100
    %v4361 = vunpack.c.l.b16 %v4101
    %v4362 = vunpack.c.l.b16 %v4102
    %v4363 = vunpack.c.l.b16 %v4103
    %v4364 = vunpack.c.l.b16 %v4104
    %v4365 = vunpack.c.l.b16 %v4105
    %v4366 = vunpack.c.l.b16 %v4106
    %v4367 = vunpack.c.l.b16 %v4107
    %v4368 = vunpack.c.l.b16 %v4108
    %v4369 = vunpack.c.l.b16 %v4109
    %v4370 = vunpack.c.l.b16 %v4110
    %v4371 = vunpack.c.l.b16 %v4111
    %v4372 = vunpack.c.l.b16 %v4112
    %v4373 = vunpack.c.l.b16 %v4113
    %v4374 = vunpack.c.l.b16 %v4114
    %v4375 = vunpack.c.l.b16 %v4115
    %v4376 = vunpack.c.l.b16 %v4116
    %v4377 = vunpack.c.l.b16 %v4117
    %v4378 = vunpack.c.l.b16 %v4118
    %v4379 = vunpack.c.l.b16 %v4119
    %v4380 = vunpack.c.l.b16 %v4120
    %v4381 = vunpack.c.l.b16 %v4121
    %v4382 = vunpack.c.l.b16 %v4122
    %v4383 = vunpack.c.l.b16 %v4123
    %v4384 = vunpack.c.l.b16 %v4124
    %v4385 = vunpack.c.l.b16 %v4125
    %v4386 = vunpack.c.l.b16 %v4126
    %v4387 = vunpack.c.l.b16 %v4127
    %v4388 = vunpack.c.l.b16 %v4128
    %v4389 = vunpack.c.l.b16 %v4129
    %v4390 = vunpack.c.l.b16 %v4130
    %v4391 = vunpack.c.l.b16 %v4131
    %v4392 = vunpack.c.l.b16 %v4132
    %v4393 = vunpack.c.l.b16 %v4133
    %v4394 = vunpack.c.l.b16 %v4134
    %v4395 = vunpack.c.l.b16 %v4135
    %v4396 = vunpack.c.l.b16 %v4136
    %v4397 = vunpack.c.l.b16 %v4137
    %v4398 = vunpack.c.l.b16 %v4138
    %v4399 = vunpack.c.l.b16 %v4139
    %v4400 = vunpack.c.l.b16 %v4140
    %v4401 = vunpack.c.l.b16 %v4141
    %v4402 = vunpack.c.l.b16 %v4142
    %v4403 = vunpack.c.l.b16 %v4143
    %v4404 = vunpack.c.l.b16 %v4144
    %v4405 = vunpack.c.l.b16 %v4145
    %v4406 = vunpack.c.l.b16 %v4146
    %v4407 = vunpack.c.l.b16 %v4147
    %v4408 = vunpack.c.l.b16 %v4148
    %v4409 = vunpack.c.l.b16 %v4149
    %v4410 = vunpack.c.l.b16 %v4150
    %v4411 = vunpack.c.l.b16 %v4151
    %v4412 = vunpack.c.l.b16 %v4152
    %v4413 = vunpack.c.l.b16 %v4153
    %v4414 = vunpack.c.l.b16 %v4154
    %v4415 = vunpack.c.l.b16 %v4155
    %v4416 = vunpack.c.l.b16 %v4156
    %v4417 = vunpack.c.l.b16 %v4157
    %v4418 = vunpack.c.l.b16 %v4158
    %v4419 = vunpack.c.l.b16 %v4159
    %v4420 = vunpack.c.l.b16 %v4160
    %v4421 = vunpack.c.l.b16 %v4161
    %v4422 = vunpack.c.l.b16 %v4162
    %v4423 = vunpack.c.l.b16 %v4163
    %v4424 = vunpack.c.l.b16 %v4164
    %v4425 = vunpack.c.l.b16 %v4165
    %v4426 = vunpack.c.l.b16 %v4166
    %v4427 = vunpack.c.l.b16 %v4167
    %v4428 = vunpack.c.l.b16 %v4168
    %v4429 = vunpack.c.l.b16 %v4169
    %v4430 = vunpack.c.l.b16 %v4170
    %v4431 = vunpack.c.l.b16 %v4171
    %v4432 = vunpack.c.l.b16 %v4172
    %v4433 = vunpack.c.l.b16 %v4173
    %v4434 = vunpack.c.l.b16 %v4174
    %v4435 = vunpack.c.l.b16 %v4175
    %v4436 = vunpack.c.l.b16 %v4176
    %v4437 = vunpack.c.l.b16 %v4177
    %v4438 = vunpack.c.l.b16 %v4178
    %v4439 = vunpack.c.l.b16 %v4179
    %v4440 = vunpack.c.l.b16 %v4180
    %v4441 = vunpack.c.l.b16 %v4181
    %v4442 = vunpack.c.l.b16 %v4182
    %v4443 = vunpack.c.l.b16 %v4183
    %v4444 = vunpack.c.l.b16 %v4184
    %v4445 = vunpack.c.l.b16 %v4185
    %v4446 = vunpack.c.l.b16 %v4186
    %v4447 = vunpack.c.l.b16 %v4187
    %v4448 = vunpack.c.l.b16 %v4188
    %v4449 = vunpack.c.l.b16 %v4189
    %v4450 = vpack.c.b16 %v4323, %v4322
    %v4451 = vpack.c.b16 %v4325, %v4324
    %v4452 = vpack.c.b16 %v4327, %v4326
    %v4453 = vpack.c.b16 %v4329, %v4328
    %v4454 = vpack.c.b16 %v4331, %v4330
    %v4455 = vpack.c.b16 %v4333, %v4332
    %v4456 = vpack.c.b16 %v4335, %v4334
    %v4457 = vpack.c.b16 %v4337, %v4336
    %v4458 = vpack.c.b16 %v4339, %v4338
    %v4459 = vpack.c.b16 %v4341, %v4340
    %v4460 = vpack.c.b16 %v4343, %v4342
    %v4461 = vpack.c.b16 %v4345, %v4344
    %v4462 = vpack.c.b16 %v4347, %v4346
    %v4463 = vpack.c.b16 %v4349, %v4348
    %v4464 = vpack.c.b16 %v4351, %v4350
    %v4465 = vpack.c.b16 %v4353, %v4352
    %v4466 = vpack.c.b16 %v4355, %v4354
    %v4467 = vpack.c.b16 %v4357, %v4356
    %v4468 = vpack.c.b16 %v4359, %v4358
    %v4469 = vpack.c.b16 %v4361, %v4360
    %v4470 = vpack.c.b16 %v4363, %v4362
    %v4471 = vpack.c.b16 %v4365, %v4364
    %v4472 = vpack.c.b16 %v4367, %v4366
    %v4473 = vpack.c.b16 %v4369, %v4368
    %v4474 = vpack.c.b16 %v4371, %v4370
    %v4475 = vpack.c.b16 %v4373, %v4372
    %v4476 = vpack.c.b16 %v4375, %v4374
    %v4477 = vpack.c.b16 %v4377, %v4376
    %v4478 = vpack.c.b16 %v4379, %v4378
    %v4479 = vpack.c.b16 %v4381, %v4380
    %v4480 = vpack.c.b16 %v4383, %v4382
    %v4481 = vpack.c.b16 %v4385, %v4384
    %v4482 = vpack.c.b16 %v4387, %v4386
    %v4483 = vpack.c.b16 %v4389, %v4388
    %v4484 = vpack.c.b16 %v4391, %v4390
    %v4485 = vpack.c.b16 %v4393, %v4392
    %v4486 = vpack.c.b16 %v4395, %v4394
    %v4487 = vpack.c.b16 %v4397, %v4396
    %v4488 = vpack.c.b16 %v4399, %v4398
    %v4489 = vpack.c.b16 %v4401, %v4400
    %v4490 = vpack.c.b16 %v4403, %v4402
    %v4491 = vpack.c.b16 %v4405, %v4404
    %v4492 = vpack.c.b16 %v4407, %v4406
    %v4493 = vpack.c.b16 %v4409, %v4408
    %v4494 = vpack.c.b16 %v4411, %v4410
    %v4495 = vpack.c.b16 %v4413, %v4412
    %v4496 = vpack.c.b16 %v4415, %v4414
    %v4497 = vpack.c.b16 %v4417, %v4416
    %v4498 = vpack.c.b16 %v4419, %v4418
    %v4499 = vpack.c.b16 %v4421, %v4420
    %v4500 = vpack.c.b16 %v4423, %v4422
    %v4501 = vpack.c.b16 %v4425, %v4424
    %v4502 = vpack.c.b16 %v4427, %v4426
    %v4503 = vpack.c.b16 %v4429, %v4428
    %v4504 = vpack.c.b16 %v4431, %v4430
    %v4505 = vpack.c.b16 %v4433, %v4432
    %v4506 = vpack.c.b16 %v4435, %v4434
    %v4507 = vpack.c.b16 %v4437, %v4436
    %v4508 = vpack.c.b16 %v4439, %v4438
    %v4509 = vpack.c.b16 %v4441, %v4440
    %v4510 = vpack.c.b16 %v4443, %v4442
    %v4511 = vpack.c.b16 %v4445, %v4444
    %v4512 = vpack.c.b16 %v4447, %v4446
    %v4513 = vpack.c.b16 %v4449, %v4448
    %4578 = vmatpush.bf16.msra.mxu0 %v4457
    %4579 = vmatpush.bf16.msra.mxu0 %v4456
    %4580 = vmatpush.bf16.msra.mxu0 %v4455
    %4581 = vmatpush.bf16.msra.mxu0 %v4454
    %4582 = vmatpush.bf16.msra.mxu0 %v4453
    %4583 = vmatpush.bf16.msra.mxu0 %v4452
    %4584 = vmatpush.bf16.msra.mxu0 %v4451
    %4585 = vmatpush.bf16.msra.mxu0 %v4450
    %4586 = vmatmul.bf16.gmra.mxu0 %v4054
    %v4587 = vpop.f32.mrf.mxu0
    %v4588 = vadd.f32 %v4192, %v4587
    %v4589 = vpop.f32.mrf.mxu0
    %4590 = vdwg.mxu0
    %4591 = vmatpush.bf16.msra.mxu0 %v4465
    %4592 = vmatpush.bf16.msra.mxu0 %v4464
    %4593 = vmatpush.bf16.msra.mxu0 %v4463
    %4594 = vmatpush.bf16.msra.mxu0 %v4462
    %4595 = vmatpush.bf16.msra.mxu0 %v4461
    %4596 = vmatpush.bf16.msra.mxu0 %v4460
    %4597 = vmatpush.bf16.msra.mxu0 %v4459
    %4598 = vmatpush.bf16.msra.mxu0 %v4458
    %4599 = vmatmul.bf16.gmra.mxu0 %v4055
    %v4600 = vpop.f32.mrf.mxu0
    %v4601 = vadd.f32 %v4588, %v4600
    %v4602 = vpop.f32.mrf.mxu0
    %4603 = vdwg.mxu0
    %4604 = vmatpush.bf16.msra.mxu0 %v4473
    %4605 = vmatpush.bf16.msra.mxu0 %v4472
    %4606 = vmatpush.bf16.msra.mxu0 %v4471
    %4607 = vmatpush.bf16.msra.mxu0 %v4470
    %4608 = vmatpush.bf16.msra.mxu0 %v4469
    %4609 = vmatpush.bf16.msra.mxu0 %v4468
    %4610 = vmatpush.bf16.msra.mxu0 %v4467
    %4611 = vmatpush.bf16.msra.mxu0 %v4466
    %4612 = vmatmul.bf16.gmra.mxu0 %v4056
    %v4613 = vpop.f32.mrf.mxu0
    %v4614 = vadd.f32 %v4601, %v4613
    %v4615 = vpop.f32.mrf.mxu0
    %4616 = vdwg.mxu0
    %4617 = vmatpush.bf16.msra.mxu0 %v4481
    %4618 = vmatpush.bf16.msra.mxu0 %v4480
    %4619 = vmatpush.bf16.msra.mxu0 %v4479
    %4620 = vmatpush.bf16.msra.mxu0 %v4478
    %4621 = vmatpush.bf16.msra.mxu0 %v4477
    %4622 = vmatpush.bf16.msra.mxu0 %v4476
    %4623 = vmatpush.bf16.msra.mxu0 %v4475
    %4624 = vmatpush.bf16.msra.mxu0 %v4474
    %4625 = vmatmul.bf16.gmra.mxu0 %v4057
    %v4626 = vpop.f32.mrf.mxu0
    %v4627 = vadd.f32 %v4614, %v4626
    %v4628 = vpop.f32.mrf.mxu0
    %4629 = vdwg.mxu0
    %4630 = vmatpush.bf16.msra.mxu0 %v4489
    %4631 = vmatpush.bf16.msra.mxu0 %v4488
    %4632 = vmatpush.bf16.msra.mxu0 %v4487
    %4633 = vmatpush.bf16.msra.mxu0 %v4486
    %4634 = vmatpush.bf16.msra.mxu0 %v4485
    %4635 = vmatpush.bf16.msra.mxu0 %v4484
    %4636 = vmatpush.bf16.msra.mxu0 %v4483
    %4637 = vmatpush.bf16.msra.mxu0 %v4482
    %4638 = vmatmul.bf16.gmra.mxu0 %v4058
    %v4639 = vpop.f32.mrf.mxu0
    %v4640 = vadd.f32 %v4627, %v4639
    %v4641 = vpop.f32.mrf.mxu0
    %4642 = vdwg.mxu0
    %4643 = vmatpush.bf16.msra.mxu0 %v4497
    %4644 = vmatpush.bf16.msra.mxu0 %v4496
    %4645 = vmatpush.bf16.msra.mxu0 %v4495
    %4646 = vmatpush.bf16.msra.mxu0 %v4494
    %4647 = vmatpush.bf16.msra.mxu0 %v4493
    %4648 = vmatpush.bf16.msra.mxu0 %v4492
    %4649 = vmatpush.bf16.msra.mxu0 %v4491
    %4650 = vmatpush.bf16.msra.mxu0 %v4490
    %4651 = vmatmul.bf16.gmra.mxu0 %v4059
    %v4652 = vpop.f32.mrf.mxu0
    %v4653 = vadd.f32 %v4640, %v4652
    %v4654 = vpop.f32.mrf.mxu0
    %4655 = vdwg.mxu0
    %4656 = vmatpush.bf16.msra.mxu0 %v4505
    %4657 = vmatpush.bf16.msra.mxu0 %v4504
    %4658 = vmatpush.bf16.msra.mxu0 %v4503
    %4659 = vmatpush.bf16.msra.mxu0 %v4502
    %4660 = vmatpush.bf16.msra.mxu0 %v4501
    %4661 = vmatpush.bf16.msra.mxu0 %v4500
    %4662 = vmatpush.bf16.msra.mxu0 %v4499
    %4663 = vmatpush.bf16.msra.mxu0 %v4498
    %4664 = vmatmul.bf16.gmra.mxu0 %v4060
    %v4665 = vpop.f32.mrf.mxu0
    %v4666 = vadd.f32 %v4653, %v4665
    %v4667 = vpop.f32.mrf.mxu0
    %4668 = vdwg.mxu0
    %4669 = vmatpush.bf16.msra.mxu0 %v4513
    %4670 = vmatpush.bf16.msra.mxu0 %v4512
    %4671 = vmatpush.bf16.msra.mxu0 %v4511
    %4672 = vmatpush.bf16.msra.mxu0 %v4510
    %4673 = vmatpush.bf16.msra.mxu0 %v4509
    %4674 = vmatpush.bf16.msra.mxu0 %v4508
    %4675 = vmatpush.bf16.msra.mxu0 %v4507
    %4676 = vmatpush.bf16.msra.mxu0 %v4506
    %4677 = vmatmul.bf16.gmra.mxu0 %v4061
    %v4678 = vpop.f32.mrf.mxu0
    %v4679 = vadd.f32 %v4666, %v4678
    %v4680 = vpop.f32.mrf.mxu0
    %4681 = vdwg.mxu0
    %4682 = vst [vmem:[#allocation11] sm:$0x3] %v4679
    // Predicated region
    $region42: #{tpu_custom_call.1} parent=1 // pred_check
      _
    $region43: #{tpu_custom_call.1} parent=1 // pred_check_branch
      %4684 = sbr.rel (0) target = $region45
    $region44: #{tpu_custom_call.1} parent=1 // pred_region
      %4686 = vsyncadd [#allocation4], 0
      %s4688 = sshll.u32 [#allocation11], 4
      %s4689 = int_to_ptr.vmem [resolvable:$true] %s4688
      %s4690 = sshll.u32 %s5, 4
      %s4691 = int_to_ptr.hbm [resolvable:$true] %s4690
      %4693 = dma.vmem_to_hbm [thread:$0]  %s4689, 32, %s4691, [#allocation4]
    $region45: #{tpu_custom_call.1} parent=1 // pred_fallthru
      _
    // Predicated region
    $region46: #{tpu_custom_call.1} parent=1 // pred_check
      _
    $region47: #{tpu_custom_call.1} parent=1 // pred_check_branch
      %4695 = sbr.rel (0) target = $region49
    $region48: #{tpu_custom_call.1} parent=1 // pred_region
      %4697 = dma.done [#allocation4], 32
    $region49: #{tpu_custom_call.1} parent=1 // pred_fallthru
      _
    %4698 = vsyncpa [#allocation3], 1
    %4699 = vsyncpa [#allocation6], 1
    %4700 = vsyncpa [#allocation9], 1
    %4701 = vsyncpa [#allocation4], 1

// kernel: tpu_custom_call.1
$region0: #{tpu_custom_call.1}
  #allocation0 [shape = 'u32[]', space=smem, size = 0x4, offset = 0x4, fixed_abs, tag = 'smem constant byte address 0x4 - core index']
  #allocation1 [shape = 'u32[72,128]{1,0:T(1,128)}', space=vmem, size = 0x9000, scoped, tag = 'internal scratch']
  %s0 = inlined_call_operand.hbm [shape: f32[2,1024], index: 0, kind: input, shape index: {}]
  %s1 = inlined_call_operand.hbm [shape: bf16[1024,1024], index: 1, kind: input, shape index: {}]
  %s2 = inlined_call_operand.hbm [shape: f32[1,1024], index: 2, kind: input, shape index: {}]
  %s3 = inlined_call_operand.hbm [shape: bf16[1024,128], index: 3, kind: input, shape index: {}]
  %s4 = inlined_call_operand.hbm [shape: f32[1,128], index: 4, kind: input, shape index: {}]
  %s5 = inlined_call_operand.hbm [shape: f32[2,128], index: 5, kind: output, shape index: {}]
  %s6 = sld [smem:[#allocation0]]
  $region50: #{tpu_custom_call.1} parent=0
    _
  %s8 = ssub.s32 1, %s6
  %s9 = scalar_select 0, %s8, %s6
  $region1: #{tpu_custom_call.1} parent=0
    #allocation2 [shape = 'u8[8192]{0}', space=vmem, size = 0x2000, scoped, tag = 'input window, operand 0, single buffered']
    #allocation3 [shape = 's32[1]{0}', space=sflag, size = 0x4, scoped, tag = 'scoped memory for tpu_custom_call.1']
    #allocation4 [shape = 's32[1]{0}', space=sflag, size = 0x4, scoped, tag = 'scoped memory for tpu_custom_call.1']
    #allocation5 [shape = 'u8[2097152]{0}', space=vmem, size = 0x200000, scoped, tag = 'input window, operand 1, single buffered']
    #allocation6 [shape = 's32[1]{0}', space=sflag, size = 0x4, scoped, tag = 'scoped memory for tpu_custom_call.1']
    #allocation7 [shape = 'u8[4096]{0}', space=vmem, size = 0x1000, scoped, tag = 'input window, operand 2, single buffered']
    #allocation8 [shape = 'u8[262144]{0}', space=vmem, size = 0x40000, scoped, tag = 'input window, operand 3, single buffered']
    #allocation9 [shape = 's32[1]{0}', space=sflag, size = 0x4, scoped, tag = 'scoped memory for tpu_custom_call.1']
    #allocation10 [shape = 'u8[512]{0}', space=vmem, size = 0x400, scoped, tag = 'input window, operand 4, single buffered']
    #allocation11 [shape = 'u8[1024]{0}', space=vmem, size = 0x400, scoped, tag = 'output window, operand 0, single buffered']
    %10 = vsyncpa [#allocation3], 0
    %11 = vsyncpa [#allocation6], 0
    %12 = vsyncpa [#allocation9], 0
    %13 = vsyncpa [#allocation4], 0
    // Predicated region
    $region2: #{tpu_custom_call.1} parent=1 // pred_check
      _
    $region3: #{tpu_custom_call.1} parent=1 // pred_check_branch
      %15 = sbr.rel (0) target = $region5
    $region4: #{tpu_custom_call.1} parent=1 // pred_region
      %17 = vsyncadd [#allocation3], 0
      %s19 = sshll.u32 %s0, 4
      %s20 = int_to_ptr.hbm [resolvable:$true] %s19
      %s21 = sshll.u32 [#allocation2], 4
      %s22 = int_to_ptr.vmem [resolvable:$true] %s21
      %24 = dma.hbm_to_vmem [thread:$0]  %s20, 256, %s22, [#allocation3]
    $region5: #{tpu_custom_call.1} parent=1 // pred_fallthru
      _
    // Predicated region
    $region6: #{tpu_custom_call.1} parent=1 // pred_check
      _
    $region7: #{tpu_custom_call.1} parent=1 // pred_check_branch
      %26 = sbr.rel (0) target = $region9
    $region8: #{tpu_custom_call.1} parent=1 // pred_region
      %28 = vsyncadd [#allocation6], 0
      %s29 = sshll.u32 %s1, 4
      %s30 = int_to_ptr.hbm [resolvable:$true] %s29
      %s31 = sshll.u32 [#allocation5], 4
      %s32 = int_to_ptr.vmem [resolvable:$true] %s31
      %37 = dma.hbm_to_vmem [thread:$0]  %s30, 65536, %s32, [#allocation6], 512, 512, 32
    $region9: #{tpu_custom_call.1} parent=1 // pred_fallthru
      _
    // Predicated region
    $region10: #{tpu_custom_call.1} parent=1 // pred_check
      _
    $region11: #{tpu_custom_call.1} parent=1 // pred_check_branch
      %39 = sbr.rel (0) target = $region13
    $region12: #{tpu_custom_call.1} parent=1 // pred_region
      %41 = vsyncadd [#allocation6], 0
      %s43 = sshll.u32 %s2, 4
      %s44 = int_to_ptr.hbm [resolvable:$true] %s43
      %s45 = sshll.u32 [#allocation7], 4
      %s46 = int_to_ptr.vmem [resolvable:$true] %s45
      %48 = dma.hbm_to_vmem [thread:$0]  %s44, 128, %s46, [#allocation6]
    $region13: #{tpu_custom_call.1} parent=1 // pred_fallthru
      _
    // Predicated region
    $region14: #{tpu_custom_call.1} parent=1 // pred_check
      _
    $region15: #{tpu_custom_call.1} parent=1 // pred_check_branch
      %50 = sbr.rel (0) target = $region17
    $region16: #{tpu_custom_call.1} parent=1 // pred_region
      %52 = vsyncadd [#allocation9], 0
      %s53 = sshll.u32 %s3, 4
      %s54 = int_to_ptr.hbm [resolvable:$true] %s53
      %s55 = sshll.u32 [#allocation8], 4
      %s56 = int_to_ptr.vmem [resolvable:$true] %s55
      %61 = dma.hbm_to_vmem [thread:$0]  %s54, 8192, %s56, [#allocation9], 64, 64, 4
    $region17: #{tpu_custom_call.1} parent=1 // pred_fallthru
      _
    // Predicated region
    $region18: #{tpu_custom_call.1} parent=1 // pred_check
      _
    $region19: #{tpu_custom_call.1} parent=1 // pred_check_branch
      %63 = sbr.rel (0) target = $region21
    $region20: #{tpu_custom_call.1} parent=1 // pred_region
      %65 = vsyncadd [#allocation9], 0
      %s67 = sshll.u32 %s4, 4
      %s68 = int_to_ptr.hbm [resolvable:$true] %s67
      %s69 = sshll.u32 [#allocation10], 4
      %s70 = int_to_ptr.vmem [resolvable:$true] %s69
      %72 = dma.hbm_to_vmem [thread:$0]  %s68, 16, %s70, [#allocation9]
    $region21: #{tpu_custom_call.1} parent=1 // pred_fallthru
      _
    // Predicated region
    $region22: #{tpu_custom_call.1} parent=1 // pred_check
      _
    $region23: #{tpu_custom_call.1} parent=1 // pred_check_branch
      %74 = sbr.rel (0) target = $region25
    $region24: #{tpu_custom_call.1} parent=1 // pred_region
      %76 = dma.done [#allocation3], 256
    $region25: #{tpu_custom_call.1} parent=1 // pred_fallthru
      _
    // Predicated region
    $region26: #{tpu_custom_call.1} parent=1 // pred_check
      _
    $region27: #{tpu_custom_call.1} parent=1 // pred_check_branch
      %78 = sbr.rel (0) target = $region29
    $region28: #{tpu_custom_call.1} parent=1 // pred_region
      %80 = dma.done [#allocation6], 65536
    $region29: #{tpu_custom_call.1} parent=1 // pred_fallthru
      _
    // Predicated region
    $region30: #{tpu_custom_call.1} parent=1 // pred_check
      _
    $region31: #{tpu_custom_call.1} parent=1 // pred_check_branch
      %82 = sbr.rel (0) target = $region33
    $region32: #{tpu_custom_call.1} parent=1 // pred_region
      %84 = dma.done [#allocation6], 128
    $region33: #{tpu_custom_call.1} parent=1 // pred_fallthru
      _
    // Predicated region
    $region34: #{tpu_custom_call.1} parent=1 // pred_check
      _
    $region35: #{tpu_custom_call.1} parent=1 // pred_check_branch
      %86 = sbr.rel (0) target = $region37
    $region36: #{tpu_custom_call.1} parent=1 // pred_region
      %88 = dma.done [#allocation9], 8192
    $region37: #{tpu_custom_call.1} parent=1 // pred_fallthru
      _
    // Predicated region
    $region38: #{tpu_custom_call.1} parent=1 // pred_check
      _
    $region39: #{tpu_custom_call.1} parent=1 // pred_check_branch
      %90 = sbr.rel (0) target = $region41
    $region40: #{tpu_custom_call.1} parent=1 // pred_region
      %92 = dma.done [#allocation9], 16
    $region41: #{tpu_custom_call.1} parent=1 // pred_fallthru
      _
    %v93 = vld [vmem:[#allocation2] sm:$0xff]
    %v94 = vld [vmem:[#allocation2 + $0x8] sm:$0xff]
    %97 = vst [vmem:[#allocation1] ss:$4 sm:$0xff] %v93
    %s98 = scalar_lea.vmem [#allocation1], 32
    %99 = vst [vmem:[%s98] ss:$4 sm:$0xff] %v94
    %v100 = vld.sshfl [vmem:[#allocation1] sm:$0xff pattern:$0x73625140]
    %v101 = vld.sshfl [vmem:[#allocation1 + $0x8] sm:$0xff pattern:$0x73625140]
    %v102 = vld.sshfl [vmem:[#allocation1 + $0x10] sm:$0xff pattern:$0x73625140]
    %v103 = vld.sshfl [vmem:[#allocation1 + $0x18] sm:$0xff pattern:$0x73625140]
    %v104 = vld.sshfl [vmem:[#allocation1 + $0x20] sm:$0xff pattern:$0x73625140]
    %v105 = vld.sshfl [vmem:[#allocation1 + $0x28] sm:$0xff pattern:$0x73625140]
    %v106 = vld.sshfl [vmem:[#allocation1 + $0x30] sm:$0xff pattern:$0x73625140]
    %v107 = vld.sshfl [vmem:[#allocation1 + $0x38] sm:$0xff pattern:$0x73625140]
    %v116 = vpack.c.bf16 %v100, %v100
    %v117 = vpack.c.bf16 %v101, %v101
    %v118 = vpack.c.bf16 %v102, %v102
    %v119 = vpack.c.bf16 %v103, %v103
    %v120 = vpack.c.bf16 %v104, %v104
    %v121 = vpack.c.bf16 %v105, %v105
    %v122 = vpack.c.bf16 %v106, %v106
    %v123 = vpack.c.bf16 %v107, %v107
    %v124 = vld [vmem:[#allocation5] sm:$0xff]
    %v125 = vld [vmem:[#allocation5 + $0x8] sm:$0xff]
    %v126 = vld [vmem:[#allocation5 + $0x10] sm:$0xff]
    %v127 = vld [vmem:[#allocation5 + $0x18] sm:$0xff]
    %v128 = vld [vmem:[#allocation5 + $0x20] sm:$0xff]
    %v129 = vld [vmem:[#allocation5 + $0x28] sm:$0xff]
    %v130 = vld [vmem:[#allocation5 + $0x30] sm:$0xff]
    %v131 = vld [vmem:[#allocation5 + $0x38] sm:$0xff]
    %v132 = vld [vmem:[#allocation5 + $0x40] sm:$0xff]
    %v133 = vld [vmem:[#allocation5 + $0x48] sm:$0xff]
    %v134 = vld [vmem:[#allocation5 + $0x50] sm:$0xff]
    %v135 = vld [vmem:[#allocation5 + $0x58] sm:$0xff]
    %v136 = vld [vmem:[#allocation5 + $0x60] sm:$0xff]
    %v137 = vld [vmem:[#allocation5 + $0x68] sm:$0xff]
    %v138 = vld [vmem:[#allocation5 + $0x70] sm:$0xff]
    %v139 = vld [vmem:[#allocation5 + $0x78] sm:$0xff]
    %v140 = vld [vmem:[#allocation5 + $0x80] sm:$0xff]
    %v141 = vld [vmem:[#allocation5 + $0x88] sm:$0xff]
    %v142 = vld [vmem:[#allocation5 + $0x90] sm:$0xff]
    %v143 = vld [vmem:[#allocation5 + $0x98] sm:$0xff]
    %v144 = vld [vmem:[#allocation5 + $0xa0] sm:$0xff]
    %v145 = vld [vmem:[#allocation5 + $0xa8] sm:$0xff]
    %v146 = vld [vmem:[#allocation5 + $0xb0] sm:$0xff]
    %v147 = vld [vmem:[#allocation5 + $0xb8] sm:$0xff]
    %v148 = vld [vmem:[#allocation5 + $0xc0] sm:$0xff]
    %v149 = vld [vmem:[#allocation5 + $0xc8] sm:$0xff]
    %v150 = vld [vmem:[#allocation5 + $0xd0] sm:$0xff]
    %v151 = vld [vmem:[#allocation5 + $0xd8] sm:$0xff]
    %v152 = vld [vmem:[#allocation5 + $0xe0] sm:$0xff]
    %v153 = vld [vmem:[#allocation5 + $0xe8] sm:$0xff]
    %v154 = vld [vmem:[#allocation5 + $0xf0] sm:$0xff]
    %v155 = vld [vmem:[#allocation5 + $0xf8] sm:$0xff]
    %v156 = vld [vmem:[#allocation5 + $0x100] sm:$0xff]
    %v157 = vld [vmem:[#allocation5 + $0x108] sm:$0xff]
    %v158 = vld [vmem:[#allocation5 + $0x110] sm:$0xff]
    %v159 = vld [vmem:[#allocation5 + $0x118] sm:$0xff]
    %v160 = vld [vmem:[#allocation5 + $0x120] sm:$0xff]
    %v161 = vld [vmem:[#allocation5 + $0x128] sm:$0xff]
    %v162 = vld [vmem:[#allocation5 + $0x130] sm:$0xff]
    %v163 = vld [vmem:[#allocation5 + $0x138] sm:$0xff]
    %v164 = vld [vmem:[#allocation5 + $0x140] sm:$0xff]
    %v165 = vld [vmem:[#allocation5 + $0x148] sm:$0xff]
    %v166 = vld [vmem:[#allocation5 + $0x150] sm:$0xff]
    %v167 = vld [vmem:[#allocation5 + $0x158] sm:$0xff]
    %v168 = vld [vmem:[#allocation5 + $0x160] sm:$0xff]
    %v169 = vld [vmem:[#allocation5 + $0x168] sm:$0xff]
    %v170 = vld [vmem:[#allocation5 + $0x170] sm:$0xff]
    %v171 = vld [vmem:[#allocation5 + $0x178] sm:$0xff]
    %v172 = vld [vmem:[#allocation5 + $0x180] sm:$0xff]
    %v173 = vld [vmem:[#allocation5 + $0x188] sm:$0xff]
    %v174 = vld [vmem:[#allocation5 + $0x190] sm:$0xff]
    %v175 = vld [vmem:[#allocation5 + $0x198] sm:$0xff]
    %v176 = vld [vmem:[#allocation5 + $0x1a0] sm:$0xff]
    %v177 = vld [vmem:[#allocation5 + $0x1a8] sm:$0xff]
    %v178 = vld [vmem:[#allocation5 + $0x1b0] sm:$0xff]
    %v179 = vld [vmem:[#allocation5 + $0x1b8] sm:$0xff]
    %v180 = vld [vmem:[#allocation5 + $0x1c0] sm:$0xff]
    %v181 = vld [vmem:[#allocation5 + $0x1c8] sm:$0xff]
    %v182 = vld [vmem:[#allocation5 + $0x1d0] sm:$0xff]
    %v183 = vld [vmem:[#allocation5 + $0x1d8] sm:$0xff]
    %v184 = vld [vmem:[#allocation5 + $0x1e0] sm:$0xff]
    %v185 = vld [vmem:[#allocation5 + $0x1e8] sm:$0xff]
    %v186 = vld [vmem:[#allocation5 + $0x1f0] sm:$0xff]
    %v187 = vld [vmem:[#allocation5 + $0x1f8] sm:$0xff]
    %v188 = vld [vmem:[#allocation5 + $0x200] sm:$0xff]
    %v189 = vld [vmem:[#allocation5 + $0x208] sm:$0xff]
    %v190 = vld [vmem:[#allocation5 + $0x210] sm:$0xff]
    %v191 = vld [vmem:[#allocation5 + $0x218] sm:$0xff]
    %v192 = vld [vmem:[#allocation5 + $0x220] sm:$0xff]
    %v193 = vld [vmem:[#allocation5 + $0x228] sm:$0xff]
    %v194 = vld [vmem:[#allocation5 + $0x230] sm:$0xff]
    %v195 = vld [vmem:[#allocation5 + $0x238] sm:$0xff]
    %v196 = vld [vmem:[#allocation5 + $0x240] sm:$0xff]
    %v197 = vld [vmem:[#allocation5 + $0x248] sm:$0xff]
    %v198 = vld [vmem:[#allocation5 + $0x250] sm:$0xff]
    %v199 = vld [vmem:[#allocation5 + $0x258] sm:$0xff]
    %v200 = vld [vmem:[#allocation5 + $0x260] sm:$0xff]
    %v201 = vld [vmem:[#allocation5 + $0x268] sm:$0xff]
    %v202 = vld [vmem:[#allocation5 + $0x270] sm:$0xff]
    %v203 = vld [vmem:[#allocation5 + $0x278] sm:$0xff]
    %v204 = vld [vmem:[#allocation5 + $0x280] sm:$0xff]
    %v205 = vld [vmem:[#allocation5 + $0x288] sm:$0xff]
    %v206 = vld [vmem:[#allocation5 + $0x290] sm:$0xff]
    %v207 = vld [vmem:[#allocation5 + $0x298] sm:$0xff]
    %v208 = vld [vmem:[#allocation5 + $0x2a0] sm:$0xff]
    %v209 = vld [vmem:[#allocation5 + $0x2a8] sm:$0xff]
    %v210 = vld [vmem:[#allocation5 + $0x2b0] sm:$0xff]
    %v211 = vld [vmem:[#allocation5 + $0x2b8] sm:$0xff]
    %v212 = vld [vmem:[#allocation5 + $0x2c0] sm:$0xff]
    %v213 = vld [vmem:[#allocation5 + $0x2c8] sm:$0xff]
    %v214 = vld [vmem:[#allocation5 + $0x2d0] sm:$0xff]
    %v215 = vld [vmem:[#allocation5 + $0x2d8] sm:$0xff]
    %v216 = vld [vmem:[#allocation5 + $0x2e0] sm:$0xff]
    %v217 = vld [vmem:[#allocation5 + $0x2e8] sm:$0xff]
    %v218 = vld [vmem:[#allocation5 + $0x2f0] sm:$0xff]
    %v219 = vld [vmem:[#allocation5 + $0x2f8] sm:$0xff]
    %v220 = vld [vmem:[#allocation5 + $0x300] sm:$0xff]
    %v221 = vld [vmem:[#allocation5 + $0x308] sm:$0xff]
    %v222 = vld [vmem:[#allocation5 + $0x310] sm:$0xff]
    %v223 = vld [vmem:[#allocation5 + $0x318] sm:$0xff]
    %v224 = vld [vmem:[#allocation5 + $0x320] sm:$0xff]
    %v225 = vld [vmem:[#allocation5 + $0x328] sm:$0xff]
    %v226 = vld [vmem:[#allocation5 + $0x330] sm:$0xff]
    %v227 = vld [vmem:[#allocation5 + $0x338] sm:$0xff]
    %v228 = vld [vmem:[#allocation5 + $0x340] sm:$0xff]
    %v229 = vld [vmem:[#allocation5 + $0x348] sm:$0xff]
    %v230 = vld [vmem:[#allocation5 + $0x350] sm:$0xff]
    %v231 = vld [vmem:[#allocation5 + $0x358] sm:$0xff]
    %v232 = vld [vmem:[#allocation5 + $0x360] sm:$0xff]
    %v233 = vld [vmem:[#allocation5 + $0x368] sm:$0xff]
    %v234 = vld [vmem:[#allocation5 + $0x370] sm:$0xff]
    %v235 = vld [vmem:[#allocation5 + $0x378] sm:$0xff]
    %v236 = vld [vmem:[#allocation5 + $0x380] sm:$0xff]
    %v237 = vld [vmem:[#allocation5 + $0x388] sm:$0xff]
    %v238 = vld [vmem:[#allocation5 + $0x390] sm:$0xff]
    %v239 = vld [vmem:[#allocation5 + $0x398] sm:$0xff]
    %v240 = vld [vmem:[#allocation5 + $0x3a0] sm:$0xff]
    %v241 = vld [vmem:[#allocation5 + $0x3a8] sm:$0xff]
    %v242 = vld [vmem:[#allocation5 + $0x3b0] sm:$0xff]
    %v243 = vld [vmem:[#allocation5 + $0x3b8] sm:$0xff]
    %v244 = vld [vmem:[#allocation5 + $0x3c0] sm:$0xff]
    %v245 = vld [vmem:[#allocation5 + $0x3c8] sm:$0xff]
    %v246 = vld [vmem:[#allocation5 + $0x3d0] sm:$0xff]
    %v247 = vld [vmem:[#allocation5 + $0x3d8] sm:$0xff]
    %v248 = vld [vmem:[#allocation5 + $0x3e0] sm:$0xff]
    %v249 = vld [vmem:[#allocation5 + $0x3e8] sm:$0xff]
    %v250 = vld [vmem:[#allocation5 + $0x3f0] sm:$0xff]
    %v251 = vld [vmem:[#allocation5 + $0x3f8] sm:$0xff]
    %v252 = vld [vmem:[#allocation5 + $0x400] sm:$0xff]
    %v253 = vld [vmem:[#allocation5 + $0x408] sm:$0xff]
    %v254 = vld [vmem:[#allocation5 + $0x410] sm:$0xff]
    %v255 = vld [vmem:[#allocation5 + $0x418] sm:$0xff]
    %v256 = vld [vmem:[#allocation5 + $0x420] sm:$0xff]
    %v257 = vld [vmem:[#allocation5 + $0x428] sm:$0xff]
    %v258 = vld [vmem:[#allocation5 + $0x430] sm:$0xff]
    %v259 = vld [vmem:[#allocation5 + $0x438] sm:$0xff]
    %v260 = vld [vmem:[#allocation5 + $0x440] sm:$0xff]
    %v261 = vld [vmem:[#allocation5 + $0x448] sm:$0xff]
    %v262 = vld [vmem:[#allocation5 + $0x450] sm:$0xff]
    %v263 = vld [vmem:[#allocation5 + $0x458] sm:$0xff]
    %v264 = vld [vmem:[#allocation5 + $0x460] sm:$0xff]
    %v265 = vld [vmem:[#allocation5 + $0x468] sm:$0xff]
    %v266 = vld [vmem:[#allocation5 + $0x470] sm:$0xff]
    %v267 = vld [vmem:[#allocation5 + $0x478] sm:$0xff]
    %v268 = vld [vmem:[#allocation5 + $0x480] sm:$0xff]
    %v269 = vld [vmem:[#allocation5 + $0x488] sm:$0xff]
    %v270 = vld [vmem:[#allocation5 + $0x490] sm:$0xff]
    %v271 = vld [vmem:[#allocation5 + $0x498] sm:$0xff]
    %v272 = vld [vmem:[#allocation5 + $0x4a0] sm:$0xff]
    %v273 = vld [vmem:[#allocation5 + $0x4a8] sm:$0xff]
    %v274 = vld [vmem:[#allocation5 + $0x4b0] sm:$0xff]
    %v275 = vld [vmem:[#allocation5 + $0x4b8] sm:$0xff]
    %v276 = vld [vmem:[#allocation5 + $0x4c0] sm:$0xff]
    %v277 = vld [vmem:[#allocation5 + $0x4c8] sm:$0xff]
    %v278 = vld [vmem:[#allocation5 + $0x4d0] sm:$0xff]
    %v279 = vld [vmem:[#allocation5 + $0x4d8] sm:$0xff]
    %v280 = vld [vmem:[#allocation5 + $0x4e0] sm:$0xff]
    %v281 = vld [vmem:[#allocation5 + $0x4e8] sm:$0xff]
    %v282 = vld [vmem:[#allocation5 + $0x4f0] sm:$0xff]
    %v283 = vld [vmem:[#allocation5 + $0x4f8] sm:$0xff]
    %v284 = vld [vmem:[#allocation5 + $0x500] sm:$0xff]
    %v285 = vld [vmem:[#allocation5 + $0x508] sm:$0xff]
    %v286 = vld [vmem:[#allocation5 + $0x510] sm:$0xff]
    %v287 = vld [vmem:[#allocation5 + $0x518] sm:$0xff]
    %v288 = vld [vmem:[#allocation5 + $0x520] sm:$0xff]
    %v289 = vld [vmem:[#allocation5 + $0x528] sm:$0xff]
    %v290 = vld [vmem:[#allocation5 + $0x530] sm:$0xff]
    %v291 = vld [vmem:[#allocation5 + $0x538] sm:$0xff]
    %v292 = vld [vmem:[#allocation5 + $0x540] sm:$0xff]
    %v293 = vld [vmem:[#allocation5 + $0x548] sm:$0xff]
    %v294 = vld [vmem:[#allocation5 + $0x550] sm:$0xff]
    %v295 = vld [vmem:[#allocation5 + $0x558] sm:$0xff]
    %v296 = vld [vmem:[#allocation5 + $0x560] sm:$0xff]
    %v297 = vld [vmem:[#allocation5 + $0x568] sm:$0xff]
    %v298 = vld [vmem:[#allocation5 + $0x570] sm:$0xff]
    %v299 = vld [vmem:[#allocation5 + $0x578] sm:$0xff]
    %v300 = vld [vmem:[#allocation5 + $0x580] sm:$0xff]
    %v301 = vld [vmem:[#allocation5 + $0x588] sm:$0xff]
    %v302 = vld [vmem:[#allocation5 + $0x590] sm:$0xff]
    %v303 = vld [vmem:[#allocation5 + $0x598] sm:$0xff]
    %v304 = vld [vmem:[#allocation5 + $0x5a0] sm:$0xff]
    %v305 = vld [vmem:[#allocation5 + $0x5a8] sm:$0xff]
    %v306 = vld [vmem:[#allocation5 + $0x5b0] sm:$0xff]
    %v307 = vld [vmem:[#allocation5 + $0x5b8] sm:$0xff]
    %v308 = vld [vmem:[#allocation5 + $0x5c0] sm:$0xff]
    %v309 = vld [vmem:[#allocation5 + $0x5c8] sm:$0xff]
    %v310 = vld [vmem:[#allocation5 + $0x5d0] sm:$0xff]
    %v311 = vld [vmem:[#allocation5 + $0x5d8] sm:$0xff]
    %v312 = vld [vmem:[#allocation5 + $0x5e0] sm:$0xff]
    %v313 = vld [vmem:[#allocation5 + $0x5e8] sm:$0xff]
    %v314 = vld [vmem:[#allocation5 + $0x5f0] sm:$0xff]
    %v315 = vld [vmem:[#allocation5 + $0x5f8] sm:$0xff]
    %v316 = vld [vmem:[#allocation5 + $0x600] sm:$0xff]
    %v317 = vld [vmem:[#allocation5 + $0x608] sm:$0xff]
    %v318 = vld [vmem:[#allocation5 + $0x610] sm:$0xff]
    %v319 = vld [vmem:[#allocation5 + $0x618] sm:$0xff]
    %v320 = vld [vmem:[#allocation5 + $0x620] sm:$0xff]
    %v321 = vld [vmem:[#allocation5 + $0x628] sm:$0xff]
    %v322 = vld [vmem:[#allocation5 + $0x630] sm:$0xff]
    %v323 = vld [vmem:[#allocation5 + $0x638] sm:$0xff]
    %v324 = vld [vmem:[#allocation5 + $0x640] sm:$0xff]
    %v325 = vld [vmem:[#allocation5 + $0x648] sm:$0xff]
    %v326 = vld [vmem:[#allocation5 + $0x650] sm:$0xff]
    %v327 = vld [vmem:[#allocation5 + $0x658] sm:$0xff]
    %v328 = vld [vmem:[#allocation5 + $0x660] sm:$0xff]
    %v329 = vld [vmem:[#allocation5 + $0x668] sm:$0xff]
    %v330 = vld [vmem:[#allocation5 + $0x670] sm:$0xff]
    %v331 = vld [vmem:[#allocation5 + $0x678] sm:$0xff]
    %v332 = vld [vmem:[#allocation5 + $0x680] sm:$0xff]
    %v333 = vld [vmem:[#allocation5 + $0x688] sm:$0xff]
    %v334 = vld [vmem:[#allocation5 + $0x690] sm:$0xff]
    %v335 = vld [vmem:[#allocation5 + $0x698] sm:$0xff]
    %v336 = vld [vmem:[#allocation5 + $0x6a0] sm:$0xff]
    %v337 = vld [vmem:[#allocation5 + $0x6a8] sm:$0xff]
    %v338 = vld [vmem:[#allocation5 + $0x6b0] sm:$0xff]
    %v339 = vld [vmem:[#allocation5 + $0x6b8] sm:$0xff]
    %v340 = vld [vmem:[#allocation5 + $0x6c0] sm:$0xff]
    %v341 = vld [vmem:[#allocation5 + $0x6c8] sm:$0xff]
    %v342 = vld [vmem:[#allocation5 + $0x6d0] sm:$0xff]
    %v343 = vld [vmem:[#allocation5 + $0x6d8] sm:$0xff]
    %v344 = vld [vmem:[#allocation5 + $0x6e0] sm:$0xff]
    %v345 = vld [vmem:[#allocation5 + $0x6e8] sm:$0xff]
    %v346 = vld [vmem:[#allocation5 + $0x6f0] sm:$0xff]
    %v347 = vld [vmem:[#allocation5 + $0x6f8] sm:$0xff]
    %v348 = vld [vmem:[#allocation5 + $0x700] sm:$0xff]
    %v349 = vld [vmem:[#allocation5 + $0x708] sm:$0xff]
    %v350 = vld [vmem:[#allocation5 + $0x710] sm:$0xff]
    %v351 = vld [vmem:[#allocation5 + $0x718] sm:$0xff]
    %v352 = vld [vmem:[#allocation5 + $0x720] sm:$0xff]
    %v353 = vld [vmem:[#allocation5 + $0x728] sm:$0xff]
    %v354 = vld [vmem:[#allocation5 + $0x730] sm:$0xff]
    %v355 = vld [vmem:[#allocation5 + $0x738] sm:$0xff]
    %v356 = vld [vmem:[#allocation5 + $0x740] sm:$0xff]
    %v357 = vld [vmem:[#allocation5 + $0x748] sm:$0xff]
    %v358 = vld [vmem:[#allocation5 + $0x750] sm:$0xff]
    %v359 = vld [vmem:[#allocation5 + $0x758] sm:$0xff]
    %v360 = vld [vmem:[#allocation5 + $0x760] sm:$0xff]
    %v361 = vld [vmem:[#allocation5 + $0x768] sm:$0xff]
    %v362 = vld [vmem:[#allocation5 + $0x770] sm:$0xff]
    %v363 = vld [vmem:[#allocation5 + $0x778] sm:$0xff]
    %v364 = vld [vmem:[#allocation5 + $0x780] sm:$0xff]
    %v365 = vld [vmem:[#allocation5 + $0x788] sm:$0xff]
    %v366 = vld [vmem:[#allocation5 + $0x790] sm:$0xff]
    %v367 = vld [vmem:[#allocation5 + $0x798] sm:$0xff]
    %v368 = vld [vmem:[#allocation5 + $0x7a0] sm:$0xff]
    %v369 = vld [vmem:[#allocation5 + $0x7a8] sm:$0xff]
    %v370 = vld [vmem:[#allocation5 + $0x7b0] sm:$0xff]
    %v371 = vld [vmem:[#allocation5 + $0x7b8] sm:$0xff]
    %v372 = vld [vmem:[#allocation5 + $0x7c0] sm:$0xff]
    %v373 = vld [vmem:[#allocation5 + $0x7c8] sm:$0xff]
    %v374 = vld [vmem:[#allocation5 + $0x7d0] sm:$0xff]
    %v375 = vld [vmem:[#allocation5 + $0x7d8] sm:$0xff]
    %v376 = vld [vmem:[#allocation5 + $0x7e0] sm:$0xff]
    %v377 = vld [vmem:[#allocation5 + $0x7e8] sm:$0xff]
    %v378 = vld [vmem:[#allocation5 + $0x7f0] sm:$0xff]
    %v379 = vld [vmem:[#allocation5 + $0x7f8] sm:$0xff]
    %v380 = vld [vmem:[#allocation5 + $0x800] sm:$0xff]
    %v381 = vld [vmem:[#allocation5 + $0x808] sm:$0xff]
    %v382 = vld [vmem:[#allocation5 + $0x810] sm:$0xff]
    %v383 = vld [vmem:[#allocation5 + $0x818] sm:$0xff]
    %v384 = vld [vmem:[#allocation5 + $0x820] sm:$0xff]
    %v385 = vld [vmem:[#allocation5 + $0x828] sm:$0xff]
    %v386 = vld [vmem:[#allocation5 + $0x830] sm:$0xff]
    %v387 = vld [vmem:[#allocation5 + $0x838] sm:$0xff]
    %v388 = vld [vmem:[#allocation5 + $0x840] sm:$0xff]
    %v389 = vld [vmem:[#allocation5 + $0x848] sm:$0xff]
    %v390 = vld [vmem:[#allocation5 + $0x850] sm:$0xff]
    %v391 = vld [vmem:[#allocation5 + $0x858] sm:$0xff]
    %v392 = vld [vmem:[#allocation5 + $0x860] sm:$0xff]
    %v393 = vld [vmem:[#allocation5 + $0x868] sm:$0xff]
    %v394 = vld [vmem:[#allocation5 + $0x870] sm:$0xff]
    %v395 = vld [vmem:[#allocation5 + $0x878] sm:$0xff]
    %v396 = vld [vmem:[#allocation5 + $0x880] sm:$0xff]
    %v397 = vld [vmem:[#allocation5 + $0x888] sm:$0xff]
    %v398 = vld [vmem:[#allocation5 + $0x890] sm:$0xff]
    %v399 = vld [vmem:[#allocation5 + $0x898] sm:$0xff]
    %v400 = vld [vmem:[#allocation5 + $0x8a0] sm:$0xff]
    %v401 = vld [vmem:[#allocation5 + $0x8a8] sm:$0xff]
    %v402 = vld [vmem:[#allocation5 + $0x8b0] sm:$0xff]
    %v403 = vld [vmem:[#allocation5 + $0x8b8] sm:$0xff]
    %v404 = vld [vmem:[#allocation5 + $0x8c0] sm:$0xff]
    %v405 = vld [vmem:[#allocation5 + $0x8c8] sm:$0xff]
    %v406 = vld [vmem:[#allocation5 + $0x8d0] sm:$0xff]
    %v407 = vld [vmem:[#allocation5 + $0x8d8] sm:$0xff]
    %v408 = vld [vmem:[#allocation5 + $0x8e0] sm:$0xff]
    %v409 = vld [vmem:[#allocation5 + $0x8e8] sm:$0xff]
    %v410 = vld [vmem:[#allocation5 + $0x8f0] sm:$0xff]
    %v411 = vld [vmem:[#allocation5 + $0x8f8] sm:$0xff]
    %v412 = vld [vmem:[#allocation5 + $0x900] sm:$0xff]
    %v413 = vld [vmem:[#allocation5 + $0x908] sm:$0xff]
    %v414 = vld [vmem:[#allocation5 + $0x910] sm:$0xff]
    %v415 = vld [vmem:[#allocation5 + $0x918] sm:$0xff]
    %v416 = vld [vmem:[#allocation5 + $0x920] sm:$0xff]
    %v417 = vld [vmem:[#allocation5 + $0x928] sm:$0xff]
    %v418 = vld [vmem:[#allocation5 + $0x930] sm:$0xff]
    %v419 = vld [vmem:[#allocation5 + $0x938] sm:$0xff]
    %v420 = vld [vmem:[#allocation5 + $0x940] sm:$0xff]
    %v421 = vld [vmem:[#allocation5 + $0x948] sm:$0xff]
    %v422 = vld [vmem:[#allocation5 + $0x950] sm:$0xff]
    %v423 = vld [vmem:[#allocation5 + $0x958] sm:$0xff]
    %v424 = vld [vmem:[#allocation5 + $0x960] sm:$0xff]
    %v425 = vld [vmem:[#allocation5 + $0x968] sm:$0xff]
    %v426 = vld [vmem:[#allocation5 + $0x970] sm:$0xff]
    %v427 = vld [vmem:[#allocation5 + $0x978] sm:$0xff]
    %v428 = vld [vmem:[#allocation5 + $0x980] sm:$0xff]
    %v429 = vld [vmem:[#allocation5 + $0x988] sm:$0xff]
    %v430 = vld [vmem:[#allocation5 + $0x990] sm:$0xff]
    %v431 = vld [vmem:[#allocation5 + $0x998] sm:$0xff]
    %v432 = vld [vmem:[#allocation5 + $0x9a0] sm:$0xff]
    %v433 = vld [vmem:[#allocation5 + $0x9a8] sm:$0xff]
    %v434 = vld [vmem:[#allocation5 + $0x9b0] sm:$0xff]
    %v435 = vld [vmem:[#allocation5 + $0x9b8] sm:$0xff]
    %v436 = vld [vmem:[#allocation5 + $0x9c0] sm:$0xff]
    %v437 = vld [vmem:[#allocation5 + $0x9c8] sm:$0xff]
    %v438 = vld [vmem:[#allocation5 + $0x9d0] sm:$0xff]
    %v439 = vld [vmem:[#allocation5 + $0x9d8] sm:$0xff]
    %v440 = vld [vmem:[#allocation5 + $0x9e0] sm:$0xff]
    %v441 = vld [vmem:[#allocation5 + $0x9e8] sm:$0xff]
    %v442 = vld [vmem:[#allocation5 + $0x9f0] sm:$0xff]
    %v443 = vld [vmem:[#allocation5 + $0x9f8] sm:$0xff]
    %v444 = vld [vmem:[#allocation5 + $0xa00] sm:$0xff]
    %v445 = vld [vmem:[#allocation5 + $0xa08] sm:$0xff]
    %v446 = vld [vmem:[#allocation5 + $0xa10] sm:$0xff]
    %v447 = vld [vmem:[#allocation5 + $0xa18] sm:$0xff]
    %v448 = vld [vmem:[#allocation5 + $0xa20] sm:$0xff]
    %v449 = vld [vmem:[#allocation5 + $0xa28] sm:$0xff]
    %v450 = vld [vmem:[#allocation5 + $0xa30] sm:$0xff]
    %v451 = vld [vmem:[#allocation5 + $0xa38] sm:$0xff]
    %v452 = vld [vmem:[#allocation5 + $0xa40] sm:$0xff]
    %v453 = vld [vmem:[#allocation5 + $0xa48] sm:$0xff]
    %v454 = vld [vmem:[#allocation5 + $0xa50] sm:$0xff]
    %v455 = vld [vmem:[#allocation5 + $0xa58] sm:$0xff]
    %v456 = vld [vmem:[#allocation5 + $0xa60] sm:$0xff]
    %v457 = vld [vmem:[#allocation5 + $0xa68] sm:$0xff]
    %v458 = vld [vmem:[#allocation5 + $0xa70] sm:$0xff]
    %v459 = vld [vmem:[#allocation5 + $0xa78] sm:$0xff]
    %v460 = vld [vmem:[#allocation5 + $0xa80] sm:$0xff]
    %v461 = vld [vmem:[#allocation5 + $0xa88] sm:$0xff]
    %v462 = vld [vmem:[#allocation5 + $0xa90] sm:$0xff]
    %v463 = vld [vmem:[#allocation5 + $0xa98] sm:$0xff]
    %v464 = vld [vmem:[#allocation5 + $0xaa0] sm:$0xff]
    %v465 = vld [vmem:[#allocation5 + $0xaa8] sm:$0xff]
    %v466 = vld [vmem:[#allocation5 + $0xab0] sm:$0xff]
    %v467 = vld [vmem:[#allocation5 + $0xab8] sm:$0xff]
    %v468 = vld [vmem:[#allocation5 + $0xac0] sm:$0xff]
    %v469 = vld [vmem:[#allocation5 + $0xac8] sm:$0xff]
    %v470 = vld [vmem:[#allocation5 + $0xad0] sm:$0xff]
    %v471 = vld [vmem:[#allocation5 + $0xad8] sm:$0xff]
    %v472 = vld [vmem:[#allocation5 + $0xae0] sm:$0xff]
    %v473 = vld [vmem:[#allocation5 + $0xae8] sm:$0xff]
    %v474 = vld [vmem:[#allocation5 + $0xaf0] sm:$0xff]
    %v475 = vld [vmem:[#allocation5 + $0xaf8] sm:$0xff]
    %v476 = vld [vmem:[#allocation5 + $0xb00] sm:$0xff]
    %v477 = vld [vmem:[#allocation5 + $0xb08] sm:$0xff]
    %v478 = vld [vmem:[#allocation5 + $0xb10] sm:$0xff]
    %v479 = vld [vmem:[#allocation5 + $0xb18] sm:$0xff]
    %v480 = vld [vmem:[#allocation5 + $0xb20] sm:$0xff]
    %v481 = vld [vmem:[#allocation5 + $0xb28] sm:$0xff]
    %v482 = vld [vmem:[#allocation5 + $0xb30] sm:$0xff]
    %v483 = vld [vmem:[#allocation5 + $0xb38] sm:$0xff]
    %v484 = vld [vmem:[#allocation5 + $0xb40] sm:$0xff]
    %v485 = vld [vmem:[#allocation5 + $0xb48] sm:$0xff]
    %v486 = vld [vmem:[#allocation5 + $0xb50] sm:$0xff]
    %v487 = vld [vmem:[#allocation5 + $0xb58] sm:$0xff]
    %v488 = vld [vmem:[#allocation5 + $0xb60] sm:$0xff]
    %v489 = vld [vmem:[#allocation5 + $0xb68] sm:$0xff]
    %v490 = vld [vmem:[#allocation5 + $0xb70] sm:$0xff]
    %v491 = vld [vmem:[#allocation5 + $0xb78] sm:$0xff]
    %v492 = vld [vmem:[#allocation5 + $0xb80] sm:$0xff]
    %v493 = vld [vmem:[#allocation5 + $0xb88] sm:$0xff]
    %v494 = vld [vmem:[#allocation5 + $0xb90] sm:$0xff]
    %v495 = vld [vmem:[#allocation5 + $0xb98] sm:$0xff]
    %v496 = vld [vmem:[#allocation5 + $0xba0] sm:$0xff]
    %v497 = vld [vmem:[#allocation5 + $0xba8] sm:$0xff]
    %v498 = vld [vmem:[#allocation5 + $0xbb0] sm:$0xff]
    %v499 = vld [vmem:[#allocation5 + $0xbb8] sm:$0xff]
    %v500 = vld [vmem:[#allocation5 + $0xbc0] sm:$0xff]
    %v501 = vld [vmem:[#allocation5 + $0xbc8] sm:$0xff]
    %v502 = vld [vmem:[#allocation5 + $0xbd0] sm:$0xff]
    %v503 = vld [vmem:[#allocation5 + $0xbd8] sm:$0xff]
    %v504 = vld [vmem:[#allocation5 + $0xbe0] sm:$0xff]
    %v505 = vld [vmem:[#allocation5 + $0xbe8] sm:$0xff]
    %v506 = vld [vmem:[#allocation5 + $0xbf0] sm:$0xff]
    %v507 = vld [vmem:[#allocation5 + $0xbf8] sm:$0xff]
    %v508 = vld [vmem:[#allocation5 + $0xc00] sm:$0xff]
    %v509 = vld [vmem:[#allocation5 + $0xc08] sm:$0xff]
    %v510 = vld [vmem:[#allocation5 + $0xc10] sm:$0xff]
    %v511 = vld [vmem:[#allocation5 + $0xc18] sm:$0xff]
    %v512 = vld [vmem:[#allocation5 + $0xc20] sm:$0xff]
    %v513 = vld [vmem:[#allocation5 + $0xc28] sm:$0xff]
    %v514 = vld [vmem:[#allocation5 + $0xc30] sm:$0xff]
    %v515 = vld [vmem:[#allocation5 + $0xc38] sm:$0xff]
    %v516 = vld [vmem:[#allocation5 + $0xc40] sm:$0xff]
    %v517 = vld [vmem:[#allocation5 + $0xc48] sm:$0xff]
    %v518 = vld [vmem:[#allocation5 + $0xc50] sm:$0xff]
    %v519 = vld [vmem:[#allocation5 + $0xc58] sm:$0xff]
    %v520 = vld [vmem:[#allocation5 + $0xc60] sm:$0xff]
    %v521 = vld [vmem:[#allocation5 + $0xc68] sm:$0xff]
    %v522 = vld [vmem:[#allocation5 + $0xc70] sm:$0xff]
    %v523 = vld [vmem:[#allocation5 + $0xc78] sm:$0xff]
    %v524 = vld [vmem:[#allocation5 + $0xc80] sm:$0xff]
    %v525 = vld [vmem:[#allocation5 + $0xc88] sm:$0xff]
    %v526 = vld [vmem:[#allocation5 + $0xc90] sm:$0xff]
    %v527 = vld [vmem:[#allocation5 + $0xc98] sm:$0xff]
    %v528 = vld [vmem:[#allocation5 + $0xca0] sm:$0xff]
    %v529 = vld [vmem:[#allocation5 + $0xca8] sm:$0xff]
    %v530 = vld [vmem:[#allocation5 + $0xcb0] sm:$0xff]
    %v531 = vld [vmem:[#allocation5 + $0xcb8] sm:$0xff]
    %v532 = vld [vmem:[#allocation5 + $0xcc0] sm:$0xff]
    %v533 = vld [vmem:[#allocation5 + $0xcc8] sm:$0xff]
    %v534 = vld [vmem:[#allocation5 + $0xcd0] sm:$0xff]
    %v535 = vld [vmem:[#allocation5 + $0xcd8] sm:$0xff]
    %v536 = vld [vmem:[#allocation5 + $0xce0] sm:$0xff]
    %v537 = vld [vmem:[#allocation5 + $0xce8] sm:$0xff]
    %v538 = vld [vmem:[#allocation5 + $0xcf0] sm:$0xff]
    %v539 = vld [vmem:[#allocation5 + $0xcf8] sm:$0xff]
    %v540 = vld [vmem:[#allocation5 + $0xd00] sm:$0xff]
    %v541 = vld [vmem:[#allocation5 + $0xd08] sm:$0xff]
    %v542 = vld [vmem:[#allocation5 + $0xd10] sm:$0xff]
    %v543 = vld [vmem:[#allocation5 + $0xd18] sm:$0xff]
    %v544 = vld [vmem:[#allocation5 + $0xd20] sm:$0xff]
    %v545 = vld [vmem:[#allocation5 + $0xd28] sm:$0xff]
    %v546 = vld [vmem:[#allocation5 + $0xd30] sm:$0xff]
    %v547 = vld [vmem:[#allocation5 + $0xd38] sm:$0xff]
    %v548 = vld [vmem:[#allocation5 + $0xd40] sm:$0xff]
    %v549 = vld [vmem:[#allocation5 + $0xd48] sm:$0xff]
    %v550 = vld [vmem:[#allocation5 + $0xd50] sm:$0xff]
    %v551 = vld [vmem:[#allocation5 + $0xd58] sm:$0xff]
    %v552 = vld [vmem:[#allocation5 + $0xd60] sm:$0xff]
    %v553 = vld [vmem:[#allocation5 + $0xd68] sm:$0xff]
    %v554 = vld [vmem:[#allocation5 + $0xd70] sm:$0xff]
    %v555 = vld [vmem:[#allocation5 + $0xd78] sm:$0xff]
    %v556 = vld [vmem:[#allocation5 + $0xd80] sm:$0xff]
    %v557 = vld [vmem:[#allocation5 + $0xd88] sm:$0xff]
    %v558 = vld [vmem:[#allocation5 + $0xd90] sm:$0xff]
    %v559 = vld [vmem:[#allocation5 + $0xd98] sm:$0xff]
    %v560 = vld [vmem:[#allocation5 + $0xda0] sm:$0xff]
    %v561 = vld [vmem:[#allocation5 + $0xda8] sm:$0xff]
    %v562 = vld [vmem:[#allocation5 + $0xdb0] sm:$0xff]
    %v563 = vld [vmem:[#allocation5 + $0xdb8] sm:$0xff]
    %v564 = vld [vmem:[#allocation5 + $0xdc0] sm:$0xff]
    %v565 = vld [vmem:[#allocation5 + $0xdc8] sm:$0xff]
    %v566 = vld [vmem:[#allocation5 + $0xdd0] sm:$0xff]
    %v567 = vld [vmem:[#allocation5 + $0xdd8] sm:$0xff]
    %v568 = vld [vmem:[#allocation5 + $0xde0] sm:$0xff]
    %v569 = vld [vmem:[#allocation5 + $0xde8] sm:$0xff]
    %v570 = vld [vmem:[#allocation5 + $0xdf0] sm:$0xff]
    %v571 = vld [vmem:[#allocation5 + $0xdf8] sm:$0xff]
    %v572 = vld [vmem:[#allocation5 + $0xe00] sm:$0xff]
    %v573 = vld [vmem:[#allocation5 + $0xe08] sm:$0xff]
    %v574 = vld [vmem:[#allocation5 + $0xe10] sm:$0xff]
    %v575 = vld [vmem:[#allocation5 + $0xe18] sm:$0xff]
    %v576 = vld [vmem:[#allocation5 + $0xe20] sm:$0xff]
    %v577 = vld [vmem:[#allocation5 + $0xe28] sm:$0xff]
    %v578 = vld [vmem:[#allocation5 + $0xe30] sm:$0xff]
    %v579 = vld [vmem:[#allocation5 + $0xe38] sm:$0xff]
    %v580 = vld [vmem:[#allocation5 + $0xe40] sm:$0xff]
    %v581 = vld [vmem:[#allocation5 + $0xe48] sm:$0xff]
    %v582 = vld [vmem:[#allocation5 + $0xe50] sm:$0xff]
    %v583 = vld [vmem:[#allocation5 + $0xe58] sm:$0xff]
    %v584 = vld [vmem:[#allocation5 + $0xe60] sm:$0xff]
    %v585 = vld [vmem:[#allocation5 + $0xe68] sm:$0xff]
    %v586 = vld [vmem:[#allocation5 + $0xe70] sm:$0xff]
    %v587 = vld [vmem:[#allocation5 + $0xe78] sm:$0xff]
    %v588 = vld [vmem:[#allocation5 + $0xe80] sm:$0xff]
    %v589 = vld [vmem:[#allocation5 + $0xe88] sm:$0xff]
    %v590 = vld [vmem:[#allocation5 + $0xe90] sm:$0xff]
    %v591 = vld [vmem:[#allocation5 + $0xe98] sm:$0xff]
    %v592 = vld [vmem:[#allocation5 + $0xea0] sm:$0xff]
    %v593 = vld [vmem:[#allocation5 + $0xea8] sm:$0xff]
    %v594 = vld [vmem:[#allocation5 + $0xeb0] sm:$0xff]
    %v595 = vld [vmem:[#allocation5 + $0xeb8] sm:$0xff]
    %v596 = vld [vmem:[#allocation5 + $0xec0] sm:$0xff]
    %v597 = vld [vmem:[#allocation5 + $0xec8] sm:$0xff]
    %v598 = vld [vmem:[#allocation5 + $0xed0] sm:$0xff]
    %v599 = vld [vmem:[#allocation5 + $0xed8] sm:$0xff]
    %v600 = vld [vmem:[#allocation5 + $0xee0] sm:$0xff]
    %v601 = vld [vmem:[#allocation5 + $0xee8] sm:$0xff]
    %v602 = vld [vmem:[#allocation5 + $0xef0] sm:$0xff]
    %v603 = vld [vmem:[#allocation5 + $0xef8] sm:$0xff]
    %v604 = vld [vmem:[#allocation5 + $0xf00] sm:$0xff]
    %v605 = vld [vmem:[#allocation5 + $0xf08] sm:$0xff]
    %v606 = vld [vmem:[#allocation5 + $0xf10] sm:$0xff]
    %v607 = vld [vmem:[#allocation5 + $0xf18] sm:$0xff]
    %v608 = vld [vmem:[#allocation5 + $0xf20] sm:$0xff]
    %v609 = vld [vmem:[#allocation5 + $0xf28] sm:$0xff]
    %v610 = vld [vmem:[#allocation5 + $0xf30] sm:$0xff]
    %v611 = vld [vmem:[#allocation5 + $0xf38] sm:$0xff]
    %v612 = vld [vmem:[#allocation5 + $0xf40] sm:$0xff]
    %v613 = vld [vmem:[#allocation5 + $0xf48] sm:$0xff]
    %v614 = vld [vmem:[#allocation5 + $0xf50] sm:$0xff]
    %v615 = vld [vmem:[#allocation5 + $0xf58] sm:$0xff]
    %v616 = vld [vmem:[#allocation5 + $0xf60] sm:$0xff]
    %v617 = vld [vmem:[#allocation5 + $0xf68] sm:$0xff]
    %v618 = vld [vmem:[#allocation5 + $0xf70] sm:$0xff]
    %v619 = vld [vmem:[#allocation5 + $0xf78] sm:$0xff]
    %v620 = vld [vmem:[#allocation5 + $0xf80] sm:$0xff]
    %v621 = vld [vmem:[#allocation5 + $0xf88] sm:$0xff]
    %v622 = vld [vmem:[#allocation5 + $0xf90] sm:$0xff]
    %v623 = vld [vmem:[#allocation5 + $0xf98] sm:$0xff]
    %v624 = vld [vmem:[#allocation5 + $0xfa0] sm:$0xff]
    %v625 = vld [vmem:[#allocation5 + $0xfa8] sm:$0xff]
    %v626 = vld [vmem:[#allocation5 + $0xfb0] sm:$0xff]
    %v627 = vld [vmem:[#allocation5 + $0xfb8] sm:$0xff]
    %v628 = vld [vmem:[#allocation5 + $0xfc0] sm:$0xff]
    %v629 = vld [vmem:[#allocation5 + $0xfc8] sm:$0xff]
    %v630 = vld [vmem:[#allocation5 + $0xfd0] sm:$0xff]
    %v631 = vld [vmem:[#allocation5 + $0xfd8] sm:$0xff]
    %v632 = vld [vmem:[#allocation5 + $0xfe0] sm:$0xff]
    %v633 = vld [vmem:[#allocation5 + $0xfe8] sm:$0xff]
    %v634 = vld [vmem:[#allocation5 + $0xff0] sm:$0xff]
    %v635 = vld [vmem:[#allocation5 + $0xff8] sm:$0xff]
    %v636 = vld [vmem:[#allocation7] sm:$0xff]
    %v638 = vperm.slane %v636, 0
    %v639 = vperm.slane %v636, 1
    %v640 = vperm.slane %v636, 2
    %v641 = vperm.slane %v636, 3
    %v642 = vperm.slane %v636, 4
    %v643 = vperm.slane %v636, 5
    %v644 = vperm.slane %v636, 6
    %v645 = vperm.slane %v636, 7
    %v1166 = vunpack.c.l.b16 %v124
    %v1167 = vunpack.c.h.b16 %v124
    %v1168 = vunpack.c.l.b16 %v125
    %v1169 = vunpack.c.h.b16 %v125
    %v1170 = vunpack.c.l.b16 %v126
    %v1171 = vunpack.c.h.b16 %v126
    %v1172 = vunpack.c.l.b16 %v127
    %v1173 = vunpack.c.h.b16 %v127
    %v1174 = vunpack.c.l.b16 %v128
    %v1175 = vunpack.c.h.b16 %v128
    %v1176 = vunpack.c.l.b16 %v129
    %v1177 = vunpack.c.h.b16 %v129
    %v1178 = vunpack.c.l.b16 %v130
    %v1179 = vunpack.c.h.b16 %v130
    %v1180 = vunpack.c.l.b16 %v131
    %v1181 = vunpack.c.h.b16 %v131
    %v1182 = vunpack.c.l.b16 %v132
    %v1183 = vunpack.c.h.b16 %v132
    %v1184 = vunpack.c.l.b16 %v133
    %v1185 = vunpack.c.h.b16 %v133
    %v1186 = vunpack.c.l.b16 %v134
    %v1187 = vunpack.c.h.b16 %v134
    %v1188 = vunpack.c.l.b16 %v135
    %v1189 = vunpack.c.h.b16 %v135
    %v1190 = vunpack.c.l.b16 %v136
    %v1191 = vunpack.c.h.b16 %v136
    %v1192 = vunpack.c.l.b16 %v137
    %v1193 = vunpack.c.h.b16 %v137
    %v1194 = vunpack.c.l.b16 %v138
    %v1195 = vunpack.c.h.b16 %v138
    %v1196 = vunpack.c.l.b16 %v139
    %v1197 = vunpack.c.h.b16 %v139
    %v1198 = vunpack.c.l.b16 %v140
    %v1199 = vunpack.c.h.b16 %v140
    %v1200 = vunpack.c.l.b16 %v141
    %v1201 = vunpack.c.h.b16 %v141
    %v1202 = vunpack.c.l.b16 %v142
    %v1203 = vunpack.c.h.b16 %v142
    %v1204 = vunpack.c.l.b16 %v143
    %v1205 = vunpack.c.h.b16 %v143
    %v1206 = vunpack.c.l.b16 %v144
    %v1207 = vunpack.c.h.b16 %v144
    %v1208 = vunpack.c.l.b16 %v145
    %v1209 = vunpack.c.h.b16 %v145
    %v1210 = vunpack.c.l.b16 %v146
    %v1211 = vunpack.c.h.b16 %v146
    %v1212 = vunpack.c.l.b16 %v147
    %v1213 = vunpack.c.h.b16 %v147
    %v1214 = vunpack.c.l.b16 %v148
    %v1215 = vunpack.c.h.b16 %v148
    %v1216 = vunpack.c.l.b16 %v149
    %v1217 = vunpack.c.h.b16 %v149
    %v1218 = vunpack.c.l.b16 %v150
    %v1219 = vunpack.c.h.b16 %v150
    %v1220 = vunpack.c.l.b16 %v151
    %v1221 = vunpack.c.h.b16 %v151
    %v1222 = vunpack.c.l.b16 %v152
    %v1223 = vunpack.c.h.b16 %v152
    %v1224 = vunpack.c.l.b16 %v153
    %v1225 = vunpack.c.h.b16 %v153
    %v1226 = vunpack.c.l.b16 %v154
    %v1227 = vunpack.c.h.b16 %v154
    %v1228 = vunpack.c.l.b16 %v155
    %v1229 = vunpack.c.h.b16 %v155
    %v1230 = vunpack.c.l.b16 %v156
    %v1231 = vunpack.c.h.b16 %v156
    %v1232 = vunpack.c.l.b16 %v157
    %v1233 = vunpack.c.h.b16 %v157
    %v1234 = vunpack.c.l.b16 %v158
    %v1235 = vunpack.c.h.b16 %v158
    %v1236 = vunpack.c.l.b16 %v159
    %v1237 = vunpack.c.h.b16 %v159
    %v1238 = vunpack.c.l.b16 %v160
    %v1239 = vunpack.c.h.b16 %v160
    %v1240 = vunpack.c.l.b16 %v161
    %v1241 = vunpack.c.h.b16 %v161
    %v1242 = vunpack.c.l.b16 %v162
    %v1243 = vunpack.c.h.b16 %v162
    %v1244 = vunpack.c.l.b16 %v163
    %v1245 = vunpack.c.h.b16 %v163
    %v1246 = vunpack.c.l.b16 %v164
    %v1247 = vunpack.c.h.b16 %v164
    %v1248 = vunpack.c.l.b16 %v165
    %v1249 = vunpack.c.h.b16 %v165
    %v1250 = vunpack.c.l.b16 %v166
    %v1251 = vunpack.c.h.b16 %v166
    %v1252 = vunpack.c.l.b16 %v167
    %v1253 = vunpack.c.h.b16 %v167
    %v1254 = vunpack.c.l.b16 %v168
    %v1255 = vunpack.c.h.b16 %v168
    %v1256 = vunpack.c.l.b16 %v169
    %v1257 = vunpack.c.h.b16 %v169
    %v1258 = vunpack.c.l.b16 %v170
    %v1259 = vunpack.c.h.b16 %v170
    %v1260 = vunpack.c.l.b16 %v171
    %v1261 = vunpack.c.h.b16 %v171
    %v1262 = vunpack.c.l.b16 %v172
    %v1263 = vunpack.c.h.b16 %v172
    %v1264 = vunpack.c.l.b16 %v173
    %v1265 = vunpack.c.h.b16 %v173
    %v1266 = vunpack.c.l.b16 %v174
    %v1267 = vunpack.c.h.b16 %v174
    %v1268 = vunpack.c.l.b16 %v175
    %v1269 = vunpack.c.h.b16 %v175
    %v1270 = vunpack.c.l.b16 %v176
    %v1271 = vunpack.c.h.b16 %v176
    %v1272 = vunpack.c.l.b16 %v177
    %v1273 = vunpack.c.h.b16 %v177
    %v1274 = vunpack.c.l.b16 %v178
    %v1275 = vunpack.c.h.b16 %v178
    %v1276 = vunpack.c.l.b16 %v179
    %v1277 = vunpack.c.h.b16 %v179
    %v1278 = vunpack.c.l.b16 %v180
    %v1279 = vunpack.c.h.b16 %v180
    %v1280 = vunpack.c.l.b16 %v181
    %v1281 = vunpack.c.h.b16 %v181
    %v1282 = vunpack.c.l.b16 %v182
    %v1283 = vunpack.c.h.b16 %v182
    %v1284 = vunpack.c.l.b16 %v183
    %v1285 = vunpack.c.h.b16 %v183
    %v1286 = vunpack.c.l.b16 %v184
    %v1287 = vunpack.c.h.b16 %v184
    %v1288 = vunpack.c.l.b16 %v185
    %v1289 = vunpack.c.h.b16 %v185
    %v1290 = vunpack.c.l.b16 %v186
    %v1291 = vunpack.c.h.b16 %v186
    %v1292 = vunpack.c.l.b16 %v187
    %v1293 = vunpack.c.h.b16 %v187
    %v1294 = vunpack.c.l.b16 %v188
    %v1295 = vunpack.c.h.b16 %v188
    %v1296 = vunpack.c.l.b16 %v189
    %v1297 = vunpack.c.h.b16 %v189
    %v1298 = vunpack.c.l.b16 %v190
    %v1299 = vunpack.c.h.b16 %v190
    %v1300 = vunpack.c.l.b16 %v191
    %v1301 = vunpack.c.h.b16 %v191
    %v1302 = vunpack.c.l.b16 %v192
    %v1303 = vunpack.c.h.b16 %v192
    %v1304 = vunpack.c.l.b16 %v193
    %v1305 = vunpack.c.h.b16 %v193
    %v1306 = vunpack.c.l.b16 %v194
    %v1307 = vunpack.c.h.b16 %v194
    %v1308 = vunpack.c.l.b16 %v195
    %v1309 = vunpack.c.h.b16 %v195
    %v1310 = vunpack.c.l.b16 %v196
    %v1311 = vunpack.c.h.b16 %v196
    %v1312 = vunpack.c.l.b16 %v197
    %v1313 = vunpack.c.h.b16 %v197
    %v1314 = vunpack.c.l.b16 %v198
    %v1315 = vunpack.c.h.b16 %v198
    %v1316 = vunpack.c.l.b16 %v199
    %v1317 = vunpack.c.h.b16 %v199
    %v1318 = vunpack.c.l.b16 %v200
    %v1319 = vunpack.c.h.b16 %v200
    %v1320 = vunpack.c.l.b16 %v201
    %v1321 = vunpack.c.h.b16 %v201
    %v1322 = vunpack.c.l.b16 %v202
    %v1323 = vunpack.c.h.b16 %v202
    %v1324 = vunpack.c.l.b16 %v203
    %v1325 = vunpack.c.h.b16 %v203
    %v1326 = vunpack.c.l.b16 %v204
    %v1327 = vunpack.c.h.b16 %v204
    %v1328 = vunpack.c.l.b16 %v205
    %v1329 = vunpack.c.h.b16 %v205
    %v1330 = vunpack.c.l.b16 %v206
    %v1331 = vunpack.c.h.b16 %v206
    %v1332 = vunpack.c.l.b16 %v207
    %v1333 = vunpack.c.h.b16 %v207
    %v1334 = vunpack.c.l.b16 %v208
    %v1335 = vunpack.c.h.b16 %v208
    %v1336 = vunpack.c.l.b16 %v209
    %v1337 = vunpack.c.h.b16 %v209
    %v1338 = vunpack.c.l.b16 %v210
    %v1339 = vunpack.c.h.b16 %v210
    %v1340 = vunpack.c.l.b16 %v211
    %v1341 = vunpack.c.h.b16 %v211
    %v1342 = vunpack.c.l.b16 %v212
    %v1343 = vunpack.c.h.b16 %v212
    %v1344 = vunpack.c.l.b16 %v213
    %v1345 = vunpack.c.h.b16 %v213
    %v1346 = vunpack.c.l.b16 %v214
    %v1347 = vunpack.c.h.b16 %v214
    %v1348 = vunpack.c.l.b16 %v215
    %v1349 = vunpack.c.h.b16 %v215
    %v1350 = vunpack.c.l.b16 %v216
    %v1351 = vunpack.c.h.b16 %v216
    %v1352 = vunpack.c.l.b16 %v217
    %v1353 = vunpack.c.h.b16 %v217
    %v1354 = vunpack.c.l.b16 %v218
    %v1355 = vunpack.c.h.b16 %v218
    %v1356 = vunpack.c.l.b16 %v219
    %v1357 = vunpack.c.h.b16 %v219
    %v1358 = vunpack.c.l.b16 %v220
    %v1359 = vunpack.c.h.b16 %v220
    %v1360 = vunpack.c.l.b16 %v221
    %v1361 = vunpack.c.h.b16 %v221
    %v1362 = vunpack.c.l.b16 %v222
    %v1363 = vunpack.c.h.b16 %v222
    %v1364 = vunpack.c.l.b16 %v223
    %v1365 = vunpack.c.h.b16 %v223
    %v1366 = vunpack.c.l.b16 %v224
    %v1367 = vunpack.c.h.b16 %v224
    %v1368 = vunpack.c.l.b16 %v225
    %v1369 = vunpack.c.h.b16 %v225
    %v1370 = vunpack.c.l.b16 %v226
    %v1371 = vunpack.c.h.b16 %v226
    %v1372 = vunpack.c.l.b16 %v227
    %v1373 = vunpack.c.h.b16 %v227
    %v1374 = vunpack.c.l.b16 %v228
    %v1375 = vunpack.c.h.b16 %v228
    %v1376 = vunpack.c.l.b16 %v229
    %v1377 = vunpack.c.h.b16 %v229
    %v1378 = vunpack.c.l.b16 %v230
    %v1379 = vunpack.c.h.b16 %v230
    %v1380 = vunpack.c.l.b16 %v231
    %v1381 = vunpack.c.h.b16 %v231
    %v1382 = vunpack.c.l.b16 %v232
    %v1383 = vunpack.c.h.b16 %v232
    %v1384 = vunpack.c.l.b16 %v233
    %v1385 = vunpack.c.h.b16 %v233
    %v1386 = vunpack.c.l.b16 %v234
    %v1387 = vunpack.c.h.b16 %v234
    %v1388 = vunpack.c.l.b16 %v235
    %v1389 = vunpack.c.h.b16 %v235
    %v1390 = vunpack.c.l.b16 %v236
    %v1391 = vunpack.c.h.b16 %v236
    %v1392 = vunpack.c.l.b16 %v237
    %v1393 = vunpack.c.h.b16 %v237
    %v1394 = vunpack.c.l.b16 %v238
    %v1395 = vunpack.c.h.b16 %v238
    %v1396 = vunpack.c.l.b16 %v239
    %v1397 = vunpack.c.h.b16 %v239
    %v1398 = vunpack.c.l.b16 %v240
    %v1399 = vunpack.c.h.b16 %v240
    %v1400 = vunpack.c.l.b16 %v241
    %v1401 = vunpack.c.h.b16 %v241
    %v1402 = vunpack.c.l.b16 %v242
    %v1403 = vunpack.c.h.b16 %v242
    %v1404 = vunpack.c.l.b16 %v243
    %v1405 = vunpack.c.h.b16 %v243
    %v1406 = vunpack.c.l.b16 %v244
    %v1407 = vunpack.c.h.b16 %v244
    %v1408 = vunpack.c.l.b16 %v245
    %v1409 = vunpack.c.h.b16 %v245
    %v1410 = vunpack.c.l.b16 %v246
    %v1411 = vunpack.c.h.b16 %v246
    %v1412 = vunpack.c.l.b16 %v247
    %v1413 = vunpack.c.h.b16 %v247
    %v1414 = vunpack.c.l.b16 %v248
    %v1415 = vunpack.c.h.b16 %v248
    %v1416 = vunpack.c.l.b16 %v249
    %v1417 = vunpack.c.h.b16 %v249
    %v1418 = vunpack.c.l.b16 %v250
    %v1419 = vunpack.c.h.b16 %v250
    %v1420 = vunpack.c.l.b16 %v251
    %v1421 = vunpack.c.h.b16 %v251
    %v1422 = vunpack.c.l.b16 %v252
    %v1423 = vunpack.c.h.b16 %v252
    %v1424 = vunpack.c.l.b16 %v253
    %v1425 = vunpack.c.h.b16 %v253
    %v1426 = vunpack.c.l.b16 %v254
    %v1427 = vunpack.c.h.b16 %v254
    %v1428 = vunpack.c.l.b16 %v255
    %v1429 = vunpack.c.h.b16 %v255
    %v1430 = vunpack.c.l.b16 %v256
    %v1431 = vunpack.c.h.b16 %v256
    %v1432 = vunpack.c.l.b16 %v257
    %v1433 = vunpack.c.h.b16 %v257
    %v1434 = vunpack.c.l.b16 %v258
    %v1435 = vunpack.c.h.b16 %v258
    %v1436 = vunpack.c.l.b16 %v259
    %v1437 = vunpack.c.h.b16 %v259
    %v1438 = vunpack.c.l.b16 %v260
    %v1439 = vunpack.c.h.b16 %v260
    %v1440 = vunpack.c.l.b16 %v261
    %v1441 = vunpack.c.h.b16 %v261
    %v1442 = vunpack.c.l.b16 %v262
    %v1443 = vunpack.c.h.b16 %v262
    %v1444 = vunpack.c.l.b16 %v263
    %v1445 = vunpack.c.h.b16 %v263
    %v1446 = vunpack.c.l.b16 %v264
    %v1447 = vunpack.c.h.b16 %v264
    %v1448 = vunpack.c.l.b16 %v265
    %v1449 = vunpack.c.h.b16 %v265
    %v1450 = vunpack.c.l.b16 %v266
    %v1451 = vunpack.c.h.b16 %v266
    %v1452 = vunpack.c.l.b16 %v267
    %v1453 = vunpack.c.h.b16 %v267
    %v1454 = vunpack.c.l.b16 %v268
    %v1455 = vunpack.c.h.b16 %v268
    %v1456 = vunpack.c.l.b16 %v269
    %v1457 = vunpack.c.h.b16 %v269
    %v1458 = vunpack.c.l.b16 %v270
    %v1459 = vunpack.c.h.b16 %v270
    %v1460 = vunpack.c.l.b16 %v271
    %v1461 = vunpack.c.h.b16 %v271
    %v1462 = vunpack.c.l.b16 %v272
    %v1463 = vunpack.c.h.b16 %v272
    %v1464 = vunpack.c.l.b16 %v273
    %v1465 = vunpack.c.h.b16 %v273
    %v1466 = vunpack.c.l.b16 %v274
    %v1467 = vunpack.c.h.b16 %v274
    %v1468 = vunpack.c.l.b16 %v275
    %v1469 = vunpack.c.h.b16 %v275
    %v1470 = vunpack.c.l.b16 %v276
    %v1471 = vunpack.c.h.b16 %v276
    %v1472 = vunpack.c.l.b16 %v277
    %v1473 = vunpack.c.h.b16 %v277
    %v1474 = vunpack.c.l.b16 %v278
    %v1475 = vunpack.c.h.b16 %v278
    %v1476 = vunpack.c.l.b16 %v279
    %v1477 = vunpack.c.h.b16 %v279
    %v1478 = vunpack.c.l.b16 %v280
    %v1479 = vunpack.c.h.b16 %v280
    %v1480 = vunpack.c.l.b16 %v281
    %v1481 = vunpack.c.h.b16 %v281
    %v1482 = vunpack.c.l.b16 %v282
    %v1483 = vunpack.c.h.b16 %v282
    %v1484 = vunpack.c.l.b16 %v283
    %v1485 = vunpack.c.h.b16 %v283
    %v1486 = vunpack.c.l.b16 %v284
    %v1487 = vunpack.c.h.b16 %v284
    %v1488 = vunpack.c.l.b16 %v285
    %v1489 = vunpack.c.h.b16 %v285
    %v1490 = vunpack.c.l.b16 %v286
    %v1491 = vunpack.c.h.b16 %v286
    %v1492 = vunpack.c.l.b16 %v287
    %v1493 = vunpack.c.h.b16 %v287
    %v1494 = vunpack.c.l.b16 %v288
    %v1495 = vunpack.c.h.b16 %v288
    %v1496 = vunpack.c.l.b16 %v289
    %v1497 = vunpack.c.h.b16 %v289
    %v1498 = vunpack.c.l.b16 %v290
    %v1499 = vunpack.c.h.b16 %v290
    %v1500 = vunpack.c.l.b16 %v291
    %v1501 = vunpack.c.h.b16 %v291
    %v1502 = vunpack.c.l.b16 %v292
    %v1503 = vunpack.c.h.b16 %v292
    %v1504 = vunpack.c.l.b16 %v293
    %v1505 = vunpack.c.h.b16 %v293
    %v1506 = vunpack.c.l.b16 %v294
    %v1507 = vunpack.c.h.b16 %v294
    %v1508 = vunpack.c.l.b16 %v295
    %v1509 = vunpack.c.h.b16 %v295
    %v1510 = vunpack.c.l.b16 %v296
    %v1511 = vunpack.c.h.b16 %v296
    %v1512 = vunpack.c.l.b16 %v297
    %v1513 = vunpack.c.h.b16 %v297
    %v1514 = vunpack.c.l.b16 %v298
    %v1515 = vunpack.c.h.b16 %v298
    %v1516 = vunpack.c.l.b16 %v299
    %v1517 = vunpack.c.h.b16 %v299
    %v1518 = vunpack.c.l.b16 %v300
    %v1519 = vunpack.c.h.b16 %v300
    %v1520 = vunpack.c.l.b16 %v301
    %v1521 = vunpack.c.h.b16 %v301
    %v1522 = vunpack.c.l.b16 %v302
    %v1523 = vunpack.c.h.b16 %v302
    %v1524 = vunpack.c.l.b16 %v303
    %v1525 = vunpack.c.h.b16 %v303
    %v1526 = vunpack.c.l.b16 %v304
    %v1527 = vunpack.c.h.b16 %v304
    %v1528 = vunpack.c.l.b16 %v305
    %v1529 = vunpack.c.h.b16 %v305
    %v1530 = vunpack.c.l.b16 %v306
    %v1531 = vunpack.c.h.b16 %v306
    %v1532 = vunpack.c.l.b16 %v307
    %v1533 = vunpack.c.h.b16 %v307
    %v1534 = vunpack.c.l.b16 %v308
    %v1535 = vunpack.c.h.b16 %v308
    %v1536 = vunpack.c.l.b16 %v309
    %v1537 = vunpack.c.h.b16 %v309
    %v1538 = vunpack.c.l.b16 %v310
    %v1539 = vunpack.c.h.b16 %v310
    %v1540 = vunpack.c.l.b16 %v311
    %v1541 = vunpack.c.h.b16 %v311
    %v1542 = vunpack.c.l.b16 %v312
    %v1543 = vunpack.c.h.b16 %v312
    %v1544 = vunpack.c.l.b16 %v313
    %v1545 = vunpack.c.h.b16 %v313
    %v1546 = vunpack.c.l.b16 %v314
    %v1547 = vunpack.c.h.b16 %v314
    %v1548 = vunpack.c.l.b16 %v315
    %v1549 = vunpack.c.h.b16 %v315
    %v1550 = vunpack.c.l.b16 %v316
    %v1551 = vunpack.c.h.b16 %v316
    %v1552 = vunpack.c.l.b16 %v317
    %v1553 = vunpack.c.h.b16 %v317
    %v1554 = vunpack.c.l.b16 %v318
    %v1555 = vunpack.c.h.b16 %v318
    %v1556 = vunpack.c.l.b16 %v319
    %v1557 = vunpack.c.h.b16 %v319
    %v1558 = vunpack.c.l.b16 %v320
    %v1559 = vunpack.c.h.b16 %v320
    %v1560 = vunpack.c.l.b16 %v321
    %v1561 = vunpack.c.h.b16 %v321
    %v1562 = vunpack.c.l.b16 %v322
    %v1563 = vunpack.c.h.b16 %v322
    %v1564 = vunpack.c.l.b16 %v323
    %v1565 = vunpack.c.h.b16 %v323
    %v1566 = vunpack.c.l.b16 %v324
    %v1567 = vunpack.c.h.b16 %v324
    %v1568 = vunpack.c.l.b16 %v325
    %v1569 = vunpack.c.h.b16 %v325
    %v1570 = vunpack.c.l.b16 %v326
    %v1571 = vunpack.c.h.b16 %v326
    %v1572 = vunpack.c.l.b16 %v327
    %v1573 = vunpack.c.h.b16 %v327
    %v1574 = vunpack.c.l.b16 %v328
    %v1575 = vunpack.c.h.b16 %v328
    %v1576 = vunpack.c.l.b16 %v329
    %v1577 = vunpack.c.h.b16 %v329
    %v1578 = vunpack.c.l.b16 %v330
    %v1579 = vunpack.c.h.b16 %v330
    %v1580 = vunpack.c.l.b16 %v331
    %v1581 = vunpack.c.h.b16 %v331
    %v1582 = vunpack.c.l.b16 %v332
    %v1583 = vunpack.c.h.b16 %v332
    %v1584 = vunpack.c.l.b16 %v333
    %v1585 = vunpack.c.h.b16 %v333
    %v1586 = vunpack.c.l.b16 %v334
    %v1587 = vunpack.c.h.b16 %v334
    %v1588 = vunpack.c.l.b16 %v335
    %v1589 = vunpack.c.h.b16 %v335
    %v1590 = vunpack.c.l.b16 %v336
    %v1591 = vunpack.c.h.b16 %v336
    %v1592 = vunpack.c.l.b16 %v337
    %v1593 = vunpack.c.h.b16 %v337
    %v1594 = vunpack.c.l.b16 %v338
    %v1595 = vunpack.c.h.b16 %v338
    %v1596 = vunpack.c.l.b16 %v339
    %v1597 = vunpack.c.h.b16 %v339
    %v1598 = vunpack.c.l.b16 %v340
    %v1599 = vunpack.c.h.b16 %v340
    %v1600 = vunpack.c.l.b16 %v341
    %v1601 = vunpack.c.h.b16 %v341
    %v1602 = vunpack.c.l.b16 %v342
    %v1603 = vunpack.c.h.b16 %v342
    %v1604 = vunpack.c.l.b16 %v343
    %v1605 = vunpack.c.h.b16 %v343
    %v1606 = vunpack.c.l.b16 %v344
    %v1607 = vunpack.c.h.b16 %v344
    %v1608 = vunpack.c.l.b16 %v345
    %v1609 = vunpack.c.h.b16 %v345
    %v1610 = vunpack.c.l.b16 %v346
    %v1611 = vunpack.c.h.b16 %v346
    %v1612 = vunpack.c.l.b16 %v347
    %v1613 = vunpack.c.h.b16 %v347
    %v1614 = vunpack.c.l.b16 %v348
    %v1615 = vunpack.c.h.b16 %v348
    %v1616 = vunpack.c.l.b16 %v349
    %v1617 = vunpack.c.h.b16 %v349
    %v1618 = vunpack.c.l.b16 %v350
    %v1619 = vunpack.c.h.b16 %v350
    %v1620 = vunpack.c.l.b16 %v351
    %v1621 = vunpack.c.h.b16 %v351
    %v1622 = vunpack.c.l.b16 %v352
    %v1623 = vunpack.c.h.b16 %v352
    %v1624 = vunpack.c.l.b16 %v353
    %v1625 = vunpack.c.h.b16 %v353
    %v1626 = vunpack.c.l.b16 %v354
    %v1627 = vunpack.c.h.b16 %v354
    %v1628 = vunpack.c.l.b16 %v355
    %v1629 = vunpack.c.h.b16 %v355
    %v1630 = vunpack.c.l.b16 %v356
    %v1631 = vunpack.c.h.b16 %v356
    %v1632 = vunpack.c.l.b16 %v357
    %v1633 = vunpack.c.h.b16 %v357
    %v1634 = vunpack.c.l.b16 %v358
    %v1635 = vunpack.c.h.b16 %v358
    %v1636 = vunpack.c.l.b16 %v359
    %v1637 = vunpack.c.h.b16 %v359
    %v1638 = vunpack.c.l.b16 %v360
    %v1639 = vunpack.c.h.b16 %v360
    %v1640 = vunpack.c.l.b16 %v361
    %v1641 = vunpack.c.h.b16 %v361
    %v1642 = vunpack.c.l.b16 %v362
    %v1643 = vunpack.c.h.b16 %v362
    %v1644 = vunpack.c.l.b16 %v363
    %v1645 = vunpack.c.h.b16 %v363
    %v1646 = vunpack.c.l.b16 %v364
    %v1647 = vunpack.c.h.b16 %v364
    %v1648 = vunpack.c.l.b16 %v365
    %v1649 = vunpack.c.h.b16 %v365
    %v1650 = vunpack.c.l.b16 %v366
    %v1651 = vunpack.c.h.b16 %v366
    %v1652 = vunpack.c.l.b16 %v367
    %v1653 = vunpack.c.h.b16 %v367
    %v1654 = vunpack.c.l.b16 %v368
    %v1655 = vunpack.c.h.b16 %v368
    %v1656 = vunpack.c.l.b16 %v369
    %v1657 = vunpack.c.h.b16 %v369
    %v1658 = vunpack.c.l.b16 %v370
    %v1659 = vunpack.c.h.b16 %v370
    %v1660 = vunpack.c.l.b16 %v371
    %v1661 = vunpack.c.h.b16 %v371
    %v1662 = vunpack.c.l.b16 %v372
    %v1663 = vunpack.c.h.b16 %v372
    %v1664 = vunpack.c.l.b16 %v373
    %v1665 = vunpack.c.h.b16 %v373
    %v1666 = vunpack.c.l.b16 %v374
    %v1667 = vunpack.c.h.b16 %v374
    %v1668 = vunpack.c.l.b16 %v375
    %v1669 = vunpack.c.h.b16 %v375
    %v1670 = vunpack.c.l.b16 %v376
    %v1671 = vunpack.c.h.b16 %v376
    %v1672 = vunpack.c.l.b16 %v377
    %v1673 = vunpack.c.h.b16 %v377
    %v1674 = vunpack.c.l.b16 %v378
    %v1675 = vunpack.c.h.b16 %v378
    %v1676 = vunpack.c.l.b16 %v379
    %v1677 = vunpack.c.h.b16 %v379
    %v1678 = vunpack.c.l.b16 %v380
    %v1679 = vunpack.c.h.b16 %v380
    %v1680 = vunpack.c.l.b16 %v381
    %v1681 = vunpack.c.h.b16 %v381
    %v1682 = vunpack.c.l.b16 %v382
    %v1683 = vunpack.c.h.b16 %v382
    %v1684 = vunpack.c.l.b16 %v383
    %v1685 = vunpack.c.h.b16 %v383
    %v1686 = vunpack.c.l.b16 %v384
    %v1687 = vunpack.c.h.b16 %v384
    %v1688 = vunpack.c.l.b16 %v385
    %v1689 = vunpack.c.h.b16 %v385
    %v1690 = vunpack.c.l.b16 %v386
    %v1691 = vunpack.c.h.b16 %v386
    %v1692 = vunpack.c.l.b16 %v387
    %v1693 = vunpack.c.h.b16 %v387
    %v1694 = vunpack.c.l.b16 %v388
    %v1695 = vunpack.c.h.b16 %v388
    %v1696 = vunpack.c.l.b16 %v389
    %v1697 = vunpack.c.h.b16 %v389
    %v1698 = vunpack.c.l.b16 %v390
    %v1699 = vunpack.c.h.b16 %v390
    %v1700 = vunpack.c.l.b16 %v391
    %v1701 = vunpack.c.h.b16 %v391
    %v1702 = vunpack.c.l.b16 %v392
    %v1703 = vunpack.c.h.b16 %v392
    %v1704 = vunpack.c.l.b16 %v393
    %v1705 = vunpack.c.h.b16 %v393
    %v1706 = vunpack.c.l.b16 %v394
    %v1707 = vunpack.c.h.b16 %v394
    %v1708 = vunpack.c.l.b16 %v395
    %v1709 = vunpack.c.h.b16 %v395
    %v1710 = vunpack.c.l.b16 %v396
    %v1711 = vunpack.c.h.b16 %v396
    %v1712 = vunpack.c.l.b16 %v397
    %v1713 = vunpack.c.h.b16 %v397
    %v1714 = vunpack.c.l.b16 %v398
    %v1715 = vunpack.c.h.b16 %v398
    %v1716 = vunpack.c.l.b16 %v399
    %v1717 = vunpack.c.h.b16 %v399
    %v1718 = vunpack.c.l.b16 %v400
    %v1719 = vunpack.c.h.b16 %v400
    %v1720 = vunpack.c.l.b16 %v401
    %v1721 = vunpack.c.h.b16 %v401
    %v1722 = vunpack.c.l.b16 %v402
    %v1723 = vunpack.c.h.b16 %v402
    %v1724 = vunpack.c.l.b16 %v403
    %v1725 = vunpack.c.h.b16 %v403
    %v1726 = vunpack.c.l.b16 %v404
    %v1727 = vunpack.c.h.b16 %v404
    %v1728 = vunpack.c.l.b16 %v405
    %v1729 = vunpack.c.h.b16 %v405
    %v1730 = vunpack.c.l.b16 %v406
    %v1731 = vunpack.c.h.b16 %v406
    %v1732 = vunpack.c.l.b16 %v407
    %v1733 = vunpack.c.h.b16 %v407
    %v1734 = vunpack.c.l.b16 %v408
    %v1735 = vunpack.c.h.b16 %v408
    %v1736 = vunpack.c.l.b16 %v409
    %v1737 = vunpack.c.h.b16 %v409
    %v1738 = vunpack.c.l.b16 %v410
    %v1739 = vunpack.c.h.b16 %v410
    %v1740 = vunpack.c.l.b16 %v411
    %v1741 = vunpack.c.h.b16 %v411
    %v1742 = vunpack.c.l.b16 %v412
    %v1743 = vunpack.c.h.b16 %v412
    %v1744 = vunpack.c.l.b16 %v413
    %v1745 = vunpack.c.h.b16 %v413
    %v1746 = vunpack.c.l.b16 %v414
    %v1747 = vunpack.c.h.b16 %v414
    %v1748 = vunpack.c.l.b16 %v415
    %v1749 = vunpack.c.h.b16 %v415
    %v1750 = vunpack.c.l.b16 %v416
    %v1751 = vunpack.c.h.b16 %v416
    %v1752 = vunpack.c.l.b16 %v417
    %v1753 = vunpack.c.h.b16 %v417
    %v1754 = vunpack.c.l.b16 %v418
    %v1755 = vunpack.c.h.b16 %v418
    %v1756 = vunpack.c.l.b16 %v419
    %v1757 = vunpack.c.h.b16 %v419
    %v1758 = vunpack.c.l.b16 %v420
    %v1759 = vunpack.c.h.b16 %v420
    %v1760 = vunpack.c.l.b16 %v421
    %v1761 = vunpack.c.h.b16 %v421
    %v1762 = vunpack.c.l.b16 %v422
    %v1763 = vunpack.c.h.b16 %v422
    %v1764 = vunpack.c.l.b16 %v423
    %v1765 = vunpack.c.h.b16 %v423
    %v1766 = vunpack.c.l.b16 %v424
    %v1767 = vunpack.c.h.b16 %v424
    %v1768 = vunpack.c.l.b16 %v425
    %v1769 = vunpack.c.h.b16 %v425
    %v1770 = vunpack.c.l.b16 %v426
    %v1771 = vunpack.c.h.b16 %v426
    %v1772 = vunpack.c.l.b16 %v427
    %v1773 = vunpack.c.h.b16 %v427
    %v1774 = vunpack.c.l.b16 %v428
    %v1775 = vunpack.c.h.b16 %v428
    %v1776 = vunpack.c.l.b16 %v429
    %v1777 = vunpack.c.h.b16 %v429
    %v1778 = vunpack.c.l.b16 %v430
    %v1779 = vunpack.c.h.b16 %v430
    %v1780 = vunpack.c.l.b16 %v431
    %v1781 = vunpack.c.h.b16 %v431
    %v1782 = vunpack.c.l.b16 %v432
    %v1783 = vunpack.c.h.b16 %v432
    %v1784 = vunpack.c.l.b16 %v433
    %v1785 = vunpack.c.h.b16 %v433
    %v1786 = vunpack.c.l.b16 %v434
    %v1787 = vunpack.c.h.b16 %v434
    %v1788 = vunpack.c.l.b16 %v435
    %v1789 = vunpack.c.h.b16 %v435
    %v1790 = vunpack.c.l.b16 %v436
    %v1791 = vunpack.c.h.b16 %v436
    %v1792 = vunpack.c.l.b16 %v437
    %v1793 = vunpack.c.h.b16 %v437
    %v1794 = vunpack.c.l.b16 %v438
    %v1795 = vunpack.c.h.b16 %v438
    %v1796 = vunpack.c.l.b16 %v439
    %v1797 = vunpack.c.h.b16 %v439
    %v1798 = vunpack.c.l.b16 %v440
    %v1799 = vunpack.c.h.b16 %v440
    %v1800 = vunpack.c.l.b16 %v441
    %v1801 = vunpack.c.h.b16 %v441
    %v1802 = vunpack.c.l.b16 %v442
    %v1803 = vunpack.c.h.b16 %v442
    %v1804 = vunpack.c.l.b16 %v443
    %v1805 = vunpack.c.h.b16 %v443
    %v1806 = vunpack.c.l.b16 %v444
    %v1807 = vunpack.c.h.b16 %v444
    %v1808 = vunpack.c.l.b16 %v445
    %v1809 = vunpack.c.h.b16 %v445
    %v1810 = vunpack.c.l.b16 %v446
    %v1811 = vunpack.c.h.b16 %v446
    %v1812 = vunpack.c.l.b16 %v447
    %v1813 = vunpack.c.h.b16 %v447
    %v1814 = vunpack.c.l.b16 %v448
    %v1815 = vunpack.c.h.b16 %v448
    %v1816 = vunpack.c.l.b16 %v449
    %v1817 = vunpack.c.h.b16 %v449
    %v1818 = vunpack.c.l.b16 %v450
    %v1819 = vunpack.c.h.b16 %v450
    %v1820 = vunpack.c.l.b16 %v451
    %v1821 = vunpack.c.h.b16 %v451
    %v1822 = vunpack.c.l.b16 %v452
    %v1823 = vunpack.c.h.b16 %v452
    %v1824 = vunpack.c.l.b16 %v453
    %v1825 = vunpack.c.h.b16 %v453
    %v1826 = vunpack.c.l.b16 %v454
    %v1827 = vunpack.c.h.b16 %v454
    %v1828 = vunpack.c.l.b16 %v455
    %v1829 = vunpack.c.h.b16 %v455
    %v1830 = vunpack.c.l.b16 %v456
    %v1831 = vunpack.c.h.b16 %v456
    %v1832 = vunpack.c.l.b16 %v457
    %v1833 = vunpack.c.h.b16 %v457
    %v1834 = vunpack.c.l.b16 %v458
    %v1835 = vunpack.c.h.b16 %v458
    %v1836 = vunpack.c.l.b16 %v459
    %v1837 = vunpack.c.h.b16 %v459
    %v1838 = vunpack.c.l.b16 %v460
    %v1839 = vunpack.c.h.b16 %v460
    %v1840 = vunpack.c.l.b16 %v461
    %v1841 = vunpack.c.h.b16 %v461
    %v1842 = vunpack.c.l.b16 %v462
    %v1843 = vunpack.c.h.b16 %v462
    %v1844 = vunpack.c.l.b16 %v463
    %v1845 = vunpack.c.h.b16 %v463
    %v1846 = vunpack.c.l.b16 %v464
    %v1847 = vunpack.c.h.b16 %v464
    %v1848 = vunpack.c.l.b16 %v465
    %v1849 = vunpack.c.h.b16 %v465
    %v1850 = vunpack.c.l.b16 %v466
    %v1851 = vunpack.c.h.b16 %v466
    %v1852 = vunpack.c.l.b16 %v467
    %v1853 = vunpack.c.h.b16 %v467
    %v1854 = vunpack.c.l.b16 %v468
    %v1855 = vunpack.c.h.b16 %v468
    %v1856 = vunpack.c.l.b16 %v469
    %v1857 = vunpack.c.h.b16 %v469
    %v1858 = vunpack.c.l.b16 %v470
    %v1859 = vunpack.c.h.b16 %v470
    %v1860 = vunpack.c.l.b16 %v471
    %v1861 = vunpack.c.h.b16 %v471
    %v1862 = vunpack.c.l.b16 %v472
    %v1863 = vunpack.c.h.b16 %v472
    %v1864 = vunpack.c.l.b16 %v473
    %v1865 = vunpack.c.h.b16 %v473
    %v1866 = vunpack.c.l.b16 %v474
    %v1867 = vunpack.c.h.b16 %v474
    %v1868 = vunpack.c.l.b16 %v475
    %v1869 = vunpack.c.h.b16 %v475
    %v1870 = vunpack.c.l.b16 %v476
    %v1871 = vunpack.c.h.b16 %v476
    %v1872 = vunpack.c.l.b16 %v477
    %v1873 = vunpack.c.h.b16 %v477
    %v1874 = vunpack.c.l.b16 %v478
    %v1875 = vunpack.c.h.b16 %v478
    %v1876 = vunpack.c.l.b16 %v479
    %v1877 = vunpack.c.h.b16 %v479
    %v1878 = vunpack.c.l.b16 %v480
    %v1879 = vunpack.c.h.b16 %v480
    %v1880 = vunpack.c.l.b16 %v481
    %v1881 = vunpack.c.h.b16 %v481
    %v1882 = vunpack.c.l.b16 %v482
    %v1883 = vunpack.c.h.b16 %v482
    %v1884 = vunpack.c.l.b16 %v483
    %v1885 = vunpack.c.h.b16 %v483
    %v1886 = vunpack.c.l.b16 %v484
    %v1887 = vunpack.c.h.b16 %v484
    %v1888 = vunpack.c.l.b16 %v485
    %v1889 = vunpack.c.h.b16 %v485
    %v1890 = vunpack.c.l.b16 %v486
    %v1891 = vunpack.c.h.b16 %v486
    %v1892 = vunpack.c.l.b16 %v487
    %v1893 = vunpack.c.h.b16 %v487
    %v1894 = vunpack.c.l.b16 %v488
    %v1895 = vunpack.c.h.b16 %v488
    %v1896 = vunpack.c.l.b16 %v489
    %v1897 = vunpack.c.h.b16 %v489
    %v1898 = vunpack.c.l.b16 %v490
    %v1899 = vunpack.c.h.b16 %v490
    %v1900 = vunpack.c.l.b16 %v491
    %v1901 = vunpack.c.h.b16 %v491
    %v1902 = vunpack.c.l.b16 %v492
    %v1903 = vunpack.c.h.b16 %v492
    %v1904 = vunpack.c.l.b16 %v493
    %v1905 = vunpack.c.h.b16 %v493
    %v1906 = vunpack.c.l.b16 %v494
    %v1907 = vunpack.c.h.b16 %v494
    %v1908 = vunpack.c.l.b16 %v495
    %v1909 = vunpack.c.h.b16 %v495
    %v1910 = vunpack.c.l.b16 %v496
    %v1911 = vunpack.c.h.b16 %v496
    %v1912 = vunpack.c.l.b16 %v497
    %v1913 = vunpack.c.h.b16 %v497
    %v1914 = vunpack.c.l.b16 %v498
    %v1915 = vunpack.c.h.b16 %v498
    %v1916 = vunpack.c.l.b16 %v499
    %v1917 = vunpack.c.h.b16 %v499
    %v1918 = vunpack.c.l.b16 %v500
    %v1919 = vunpack.c.h.b16 %v500
    %v1920 = vunpack.c.l.b16 %v501
    %v1921 = vunpack.c.h.b16 %v501
    %v1922 = vunpack.c.l.b16 %v502
    %v1923 = vunpack.c.h.b16 %v502
    %v1924 = vunpack.c.l.b16 %v503
    %v1925 = vunpack.c.h.b16 %v503
    %v1926 = vunpack.c.l.b16 %v504
    %v1927 = vunpack.c.h.b16 %v504
    %v1928 = vunpack.c.l.b16 %v505
    %v1929 = vunpack.c.h.b16 %v505
    %v1930 = vunpack.c.l.b16 %v506
    %v1931 = vunpack.c.h.b16 %v506
    %v1932 = vunpack.c.l.b16 %v507
    %v1933 = vunpack.c.h.b16 %v507
    %v1934 = vunpack.c.l.b16 %v508
    %v1935 = vunpack.c.h.b16 %v508
    %v1936 = vunpack.c.l.b16 %v509
    %v1937 = vunpack.c.h.b16 %v509
    %v1938 = vunpack.c.l.b16 %v510
    %v1939 = vunpack.c.h.b16 %v510
    %v1940 = vunpack.c.l.b16 %v511
    %v1941 = vunpack.c.h.b16 %v511
    %v1942 = vunpack.c.l.b16 %v512
    %v1943 = vunpack.c.h.b16 %v512
    %v1944 = vunpack.c.l.b16 %v513
    %v1945 = vunpack.c.h.b16 %v513
    %v1946 = vunpack.c.l.b16 %v514
    %v1947 = vunpack.c.h.b16 %v514
    %v1948 = vunpack.c.l.b16 %v515
    %v1949 = vunpack.c.h.b16 %v515
    %v1950 = vunpack.c.l.b16 %v516
    %v1951 = vunpack.c.h.b16 %v516
    %v1952 = vunpack.c.l.b16 %v517
    %v1953 = vunpack.c.h.b16 %v517
    %v1954 = vunpack.c.l.b16 %v518
    %v1955 = vunpack.c.h.b16 %v518
    %v1956 = vunpack.c.l.b16 %v519
    %v1957 = vunpack.c.h.b16 %v519
    %v1958 = vunpack.c.l.b16 %v520
    %v1959 = vunpack.c.h.b16 %v520
    %v1960 = vunpack.c.l.b16 %v521
    %v1961 = vunpack.c.h.b16 %v521
    %v1962 = vunpack.c.l.b16 %v522
    %v1963 = vunpack.c.h.b16 %v522
    %v1964 = vunpack.c.l.b16 %v523
    %v1965 = vunpack.c.h.b16 %v523
    %v1966 = vunpack.c.l.b16 %v524
    %v1967 = vunpack.c.h.b16 %v524
    %v1968 = vunpack.c.l.b16 %v525
    %v1969 = vunpack.c.h.b16 %v525
    %v1970 = vunpack.c.l.b16 %v526
    %v1971 = vunpack.c.h.b16 %v526
    %v1972 = vunpack.c.l.b16 %v527
    %v1973 = vunpack.c.h.b16 %v527
    %v1974 = vunpack.c.l.b16 %v528
    %v1975 = vunpack.c.h.b16 %v528
    %v1976 = vunpack.c.l.b16 %v529
    %v1977 = vunpack.c.h.b16 %v529
    %v1978 = vunpack.c.l.b16 %v530
    %v1979 = vunpack.c.h.b16 %v530
    %v1980 = vunpack.c.l.b16 %v531
    %v1981 = vunpack.c.h.b16 %v531
    %v1982 = vunpack.c.l.b16 %v532
    %v1983 = vunpack.c.h.b16 %v532
    %v1984 = vunpack.c.l.b16 %v533
    %v1985 = vunpack.c.h.b16 %v533
    %v1986 = vunpack.c.l.b16 %v534
    %v1987 = vunpack.c.h.b16 %v534
    %v1988 = vunpack.c.l.b16 %v535
    %v1989 = vunpack.c.h.b16 %v535
    %v1990 = vunpack.c.l.b16 %v536
    %v1991 = vunpack.c.h.b16 %v536
    %v1992 = vunpack.c.l.b16 %v537
    %v1993 = vunpack.c.h.b16 %v537
    %v1994 = vunpack.c.l.b16 %v538
    %v1995 = vunpack.c.h.b16 %v538
    %v1996 = vunpack.c.l.b16 %v539
    %v1997 = vunpack.c.h.b16 %v539
    %v1998 = vunpack.c.l.b16 %v540
    %v1999 = vunpack.c.h.b16 %v540
    %v2000 = vunpack.c.l.b16 %v541
    %v2001 = vunpack.c.h.b16 %v541
    %v2002 = vunpack.c.l.b16 %v542
    %v2003 = vunpack.c.h.b16 %v542
    %v2004 = vunpack.c.l.b16 %v543
    %v2005 = vunpack.c.h.b16 %v543
    %v2006 = vunpack.c.l.b16 %v544
    %v2007 = vunpack.c.h.b16 %v544
    %v2008 = vunpack.c.l.b16 %v545
    %v2009 = vunpack.c.h.b16 %v545
    %v2010 = vunpack.c.l.b16 %v546
    %v2011 = vunpack.c.h.b16 %v546
    %v2012 = vunpack.c.l.b16 %v547
    %v2013 = vunpack.c.h.b16 %v547
    %v2014 = vunpack.c.l.b16 %v548
    %v2015 = vunpack.c.h.b16 %v548
    %v2016 = vunpack.c.l.b16 %v549
    %v2017 = vunpack.c.h.b16 %v549
    %v2018 = vunpack.c.l.b16 %v550
    %v2019 = vunpack.c.h.b16 %v550
    %v2020 = vunpack.c.l.b16 %v551
    %v2021 = vunpack.c.h.b16 %v551
    %v2022 = vunpack.c.l.b16 %v552
    %v2023 = vunpack.c.h.b16 %v552
    %v2024 = vunpack.c.l.b16 %v553
    %v2025 = vunpack.c.h.b16 %v553
    %v2026 = vunpack.c.l.b16 %v554
    %v2027 = vunpack.c.h.b16 %v554
    %v2028 = vunpack.c.l.b16 %v555
    %v2029 = vunpack.c.h.b16 %v555
    %v2030 = vunpack.c.l.b16 %v556
    %v2031 = vunpack.c.h.b16 %v556
    %v2032 = vunpack.c.l.b16 %v557
    %v2033 = vunpack.c.h.b16 %v557
    %v2034 = vunpack.c.l.b16 %v558
    %v2035 = vunpack.c.h.b16 %v558
    %v2036 = vunpack.c.l.b16 %v559
    %v2037 = vunpack.c.h.b16 %v559
    %v2038 = vunpack.c.l.b16 %v560
    %v2039 = vunpack.c.h.b16 %v560
    %v2040 = vunpack.c.l.b16 %v561
    %v2041 = vunpack.c.h.b16 %v561
    %v2042 = vunpack.c.l.b16 %v562
    %v2043 = vunpack.c.h.b16 %v562
    %v2044 = vunpack.c.l.b16 %v563
    %v2045 = vunpack.c.h.b16 %v563
    %v2046 = vunpack.c.l.b16 %v564
    %v2047 = vunpack.c.h.b16 %v564
    %v2048 = vunpack.c.l.b16 %v565
    %v2049 = vunpack.c.h.b16 %v565
    %v2050 = vunpack.c.l.b16 %v566
    %v2051 = vunpack.c.h.b16 %v566
    %v2052 = vunpack.c.l.b16 %v567
    %v2053 = vunpack.c.h.b16 %v567
    %v2054 = vunpack.c.l.b16 %v568
    %v2055 = vunpack.c.h.b16 %v568
    %v2056 = vunpack.c.l.b16 %v569
    %v2057 = vunpack.c.h.b16 %v569
    %v2058 = vunpack.c.l.b16 %v570
    %v2059 = vunpack.c.h.b16 %v570
    %v2060 = vunpack.c.l.b16 %v571
    %v2061 = vunpack.c.h.b16 %v571
    %v2062 = vunpack.c.l.b16 %v572
    %v2063 = vunpack.c.h.b16 %v572
    %v2064 = vunpack.c.l.b16 %v573
    %v2065 = vunpack.c.h.b16 %v573
    %v2066 = vunpack.c.l.b16 %v574
    %v2067 = vunpack.c.h.b16 %v574
    %v2068 = vunpack.c.l.b16 %v575
    %v2069 = vunpack.c.h.b16 %v575
    %v2070 = vunpack.c.l.b16 %v576
    %v2071 = vunpack.c.h.b16 %v576
    %v2072 = vunpack.c.l.b16 %v577
    %v2073 = vunpack.c.h.b16 %v577
    %v2074 = vunpack.c.l.b16 %v578
    %v2075 = vunpack.c.h.b16 %v578
    %v2076 = vunpack.c.l.b16 %v579
    %v2077 = vunpack.c.h.b16 %v579
    %v2078 = vunpack.c.l.b16 %v580
    %v2079 = vunpack.c.h.b16 %v580
    %v2080 = vunpack.c.l.b16 %v581
    %v2081 = vunpack.c.h.b16 %v581
    %v2082 = vunpack.c.l.b16 %v582
    %v2083 = vunpack.c.h.b16 %v582
    %v2084 = vunpack.c.l.b16 %v583
    %v2085 = vunpack.c.h.b16 %v583
    %v2086 = vunpack.c.l.b16 %v584
    %v2087 = vunpack.c.h.b16 %v584
    %v2088 = vunpack.c.l.b16 %v585
    %v2089 = vunpack.c.h.b16 %v585
    %v2090 = vunpack.c.l.b16 %v586
    %v2091 = vunpack.c.h.b16 %v586
    %v2092 = vunpack.c.l.b16 %v587
    %v2093 = vunpack.c.h.b16 %v587
    %v2094 = vunpack.c.l.b16 %v588
    %v2095 = vunpack.c.h.b16 %v588
    %v2096 = vunpack.c.l.b16 %v589
    %v2097 = vunpack.c.h.b16 %v589
    %v2098 = vunpack.c.l.b16 %v590
    %v2099 = vunpack.c.h.b16 %v590
    %v2100 = vunpack.c.l.b16 %v591
    %v2101 = vunpack.c.h.b16 %v591
    %v2102 = vunpack.c.l.b16 %v592
    %v2103 = vunpack.c.h.b16 %v592
    %v2104 = vunpack.c.l.b16 %v593
    %v2105 = vunpack.c.h.b16 %v593
    %v2106 = vunpack.c.l.b16 %v594
    %v2107 = vunpack.c.h.b16 %v594
    %v2108 = vunpack.c.l.b16 %v595
    %v2109 = vunpack.c.h.b16 %v595
    %v2110 = vunpack.c.l.b16 %v596
    %v2111 = vunpack.c.h.b16 %v596
    %v2112 = vunpack.c.l.b16 %v597
    %v2113 = vunpack.c.h.b16 %v597
    %v2114 = vunpack.c.l.b16 %v598
    %v2115 = vunpack.c.h.b16 %v598
    %v2116 = vunpack.c.l.b16 %v599
    %v2117 = vunpack.c.h.b16 %v599
    %v2118 = vunpack.c.l.b16 %v600
    %v2119 = vunpack.c.h.b16 %v600
    %v2120 = vunpack.c.l.b16 %v601
    %v2121 = vunpack.c.h.b16 %v601
    %v2122 = vunpack.c.l.b16 %v602
    %v2123 = vunpack.c.h.b16 %v602
    %v2124 = vunpack.c.l.b16 %v603
    %v2125 = vunpack.c.h.b16 %v603
    %v2126 = vunpack.c.l.b16 %v604
    %v2127 = vunpack.c.h.b16 %v604
    %v2128 = vunpack.c.l.b16 %v605
    %v2129 = vunpack.c.h.b16 %v605
    %v2130 = vunpack.c.l.b16 %v606
    %v2131 = vunpack.c.h.b16 %v606
    %v2132 = vunpack.c.l.b16 %v607
    %v2133 = vunpack.c.h.b16 %v607
    %v2134 = vunpack.c.l.b16 %v608
    %v2135 = vunpack.c.h.b16 %v608
    %v2136 = vunpack.c.l.b16 %v609
    %v2137 = vunpack.c.h.b16 %v609
    %v2138 = vunpack.c.l.b16 %v610
    %v2139 = vunpack.c.h.b16 %v610
    %v2140 = vunpack.c.l.b16 %v611
    %v2141 = vunpack.c.h.b16 %v611
    %v2142 = vunpack.c.l.b16 %v612
    %v2143 = vunpack.c.h.b16 %v612
    %v2144 = vunpack.c.l.b16 %v613
    %v2145 = vunpack.c.h.b16 %v613
    %v2146 = vunpack.c.l.b16 %v614
    %v2147 = vunpack.c.h.b16 %v614
    %v2148 = vunpack.c.l.b16 %v615
    %v2149 = vunpack.c.h.b16 %v615
    %v2150 = vunpack.c.l.b16 %v616
    %v2151 = vunpack.c.h.b16 %v616
    %v2152 = vunpack.c.l.b16 %v617
    %v2153 = vunpack.c.h.b16 %v617
    %v2154 = vunpack.c.l.b16 %v618
    %v2155 = vunpack.c.h.b16 %v618
    %v2156 = vunpack.c.l.b16 %v619
    %v2157 = vunpack.c.h.b16 %v619
    %v2158 = vunpack.c.l.b16 %v620
    %v2159 = vunpack.c.h.b16 %v620
    %v2160 = vunpack.c.l.b16 %v621
    %v2161 = vunpack.c.h.b16 %v621
    %v2162 = vunpack.c.l.b16 %v622
    %v2163 = vunpack.c.h.b16 %v622
    %v2164 = vunpack.c.l.b16 %v623
    %v2165 = vunpack.c.h.b16 %v623
    %v2166 = vunpack.c.l.b16 %v624
    %v2167 = vunpack.c.h.b16 %v624
    %v2168 = vunpack.c.l.b16 %v625
    %v2169 = vunpack.c.h.b16 %v625
    %v2170 = vunpack.c.l.b16 %v626
    %v2171 = vunpack.c.h.b16 %v626
    %v2172 = vunpack.c.l.b16 %v627
    %v2173 = vunpack.c.h.b16 %v627
    %v2174 = vunpack.c.l.b16 %v628
    %v2175 = vunpack.c.h.b16 %v628
    %v2176 = vunpack.c.l.b16 %v629
    %v2177 = vunpack.c.h.b16 %v629
    %v2178 = vunpack.c.l.b16 %v630
    %v2179 = vunpack.c.h.b16 %v630
    %v2180 = vunpack.c.l.b16 %v631
    %v2181 = vunpack.c.h.b16 %v631
    %v2182 = vunpack.c.l.b16 %v632
    %v2183 = vunpack.c.h.b16 %v632
    %v2184 = vunpack.c.l.b16 %v633
    %v2185 = vunpack.c.h.b16 %v633
    %v2186 = vunpack.c.l.b16 %v634
    %v2187 = vunpack.c.h.b16 %v634
    %v2188 = vunpack.c.l.b16 %v635
    %v2189 = vunpack.c.h.b16 %v635
    %v2190 = vpack.c.b16 %v1174, %v1166
    %v2191 = vpack.c.b16 %v1175, %v1167
    %v2192 = vpack.c.b16 %v1176, %v1168
    %v2193 = vpack.c.b16 %v1177, %v1169
    %v2194 = vpack.c.b16 %v1178, %v1170
    %v2195 = vpack.c.b16 %v1179, %v1171
    %v2196 = vpack.c.b16 %v1180, %v1172
    %v2197 = vpack.c.b16 %v1181, %v1173
    %v2198 = vpack.c.b16 %v1190, %v1182
    %v2199 = vpack.c.b16 %v1191, %v1183
    %v2200 = vpack.c.b16 %v1192, %v1184
    %v2201 = vpack.c.b16 %v1193, %v1185
    %v2202 = vpack.c.b16 %v1194, %v1186
    %v2203 = vpack.c.b16 %v1195, %v1187
    %v2204 = vpack.c.b16 %v1196, %v1188
    %v2205 = vpack.c.b16 %v1197, %v1189
    %v2206 = vpack.c.b16 %v1206, %v1198
    %v2207 = vpack.c.b16 %v1207, %v1199
    %v2208 = vpack.c.b16 %v1208, %v1200
    %v2209 = vpack.c.b16 %v1209, %v1201
    %v2210 = vpack.c.b16 %v1210, %v1202
    %v2211 = vpack.c.b16 %v1211, %v1203
    %v2212 = vpack.c.b16 %v1212, %v1204
    %v2213 = vpack.c.b16 %v1213, %v1205
    %v2214 = vpack.c.b16 %v1222, %v1214
    %v2215 = vpack.c.b16 %v1223, %v1215
    %v2216 = vpack.c.b16 %v1224, %v1216
    %v2217 = vpack.c.b16 %v1225, %v1217
    %v2218 = vpack.c.b16 %v1226, %v1218
    %v2219 = vpack.c.b16 %v1227, %v1219
    %v2220 = vpack.c.b16 %v1228, %v1220
    %v2221 = vpack.c.b16 %v1229, %v1221
    %v2222 = vpack.c.b16 %v1238, %v1230
    %v2223 = vpack.c.b16 %v1239, %v1231
    %v2224 = vpack.c.b16 %v1240, %v1232
    %v2225 = vpack.c.b16 %v1241, %v1233
    %v2226 = vpack.c.b16 %v1242, %v1234
    %v2227 = vpack.c.b16 %v1243, %v1235
    %v2228 = vpack.c.b16 %v1244, %v1236
    %v2229 = vpack.c.b16 %v1245, %v1237
    %v2230 = vpack.c.b16 %v1254, %v1246
    %v2231 = vpack.c.b16 %v1255, %v1247
    %v2232 = vpack.c.b16 %v1256, %v1248
    %v2233 = vpack.c.b16 %v1257, %v1249
    %v2234 = vpack.c.b16 %v1258, %v1250
    %v2235 = vpack.c.b16 %v1259, %v1251
    %v2236 = vpack.c.b16 %v1260, %v1252
    %v2237 = vpack.c.b16 %v1261, %v1253
    %v2238 = vpack.c.b16 %v1270, %v1262
    %v2239 = vpack.c.b16 %v1271, %v1263
    %v2240 = vpack.c.b16 %v1272, %v1264
    %v2241 = vpack.c.b16 %v1273, %v1265
    %v2242 = vpack.c.b16 %v1274, %v1266
    %v2243 = vpack.c.b16 %v1275, %v1267
    %v2244 = vpack.c.b16 %v1276, %v1268
    %v2245 = vpack.c.b16 %v1277, %v1269
    %v2246 = vpack.c.b16 %v1286, %v1278
    %v2247 = vpack.c.b16 %v1287, %v1279
    %v2248 = vpack.c.b16 %v1288, %v1280
    %v2249 = vpack.c.b16 %v1289, %v1281
    %v2250 = vpack.c.b16 %v1290, %v1282
    %v2251 = vpack.c.b16 %v1291, %v1283
    %v2252 = vpack.c.b16 %v1292, %v1284
    %v2253 = vpack.c.b16 %v1293, %v1285
    %v2254 = vpack.c.b16 %v1302, %v1294
    %v2255 = vpack.c.b16 %v1303, %v1295
    %v2256 = vpack.c.b16 %v1304, %v1296
    %v2257 = vpack.c.b16 %v1305, %v1297
    %v2258 = vpack.c.b16 %v1306, %v1298
    %v2259 = vpack.c.b16 %v1307, %v1299
    %v2260 = vpack.c.b16 %v1308, %v1300
    %v2261 = vpack.c.b16 %v1309, %v1301
    %v2262 = vpack.c.b16 %v1318, %v1310
    %v2263 = vpack.c.b16 %v1319, %v1311
    %v2264 = vpack.c.b16 %v1320, %v1312
    %v2265 = vpack.c.b16 %v1321, %v1313
    %v2266 = vpack.c.b16 %v1322, %v1314
    %v2267 = vpack.c.b16 %v1323, %v1315
    %v2268 = vpack.c.b16 %v1324, %v1316
    %v2269 = vpack.c.b16 %v1325, %v1317
    %v2270 = vpack.c.b16 %v1334, %v1326
    %v2271 = vpack.c.b16 %v1335, %v1327
    %v2272 = vpack.c.b16 %v1336, %v1328
    %v2273 = vpack.c.b16 %v1337, %v1329
    %v2274 = vpack.c.b16 %v1338, %v1330
    %v2275 = vpack.c.b16 %v1339, %v1331
    %v2276 = vpack.c.b16 %v1340, %v1332
    %v2277 = vpack.c.b16 %v1341, %v1333
    %v2278 = vpack.c.b16 %v1350, %v1342
    %v2279 = vpack.c.b16 %v1351, %v1343
    %v2280 = vpack.c.b16 %v1352, %v1344
    %v2281 = vpack.c.b16 %v1353, %v1345
    %v2282 = vpack.c.b16 %v1354, %v1346
    %v2283 = vpack.c.b16 %v1355, %v1347
    %v2284 = vpack.c.b16 %v1356, %v1348
    %v2285 = vpack.c.b16 %v1357, %v1349
    %v2286 = vpack.c.b16 %v1366, %v1358
    %v2287 = vpack.c.b16 %v1367, %v1359
    %v2288 = vpack.c.b16 %v1368, %v1360
    %v2289 = vpack.c.b16 %v1369, %v1361
    %v2290 = vpack.c.b16 %v1370, %v1362
    %v2291 = vpack.c.b16 %v1371, %v1363
    %v2292 = vpack.c.b16 %v1372, %v1364
    %v2293 = vpack.c.b16 %v1373, %v1365
    %v2294 = vpack.c.b16 %v1382, %v1374
    %v2295 = vpack.c.b16 %v1383, %v1375
    %v2296 = vpack.c.b16 %v1384, %v1376
    %v2297 = vpack.c.b16 %v1385, %v1377
    %v2298 = vpack.c.b16 %v1386, %v1378
    %v2299 = vpack.c.b16 %v1387, %v1379
    %v2300 = vpack.c.b16 %v1388, %v1380
    %v2301 = vpack.c.b16 %v1389, %v1381
    %v2302 = vpack.c.b16 %v1398, %v1390
    %v2303 = vpack.c.b16 %v1399, %v1391
    %v2304 = vpack.c.b16 %v1400, %v1392
    %v2305 = vpack.c.b16 %v1401, %v1393
    %v2306 = vpack.c.b16 %v1402, %v1394
    %v2307 = vpack.c.b16 %v1403, %v1395
    %v2308 = vpack.c.b16 %v1404, %v1396
    %v2309 = vpack.c.b16 %v1405, %v1397
    %v2310 = vpack.c.b16 %v1414, %v1406
    %v2311 = vpack.c.b16 %v1415, %v1407
    %v2312 = vpack.c.b16 %v1416, %v1408
    %v2313 = vpack.c.b16 %v1417, %v1409
    %v2314 = vpack.c.b16 %v1418, %v1410
    %v2315 = vpack.c.b16 %v1419, %v1411
    %v2316 = vpack.c.b16 %v1420, %v1412
    %v2317 = vpack.c.b16 %v1421, %v1413
    %v2318 = vpack.c.b16 %v1430, %v1422
    %v2319 = vpack.c.b16 %v1431, %v1423
    %v2320 = vpack.c.b16 %v1432, %v1424
    %v2321 = vpack.c.b16 %v1433, %v1425
    %v2322 = vpack.c.b16 %v1434, %v1426
    %v2323 = vpack.c.b16 %v1435, %v1427
    %v2324 = vpack.c.b16 %v1436, %v1428
    %v2325 = vpack.c.b16 %v1437, %v1429
    %v2326 = vpack.c.b16 %v1446, %v1438
    %v2327 = vpack.c.b16 %v1447, %v1439
    %v2328 = vpack.c.b16 %v1448, %v1440
    %v2329 = vpack.c.b16 %v1449, %v1441
    %v2330 = vpack.c.b16 %v1450, %v1442
    %v2331 = vpack.c.b16 %v1451, %v1443
    %v2332 = vpack.c.b16 %v1452, %v1444
    %v2333 = vpack.c.b16 %v1453, %v1445
    %v2334 = vpack.c.b16 %v1462, %v1454
    %v2335 = vpack.c.b16 %v1463, %v1455
    %v2336 = vpack.c.b16 %v1464, %v1456
    %v2337 = vpack.c.b16 %v1465, %v1457
    %v2338 = vpack.c.b16 %v1466, %v1458
    %v2339 = vpack.c.b16 %v1467, %v1459
    %v2340 = vpack.c.b16 %v1468, %v1460
    %v2341 = vpack.c.b16 %v1469, %v1461
    %v2342 = vpack.c.b16 %v1478, %v1470
    %v2343 = vpack.c.b16 %v1479, %v1471
    %v2344 = vpack.c.b16 %v1480, %v1472
    %v2345 = vpack.c.b16 %v1481, %v1473
    %v2346 = vpack.c.b16 %v1482, %v1474
    %v2347 = vpack.c.b16 %v1483, %v1475
    %v2348 = vpack.c.b16 %v1484, %v1476
    %v2349 = vpack.c.b16 %v1485, %v1477
    %v2350 = vpack.c.b16 %v1494, %v1486
    %v2351 = vpack.c.b16 %v1495, %v1487
    %v2352 = vpack.c.b16 %v1496, %v1488
    %v2353 = vpack.c.b16 %v1497, %v1489
    %v2354 = vpack.c.b16 %v1498, %v1490
    %v2355 = vpack.c.b16 %v1499, %v1491
    %v2356 = vpack.c.b16 %v1500, %v1492
    %v2357 = vpack.c.b16 %v1501, %v1493
    %v2358 = vpack.c.b16 %v1510, %v1502
    %v2359 = vpack.c.b16 %v1511, %v1503
    %v2360 = vpack.c.b16 %v1512, %v1504
    %v2361 = vpack.c.b16 %v1513, %v1505
    %v2362 = vpack.c.b16 %v1514, %v1506
    %v2363 = vpack.c.b16 %v1515, %v1507
    %v2364 = vpack.c.b16 %v1516, %v1508
    %v2365 = vpack.c.b16 %v1517, %v1509
    %v2366 = vpack.c.b16 %v1526, %v1518
    %v2367 = vpack.c.b16 %v1527, %v1519
    %v2368 = vpack.c.b16 %v1528, %v1520
    %v2369 = vpack.c.b16 %v1529, %v1521
    %v2370 = vpack.c.b16 %v1530, %v1522
    %v2371 = vpack.c.b16 %v1531, %v1523
    %v2372 = vpack.c.b16 %v1532, %v1524
    %v2373 = vpack.c.b16 %v1533, %v1525
    %v2374 = vpack.c.b16 %v1542, %v1534
    %v2375 = vpack.c.b16 %v1543, %v1535
    %v2376 = vpack.c.b16 %v1544, %v1536
    %v2377 = vpack.c.b16 %v1545, %v1537
    %v2378 = vpack.c.b16 %v1546, %v1538
    %v2379 = vpack.c.b16 %v1547, %v1539
    %v2380 = vpack.c.b16 %v1548, %v1540
    %v2381 = vpack.c.b16 %v1549, %v1541
    %v2382 = vpack.c.b16 %v1558, %v1550
    %v2383 = vpack.c.b16 %v1559, %v1551
    %v2384 = vpack.c.b16 %v1560, %v1552
    %v2385 = vpack.c.b16 %v1561, %v1553
    %v2386 = vpack.c.b16 %v1562, %v1554
    %v2387 = vpack.c.b16 %v1563, %v1555
    %v2388 = vpack.c.b16 %v1564, %v1556
    %v2389 = vpack.c.b16 %v1565, %v1557
    %v2390 = vpack.c.b16 %v1574, %v1566
    %v2391 = vpack.c.b16 %v1575, %v1567
    %v2392 = vpack.c.b16 %v1576, %v1568
    %v2393 = vpack.c.b16 %v1577, %v1569
    %v2394 = vpack.c.b16 %v1578, %v1570
    %v2395 = vpack.c.b16 %v1579, %v1571
    %v2396 = vpack.c.b16 %v1580, %v1572
    %v2397 = vpack.c.b16 %v1581, %v1573
    %v2398 = vpack.c.b16 %v1590, %v1582
    %v2399 = vpack.c.b16 %v1591, %v1583
    %v2400 = vpack.c.b16 %v1592, %v1584
    %v2401 = vpack.c.b16 %v1593, %v1585
    %v2402 = vpack.c.b16 %v1594, %v1586
    %v2403 = vpack.c.b16 %v1595, %v1587
    %v2404 = vpack.c.b16 %v1596, %v1588
    %v2405 = vpack.c.b16 %v1597, %v1589
    %v2406 = vpack.c.b16 %v1606, %v1598
    %v2407 = vpack.c.b16 %v1607, %v1599
    %v2408 = vpack.c.b16 %v1608, %v1600
    %v2409 = vpack.c.b16 %v1609, %v1601
    %v2410 = vpack.c.b16 %v1610, %v1602
    %v2411 = vpack.c.b16 %v1611, %v1603
    %v2412 = vpack.c.b16 %v1612, %v1604
    %v2413 = vpack.c.b16 %v1613, %v1605
    %v2414 = vpack.c.b16 %v1622, %v1614
    %v2415 = vpack.c.b16 %v1623, %v1615
    %v2416 = vpack.c.b16 %v1624, %v1616
    %v2417 = vpack.c.b16 %v1625, %v1617
    %v2418 = vpack.c.b16 %v1626, %v1618
    %v2419 = vpack.c.b16 %v1627, %v1619
    %v2420 = vpack.c.b16 %v1628, %v1620
    %v2421 = vpack.c.b16 %v1629, %v1621
    %v2422 = vpack.c.b16 %v1638, %v1630
    %v2423 = vpack.c.b16 %v1639, %v1631
    %v2424 = vpack.c.b16 %v1640, %v1632
    %v2425 = vpack.c.b16 %v1641, %v1633
    %v2426 = vpack.c.b16 %v1642, %v1634
    %v2427 = vpack.c.b16 %v1643, %v1635
    %v2428 = vpack.c.b16 %v1644, %v1636
    %v2429 = vpack.c.b16 %v1645, %v1637
    %v2430 = vpack.c.b16 %v1654, %v1646
    %v2431 = vpack.c.b16 %v1655, %v1647
    %v2432 = vpack.c.b16 %v1656, %v1648
    %v2433 = vpack.c.b16 %v1657, %v1649
    %v2434 = vpack.c.b16 %v1658, %v1650
    %v2435 = vpack.c.b16 %v1659, %v1651
    %v2436 = vpack.c.b16 %v1660, %v1652
    %v2437 = vpack.c.b16 %v1661, %v1653
    %v2438 = vpack.c.b16 %v1670, %v1662
    %v2439 = vpack.c.b16 %v1671, %v1663
    %v2440 = vpack.c.b16 %v1672, %v1664
    %v2441 = vpack.c.b16 %v1673, %v1665
    %v2442 = vpack.c.b16 %v1674, %v1666
    %v2443 = vpack.c.b16 %v1675, %v1667
    %v2444 = vpack.c.b16 %v1676, %v1668
    %v2445 = vpack.c.b16 %v1677, %v1669
    %v2446 = vpack.c.b16 %v1686, %v1678
    %v2447 = vpack.c.b16 %v1687, %v1679
    %v2448 = vpack.c.b16 %v1688, %v1680
    %v2449 = vpack.c.b16 %v1689, %v1681
    %v2450 = vpack.c.b16 %v1690, %v1682
    %v2451 = vpack.c.b16 %v1691, %v1683
    %v2452 = vpack.c.b16 %v1692, %v1684
    %v2453 = vpack.c.b16 %v1693, %v1685
    %v2454 = vpack.c.b16 %v1702, %v1694
    %v2455 = vpack.c.b16 %v1703, %v1695
    %v2456 = vpack.c.b16 %v1704, %v1696
    %v2457 = vpack.c.b16 %v1705, %v1697
    %v2458 = vpack.c.b16 %v1706, %v1698
    %v2459 = vpack.c.b16 %v1707, %v1699
    %v2460 = vpack.c.b16 %v1708, %v1700
    %v2461 = vpack.c.b16 %v1709, %v1701
    %v2462 = vpack.c.b16 %v1718, %v1710
    %v2463 = vpack.c.b16 %v1719, %v1711
    %v2464 = vpack.c.b16 %v1720, %v1712
    %v2465 = vpack.c.b16 %v1721, %v1713
    %v2466 = vpack.c.b16 %v1722, %v1714
    %v2467 = vpack.c.b16 %v1723, %v1715
    %v2468 = vpack.c.b16 %v1724, %v1716
    %v2469 = vpack.c.b16 %v1725, %v1717
    %v2470 = vpack.c.b16 %v1734, %v1726
    %v2471 = vpack.c.b16 %v1735, %v1727
    %v2472 = vpack.c.b16 %v1736, %v1728
    %v2473 = vpack.c.b16 %v1737, %v1729
    %v2474 = vpack.c.b16 %v1738, %v1730
    %v2475 = vpack.c.b16 %v1739, %v1731
    %v2476 = vpack.c.b16 %v1740, %v1732
    %v2477 = vpack.c.b16 %v1741, %v1733
    %v2478 = vpack.c.b16 %v1750, %v1742
    %v2479 = vpack.c.b16 %v1751, %v1743
    %v2480 = vpack.c.b16 %v1752, %v1744
    %v2481 = vpack.c.b16 %v1753, %v1745
    %v2482 = vpack.c.b16 %v1754, %v1746
    %v2483 = vpack.c.b16 %v1755, %v1747
    %v2484 = vpack.c.b16 %v1756, %v1748
    %v2485 = vpack.c.b16 %v1757, %v1749
    %v2486 = vpack.c.b16 %v1766, %v1758
    %v2487 = vpack.c.b16 %v1767, %v1759
    %v2488 = vpack.c.b16 %v1768, %v1760
    %v2489 = vpack.c.b16 %v1769, %v1761
    %v2490 = vpack.c.b16 %v1770, %v1762
    %v2491 = vpack.c.b16 %v1771, %v1763
    %v2492 = vpack.c.b16 %v1772, %v1764
    %v2493 = vpack.c.b16 %v1773, %v1765
    %v2494 = vpack.c.b16 %v1782, %v1774
    %v2495 = vpack.c.b16 %v1783, %v1775
    %v2496 = vpack.c.b16 %v1784, %v1776
    %v2497 = vpack.c.b16 %v1785, %v1777
    %v2498 = vpack.c.b16 %v1786, %v1778
    %v2499 = vpack.c.b16 %v1787, %v1779
    %v2500 = vpack.c.b16 %v1788, %v1780
    %v2501 = vpack.c.b16 %v1789, %v1781
    %v2502 = vpack.c.b16 %v1798, %v1790
    %v2503 = vpack.c.b16 %v1799, %v1791
    %v2504 = vpack.c.b16 %v1800, %v1792
    %v2505 = vpack.c.b16 %v1801, %v1793
    %v2506 = vpack.c.b16 %v1802, %v1794
    %v2507 = vpack.c.b16 %v1803, %v1795
    %v2508 = vpack.c.b16 %v1804, %v1796
    %v2509 = vpack.c.b16 %v1805, %v1797
    %v2510 = vpack.c.b16 %v1814, %v1806
    %v2511 = vpack.c.b16 %v1815, %v1807
    %v2512 = vpack.c.b16 %v1816, %v1808
    %v2513 = vpack.c.b16 %v1817, %v1809
    %v2514 = vpack.c.b16 %v1818, %v1810
    %v2515 = vpack.c.b16 %v1819, %v1811
    %v2516 = vpack.c.b16 %v1820, %v1812
    %v2517 = vpack.c.b16 %v1821, %v1813
    %v2518 = vpack.c.b16 %v1830, %v1822
    %v2519 = vpack.c.b16 %v1831, %v1823
    %v2520 = vpack.c.b16 %v1832, %v1824
    %v2521 = vpack.c.b16 %v1833, %v1825
    %v2522 = vpack.c.b16 %v1834, %v1826
    %v2523 = vpack.c.b16 %v1835, %v1827
    %v2524 = vpack.c.b16 %v1836, %v1828
    %v2525 = vpack.c.b16 %v1837, %v1829
    %v2526 = vpack.c.b16 %v1846, %v1838
    %v2527 = vpack.c.b16 %v1847, %v1839
    %v2528 = vpack.c.b16 %v1848, %v1840
    %v2529 = vpack.c.b16 %v1849, %v1841
    %v2530 = vpack.c.b16 %v1850, %v1842
    %v2531 = vpack.c.b16 %v1851, %v1843
    %v2532 = vpack.c.b16 %v1852, %v1844
    %v2533 = vpack.c.b16 %v1853, %v1845
    %v2534 = vpack.c.b16 %v1862, %v1854
    %v2535 = vpack.c.b16 %v1863, %v1855
    %v2536 = vpack.c.b16 %v1864, %v1856
    %v2537 = vpack.c.b16 %v1865, %v1857
    %v2538 = vpack.c.b16 %v1866, %v1858
    %v2539 = vpack.c.b16 %v1867, %v1859
    %v2540 = vpack.c.b16 %v1868, %v1860
    %v2541 = vpack.c.b16 %v1869, %v1861
    %v2542 = vpack.c.b16 %v1878, %v1870
    %v2543 = vpack.c.b16 %v1879, %v1871
    %v2544 = vpack.c.b16 %v1880, %v1872
    %v2545 = vpack.c.b16 %v1881, %v1873
    %v2546 = vpack.c.b16 %v1882, %v1874
    %v2547 = vpack.c.b16 %v1883, %v1875
    %v2548 = vpack.c.b16 %v1884, %v1876
    %v2549 = vpack.c.b16 %v1885, %v1877
    %v2550 = vpack.c.b16 %v1894, %v1886
    %v2551 = vpack.c.b16 %v1895, %v1887
    %v2552 = vpack.c.b16 %v1896, %v1888
    %v2553 = vpack.c.b16 %v1897, %v1889
    %v2554 = vpack.c.b16 %v1898, %v1890
    %v2555 = vpack.c.b16 %v1899, %v1891
    %v2556 = vpack.c.b16 %v1900, %v1892
    %v2557 = vpack.c.b16 %v1901, %v1893
    %v2558 = vpack.c.b16 %v1910, %v1902
    %v2559 = vpack.c.b16 %v1911, %v1903
    %v2560 = vpack.c.b16 %v1912, %v1904
    %v2561 = vpack.c.b16 %v1913, %v1905
    %v2562 = vpack.c.b16 %v1914, %v1906
    %v2563 = vpack.c.b16 %v1915, %v1907
    %v2564 = vpack.c.b16 %v1916, %v1908
    %v2565 = vpack.c.b16 %v1917, %v1909
    %v2566 = vpack.c.b16 %v1926, %v1918
    %v2567 = vpack.c.b16 %v1927, %v1919
    %v2568 = vpack.c.b16 %v1928, %v1920
    %v2569 = vpack.c.b16 %v1929, %v1921
    %v2570 = vpack.c.b16 %v1930, %v1922
    %v2571 = vpack.c.b16 %v1931, %v1923
    %v2572 = vpack.c.b16 %v1932, %v1924
    %v2573 = vpack.c.b16 %v1933, %v1925
    %v2574 = vpack.c.b16 %v1942, %v1934
    %v2575 = vpack.c.b16 %v1943, %v1935
    %v2576 = vpack.c.b16 %v1944, %v1936
    %v2577 = vpack.c.b16 %v1945, %v1937
    %v2578 = vpack.c.b16 %v1946, %v1938
    %v2579 = vpack.c.b16 %v1947, %v1939
    %v2580 = vpack.c.b16 %v1948, %v1940
    %v2581 = vpack.c.b16 %v1949, %v1941
    %v2582 = vpack.c.b16 %v1958, %v1950
    %v2583 = vpack.c.b16 %v1959, %v1951
    %v2584 = vpack.c.b16 %v1960, %v1952
    %v2585 = vpack.c.b16 %v1961, %v1953
    %v2586 = vpack.c.b16 %v1962, %v1954
    %v2587 = vpack.c.b16 %v1963, %v1955
    %v2588 = vpack.c.b16 %v1964, %v1956
    %v2589 = vpack.c.b16 %v1965, %v1957
    %v2590 = vpack.c.b16 %v1974, %v1966
    %v2591 = vpack.c.b16 %v1975, %v1967
    %v2592 = vpack.c.b16 %v1976, %v1968
    %v2593 = vpack.c.b16 %v1977, %v1969
    %v2594 = vpack.c.b16 %v1978, %v1970
    %v2595 = vpack.c.b16 %v1979, %v1971
    %v2596 = vpack.c.b16 %v1980, %v1972
    %v2597 = vpack.c.b16 %v1981, %v1973
    %v2598 = vpack.c.b16 %v1990, %v1982
    %v2599 = vpack.c.b16 %v1991, %v1983
    %v2600 = vpack.c.b16 %v1992, %v1984
    %v2601 = vpack.c.b16 %v1993, %v1985
    %v2602 = vpack.c.b16 %v1994, %v1986
    %v2603 = vpack.c.b16 %v1995, %v1987
    %v2604 = vpack.c.b16 %v1996, %v1988
    %v2605 = vpack.c.b16 %v1997, %v1989
    %v2606 = vpack.c.b16 %v2006, %v1998
    %v2607 = vpack.c.b16 %v2007, %v1999
    %v2608 = vpack.c.b16 %v2008, %v2000
    %v2609 = vpack.c.b16 %v2009, %v2001
    %v2610 = vpack.c.b16 %v2010, %v2002
    %v2611 = vpack.c.b16 %v2011, %v2003
    %v2612 = vpack.c.b16 %v2012, %v2004
    %v2613 = vpack.c.b16 %v2013, %v2005
    %v2614 = vpack.c.b16 %v2022, %v2014
    %v2615 = vpack.c.b16 %v2023, %v2015
    %v2616 = vpack.c.b16 %v2024, %v2016
    %v2617 = vpack.c.b16 %v2025, %v2017
    %v2618 = vpack.c.b16 %v2026, %v2018
    %v2619 = vpack.c.b16 %v2027, %v2019
    %v2620 = vpack.c.b16 %v2028, %v2020
    %v2621 = vpack.c.b16 %v2029, %v2021
    %v2622 = vpack.c.b16 %v2038, %v2030
    %v2623 = vpack.c.b16 %v2039, %v2031
    %v2624 = vpack.c.b16 %v2040, %v2032
    %v2625 = vpack.c.b16 %v2041, %v2033
    %v2626 = vpack.c.b16 %v2042, %v2034
    %v2627 = vpack.c.b16 %v2043, %v2035
    %v2628 = vpack.c.b16 %v2044, %v2036
    %v2629 = vpack.c.b16 %v2045, %v2037
    %v2630 = vpack.c.b16 %v2054, %v2046
    %v2631 = vpack.c.b16 %v2055, %v2047
    %v2632 = vpack.c.b16 %v2056, %v2048
    %v2633 = vpack.c.b16 %v2057, %v2049
    %v2634 = vpack.c.b16 %v2058, %v2050
    %v2635 = vpack.c.b16 %v2059, %v2051
    %v2636 = vpack.c.b16 %v2060, %v2052
    %v2637 = vpack.c.b16 %v2061, %v2053
    %v2638 = vpack.c.b16 %v2070, %v2062
    %v2639 = vpack.c.b16 %v2071, %v2063
    %v2640 = vpack.c.b16 %v2072, %v2064
    %v2641 = vpack.c.b16 %v2073, %v2065
    %v2642 = vpack.c.b16 %v2074, %v2066
    %v2643 = vpack.c.b16 %v2075, %v2067
    %v2644 = vpack.c.b16 %v2076, %v2068
    %v2645 = vpack.c.b16 %v2077, %v2069
    %v2646 = vpack.c.b16 %v2086, %v2078
    %v2647 = vpack.c.b16 %v2087, %v2079
    %v2648 = vpack.c.b16 %v2088, %v2080
    %v2649 = vpack.c.b16 %v2089, %v2081
    %v2650 = vpack.c.b16 %v2090, %v2082
    %v2651 = vpack.c.b16 %v2091, %v2083
    %v2652 = vpack.c.b16 %v2092, %v2084
    %v2653 = vpack.c.b16 %v2093, %v2085
    %v2654 = vpack.c.b16 %v2102, %v2094
    %v2655 = vpack.c.b16 %v2103, %v2095
    %v2656 = vpack.c.b16 %v2104, %v2096
    %v2657 = vpack.c.b16 %v2105, %v2097
    %v2658 = vpack.c.b16 %v2106, %v2098
    %v2659 = vpack.c.b16 %v2107, %v2099
    %v2660 = vpack.c.b16 %v2108, %v2100
    %v2661 = vpack.c.b16 %v2109, %v2101
    %v2662 = vpack.c.b16 %v2118, %v2110
    %v2663 = vpack.c.b16 %v2119, %v2111
    %v2664 = vpack.c.b16 %v2120, %v2112
    %v2665 = vpack.c.b16 %v2121, %v2113
    %v2666 = vpack.c.b16 %v2122, %v2114
    %v2667 = vpack.c.b16 %v2123, %v2115
    %v2668 = vpack.c.b16 %v2124, %v2116
    %v2669 = vpack.c.b16 %v2125, %v2117
    %v2670 = vpack.c.b16 %v2134, %v2126
    %v2671 = vpack.c.b16 %v2135, %v2127
    %v2672 = vpack.c.b16 %v2136, %v2128
    %v2673 = vpack.c.b16 %v2137, %v2129
    %v2674 = vpack.c.b16 %v2138, %v2130
    %v2675 = vpack.c.b16 %v2139, %v2131
    %v2676 = vpack.c.b16 %v2140, %v2132
    %v2677 = vpack.c.b16 %v2141, %v2133
    %v2678 = vpack.c.b16 %v2150, %v2142
    %v2679 = vpack.c.b16 %v2151, %v2143
    %v2680 = vpack.c.b16 %v2152, %v2144
    %v2681 = vpack.c.b16 %v2153, %v2145
    %v2682 = vpack.c.b16 %v2154, %v2146
    %v2683 = vpack.c.b16 %v2155, %v2147
    %v2684 = vpack.c.b16 %v2156, %v2148
    %v2685 = vpack.c.b16 %v2157, %v2149
    %v2686 = vpack.c.b16 %v2166, %v2158
    %v2687 = vpack.c.b16 %v2167, %v2159
    %v2688 = vpack.c.b16 %v2168, %v2160
    %v2689 = vpack.c.b16 %v2169, %v2161
    %v2690 = vpack.c.b16 %v2170, %v2162
    %v2691 = vpack.c.b16 %v2171, %v2163
    %v2692 = vpack.c.b16 %v2172, %v2164
    %v2693 = vpack.c.b16 %v2173, %v2165
    %v2694 = vpack.c.b16 %v2182, %v2174
    %v2695 = vpack.c.b16 %v2183, %v2175
    %v2696 = vpack.c.b16 %v2184, %v2176
    %v2697 = vpack.c.b16 %v2185, %v2177
    %v2698 = vpack.c.b16 %v2186, %v2178
    %v2699 = vpack.c.b16 %v2187, %v2179
    %v2700 = vpack.c.b16 %v2188, %v2180
    %v2701 = vpack.c.b16 %v2189, %v2181
    %3214 = vmatpush.bf16.msra.mxu0 %v2246
    %3215 = vmatpush.bf16.msra.mxu0 %v2238
    %3216 = vmatpush.bf16.msra.mxu0 %v2230
    %3217 = vmatpush.bf16.msra.mxu0 %v2222
    %3218 = vmatpush.bf16.msra.mxu0 %v2214
    %3219 = vmatpush.bf16.msra.mxu0 %v2206
    %3220 = vmatpush.bf16.msra.mxu0 %v2198
    %3221 = vmatpush.bf16.msra.mxu0 %v2190
    %3222 = vmatmul.bf16.gmra.mxu0 %v116
    %v3223 = vpop.f32.mrf.mxu0
    %v3224 = vadd.f32 %v638, %v3223
    %v3225 = vpop.f32.mrf.mxu0
    %3226 = vdwg.mxu0
    %3227 = vmatpush.bf16.msra.mxu0 %v2310
    %3228 = vmatpush.bf16.msra.mxu0 %v2302
    %3229 = vmatpush.bf16.msra.mxu0 %v2294
    %3230 = vmatpush.bf16.msra.mxu0 %v2286
    %3231 = vmatpush.bf16.msra.mxu0 %v2278
    %3232 = vmatpush.bf16.msra.mxu0 %v2270
    %3233 = vmatpush.bf16.msra.mxu0 %v2262
    %3234 = vmatpush.bf16.msra.mxu0 %v2254
    %3235 = vmatmul.bf16.gmra.mxu0 %v117
    %v3236 = vpop.f32.mrf.mxu0
    %v3237 = vadd.f32 %v3224, %v3236
    %v3238 = vpop.f32.mrf.mxu0
    %3239 = vdwg.mxu0
    %3240 = vmatpush.bf16.msra.mxu0 %v2374
    %3241 = vmatpush.bf16.msra.mxu0 %v2366
    %3242 = vmatpush.bf16.msra.mxu0 %v2358
    %3243 = vmatpush.bf16.msra.mxu0 %v2350
    %3244 = vmatpush.bf16.msra.mxu0 %v2342
    %3245 = vmatpush.bf16.msra.mxu0 %v2334
    %3246 = vmatpush.bf16.msra.mxu0 %v2326
    %3247 = vmatpush.bf16.msra.mxu0 %v2318
    %3248 = vmatmul.bf16.gmra.mxu0 %v118
    %v3249 = vpop.f32.mrf.mxu0
    %v3250 = vadd.f32 %v3237, %v3249
    %v3251 = vpop.f32.mrf.mxu0
    %3252 = vdwg.mxu0
    %3253 = vmatpush.bf16.msra.mxu0 %v2438
    %3254 = vmatpush.bf16.msra.mxu0 %v2430
    %3255 = vmatpush.bf16.msra.mxu0 %v2422
    %3256 = vmatpush.bf16.msra.mxu0 %v2414
    %3257 = vmatpush.bf16.msra.mxu0 %v2406
    %3258 = vmatpush.bf16.msra.mxu0 %v2398
    %3259 = vmatpush.bf16.msra.mxu0 %v2390
    %3260 = vmatpush.bf16.msra.mxu0 %v2382
    %3261 = vmatmul.bf16.gmra.mxu0 %v119
    %v3262 = vpop.f32.mrf.mxu0
    %v3263 = vadd.f32 %v3250, %v3262
    %v3264 = vpop.f32.mrf.mxu0
    %3265 = vdwg.mxu0
    %3266 = vmatpush.bf16.msra.mxu0 %v2502
    %3267 = vmatpush.bf16.msra.mxu0 %v2494
    %3268 = vmatpush.bf16.msra.mxu0 %v2486
    %3269 = vmatpush.bf16.msra.mxu0 %v2478
    %3270 = vmatpush.bf16.msra.mxu0 %v2470
    %3271 = vmatpush.bf16.msra.mxu0 %v2462
    %3272 = vmatpush.bf16.msra.mxu0 %v2454
    %3273 = vmatpush.bf16.msra.mxu0 %v2446
    %3274 = vmatmul.bf16.gmra.mxu0 %v120
    %v3275 = vpop.f32.mrf.mxu0
    %v3276 = vadd.f32 %v3263, %v3275
    %v3277 = vpop.f32.mrf.mxu0
    %3278 = vdwg.mxu0
    %3279 = vmatpush.bf16.msra.mxu0 %v2566
    %3280 = vmatpush.bf16.msra.mxu0 %v2558
    %3281 = vmatpush.bf16.msra.mxu0 %v2550
    %3282 = vmatpush.bf16.msra.mxu0 %v2542
    %3283 = vmatpush.bf16.msra.mxu0 %v2534
    %3284 = vmatpush.bf16.msra.mxu0 %v2526
    %3285 = vmatpush.bf16.msra.mxu0 %v2518
    %3286 = vmatpush.bf16.msra.mxu0 %v2510
    %3287 = vmatmul.bf16.gmra.mxu0 %v121
    %v3288 = vpop.f32.mrf.mxu0
    %v3289 = vadd.f32 %v3276, %v3288
    %v3290 = vpop.f32.mrf.mxu0
    %3291 = vdwg.mxu0
    %3292 = vmatpush.bf16.msra.mxu0 %v2630
    %3293 = vmatpush.bf16.msra.mxu0 %v2622
    %3294 = vmatpush.bf16.msra.mxu0 %v2614
    %3295 = vmatpush.bf16.msra.mxu0 %v2606
    %3296 = vmatpush.bf16.msra.mxu0 %v2598
    %3297 = vmatpush.bf16.msra.mxu0 %v2590
    %3298 = vmatpush.bf16.msra.mxu0 %v2582
    %3299 = vmatpush.bf16.msra.mxu0 %v2574
    %3300 = vmatmul.bf16.gmra.mxu0 %v122
    %v3301 = vpop.f32.mrf.mxu0
    %v3302 = vadd.f32 %v3289, %v3301
    %v3303 = vpop.f32.mrf.mxu0
    %3304 = vdwg.mxu0
    %3305 = vmatpush.bf16.msra.mxu0 %v2694
    %3306 = vmatpush.bf16.msra.mxu0 %v2686
    %3307 = vmatpush.bf16.msra.mxu0 %v2678
    %3308 = vmatpush.bf16.msra.mxu0 %v2670
    %3309 = vmatpush.bf16.msra.mxu0 %v2662
    %3310 = vmatpush.bf16.msra.mxu0 %v2654
    %3311 = vmatpush.bf16.msra.mxu0 %v2646
    %3312 = vmatpush.bf16.msra.mxu0 %v2638
    %3313 = vmatmul.bf16.gmra.mxu0 %v123
    %v3314 = vpop.f32.mrf.mxu0
    %v3315 = vadd.f32 %v3302, %v3314
    %v3316 = vpop.f32.mrf.mxu0
    %3317 = vdwg.mxu0
    %3318 = vmatpush.bf16.msra.mxu0 %v2247
    %3319 = vmatpush.bf16.msra.mxu0 %v2239
    %3320 = vmatpush.bf16.msra.mxu0 %v2231
    %3321 = vmatpush.bf16.msra.mxu0 %v2223
    %3322 = vmatpush.bf16.msra.mxu0 %v2215
    %3323 = vmatpush.bf16.msra.mxu0 %v2207
    %3324 = vmatpush.bf16.msra.mxu0 %v2199
    %3325 = vmatpush.bf16.msra.mxu0 %v2191
    %3326 = vmatmul.bf16.gmra.mxu0 %v116
    %v3327 = vpop.f32.mrf.mxu0
    %v3328 = vadd.f32 %v639, %v3327
    %v3329 = vpop.f32.mrf.mxu0
    %3330 = vdwg.mxu0
    %3331 = vmatpush.bf16.msra.mxu0 %v2311
    %3332 = vmatpush.bf16.msra.mxu0 %v2303
    %3333 = vmatpush.bf16.msra.mxu0 %v2295
    %3334 = vmatpush.bf16.msra.mxu0 %v2287
    %3335 = vmatpush.bf16.msra.mxu0 %v2279
    %3336 = vmatpush.bf16.msra.mxu0 %v2271
    %3337 = vmatpush.bf16.msra.mxu0 %v2263
    %3338 = vmatpush.bf16.msra.mxu0 %v2255
    %3339 = vmatmul.bf16.gmra.mxu0 %v117
    %v3340 = vpop.f32.mrf.mxu0
    %v3341 = vadd.f32 %v3328, %v3340
    %v3342 = vpop.f32.mrf.mxu0
    %3343 = vdwg.mxu0
    %3344 = vmatpush.bf16.msra.mxu0 %v2375
    %3345 = vmatpush.bf16.msra.mxu0 %v2367
    %3346 = vmatpush.bf16.msra.mxu0 %v2359
    %3347 = vmatpush.bf16.msra.mxu0 %v2351
    %3348 = vmatpush.bf16.msra.mxu0 %v2343
    %3349 = vmatpush.bf16.msra.mxu0 %v2335
    %3350 = vmatpush.bf16.msra.mxu0 %v2327
    %3351 = vmatpush.bf16.msra.mxu0 %v2319
    %3352 = vmatmul.bf16.gmra.mxu0 %v118
    %v3353 = vpop.f32.mrf.mxu0
    %v3354 = vadd.f32 %v3341, %v3353
    %v3355 = vpop.f32.mrf.mxu0
    %3356 = vdwg.mxu0
    %3357 = vmatpush.bf16.msra.mxu0 %v2439
    %3358 = vmatpush.bf16.msra.mxu0 %v2431
    %3359 = vmatpush.bf16.msra.mxu0 %v2423
    %3360 = vmatpush.bf16.msra.mxu0 %v2415
    %3361 = vmatpush.bf16.msra.mxu0 %v2407
    %3362 = vmatpush.bf16.msra.mxu0 %v2399
    %3363 = vmatpush.bf16.msra.mxu0 %v2391
    %3364 = vmatpush.bf16.msra.mxu0 %v2383
    %3365 = vmatmul.bf16.gmra.mxu0 %v119
    %v3366 = vpop.f32.mrf.mxu0
    %v3367 = vadd.f32 %v3354, %v3366
    %v3368 = vpop.f32.mrf.mxu0
    %3369 = vdwg.mxu0
    %3370 = vmatpush.bf16.msra.mxu0 %v2503
    %3371 = vmatpush.bf16.msra.mxu0 %v2495
    %3372 = vmatpush.bf16.msra.mxu0 %v2487
    %3373 = vmatpush.bf16.msra.mxu0 %v2479
    %3374 = vmatpush.bf16.msra.mxu0 %v2471
    %3375 = vmatpush.bf16.msra.mxu0 %v2463
    %3376 = vmatpush.bf16.msra.mxu0 %v2455
    %3377 = vmatpush.bf16.msra.mxu0 %v2447
    %3378 = vmatmul.bf16.gmra.mxu0 %v120
    %v3379 = vpop.f32.mrf.mxu0
    %v3380 = vadd.f32 %v3367, %v3379
    %v3381 = vpop.f32.mrf.mxu0
    %3382 = vdwg.mxu0
    %3383 = vmatpush.bf16.msra.mxu0 %v2567
    %3384 = vmatpush.bf16.msra.mxu0 %v2559
    %3385 = vmatpush.bf16.msra.mxu0 %v2551
    %3386 = vmatpush.bf16.msra.mxu0 %v2543
    %3387 = vmatpush.bf16.msra.mxu0 %v2535
    %3388 = vmatpush.bf16.msra.mxu0 %v2527
    %3389 = vmatpush.bf16.msra.mxu0 %v2519
    %3390 = vmatpush.bf16.msra.mxu0 %v2511
    %3391 = vmatmul.bf16.gmra.mxu0 %v121
    %v3392 = vpop.f32.mrf.mxu0
    %v3393 = vadd.f32 %v3380, %v3392
    %v3394 = vpop.f32.mrf.mxu0
    %3395 = vdwg.mxu0
    %3396 = vmatpush.bf16.msra.mxu0 %v2631
    %3397 = vmatpush.bf16.msra.mxu0 %v2623
    %3398 = vmatpush.bf16.msra.mxu0 %v2615
    %3399 = vmatpush.bf16.msra.mxu0 %v2607
    %3400 = vmatpush.bf16.msra.mxu0 %v2599
    %3401 = vmatpush.bf16.msra.mxu0 %v2591
    %3402 = vmatpush.bf16.msra.mxu0 %v2583
    %3403 = vmatpush.bf16.msra.mxu0 %v2575
    %3404 = vmatmul.bf16.gmra.mxu0 %v122
    %v3405 = vpop.f32.mrf.mxu0
    %v3406 = vadd.f32 %v3393, %v3405
    %v3407 = vpop.f32.mrf.mxu0
    %3408 = vdwg.mxu0
    %3409 = vmatpush.bf16.msra.mxu0 %v2695
    %3410 = vmatpush.bf16.msra.mxu0 %v2687
    %3411 = vmatpush.bf16.msra.mxu0 %v2679
    %3412 = vmatpush.bf16.msra.mxu0 %v2671
    %3413 = vmatpush.bf16.msra.mxu0 %v2663
    %3414 = vmatpush.bf16.msra.mxu0 %v2655
    %3415 = vmatpush.bf16.msra.mxu0 %v2647
    %3416 = vmatpush.bf16.msra.mxu0 %v2639
    %3417 = vmatmul.bf16.gmra.mxu0 %v123
    %v3418 = vpop.f32.mrf.mxu0
    %v3419 = vadd.f32 %v3406, %v3418
    %v3420 = vpop.f32.mrf.mxu0
    %3421 = vdwg.mxu0
    %3422 = vmatpush.bf16.msra.mxu0 %v2248
    %3423 = vmatpush.bf16.msra.mxu0 %v2240
    %3424 = vmatpush.bf16.msra.mxu0 %v2232
    %3425 = vmatpush.bf16.msra.mxu0 %v2224
    %3426 = vmatpush.bf16.msra.mxu0 %v2216
    %3427 = vmatpush.bf16.msra.mxu0 %v2208
    %3428 = vmatpush.bf16.msra.mxu0 %v2200
    %3429 = vmatpush.bf16.msra.mxu0 %v2192
    %3430 = vmatmul.bf16.gmra.mxu0 %v116
    %v3431 = vpop.f32.mrf.mxu0
    %v3432 = vadd.f32 %v640, %v3431
    %v3433 = vpop.f32.mrf.mxu0
    %3434 = vdwg.mxu0
    %3435 = vmatpush.bf16.msra.mxu0 %v2312
    %3436 = vmatpush.bf16.msra.mxu0 %v2304
    %3437 = vmatpush.bf16.msra.mxu0 %v2296
    %3438 = vmatpush.bf16.msra.mxu0 %v2288
    %3439 = vmatpush.bf16.msra.mxu0 %v2280
    %3440 = vmatpush.bf16.msra.mxu0 %v2272
    %3441 = vmatpush.bf16.msra.mxu0 %v2264
    %3442 = vmatpush.bf16.msra.mxu0 %v2256
    %3443 = vmatmul.bf16.gmra.mxu0 %v117
    %v3444 = vpop.f32.mrf.mxu0
    %v3445 = vadd.f32 %v3432, %v3444
    %v3446 = vpop.f32.mrf.mxu0
    %3447 = vdwg.mxu0
    %3448 = vmatpush.bf16.msra.mxu0 %v2376
    %3449 = vmatpush.bf16.msra.mxu0 %v2368
    %3450 = vmatpush.bf16.msra.mxu0 %v2360
    %3451 = vmatpush.bf16.msra.mxu0 %v2352
    %3452 = vmatpush.bf16.msra.mxu0 %v2344
    %3453 = vmatpush.bf16.msra.mxu0 %v2336
    %3454 = vmatpush.bf16.msra.mxu0 %v2328
    %3455 = vmatpush.bf16.msra.mxu0 %v2320
    %3456 = vmatmul.bf16.gmra.mxu0 %v118
    %v3457 = vpop.f32.mrf.mxu0
    %v3458 = vadd.f32 %v3445, %v3457
    %v3459 = vpop.f32.mrf.mxu0
    %3460 = vdwg.mxu0
    %3461 = vmatpush.bf16.msra.mxu0 %v2440
    %3462 = vmatpush.bf16.msra.mxu0 %v2432
    %3463 = vmatpush.bf16.msra.mxu0 %v2424
    %3464 = vmatpush.bf16.msra.mxu0 %v2416
    %3465 = vmatpush.bf16.msra.mxu0 %v2408
    %3466 = vmatpush.bf16.msra.mxu0 %v2400
    %3467 = vmatpush.bf16.msra.mxu0 %v2392
    %3468 = vmatpush.bf16.msra.mxu0 %v2384
    %3469 = vmatmul.bf16.gmra.mxu0 %v119
    %v3470 = vpop.f32.mrf.mxu0
    %v3471 = vadd.f32 %v3458, %v3470
    %v3472 = vpop.f32.mrf.mxu0
    %3473 = vdwg.mxu0
    %3474 = vmatpush.bf16.msra.mxu0 %v2504
    %3475 = vmatpush.bf16.msra.mxu0 %v2496
    %3476 = vmatpush.bf16.msra.mxu0 %v2488
    %3477 = vmatpush.bf16.msra.mxu0 %v2480
    %3478 = vmatpush.bf16.msra.mxu0 %v2472
    %3479 = vmatpush.bf16.msra.mxu0 %v2464
    %3480 = vmatpush.bf16.msra.mxu0 %v2456
    %3481 = vmatpush.bf16.msra.mxu0 %v2448
    %3482 = vmatmul.bf16.gmra.mxu0 %v120
    %v3483 = vpop.f32.mrf.mxu0
    %v3484 = vadd.f32 %v3471, %v3483
    %v3485 = vpop.f32.mrf.mxu0
    %3486 = vdwg.mxu0
    %3487 = vmatpush.bf16.msra.mxu0 %v2568
    %3488 = vmatpush.bf16.msra.mxu0 %v2560
    %3489 = vmatpush.bf16.msra.mxu0 %v2552
    %3490 = vmatpush.bf16.msra.mxu0 %v2544
    %3491 = vmatpush.bf16.msra.mxu0 %v2536
    %3492 = vmatpush.bf16.msra.mxu0 %v2528
    %3493 = vmatpush.bf16.msra.mxu0 %v2520
    %3494 = vmatpush.bf16.msra.mxu0 %v2512
    %3495 = vmatmul.bf16.gmra.mxu0 %v121
    %v3496 = vpop.f32.mrf.mxu0
    %v3497 = vadd.f32 %v3484, %v3496
    %v3498 = vpop.f32.mrf.mxu0
    %3499 = vdwg.mxu0
    %3500 = vmatpush.bf16.msra.mxu0 %v2632
    %3501 = vmatpush.bf16.msra.mxu0 %v2624
    %3502 = vmatpush.bf16.msra.mxu0 %v2616
    %3503 = vmatpush.bf16.msra.mxu0 %v2608
    %3504 = vmatpush.bf16.msra.mxu0 %v2600
    %3505 = vmatpush.bf16.msra.mxu0 %v2592
    %3506 = vmatpush.bf16.msra.mxu0 %v2584
    %3507 = vmatpush.bf16.msra.mxu0 %v2576
    %3508 = vmatmul.bf16.gmra.mxu0 %v122
    %v3509 = vpop.f32.mrf.mxu0
    %v3510 = vadd.f32 %v3497, %v3509
    %v3511 = vpop.f32.mrf.mxu0
    %3512 = vdwg.mxu0
    %3513 = vmatpush.bf16.msra.mxu0 %v2696
    %3514 = vmatpush.bf16.msra.mxu0 %v2688
    %3515 = vmatpush.bf16.msra.mxu0 %v2680
    %3516 = vmatpush.bf16.msra.mxu0 %v2672
    %3517 = vmatpush.bf16.msra.mxu0 %v2664
    %3518 = vmatpush.bf16.msra.mxu0 %v2656
    %3519 = vmatpush.bf16.msra.mxu0 %v2648
    %3520 = vmatpush.bf16.msra.mxu0 %v2640
    %3521 = vmatmul.bf16.gmra.mxu0 %v123
    %v3522 = vpop.f32.mrf.mxu0
    %v3523 = vadd.f32 %v3510, %v3522
    %v3524 = vpop.f32.mrf.mxu0
    %3525 = vdwg.mxu0
    %3526 = vmatpush.bf16.msra.mxu0 %v2249
    %3527 = vmatpush.bf16.msra.mxu0 %v2241
    %3528 = vmatpush.bf16.msra.mxu0 %v2233
    %3529 = vmatpush.bf16.msra.mxu0 %v2225
    %3530 = vmatpush.bf16.msra.mxu0 %v2217
    %3531 = vmatpush.bf16.msra.mxu0 %v2209
    %3532 = vmatpush.bf16.msra.mxu0 %v2201
    %3533 = vmatpush.bf16.msra.mxu0 %v2193
    %3534 = vmatmul.bf16.gmra.mxu0 %v116
    %v3535 = vpop.f32.mrf.mxu0
    %v3536 = vadd.f32 %v641, %v3535
    %v3537 = vpop.f32.mrf.mxu0
    %3538 = vdwg.mxu0
    %3539 = vmatpush.bf16.msra.mxu0 %v2313
    %3540 = vmatpush.bf16.msra.mxu0 %v2305
    %3541 = vmatpush.bf16.msra.mxu0 %v2297
    %3542 = vmatpush.bf16.msra.mxu0 %v2289
    %3543 = vmatpush.bf16.msra.mxu0 %v2281
    %3544 = vmatpush.bf16.msra.mxu0 %v2273
    %3545 = vmatpush.bf16.msra.mxu0 %v2265
    %3546 = vmatpush.bf16.msra.mxu0 %v2257
    %3547 = vmatmul.bf16.gmra.mxu0 %v117
    %v3548 = vpop.f32.mrf.mxu0
    %v3549 = vadd.f32 %v3536, %v3548
    %v3550 = vpop.f32.mrf.mxu0
    %3551 = vdwg.mxu0
    %3552 = vmatpush.bf16.msra.mxu0 %v2377
    %3553 = vmatpush.bf16.msra.mxu0 %v2369
    %3554 = vmatpush.bf16.msra.mxu0 %v2361
    %3555 = vmatpush.bf16.msra.mxu0 %v2353
    %3556 = vmatpush.bf16.msra.mxu0 %v2345
    %3557 = vmatpush.bf16.msra.mxu0 %v2337
    %3558 = vmatpush.bf16.msra.mxu0 %v2329
    %3559 = vmatpush.bf16.msra.mxu0 %v2321
    %3560 = vmatmul.bf16.gmra.mxu0 %v118
    %v3561 = vpop.f32.mrf.mxu0
    %v3562 = vadd.f32 %v3549, %v3561
    %v3563 = vpop.f32.mrf.mxu0
    %3564 = vdwg.mxu0
    %3565 = vmatpush.bf16.msra.mxu0 %v2441
    %3566 = vmatpush.bf16.msra.mxu0 %v2433
    %3567 = vmatpush.bf16.msra.mxu0 %v2425
    %3568 = vmatpush.bf16.msra.mxu0 %v2417
    %3569 = vmatpush.bf16.msra.mxu0 %v2409
    %3570 = vmatpush.bf16.msra.mxu0 %v2401
    %3571 = vmatpush.bf16.msra.mxu0 %v2393
    %3572 = vmatpush.bf16.msra.mxu0 %v2385
    %3573 = vmatmul.bf16.gmra.mxu0 %v119
    %v3574 = vpop.f32.mrf.mxu0
    %v3575 = vadd.f32 %v3562, %v3574
    %v3576 = vpop.f32.mrf.mxu0
    %3577 = vdwg.mxu0
    %3578 = vmatpush.bf16.msra.mxu0 %v2505
    %3579 = vmatpush.bf16.msra.mxu0 %v2497
    %3580 = vmatpush.bf16.msra.mxu0 %v2489
    %3581 = vmatpush.bf16.msra.mxu0 %v2481
    %3582 = vmatpush.bf16.msra.mxu0 %v2473
    %3583 = vmatpush.bf16.msra.mxu0 %v2465
    %3584 = vmatpush.bf16.msra.mxu0 %v2457
    %3585 = vmatpush.bf16.msra.mxu0 %v2449
    %3586 = vmatmul.bf16.gmra.mxu0 %v120
    %v3587 = vpop.f32.mrf.mxu0
    %v3588 = vadd.f32 %v3575, %v3587
    %v3589 = vpop.f32.mrf.mxu0
    %3590 = vdwg.mxu0
    %3591 = vmatpush.bf16.msra.mxu0 %v2569
    %3592 = vmatpush.bf16.msra.mxu0 %v2561
    %3593 = vmatpush.bf16.msra.mxu0 %v2553
    %3594 = vmatpush.bf16.msra.mxu0 %v2545
    %3595 = vmatpush.bf16.msra.mxu0 %v2537
    %3596 = vmatpush.bf16.msra.mxu0 %v2529
    %3597 = vmatpush.bf16.msra.mxu0 %v2521
    %3598 = vmatpush.bf16.msra.mxu0 %v2513
    %3599 = vmatmul.bf16.gmra.mxu0 %v121
    %v3600 = vpop.f32.mrf.mxu0
    %v3601 = vadd.f32 %v3588, %v3600
    %v3602 = vpop.f32.mrf.mxu0
    %3603 = vdwg.mxu0
    %3604 = vmatpush.bf16.msra.mxu0 %v2633
    %3605 = vmatpush.bf16.msra.mxu0 %v2625
    %3606 = vmatpush.bf16.msra.mxu0 %v2617
    %3607 = vmatpush.bf16.msra.mxu0 %v2609
    %3608 = vmatpush.bf16.msra.mxu0 %v2601
    %3609 = vmatpush.bf16.msra.mxu0 %v2593
    %3610 = vmatpush.bf16.msra.mxu0 %v2585
    %3611 = vmatpush.bf16.msra.mxu0 %v2577
    %3612 = vmatmul.bf16.gmra.mxu0 %v122
    %v3613 = vpop.f32.mrf.mxu0
    %v3614 = vadd.f32 %v3601, %v3613
    %v3615 = vpop.f32.mrf.mxu0
    %3616 = vdwg.mxu0
    %3617 = vmatpush.bf16.msra.mxu0 %v2697
    %3618 = vmatpush.bf16.msra.mxu0 %v2689
    %3619 = vmatpush.bf16.msra.mxu0 %v2681
    %3620 = vmatpush.bf16.msra.mxu0 %v2673
    %3621 = vmatpush.bf16.msra.mxu0 %v2665
    %3622 = vmatpush.bf16.msra.mxu0 %v2657
    %3623 = vmatpush.bf16.msra.mxu0 %v2649
    %3624 = vmatpush.bf16.msra.mxu0 %v2641
    %3625 = vmatmul.bf16.gmra.mxu0 %v123
    %v3626 = vpop.f32.mrf.mxu0
    %v3627 = vadd.f32 %v3614, %v3626
    %v3628 = vpop.f32.mrf.mxu0
    %3629 = vdwg.mxu0
    %3630 = vmatpush.bf16.msra.mxu0 %v2250
    %3631 = vmatpush.bf16.msra.mxu0 %v2242
    %3632 = vmatpush.bf16.msra.mxu0 %v2234
    %3633 = vmatpush.bf16.msra.mxu0 %v2226
    %3634 = vmatpush.bf16.msra.mxu0 %v2218
    %3635 = vmatpush.bf16.msra.mxu0 %v2210
    %3636 = vmatpush.bf16.msra.mxu0 %v2202
    %3637 = vmatpush.bf16.msra.mxu0 %v2194
    %3638 = vmatmul.bf16.gmra.mxu0 %v116
    %v3639 = vpop.f32.mrf.mxu0
    %v3640 = vadd.f32 %v642, %v3639
    %v3641 = vpop.f32.mrf.mxu0
    %3642 = vdwg.mxu0
    %3643 = vmatpush.bf16.msra.mxu0 %v2314
    %3644 = vmatpush.bf16.msra.mxu0 %v2306
    %3645 = vmatpush.bf16.msra.mxu0 %v2298
    %3646 = vmatpush.bf16.msra.mxu0 %v2290
    %3647 = vmatpush.bf16.msra.mxu0 %v2282
    %3648 = vmatpush.bf16.msra.mxu0 %v2274
    %3649 = vmatpush.bf16.msra.mxu0 %v2266
    %3650 = vmatpush.bf16.msra.mxu0 %v2258
    %3651 = vmatmul.bf16.gmra.mxu0 %v117
    %v3652 = vpop.f32.mrf.mxu0
    %v3653 = vadd.f32 %v3640, %v3652
    %v3654 = vpop.f32.mrf.mxu0
    %3655 = vdwg.mxu0
    %3656 = vmatpush.bf16.msra.mxu0 %v2378
    %3657 = vmatpush.bf16.msra.mxu0 %v2370
    %3658 = vmatpush.bf16.msra.mxu0 %v2362
    %3659 = vmatpush.bf16.msra.mxu0 %v2354
    %3660 = vmatpush.bf16.msra.mxu0 %v2346
    %3661 = vmatpush.bf16.msra.mxu0 %v2338
    %3662 = vmatpush.bf16.msra.mxu0 %v2330
    %3663 = vmatpush.bf16.msra.mxu0 %v2322
    %3664 = vmatmul.bf16.gmra.mxu0 %v118
    %v3665 = vpop.f32.mrf.mxu0
    %v3666 = vadd.f32 %v3653, %v3665
    %v3667 = vpop.f32.mrf.mxu0
    %3668 = vdwg.mxu0
    %3669 = vmatpush.bf16.msra.mxu0 %v2442
    %3670 = vmatpush.bf16.msra.mxu0 %v2434
    %3671 = vmatpush.bf16.msra.mxu0 %v2426
    %3672 = vmatpush.bf16.msra.mxu0 %v2418
    %3673 = vmatpush.bf16.msra.mxu0 %v2410
    %3674 = vmatpush.bf16.msra.mxu0 %v2402
    %3675 = vmatpush.bf16.msra.mxu0 %v2394
    %3676 = vmatpush.bf16.msra.mxu0 %v2386
    %3677 = vmatmul.bf16.gmra.mxu0 %v119
    %v3678 = vpop.f32.mrf.mxu0
    %v3679 = vadd.f32 %v3666, %v3678
    %v3680 = vpop.f32.mrf.mxu0
    %3681 = vdwg.mxu0
    %3682 = vmatpush.bf16.msra.mxu0 %v2506
    %3683 = vmatpush.bf16.msra.mxu0 %v2498
    %3684 = vmatpush.bf16.msra.mxu0 %v2490
    %3685 = vmatpush.bf16.msra.mxu0 %v2482
    %3686 = vmatpush.bf16.msra.mxu0 %v2474
    %3687 = vmatpush.bf16.msra.mxu0 %v2466
    %3688 = vmatpush.bf16.msra.mxu0 %v2458
    %3689 = vmatpush.bf16.msra.mxu0 %v2450
    %3690 = vmatmul.bf16.gmra.mxu0 %v120
    %v3691 = vpop.f32.mrf.mxu0
    %v3692 = vadd.f32 %v3679, %v3691
    %v3693 = vpop.f32.mrf.mxu0
    %3694 = vdwg.mxu0
    %3695 = vmatpush.bf16.msra.mxu0 %v2570
    %3696 = vmatpush.bf16.msra.mxu0 %v2562
    %3697 = vmatpush.bf16.msra.mxu0 %v2554
    %3698 = vmatpush.bf16.msra.mxu0 %v2546
    %3699 = vmatpush.bf16.msra.mxu0 %v2538
    %3700 = vmatpush.bf16.msra.mxu0 %v2530
    %3701 = vmatpush.bf16.msra.mxu0 %v2522
    %3702 = vmatpush.bf16.msra.mxu0 %v2514
    %3703 = vmatmul.bf16.gmra.mxu0 %v121
    %v3704 = vpop.f32.mrf.mxu0
    %v3705 = vadd.f32 %v3692, %v3704
    %v3706 = vpop.f32.mrf.mxu0
    %3707 = vdwg.mxu0
    %3708 = vmatpush.bf16.msra.mxu0 %v2634
    %3709 = vmatpush.bf16.msra.mxu0 %v2626
    %3710 = vmatpush.bf16.msra.mxu0 %v2618
    %3711 = vmatpush.bf16.msra.mxu0 %v2610
    %3712 = vmatpush.bf16.msra.mxu0 %v2602
    %3713 = vmatpush.bf16.msra.mxu0 %v2594
    %3714 = vmatpush.bf16.msra.mxu0 %v2586
    %3715 = vmatpush.bf16.msra.mxu0 %v2578
    %3716 = vmatmul.bf16.gmra.mxu0 %v122
    %v3717 = vpop.f32.mrf.mxu0
    %v3718 = vadd.f32 %v3705, %v3717
    %v3719 = vpop.f32.mrf.mxu0
    %3720 = vdwg.mxu0
    %3721 = vmatpush.bf16.msra.mxu0 %v2698
    %3722 = vmatpush.bf16.msra.mxu0 %v2690
    %3723 = vmatpush.bf16.msra.mxu0 %v2682
    %3724 = vmatpush.bf16.msra.mxu0 %v2674
    %3725 = vmatpush.bf16.msra.mxu0 %v2666
    %3726 = vmatpush.bf16.msra.mxu0 %v2658
    %3727 = vmatpush.bf16.msra.mxu0 %v2650
    %3728 = vmatpush.bf16.msra.mxu0 %v2642
    %3729 = vmatmul.bf16.gmra.mxu0 %v123
    %v3730 = vpop.f32.mrf.mxu0
    %v3731 = vadd.f32 %v3718, %v3730
    %v3732 = vpop.f32.mrf.mxu0
    %3733 = vdwg.mxu0
    %3734 = vmatpush.bf16.msra.mxu0 %v2251
    %3735 = vmatpush.bf16.msra.mxu0 %v2243
    %3736 = vmatpush.bf16.msra.mxu0 %v2235
    %3737 = vmatpush.bf16.msra.mxu0 %v2227
    %3738 = vmatpush.bf16.msra.mxu0 %v2219
    %3739 = vmatpush.bf16.msra.mxu0 %v2211
    %3740 = vmatpush.bf16.msra.mxu0 %v2203
    %3741 = vmatpush.bf16.msra.mxu0 %v2195
    %3742 = vmatmul.bf16.gmra.mxu0 %v116
    %v3743 = vpop.f32.mrf.mxu0
    %v3744 = vadd.f32 %v643, %v3743
    %v3745 = vpop.f32.mrf.mxu0
    %3746 = vdwg.mxu0
    %3747 = vmatpush.bf16.msra.mxu0 %v2315
    %3748 = vmatpush.bf16.msra.mxu0 %v2307
    %3749 = vmatpush.bf16.msra.mxu0 %v2299
    %3750 = vmatpush.bf16.msra.mxu0 %v2291
    %3751 = vmatpush.bf16.msra.mxu0 %v2283
    %3752 = vmatpush.bf16.msra.mxu0 %v2275
    %3753 = vmatpush.bf16.msra.mxu0 %v2267
    %3754 = vmatpush.bf16.msra.mxu0 %v2259
    %3755 = vmatmul.bf16.gmra.mxu0 %v117
    %v3756 = vpop.f32.mrf.mxu0
    %v3757 = vadd.f32 %v3744, %v3756
    %v3758 = vpop.f32.mrf.mxu0
    %3759 = vdwg.mxu0
    %3760 = vmatpush.bf16.msra.mxu0 %v2379
    %3761 = vmatpush.bf16.msra.mxu0 %v2371
    %3762 = vmatpush.bf16.msra.mxu0 %v2363
    %3763 = vmatpush.bf16.msra.mxu0 %v2355
    %3764 = vmatpush.bf16.msra.mxu0 %v2347
    %3765 = vmatpush.bf16.msra.mxu0 %v2339
    %3766 = vmatpush.bf16.msra.mxu0 %v2331
    %3767 = vmatpush.bf16.msra.mxu0 %v2323
    %3768 = vmatmul.bf16.gmra.mxu0 %v118
    %v3769 = vpop.f32.mrf.mxu0
    %v3770 = vadd.f32 %v3757, %v3769
    %v3771 = vpop.f32.mrf.mxu0
    %3772 = vdwg.mxu0
    %3773 = vmatpush.bf16.msra.mxu0 %v2443
    %3774 = vmatpush.bf16.msra.mxu0 %v2435
    %3775 = vmatpush.bf16.msra.mxu0 %v2427
    %3776 = vmatpush.bf16.msra.mxu0 %v2419
    %3777 = vmatpush.bf16.msra.mxu0 %v2411
    %3778 = vmatpush.bf16.msra.mxu0 %v2403
    %3779 = vmatpush.bf16.msra.mxu0 %v2395
    %3780 = vmatpush.bf16.msra.mxu0 %v2387
    %3781 = vmatmul.bf16.gmra.mxu0 %v119
    %v3782 = vpop.f32.mrf.mxu0
    %v3783 = vadd.f32 %v3770, %v3782
    %v3784 = vpop.f32.mrf.mxu0
    %3785 = vdwg.mxu0
    %3786 = vmatpush.bf16.msra.mxu0 %v2507
    %3787 = vmatpush.bf16.msra.mxu0 %v2499
    %3788 = vmatpush.bf16.msra.mxu0 %v2491
    %3789 = vmatpush.bf16.msra.mxu0 %v2483
    %3790 = vmatpush.bf16.msra.mxu0 %v2475
    %3791 = vmatpush.bf16.msra.mxu0 %v2467
    %3792 = vmatpush.bf16.msra.mxu0 %v2459
    %3793 = vmatpush.bf16.msra.mxu0 %v2451
    %3794 = vmatmul.bf16.gmra.mxu0 %v120
    %v3795 = vpop.f32.mrf.mxu0
    %v3796 = vadd.f32 %v3783, %v3795
    %v3797 = vpop.f32.mrf.mxu0
    %3798 = vdwg.mxu0
    %3799 = vmatpush.bf16.msra.mxu0 %v2571
    %3800 = vmatpush.bf16.msra.mxu0 %v2563
    %3801 = vmatpush.bf16.msra.mxu0 %v2555
    %3802 = vmatpush.bf16.msra.mxu0 %v2547
    %3803 = vmatpush.bf16.msra.mxu0 %v2539
    %3804 = vmatpush.bf16.msra.mxu0 %v2531
    %3805 = vmatpush.bf16.msra.mxu0 %v2523
    %3806 = vmatpush.bf16.msra.mxu0 %v2515
    %3807 = vmatmul.bf16.gmra.mxu0 %v121
    %v3808 = vpop.f32.mrf.mxu0
    %v3809 = vadd.f32 %v3796, %v3808
    %v3810 = vpop.f32.mrf.mxu0
    %3811 = vdwg.mxu0
    %3812 = vmatpush.bf16.msra.mxu0 %v2635
    %3813 = vmatpush.bf16.msra.mxu0 %v2627
    %3814 = vmatpush.bf16.msra.mxu0 %v2619
    %3815 = vmatpush.bf16.msra.mxu0 %v2611
    %3816 = vmatpush.bf16.msra.mxu0 %v2603
    %3817 = vmatpush.bf16.msra.mxu0 %v2595
    %3818 = vmatpush.bf16.msra.mxu0 %v2587
    %3819 = vmatpush.bf16.msra.mxu0 %v2579
    %3820 = vmatmul.bf16.gmra.mxu0 %v122
    %v3821 = vpop.f32.mrf.mxu0
    %v3822 = vadd.f32 %v3809, %v3821
    %v3823 = vpop.f32.mrf.mxu0
    %3824 = vdwg.mxu0
    %3825 = vmatpush.bf16.msra.mxu0 %v2699
    %3826 = vmatpush.bf16.msra.mxu0 %v2691
    %3827 = vmatpush.bf16.msra.mxu0 %v2683
    %3828 = vmatpush.bf16.msra.mxu0 %v2675
    %3829 = vmatpush.bf16.msra.mxu0 %v2667
    %3830 = vmatpush.bf16.msra.mxu0 %v2659
    %3831 = vmatpush.bf16.msra.mxu0 %v2651
    %3832 = vmatpush.bf16.msra.mxu0 %v2643
    %3833 = vmatmul.bf16.gmra.mxu0 %v123
    %v3834 = vpop.f32.mrf.mxu0
    %v3835 = vadd.f32 %v3822, %v3834
    %v3836 = vpop.f32.mrf.mxu0
    %3837 = vdwg.mxu0
    %3838 = vmatpush.bf16.msra.mxu0 %v2252
    %3839 = vmatpush.bf16.msra.mxu0 %v2244
    %3840 = vmatpush.bf16.msra.mxu0 %v2236
    %3841 = vmatpush.bf16.msra.mxu0 %v2228
    %3842 = vmatpush.bf16.msra.mxu0 %v2220
    %3843 = vmatpush.bf16.msra.mxu0 %v2212
    %3844 = vmatpush.bf16.msra.mxu0 %v2204
    %3845 = vmatpush.bf16.msra.mxu0 %v2196
    %3846 = vmatmul.bf16.gmra.mxu0 %v116
    %v3847 = vpop.f32.mrf.mxu0
    %v3848 = vadd.f32 %v644, %v3847
    %v3849 = vpop.f32.mrf.mxu0
    %3850 = vdwg.mxu0
    %3851 = vmatpush.bf16.msra.mxu0 %v2316
    %3852 = vmatpush.bf16.msra.mxu0 %v2308
    %3853 = vmatpush.bf16.msra.mxu0 %v2300
    %3854 = vmatpush.bf16.msra.mxu0 %v2292
    %3855 = vmatpush.bf16.msra.mxu0 %v2284
    %3856 = vmatpush.bf16.msra.mxu0 %v2276
    %3857 = vmatpush.bf16.msra.mxu0 %v2268
    %3858 = vmatpush.bf16.msra.mxu0 %v2260
    %3859 = vmatmul.bf16.gmra.mxu0 %v117
    %v3860 = vpop.f32.mrf.mxu0
    %v3861 = vadd.f32 %v3848, %v3860
    %v3862 = vpop.f32.mrf.mxu0
    %3863 = vdwg.mxu0
    %3864 = vmatpush.bf16.msra.mxu0 %v2380
    %3865 = vmatpush.bf16.msra.mxu0 %v2372
    %3866 = vmatpush.bf16.msra.mxu0 %v2364
    %3867 = vmatpush.bf16.msra.mxu0 %v2356
    %3868 = vmatpush.bf16.msra.mxu0 %v2348
    %3869 = vmatpush.bf16.msra.mxu0 %v2340
    %3870 = vmatpush.bf16.msra.mxu0 %v2332
    %3871 = vmatpush.bf16.msra.mxu0 %v2324
    %3872 = vmatmul.bf16.gmra.mxu0 %v118
    %v3873 = vpop.f32.mrf.mxu0
    %v3874 = vadd.f32 %v3861, %v3873
    %v3875 = vpop.f32.mrf.mxu0
    %3876 = vdwg.mxu0
    %3877 = vmatpush.bf16.msra.mxu0 %v2444
    %3878 = vmatpush.bf16.msra.mxu0 %v2436
    %3879 = vmatpush.bf16.msra.mxu0 %v2428
    %3880 = vmatpush.bf16.msra.mxu0 %v2420
    %3881 = vmatpush.bf16.msra.mxu0 %v2412
    %3882 = vmatpush.bf16.msra.mxu0 %v2404
    %3883 = vmatpush.bf16.msra.mxu0 %v2396
    %3884 = vmatpush.bf16.msra.mxu0 %v2388
    %3885 = vmatmul.bf16.gmra.mxu0 %v119
    %v3886 = vpop.f32.mrf.mxu0
    %v3887 = vadd.f32 %v3874, %v3886
    %v3888 = vpop.f32.mrf.mxu0
    %3889 = vdwg.mxu0
    %3890 = vmatpush.bf16.msra.mxu0 %v2508
    %3891 = vmatpush.bf16.msra.mxu0 %v2500
    %3892 = vmatpush.bf16.msra.mxu0 %v2492
    %3893 = vmatpush.bf16.msra.mxu0 %v2484
    %3894 = vmatpush.bf16.msra.mxu0 %v2476
    %3895 = vmatpush.bf16.msra.mxu0 %v2468
    %3896 = vmatpush.bf16.msra.mxu0 %v2460
    %3897 = vmatpush.bf16.msra.mxu0 %v2452
    %3898 = vmatmul.bf16.gmra.mxu0 %v120
    %v3899 = vpop.f32.mrf.mxu0
    %v3900 = vadd.f32 %v3887, %v3899
    %v3901 = vpop.f32.mrf.mxu0
    %3902 = vdwg.mxu0
    %3903 = vmatpush.bf16.msra.mxu0 %v2572
    %3904 = vmatpush.bf16.msra.mxu0 %v2564
    %3905 = vmatpush.bf16.msra.mxu0 %v2556
    %3906 = vmatpush.bf16.msra.mxu0 %v2548
    %3907 = vmatpush.bf16.msra.mxu0 %v2540
    %3908 = vmatpush.bf16.msra.mxu0 %v2532
    %3909 = vmatpush.bf16.msra.mxu0 %v2524
    %3910 = vmatpush.bf16.msra.mxu0 %v2516
    %3911 = vmatmul.bf16.gmra.mxu0 %v121
    %v3912 = vpop.f32.mrf.mxu0
    %v3913 = vadd.f32 %v3900, %v3912
    %v3914 = vpop.f32.mrf.mxu0
    %3915 = vdwg.mxu0
    %3916 = vmatpush.bf16.msra.mxu0 %v2636
    %3917 = vmatpush.bf16.msra.mxu0 %v2628
    %3918 = vmatpush.bf16.msra.mxu0 %v2620
    %3919 = vmatpush.bf16.msra.mxu0 %v2612
    %3920 = vmatpush.bf16.msra.mxu0 %v2604
    %3921 = vmatpush.bf16.msra.mxu0 %v2596
    %3922 = vmatpush.bf16.msra.mxu0 %v2588
    %3923 = vmatpush.bf16.msra.mxu0 %v2580
    %3924 = vmatmul.bf16.gmra.mxu0 %v122
    %v3925 = vpop.f32.mrf.mxu0
    %v3926 = vadd.f32 %v3913, %v3925
    %v3927 = vpop.f32.mrf.mxu0
    %3928 = vdwg.mxu0
    %3929 = vmatpush.bf16.msra.mxu0 %v2700
    %3930 = vmatpush.bf16.msra.mxu0 %v2692
    %3931 = vmatpush.bf16.msra.mxu0 %v2684
    %3932 = vmatpush.bf16.msra.mxu0 %v2676
    %3933 = vmatpush.bf16.msra.mxu0 %v2668
    %3934 = vmatpush.bf16.msra.mxu0 %v2660
    %3935 = vmatpush.bf16.msra.mxu0 %v2652
    %3936 = vmatpush.bf16.msra.mxu0 %v2644
    %3937 = vmatmul.bf16.gmra.mxu0 %v123
    %v3938 = vpop.f32.mrf.mxu0
    %v3939 = vadd.f32 %v3926, %v3938
    %v3940 = vpop.f32.mrf.mxu0
    %3941 = vdwg.mxu0
    %3942 = vmatpush.bf16.msra.mxu0 %v2253
    %3943 = vmatpush.bf16.msra.mxu0 %v2245
    %3944 = vmatpush.bf16.msra.mxu0 %v2237
    %3945 = vmatpush.bf16.msra.mxu0 %v2229
    %3946 = vmatpush.bf16.msra.mxu0 %v2221
    %3947 = vmatpush.bf16.msra.mxu0 %v2213
    %3948 = vmatpush.bf16.msra.mxu0 %v2205
    %3949 = vmatpush.bf16.msra.mxu0 %v2197
    %3950 = vmatmul.bf16.gmra.mxu0 %v116
    %v3951 = vpop.f32.mrf.mxu0
    %v3952 = vadd.f32 %v645, %v3951
    %v3953 = vpop.f32.mrf.mxu0
    %3954 = vdwg.mxu0
    %3955 = vmatpush.bf16.msra.mxu0 %v2317
    %3956 = vmatpush.bf16.msra.mxu0 %v2309
    %3957 = vmatpush.bf16.msra.mxu0 %v2301
    %3958 = vmatpush.bf16.msra.mxu0 %v2293
    %3959 = vmatpush.bf16.msra.mxu0 %v2285
    %3960 = vmatpush.bf16.msra.mxu0 %v2277
    %3961 = vmatpush.bf16.msra.mxu0 %v2269
    %3962 = vmatpush.bf16.msra.mxu0 %v2261
    %3963 = vmatmul.bf16.gmra.mxu0 %v117
    %v3964 = vpop.f32.mrf.mxu0
    %v3965 = vadd.f32 %v3952, %v3964
    %v3966 = vpop.f32.mrf.mxu0
    %3967 = vdwg.mxu0
    %3968 = vmatpush.bf16.msra.mxu0 %v2381
    %3969 = vmatpush.bf16.msra.mxu0 %v2373
    %3970 = vmatpush.bf16.msra.mxu0 %v2365
    %3971 = vmatpush.bf16.msra.mxu0 %v2357
    %3972 = vmatpush.bf16.msra.mxu0 %v2349
    %3973 = vmatpush.bf16.msra.mxu0 %v2341
    %3974 = vmatpush.bf16.msra.mxu0 %v2333
    %3975 = vmatpush.bf16.msra.mxu0 %v2325
    %3976 = vmatmul.bf16.gmra.mxu0 %v118
    %v3977 = vpop.f32.mrf.mxu0
    %v3978 = vadd.f32 %v3965, %v3977
    %v3979 = vpop.f32.mrf.mxu0
    %3980 = vdwg.mxu0
    %3981 = vmatpush.bf16.msra.mxu0 %v2445
    %3982 = vmatpush.bf16.msra.mxu0 %v2437
    %3983 = vmatpush.bf16.msra.mxu0 %v2429
    %3984 = vmatpush.bf16.msra.mxu0 %v2421
    %3985 = vmatpush.bf16.msra.mxu0 %v2413
    %3986 = vmatpush.bf16.msra.mxu0 %v2405
    %3987 = vmatpush.bf16.msra.mxu0 %v2397
    %3988 = vmatpush.bf16.msra.mxu0 %v2389
    %3989 = vmatmul.bf16.gmra.mxu0 %v119
    %v3990 = vpop.f32.mrf.mxu0
    %v3991 = vadd.f32 %v3978, %v3990
    %v3992 = vpop.f32.mrf.mxu0
    %3993 = vdwg.mxu0
    %3994 = vmatpush.bf16.msra.mxu0 %v2509
    %3995 = vmatpush.bf16.msra.mxu0 %v2501
    %3996 = vmatpush.bf16.msra.mxu0 %v2493
    %3997 = vmatpush.bf16.msra.mxu0 %v2485
    %3998 = vmatpush.bf16.msra.mxu0 %v2477
    %3999 = vmatpush.bf16.msra.mxu0 %v2469
    %4000 = vmatpush.bf16.msra.mxu0 %v2461
    %4001 = vmatpush.bf16.msra.mxu0 %v2453
    %4002 = vmatmul.bf16.gmra.mxu0 %v120
    %v4003 = vpop.f32.mrf.mxu0
    %v4004 = vadd.f32 %v3991, %v4003
    %v4005 = vpop.f32.mrf.mxu0
    %4006 = vdwg.mxu0
    %4007 = vmatpush.bf16.msra.mxu0 %v2573
    %4008 = vmatpush.bf16.msra.mxu0 %v2565
    %4009 = vmatpush.bf16.msra.mxu0 %v2557
    %4010 = vmatpush.bf16.msra.mxu0 %v2549
    %4011 = vmatpush.bf16.msra.mxu0 %v2541
    %4012 = vmatpush.bf16.msra.mxu0 %v2533
    %4013 = vmatpush.bf16.msra.mxu0 %v2525
    %4014 = vmatpush.bf16.msra.mxu0 %v2517
    %4015 = vmatmul.bf16.gmra.mxu0 %v121
    %v4016 = vpop.f32.mrf.mxu0
    %v4017 = vadd.f32 %v4004, %v4016
    %v4018 = vpop.f32.mrf.mxu0
    %4019 = vdwg.mxu0
    %4020 = vmatpush.bf16.msra.mxu0 %v2637
    %4021 = vmatpush.bf16.msra.mxu0 %v2629
    %4022 = vmatpush.bf16.msra.mxu0 %v2621
    %4023 = vmatpush.bf16.msra.mxu0 %v2613
    %4024 = vmatpush.bf16.msra.mxu0 %v2605
    %4025 = vmatpush.bf16.msra.mxu0 %v2597
    %4026 = vmatpush.bf16.msra.mxu0 %v2589
    %4027 = vmatpush.bf16.msra.mxu0 %v2581
    %4028 = vmatmul.bf16.gmra.mxu0 %v122
    %v4029 = vpop.f32.mrf.mxu0
    %v4030 = vadd.f32 %v4017, %v4029
    %v4031 = vpop.f32.mrf.mxu0
    %4032 = vdwg.mxu0
    %4033 = vmatpush.bf16.msra.mxu0 %v2701
    %4034 = vmatpush.bf16.msra.mxu0 %v2693
    %4035 = vmatpush.bf16.msra.mxu0 %v2685
    %4036 = vmatpush.bf16.msra.mxu0 %v2677
    %4037 = vmatpush.bf16.msra.mxu0 %v2669
    %4038 = vmatpush.bf16.msra.mxu0 %v2661
    %4039 = vmatpush.bf16.msra.mxu0 %v2653
    %4040 = vmatpush.bf16.msra.mxu0 %v2645
    %4041 = vmatmul.bf16.gmra.mxu0 %v123
    %v4042 = vpop.f32.mrf.mxu0
    %v4043 = vadd.f32 %v4030, %v4042
    %v4044 = vpop.f32.mrf.mxu0
    %4045 = vdwg.mxu0
    %v4046 = vmax.f32 %v3315, 0.0
    %v4047 = vmax.f32 %v3419, 0.0
    %v4048 = vmax.f32 %v3523, 0.0
    %v4049 = vmax.f32 %v3627, 0.0
    %v4050 = vmax.f32 %v3731, 0.0
    %v4051 = vmax.f32 %v3835, 0.0
    %v4052 = vmax.f32 %v3939, 0.0
    %v4053 = vmax.f32 %v4043, 0.0
    %v4054 = vpack.c.bf16 %v4046, %v4046
    %v4055 = vpack.c.bf16 %v4047, %v4047
    %v4056 = vpack.c.bf16 %v4048, %v4048
    %v4057 = vpack.c.bf16 %v4049, %v4049
    %v4058 = vpack.c.bf16 %v4050, %v4050
    %v4059 = vpack.c.bf16 %v4051, %v4051
    %v4060 = vpack.c.bf16 %v4052, %v4052
    %v4061 = vpack.c.bf16 %v4053, %v4053
    %v4062 = vld [vmem:[#allocation8] sm:$0xf]
    %v4063 = vld [vmem:[#allocation8 + $0x4] sm:$0xf]
    %v4064 = vld [vmem:[#allocation8 + $0x8] sm:$0xf]
    %v4065 = vld [vmem:[#allocation8 + $0xc] sm:$0xf]
    %v4066 = vld [vmem:[#allocation8 + $0x10] sm:$0xf]
    %v4067 = vld [vmem:[#allocation8 + $0x14] sm:$0xf]
    %v4068 = vld [vmem:[#allocation8 + $0x18] sm:$0xf]
    %v4069 = vld [vmem:[#allocation8 + $0x1c] sm:$0xf]
    %v4070 = vld [vmem:[#allocation8 + $0x20] sm:$0xf]
    %v4071 = vld [vmem:[#allocation8 + $0x24] sm:$0xf]
    %v4072 = vld [vmem:[#allocation8 + $0x28] sm:$0xf]
    %v4073 = vld [vmem:[#allocation8 + $0x2c] sm:$0xf]
    %v4074 = vld [vmem:[#allocation8 + $0x30] sm:$0xf]
    %v4075 = vld [vmem:[#allocation8 + $0x34] sm:$0xf]
    %v4076 = vld [vmem:[#allocation8 + $0x38] sm:$0xf]
    %v4077 = vld [vmem:[#allocation8 + $0x3c] sm:$0xf]
    %v4078 = vld [vmem:[#allocation8 + $0x40] sm:$0xf]
    %v4079 = vld [vmem:[#allocation8 + $0x44] sm:$0xf]
    %v4080 = vld [vmem:[#allocation8 + $0x48] sm:$0xf]
    %v4081 = vld [vmem:[#allocation8 + $0x4c] sm:$0xf]
    %v4082 = vld [vmem:[#allocation8 + $0x50] sm:$0xf]
    %v4083 = vld [vmem:[#allocation8 + $0x54] sm:$0xf]
    %v4084 = vld [vmem:[#allocation8 + $0x58] sm:$0xf]
    %v4085 = vld [vmem:[#allocation8 + $0x5c] sm:$0xf]
    %v4086 = vld [vmem:[#allocation8 + $0x60] sm:$0xf]
    %v4087 = vld [vmem:[#allocation8 + $0x64] sm:$0xf]
    %v4088 = vld [vmem:[#allocation8 + $0x68] sm:$0xf]
    %v4089 = vld [vmem:[#allocation8 + $0x6c] sm:$0xf]
    %v4090 = vld [vmem:[#allocation8 + $0x70] sm:$0xf]
    %v4091 = vld [vmem:[#allocation8 + $0x74] sm:$0xf]
    %v4092 = vld [vmem:[#allocation8 + $0x78] sm:$0xf]
    %v4093 = vld [vmem:[#allocation8 + $0x7c] sm:$0xf]
    %v4094 = vld [vmem:[#allocation8 + $0x80] sm:$0xf]
    %v4095 = vld [vmem:[#allocation8 + $0x84] sm:$0xf]
    %v4096 = vld [vmem:[#allocation8 + $0x88] sm:$0xf]
    %v4097 = vld [vmem:[#allocation8 + $0x8c] sm:$0xf]
    %v4098 = vld [vmem:[#allocation8 + $0x90] sm:$0xf]
    %v4099 = vld [vmem:[#allocation8 + $0x94] sm:$0xf]
    %v4100 = vld [vmem:[#allocation8 + $0x98] sm:$0xf]
    %v4101 = vld [vmem:[#allocation8 + $0x9c] sm:$0xf]
    %v4102 = vld [vmem:[#allocation8 + $0xa0] sm:$0xf]
    %v4103 = vld [vmem:[#allocation8 + $0xa4] sm:$0xf]
    %v4104 = vld [vmem:[#allocation8 + $0xa8] sm:$0xf]
    %v4105 = vld [vmem:[#allocation8 + $0xac] sm:$0xf]
    %v4106 = vld [vmem:[#allocation8 + $0xb0] sm:$0xf]
    %v4107 = vld [vmem:[#allocation8 + $0xb4] sm:$0xf]
    %v4108 = vld [vmem:[#allocation8 + $0xb8] sm:$0xf]
    %v4109 = vld [vmem:[#allocation8 + $0xbc] sm:$0xf]
    %v4110 = vld [vmem:[#allocation8 + $0xc0] sm:$0xf]
    %v4111 = vld [vmem:[#allocation8 + $0xc4] sm:$0xf]
    %v4112 = vld [vmem:[#allocation8 + $0xc8] sm:$0xf]
    %v4113 = vld [vmem:[#allocation8 + $0xcc] sm:$0xf]
    %v4114 = vld [vmem:[#allocation8 + $0xd0] sm:$0xf]
    %v4115 = vld [vmem:[#allocation8 + $0xd4] sm:$0xf]
    %v4116 = vld [vmem:[#allocation8 + $0xd8] sm:$0xf]
    %v4117 = vld [vmem:[#allocation8 + $0xdc] sm:$0xf]
    %v4118 = vld [vmem:[#allocation8 + $0xe0] sm:$0xf]
    %v4119 = vld [vmem:[#allocation8 + $0xe4] sm:$0xf]
    %v4120 = vld [vmem:[#allocation8 + $0xe8] sm:$0xf]
    %v4121 = vld [vmem:[#allocation8 + $0xec] sm:$0xf]
    %v4122 = vld [vmem:[#allocation8 + $0xf0] sm:$0xf]
    %v4123 = vld [vmem:[#allocation8 + $0xf4] sm:$0xf]
    %v4124 = vld [vmem:[#allocation8 + $0xf8] sm:$0xf]
    %v4125 = vld [vmem:[#allocation8 + $0xfc] sm:$0xf]
    %v4126 = vld [vmem:[#allocation8 + $0x100] sm:$0xf]
    %v4127 = vld [vmem:[#allocation8 + $0x104] sm:$0xf]
    %v4128 = vld [vmem:[#allocation8 + $0x108] sm:$0xf]
    %v4129 = vld [vmem:[#allocation8 + $0x10c] sm:$0xf]
    %v4130 = vld [vmem:[#allocation8 + $0x110] sm:$0xf]
    %v4131 = vld [vmem:[#allocation8 + $0x114] sm:$0xf]
    %v4132 = vld [vmem:[#allocation8 + $0x118] sm:$0xf]
    %v4133 = vld [vmem:[#allocation8 + $0x11c] sm:$0xf]
    %v4134 = vld [vmem:[#allocation8 + $0x120] sm:$0xf]
    %v4135 = vld [vmem:[#allocation8 + $0x124] sm:$0xf]
    %v4136 = vld [vmem:[#allocation8 + $0x128] sm:$0xf]
    %v4137 = vld [vmem:[#allocation8 + $0x12c] sm:$0xf]
    %v4138 = vld [vmem:[#allocation8 + $0x130] sm:$0xf]
    %v4139 = vld [vmem:[#allocation8 + $0x134] sm:$0xf]
    %v4140 = vld [vmem:[#allocation8 + $0x138] sm:$0xf]
    %v4141 = vld [vmem:[#allocation8 + $0x13c] sm:$0xf]
    %v4142 = vld [vmem:[#allocation8 + $0x140] sm:$0xf]
    %v4143 = vld [vmem:[#allocation8 + $0x144] sm:$0xf]
    %v4144 = vld [vmem:[#allocation8 + $0x148] sm:$0xf]
    %v4145 = vld [vmem:[#allocation8 + $0x14c] sm:$0xf]
    %v4146 = vld [vmem:[#allocation8 + $0x150] sm:$0xf]
    %v4147 = vld [vmem:[#allocation8 + $0x154] sm:$0xf]
    %v4148 = vld [vmem:[#allocation8 + $0x158] sm:$0xf]
    %v4149 = vld [vmem:[#allocation8 + $0x15c] sm:$0xf]
    %v4150 = vld [vmem:[#allocation8 + $0x160] sm:$0xf]
    %v4151 = vld [vmem:[#allocation8 + $0x164] sm:$0xf]
    %v4152 = vld [vmem:[#allocation8 + $0x168] sm:$0xf]
    %v4153 = vld [vmem:[#allocation8 + $0x16c] sm:$0xf]
    %v4154 = vld [vmem:[#allocation8 + $0x170] sm:$0xf]
    %v4155 = vld [vmem:[#allocation8 + $0x174] sm:$0xf]
    %v4156 = vld [vmem:[#allocation8 + $0x178] sm:$0xf]
    %v4157 = vld [vmem:[#allocation8 + $0x17c] sm:$0xf]
    %v4158 = vld [vmem:[#allocation8 + $0x180] sm:$0xf]
    %v4159 = vld [vmem:[#allocation8 + $0x184] sm:$0xf]
    %v4160 = vld [vmem:[#allocation8 + $0x188] sm:$0xf]
    %v4161 = vld [vmem:[#allocation8 + $0x18c] sm:$0xf]
    %v4162 = vld [vmem:[#allocation8 + $0x190] sm:$0xf]
    %v4163 = vld [vmem:[#allocation8 + $0x194] sm:$0xf]
    %v4164 = vld [vmem:[#allocation8 + $0x198] sm:$0xf]
    %v4165 = vld [vmem:[#allocation8 + $0x19c] sm:$0xf]
    %v4166 = vld [vmem:[#allocation8 + $0x1a0] sm:$0xf]
    %v4167 = vld [vmem:[#allocation8 + $0x1a4] sm:$0xf]
    %v4168 = vld [vmem:[#allocation8 + $0x1a8] sm:$0xf]
    %v4169 = vld [vmem:[#allocation8 + $0x1ac] sm:$0xf]
    %v4170 = vld [vmem:[#allocation8 + $0x1b0] sm:$0xf]
    %v4171 = vld [vmem:[#allocation8 + $0x1b4] sm:$0xf]
    %v4172 = vld [vmem:[#allocation8 + $0x1b8] sm:$0xf]
    %v4173 = vld [vmem:[#allocation8 + $0x1bc] sm:$0xf]
    %v4174 = vld [vmem:[#allocation8 + $0x1c0] sm:$0xf]
    %v4175 = vld [vmem:[#allocation8 + $0x1c4] sm:$0xf]
    %v4176 = vld [vmem:[#allocation8 + $0x1c8] sm:$0xf]
    %v4177 = vld [vmem:[#allocation8 + $0x1cc] sm:$0xf]
    %v4178 = vld [vmem:[#allocation8 + $0x1d0] sm:$0xf]
    %v4179 = vld [vmem:[#allocation8 + $0x1d4] sm:$0xf]
    %v4180 = vld [vmem:[#allocation8 + $0x1d8] sm:$0xf]
    %v4181 = vld [vmem:[#allocation8 + $0x1dc] sm:$0xf]
    %v4182 = vld [vmem:[#allocation8 + $0x1e0] sm:$0xf]
    %v4183 = vld [vmem:[#allocation8 + $0x1e4] sm:$0xf]
    %v4184 = vld [vmem:[#allocation8 + $0x1e8] sm:$0xf]
    %v4185 = vld [vmem:[#allocation8 + $0x1ec] sm:$0xf]
    %v4186 = vld [vmem:[#allocation8 + $0x1f0] sm:$0xf]
    %v4187 = vld [vmem:[#allocation8 + $0x1f4] sm:$0xf]
    %v4188 = vld [vmem:[#allocation8 + $0x1f8] sm:$0xf]
    %v4189 = vld [vmem:[#allocation8 + $0x1fc] sm:$0xf]
    %v4190 = vld [vmem:[#allocation10] sm:$0x1]
    %v4192 = vperm.slane %v4190, 0
    %v4322 = vunpack.c.l.b16 %v4062
    %v4323 = vunpack.c.l.b16 %v4063
    %v4324 = vunpack.c.l.b16 %v4064
    %v4325 = vunpack.c.l.b16 %v4065
    %v4326 = vunpack.c.l.b16 %v4066
    %v4327 = vunpack.c.l.b16 %v4067
    %v4328 = vunpack.c.l.b16 %v4068
    %v4329 = vunpack.c.l.b16 %v4069
    %v4330 = vunpack.c.l.b16 %v4070
    %v4331 = vunpack.c.l.b16 %v4071
    %v4332 = vunpack.c.l.b16 %v4072
    %v4333 = vunpack.c.l.b16 %v4073
    %v4334 = vunpack.c.l.b16 %v4074
    %v4335 = vunpack.c.l.b16 %v4075
    %v4336 = vunpack.c.l.b16 %v4076
    %v4337 = vunpack.c.l.b16 %v4077
    %v4338 = vunpack.c.l.b16 %v4078
    %v4339 = vunpack.c.l.b16 %v4079
    %v4340 = vunpack.c.l.b16 %v4080
    %v4341 = vunpack.c.l.b16 %v4081
    %v4342 = vunpack.c.l.b16 %v4082
    %v4343 = vunpack.c.l.b16 %v4083
    %v4344 = vunpack.c.l.b16 %v4084
    %v4345 = vunpack.c.l.b16 %v4085
    %v4346 = vunpack.c.l.b16 %v4086
    %v4347 = vunpack.c.l.b16 %v4087
    %v4348 = vunpack.c.l.b16 %v4088
    %v4349 = vunpack.c.l.b16 %v4089
    %v4350 = vunpack.c.l.b16 %v4090
    %v4351 = vunpack.c.l.b16 %v4091
    %v4352 = vunpack.c.l.b16 %v4092
    %v4353 = vunpack.c.l.b16 %v4093
    %v4354 = vunpack.c.l.b16 %v4094
    %v4355 = vunpack.c.l.b16 %v4095
    %v4356 = vunpack.c.l.b16 %v4096
    %v4357 = vunpack.c.l.b16 %v4097
    %v4358 = vunpack.c.l.b16 %v4098
    %v4359 = vunpack.c.l.b16 %v4099
    %v4360 = vunpack.c.l.b16 %v4100
    %v4361 = vunpack.c.l.b16 %v4101
    %v4362 = vunpack.c.l.b16 %v4102
    %v4363 = vunpack.c.l.b16 %v4103
    %v4364 = vunpack.c.l.b16 %v4104
    %v4365 = vunpack.c.l.b16 %v4105
    %v4366 = vunpack.c.l.b16 %v4106
    %v4367 = vunpack.c.l.b16 %v4107
    %v4368 = vunpack.c.l.b16 %v4108
    %v4369 = vunpack.c.l.b16 %v4109
    %v4370 = vunpack.c.l.b16 %v4110
    %v4371 = vunpack.c.l.b16 %v4111
    %v4372 = vunpack.c.l.b16 %v4112
    %v4373 = vunpack.c.l.b16 %v4113
    %v4374 = vunpack.c.l.b16 %v4114
    %v4375 = vunpack.c.l.b16 %v4115
    %v4376 = vunpack.c.l.b16 %v4116
    %v4377 = vunpack.c.l.b16 %v4117
    %v4378 = vunpack.c.l.b16 %v4118
    %v4379 = vunpack.c.l.b16 %v4119
    %v4380 = vunpack.c.l.b16 %v4120
    %v4381 = vunpack.c.l.b16 %v4121
    %v4382 = vunpack.c.l.b16 %v4122
    %v4383 = vunpack.c.l.b16 %v4123
    %v4384 = vunpack.c.l.b16 %v4124
    %v4385 = vunpack.c.l.b16 %v4125
    %v4386 = vunpack.c.l.b16 %v4126
    %v4387 = vunpack.c.l.b16 %v4127
    %v4388 = vunpack.c.l.b16 %v4128
    %v4389 = vunpack.c.l.b16 %v4129
    %v4390 = vunpack.c.l.b16 %v4130
    %v4391 = vunpack.c.l.b16 %v4131
    %v4392 = vunpack.c.l.b16 %v4132
    %v4393 = vunpack.c.l.b16 %v4133
    %v4394 = vunpack.c.l.b16 %v4134
    %v4395 = vunpack.c.l.b16 %v4135
    %v4396 = vunpack.c.l.b16 %v4136
    %v4397 = vunpack.c.l.b16 %v4137
    %v4398 = vunpack.c.l.b16 %v4138
    %v4399 = vunpack.c.l.b16 %v4139
    %v4400 = vunpack.c.l.b16 %v4140
    %v4401 = vunpack.c.l.b16 %v4141
    %v4402 = vunpack.c.l.b16 %v4142
    %v4403 = vunpack.c.l.b16 %v4143
    %v4404 = vunpack.c.l.b16 %v4144
    %v4405 = vunpack.c.l.b16 %v4145
    %v4406 = vunpack.c.l.b16 %v4146
    %v4407 = vunpack.c.l.b16 %v4147
    %v4408 = vunpack.c.l.b16 %v4148
    %v4409 = vunpack.c.l.b16 %v4149
    %v4410 = vunpack.c.l.b16 %v4150
    %v4411 = vunpack.c.l.b16 %v4151
    %v4412 = vunpack.c.l.b16 %v4152
    %v4413 = vunpack.c.l.b16 %v4153
    %v4414 = vunpack.c.l.b16 %v4154
    %v4415 = vunpack.c.l.b16 %v4155
    %v4416 = vunpack.c.l.b16 %v4156
    %v4417 = vunpack.c.l.b16 %v4157
    %v4418 = vunpack.c.l.b16 %v4158
    %v4419 = vunpack.c.l.b16 %v4159
    %v4420 = vunpack.c.l.b16 %v4160
    %v4421 = vunpack.c.l.b16 %v4161
    %v4422 = vunpack.c.l.b16 %v4162
    %v4423 = vunpack.c.l.b16 %v4163
    %v4424 = vunpack.c.l.b16 %v4164
    %v4425 = vunpack.c.l.b16 %v4165
    %v4426 = vunpack.c.l.b16 %v4166
    %v4427 = vunpack.c.l.b16 %v4167
    %v4428 = vunpack.c.l.b16 %v4168
    %v4429 = vunpack.c.l.b16 %v4169
    %v4430 = vunpack.c.l.b16 %v4170
    %v4431 = vunpack.c.l.b16 %v4171
    %v4432 = vunpack.c.l.b16 %v4172
    %v4433 = vunpack.c.l.b16 %v4173
    %v4434 = vunpack.c.l.b16 %v4174
    %v4435 = vunpack.c.l.b16 %v4175
    %v4436 = vunpack.c.l.b16 %v4176
    %v4437 = vunpack.c.l.b16 %v4177
    %v4438 = vunpack.c.l.b16 %v4178
    %v4439 = vunpack.c.l.b16 %v4179
    %v4440 = vunpack.c.l.b16 %v4180
    %v4441 = vunpack.c.l.b16 %v4181
    %v4442 = vunpack.c.l.b16 %v4182
    %v4443 = vunpack.c.l.b16 %v4183
    %v4444 = vunpack.c.l.b16 %v4184
    %v4445 = vunpack.c.l.b16 %v4185
    %v4446 = vunpack.c.l.b16 %v4186
    %v4447 = vunpack.c.l.b16 %v4187
    %v4448 = vunpack.c.l.b16 %v4188
    %v4449 = vunpack.c.l.b16 %v4189
    %v4450 = vpack.c.b16 %v4323, %v4322
    %v4451 = vpack.c.b16 %v4325, %v4324
    %v4452 = vpack.c.b16 %v4327, %v4326
    %v4453 = vpack.c.b16 %v4329, %v4328
    %v4454 = vpack.c.b16 %v4331, %v4330
    %v4455 = vpack.c.b16 %v4333, %v4332
    %v4456 = vpack.c.b16 %v4335, %v4334
    %v4457 = vpack.c.b16 %v4337, %v4336
    %v4458 = vpack.c.b16 %v4339, %v4338
    %v4459 = vpack.c.b16 %v4341, %v4340
    %v4460 = vpack.c.b16 %v4343, %v4342
    %v4461 = vpack.c.b16 %v4345, %v4344
    %v4462 = vpack.c.b16 %v4347, %v4346
    %v4463 = vpack.c.b16 %v4349, %v4348
    %v4464 = vpack.c.b16 %v4351, %v4350
    %v4465 = vpack.c.b16 %v4353, %v4352
    %v4466 = vpack.c.b16 %v4355, %v4354
    %v4467 = vpack.c.b16 %v4357, %v4356
    %v4468 = vpack.c.b16 %v4359, %v4358
    %v4469 = vpack.c.b16 %v4361, %v4360
    %v4470 = vpack.c.b16 %v4363, %v4362
    %v4471 = vpack.c.b16 %v4365, %v4364
    %v4472 = vpack.c.b16 %v4367, %v4366
    %v4473 = vpack.c.b16 %v4369, %v4368
    %v4474 = vpack.c.b16 %v4371, %v4370
    %v4475 = vpack.c.b16 %v4373, %v4372
    %v4476 = vpack.c.b16 %v4375, %v4374
    %v4477 = vpack.c.b16 %v4377, %v4376
    %v4478 = vpack.c.b16 %v4379, %v4378
    %v4479 = vpack.c.b16 %v4381, %v4380
    %v4480 = vpack.c.b16 %v4383, %v4382
    %v4481 = vpack.c.b16 %v4385, %v4384
    %v4482 = vpack.c.b16 %v4387, %v4386
    %v4483 = vpack.c.b16 %v4389, %v4388
    %v4484 = vpack.c.b16 %v4391, %v4390
    %v4485 = vpack.c.b16 %v4393, %v4392
    %v4486 = vpack.c.b16 %v4395, %v4394
    %v4487 = vpack.c.b16 %v4397, %v4396
    %v4488 = vpack.c.b16 %v4399, %v4398
    %v4489 = vpack.c.b16 %v4401, %v4400
    %v4490 = vpack.c.b16 %v4403, %v4402
    %v4491 = vpack.c.b16 %v4405, %v4404
    %v4492 = vpack.c.b16 %v4407, %v4406
    %v4493 = vpack.c.b16 %v4409, %v4408
    %v4494 = vpack.c.b16 %v4411, %v4410
    %v4495 = vpack.c.b16 %v4413, %v4412
    %v4496 = vpack.c.b16 %v4415, %v4414
    %v4497 = vpack.c.b16 %v4417, %v4416
    %v4498 = vpack.c.b16 %v4419, %v4418
    %v4499 = vpack.c.b16 %v4421, %v4420
    %v4500 = vpack.c.b16 %v4423, %v4422
    %v4501 = vpack.c.b16 %v4425, %v4424
    %v4502 = vpack.c.b16 %v4427, %v4426
    %v4503 = vpack.c.b16 %v4429, %v4428
    %v4504 = vpack.c.b16 %v4431, %v4430
    %v4505 = vpack.c.b16 %v4433, %v4432
    %v4506 = vpack.c.b16 %v4435, %v4434
    %v4507 = vpack.c.b16 %v4437, %v4436
    %v4508 = vpack.c.b16 %v4439, %v4438
    %v4509 = vpack.c.b16 %v4441, %v4440
    %v4510 = vpack.c.b16 %v4443, %v4442
    %v4511 = vpack.c.b16 %v4445, %v4444
    %v4512 = vpack.c.b16 %v4447, %v4446
    %v4513 = vpack.c.b16 %v4449, %v4448
    %4578 = vmatpush.bf16.msra.mxu0 %v4457
    %4579 = vmatpush.bf16.msra.mxu0 %v4456
    %4580 = vmatpush.bf16.msra.mxu0 %v4455
    %4581 = vmatpush.bf16.msra.mxu0 %v4454
    %4582 = vmatpush.bf16.msra.mxu0 %v4453
    %4583 = vmatpush.bf16.msra.mxu0 %v4452
    %4584 = vmatpush.bf16.msra.mxu0 %v4451
    %4585 = vmatpush.bf16.msra.mxu0 %v4450
    %4586 = vmatmul.bf16.gmra.mxu0 %v4054
    %v4587 = vpop.f32.mrf.mxu0
    %v4588 = vadd.f32 %v4192, %v4587
    %v4589 = vpop.f32.mrf.mxu0
    %4590 = vdwg.mxu0
    %4591 = vmatpush.bf16.msra.mxu0 %v4465
    %4592 = vmatpush.bf16.msra.mxu0 %v4464
    %4593 = vmatpush.bf16.msra.mxu0 %v4463
    %4594 = vmatpush.bf16.msra.mxu0 %v4462
    %4595 = vmatpush.bf16.msra.mxu0 %v4461
    %4596 = vmatpush.bf16.msra.mxu0 %v4460
    %4597 = vmatpush.bf16.msra.mxu0 %v4459
    %4598 = vmatpush.bf16.msra.mxu0 %v4458
    %4599 = vmatmul.bf16.gmra.mxu0 %v4055
    %v4600 = vpop.f32.mrf.mxu0
    %v4601 = vadd.f32 %v4588, %v4600
    %v4602 = vpop.f32.mrf.mxu0
    %4603 = vdwg.mxu0
    %4604 = vmatpush.bf16.msra.mxu0 %v4473
    %4605 = vmatpush.bf16.msra.mxu0 %v4472
    %4606 = vmatpush.bf16.msra.mxu0 %v4471
    %4607 = vmatpush.bf16.msra.mxu0 %v4470
    %4608 = vmatpush.bf16.msra.mxu0 %v4469
    %4609 = vmatpush.bf16.msra.mxu0 %v4468
    %4610 = vmatpush.bf16.msra.mxu0 %v4467
    %4611 = vmatpush.bf16.msra.mxu0 %v4466
    %4612 = vmatmul.bf16.gmra.mxu0 %v4056
    %v4613 = vpop.f32.mrf.mxu0
    %v4614 = vadd.f32 %v4601, %v4613
    %v4615 = vpop.f32.mrf.mxu0
    %4616 = vdwg.mxu0
    %4617 = vmatpush.bf16.msra.mxu0 %v4481
    %4618 = vmatpush.bf16.msra.mxu0 %v4480
    %4619 = vmatpush.bf16.msra.mxu0 %v4479
    %4620 = vmatpush.bf16.msra.mxu0 %v4478
    %4621 = vmatpush.bf16.msra.mxu0 %v4477
    %4622 = vmatpush.bf16.msra.mxu0 %v4476
    %4623 = vmatpush.bf16.msra.mxu0 %v4475
    %4624 = vmatpush.bf16.msra.mxu0 %v4474
    %4625 = vmatmul.bf16.gmra.mxu0 %v4057
    %v4626 = vpop.f32.mrf.mxu0
    %v4627 = vadd.f32 %v4614, %v4626
    %v4628 = vpop.f32.mrf.mxu0
    %4629 = vdwg.mxu0
    %4630 = vmatpush.bf16.msra.mxu0 %v4489
    %4631 = vmatpush.bf16.msra.mxu0 %v4488
    %4632 = vmatpush.bf16.msra.mxu0 %v4487
    %4633 = vmatpush.bf16.msra.mxu0 %v4486
    %4634 = vmatpush.bf16.msra.mxu0 %v4485
    %4635 = vmatpush.bf16.msra.mxu0 %v4484
    %4636 = vmatpush.bf16.msra.mxu0 %v4483
    %4637 = vmatpush.bf16.msra.mxu0 %v4482
    %4638 = vmatmul.bf16.gmra.mxu0 %v4058
    %v4639 = vpop.f32.mrf.mxu0
    %v4640 = vadd.f32 %v4627, %v4639
    %v4641 = vpop.f32.mrf.mxu0
    %4642 = vdwg.mxu0
    %4643 = vmatpush.bf16.msra.mxu0 %v4497
    %4644 = vmatpush.bf16.msra.mxu0 %v4496
    %4645 = vmatpush.bf16.msra.mxu0 %v4495
    %4646 = vmatpush.bf16.msra.mxu0 %v4494
    %4647 = vmatpush.bf16.msra.mxu0 %v4493
    %4648 = vmatpush.bf16.msra.mxu0 %v4492
    %4649 = vmatpush.bf16.msra.mxu0 %v4491
    %4650 = vmatpush.bf16.msra.mxu0 %v4490
    %4651 = vmatmul.bf16.gmra.mxu0 %v4059
    %v4652 = vpop.f32.mrf.mxu0
    %v4653 = vadd.f32 %v4640, %v4652
    %v4654 = vpop.f32.mrf.mxu0
    %4655 = vdwg.mxu0
    %4656 = vmatpush.bf16.msra.mxu0 %v4505
    %4657 = vmatpush.bf16.msra.mxu0 %v4504
    %4658 = vmatpush.bf16.msra.mxu0 %v4503
    %4659 = vmatpush.bf16.msra.mxu0 %v4502
    %4660 = vmatpush.bf16.msra.mxu0 %v4501
    %4661 = vmatpush.bf16.msra.mxu0 %v4500
    %4662 = vmatpush.bf16.msra.mxu0 %v4499
    %4663 = vmatpush.bf16.msra.mxu0 %v4498
    %4664 = vmatmul.bf16.gmra.mxu0 %v4060
    %v4665 = vpop.f32.mrf.mxu0
    %v4666 = vadd.f32 %v4653, %v4665
    %v4667 = vpop.f32.mrf.mxu0
    %4668 = vdwg.mxu0
    %4669 = vmatpush.bf16.msra.mxu0 %v4513
    %4670 = vmatpush.bf16.msra.mxu0 %v4512
    %4671 = vmatpush.bf16.msra.mxu0 %v4511
    %4672 = vmatpush.bf16.msra.mxu0 %v4510
    %4673 = vmatpush.bf16.msra.mxu0 %v4509
    %4674 = vmatpush.bf16.msra.mxu0 %v4508
    %4675 = vmatpush.bf16.msra.mxu0 %v4507
    %4676 = vmatpush.bf16.msra.mxu0 %v4506
    %4677 = vmatmul.bf16.gmra.mxu0 %v4061
    %v4678 = vpop.f32.mrf.mxu0
    %v4679 = vadd.f32 %v4666, %v4678
    %v4680 = vpop.f32.mrf.mxu0
    %4681 = vdwg.mxu0
    %4682 = vst [vmem:[#allocation11] sm:$0x3] %v4679
    // Predicated region
    $region42: #{tpu_custom_call.1} parent=1 // pred_check
      _
    $region43: #{tpu_custom_call.1} parent=1 // pred_check_branch
      %4684 = sbr.rel (0) target = $region45
    $region44: #{tpu_custom_call.1} parent=1 // pred_region
      %4686 = vsyncadd [#allocation4], 0
      %s4688 = sshll.u32 [#allocation11], 4
      %s4689 = int_to_ptr.vmem [resolvable:$true] %s4688
      %s4690 = sshll.u32 %s5, 4
      %s4691 = int_to_ptr.hbm [resolvable:$true] %s4690
      %4693 = dma.vmem_to_hbm [thread:$0]  %s4689, 32, %s4691, [#allocation4]
    $region45: #{tpu_custom_call.1} parent=1 // pred_fallthru
      _
    // Predicated region
    $region46: #{tpu_custom_call.1} parent=1 // pred_check
      _
    $region47: #{tpu_custom_call.1} parent=1 // pred_check_branch
      %4695 = sbr.rel (0) target = $region49
    $region48: #{tpu_custom_call.1} parent=1 // pred_region
      %4697 = dma.done [#allocation4], 32
    $region49: #{tpu_custom_call.1} parent=1 // pred_fallthru
      _
    %4698 = vsyncpa [#allocation3], 1
    %4699 = vsyncpa [#allocation6], 1
    %4700 = vsyncpa [#allocation9], 1
    %4701 = vsyncpa [#allocation4], 1

</llo_original>
